<compile_context>
chip_gen: v7x
topology: tpu7x:2x2x1
jax: 0.10.0
libtpu: 0.0.40
codegen_flags: <defaults>
</compile_context>

<pallas_src>
import math
from functools import partial

import jax
import jax.numpy as jnp
import numpy as np
from jax.experimental import pallas as pl
from jax.experimental.pallas import tpu as pltpu


# --------------------------- fused decoder kernel ----------------------------

def _decoder_kernel(emb_ref, enc_ref, pe_ref, mask_ref,
                    wq_ref, wk_ref, wv_ref, wo_ref, bo_ref, ng_ref, nb_ref,
                    twq_ref, twk_ref, twv_ref, two_ref, tbo_ref,
                    tn1g_ref, tn1b_ref, tn2g_ref, tn2b_ref,
                    w1_ref, b1_ref, w2_ref, b2_ref,
                    o_ref, *, heads, num_blocks, embed_scale):
    # One grid step == one batch element. Everything below stays in VMEM/vregs.
    x = emb_ref[0] * embed_scale + pe_ref[...]          # (S, E) pos-encoded input
    enc = enc_ref[0]                                    # (S, E) encoder output
    masked = mask_ref[...] == 0.0                       # (S, S) hoisted mask compare

    E = x.shape[-1]
    d = E // heads
    scale = 1.0 / math.sqrt(d)

    def layernorm(v, g, b):                             # LayerNorm over E, eps=1e-5
        mu = jnp.mean(v, axis=-1, keepdims=True)
        var = jnp.mean(jnp.square(v - mu), axis=-1, keepdims=True)
        return (v - mu) * jax.lax.rsqrt(var + 1e-5) * g + b

    def mha(xk, xq, xv, wq_t, wk_t, wv_t, wo_t, bo, use_mask):
        # Block-diagonal, pre-transposed per-head weights: ONE lane-dense
        # (S,E)x(E,E) matmul per projection covers all heads at once.
        q = jnp.dot(xq, wq_t, preferred_element_type=jnp.float32) * scale
        k = jnp.dot(xk, wk_t, preferred_element_type=jnp.float32)
        v = jnp.dot(xv, wv_t, preferred_element_type=jnp.float32)

        out = jnp.zeros((xq.shape[0], E), jnp.float32)
        contract_last = (((1,), (1,)), ((), ()))        # q @ k^T without .T
        for h in range(heads):                          # static unroll, no launches
            sl = slice(h * d, (h + 1) * d)
            s = jax.lax.dot_general(q[:, sl], k[:, sl], contract_last,
                                    preferred_element_type=jnp.float32)   # (Sq,Sk)
            if use_mask:
                s = jnp.where(masked, -1e20, s)         # masked_fill
            m = jnp.max(s, axis=-1, keepdims=True)
            e = jnp.exp(s - m)
            p = e * pl.reciprocal(jnp.sum(e, axis=-1, keepdims=True), approx=True)
            oh = jnp.dot(p, v[:, sl], preferred_element_type=jnp.float32)  # (Sq,d)
            # fold "concat heads" + fc_out: out += oh @ Wo^T[rows of head h]
            out = out + jnp.dot(oh, wo_t[sl, :], preferred_element_type=jnp.float32)
        return out + bo                                 # (Sq, E), lane-dense

    for bi in range(num_blocks):
        # DecoderBlock: decoder_attention = attention(x, x, x, mask) with x=enc
        attn = mha(enc, enc, enc,
                   wq_ref[bi], wk_ref[bi], wv_ref[bi], wo_ref[bi], bo_ref[bi],
                   True)
        value = layernorm(attn + enc, ng_ref[bi], nb_ref[bi])      # dropout = id
        # TransformerBlock: attention(key=enc, query=x, value=value), no mask
        attn2 = mha(enc, x, value,
                    twq_ref[bi], twk_ref[bi], twv_ref[bi], two_ref[bi], tbo_ref[bi],
                    False)
        h1 = layernorm(attn2 + value, tn1g_ref[bi], tn1b_ref[bi])
        hid = jnp.maximum(
            jnp.dot(h1, w1_ref[bi], preferred_element_type=jnp.float32) + b1_ref[bi],
            0.0)                                                   # Linear+ReLU
        ff = jnp.dot(hid, w2_ref[bi], preferred_element_type=jnp.float32) + b2_ref[bi]
        x = layernorm(ff + h1, tn2g_ref[bi], tn2b_ref[bi])

    o_ref[0] = x


# --------------------------- wrapper ------------------------------------------

def decoder_forward(tokens, enc_out, mask, params, heads):
    # Embedding gather is glue (data-dependent, no rectangular BlockSpec).
    E = params["embedding"].shape[1]
    B, S = tokens.shape
    emb = params["embedding"][tokens]                   # (B, S, E)
    pe = params["pos_enc"][:S]                          # (S, E)
    weights = params["packed"]                          # 20 stacked/pre-T'd tensors
    NB = weights[0].shape[0]

    seq_spec = pl.BlockSpec((1, S, E), lambda b: (b, 0, 0))
    w_specs = [pl.BlockSpec(w.shape, lambda b: (0, 0, 0)) for w in weights]

    kernel = partial(_decoder_kernel, heads=heads, num_blocks=NB,
                     embed_scale=math.sqrt(E))
    return pl.pallas_call(
        kernel,
        grid=(B,),
        in_specs=[seq_spec, seq_spec,
                  pl.BlockSpec((S, E), lambda b: (0, 0)),
                  pl.BlockSpec((S, S), lambda b: (0, 0))] + w_specs,
        out_specs=seq_spec,
        out_shape=jax.ShapeDtypeStruct((B, S, E), jnp.float32),
        compiler_params=pltpu.CompilerParams(
            dimension_semantics=("parallel",)),        # v7x: batch across 2 TCs
    )(emb, enc_out, pe, mask, *weights)


# --------------------------- parameter init / packing -------------------------

def pack_params(params, heads):
    """Host-side: pre-transpose + block-diagonalize weights, stack over blocks."""
    E = params["blocks"][0]["norm_g"].shape[0]
    d = E // heads

    def bd_t(w):                                        # (d,d) per-head W -> block-diag(E,E) of W^T
        wt = w.T
        m = jnp.zeros((E, E), jnp.float32)
        for h in range(heads):
            m = m.at[h * d:(h + 1) * d, h * d:(h + 1) * d].set(wt)
        return m

    def row(v):
        return v.reshape(1, -1)

    def stack(fn):
        return jnp.stack([fn(bp) for bp in params["blocks"]])

    return [
        stack(lambda bp: bd_t(bp["attn"]["wq"])),       # wq
        stack(lambda bp: bd_t(bp["attn"]["wk"])),       # wk
        stack(lambda bp: bd_t(bp["attn"]["wv"])),       # wv
        stack(lambda bp: bp["attn"]["wo"].T),           # wo (W^T)
        stack(lambda bp: row(bp["attn"]["bo"])),        # bo
        stack(lambda bp: row(bp["norm_g"])),            # ng
        stack(lambda bp: row(bp["norm_b"])),            # nb
        stack(lambda bp: bd_t(bp["tb_attn"]["wq"])),    # twq
        stack(lambda bp: bd_t(bp["tb_attn"]["wk"])),    # twk
        stack(lambda bp: bd_t(bp["tb_attn"]["wv"])),    # twv
        stack(lambda bp: bp["tb_attn"]["wo"].T),        # two
        stack(lambda bp: row(bp["tb_attn"]["bo"])),     # tbo
        stack(lambda bp: row(bp["tb_norm1_g"])),        # tn1g
        stack(lambda bp: row(bp["tb_norm1_b"])),        # tn1b
        stack(lambda bp: row(bp["tb_norm2_g"])),        # tn2g
        stack(lambda bp: row(bp["tb_norm2_b"])),        # tn2b
        stack(lambda bp: bp["ff"]["w1"].T),             # w1 (E, 4E)
        stack(lambda bp: row(bp["ff"]["b1"])),          # b1
        stack(lambda bp: bp["ff"]["w2"].T),             # w2 (4E, E)
        stack(lambda bp: row(bp["ff"]["b2"])),          # b2
    ]


def init_params(key, vocab, seq_len, E, heads, num_blocks, expansion):
    d = E // heads
    hid = expansion * E
    keys = jax.random.split(key, 1 + num_blocks)

    def dense(k, out_dim, in_dim):
        return jax.random.normal(k, (out_dim, in_dim), jnp.float32) / math.sqrt(in_dim)

    params = {"embedding": 0.02 * jax.random.normal(keys[0], (vocab, E), jnp.float32)}

    # sinusoidal positional encoding table (seq_len, E)
    pe = np.zeros((seq_len, E), np.float32)
    position = np.arange(seq_len, dtype=np.float32)[:, None]
    div = np.exp(np.arange(0, E, 2, dtype=np.float32) * (-math.log(10000.0) / E))
    pe[:, 0::2] = np.sin(position * div)
    pe[:, 1::2] = np.cos(position * div)
    params["pos_enc"] = jnp.asarray(pe)

    blocks = []
    for bi in range(num_blocks):
        bk = jax.random.split(keys[1 + bi], 10)

        def mha_params(ks):
            return {"wq": dense(ks[0], d, d), "wk": dense(ks[1], d, d),
                    "wv": dense(ks[2], d, d), "wo": dense(ks[3], E, E),
                    "bo": jnp.zeros((E,), jnp.float32)}

        blocks.append({
            "attn": mha_params(bk[0:4]),
            "norm_g": jnp.ones((E,), jnp.float32),
            "norm_b": jnp.zeros((E,), jnp.float32),
            "tb_attn": mha_params(bk[4:8]),
            "tb_norm1_g": jnp.ones((E,), jnp.float32),
            "tb_norm1_b": jnp.zeros((E,), jnp.float32),
            "tb_norm2_g": jnp.ones((E,), jnp.float32),
            "tb_norm2_b": jnp.zeros((E,), jnp.float32),
            "ff": {"w1": dense(bk[8], hid, E), "b1": jnp.zeros((hid,), jnp.float32),
                   "w2": dense(bk[9], E, hid), "b2": jnp.zeros((E,), jnp.float32)},
        })
    params["blocks"] = blocks
    params["packed"] = pack_params(params, heads)
    return params


# --------------------------- main ---------------------------------------------

if __name__ == "__main__":
    B, S, E, H, NUM_BLOCKS, EXP, VOCAB = 2, 8, 32, 4, 2, 4, 50

    key = jax.random.PRNGKey(0)
    pkey, tkey, ekey = jax.random.split(key, 3)

    params = init_params(pkey, VOCAB, S, E, H, NUM_BLOCKS, EXP)
    tokens = jax.random.randint(tkey, (B, S), 0, VOCAB)           # target tokens
    encoder_output = jax.random.normal(ekey, (B, S, E), jnp.float32)
    mask = jnp.tril(jnp.ones((S, S), jnp.float32))                # causal target mask

    fwd = jax.jit(lambda t, e, m: decoder_forward(t, e, m, params, H))
    out = fwd(tokens, encoder_output, mask)
    out = jax.block_until_ready(out)
    assert out.shape == (B, S, E) and out.dtype == jnp.float32
    assert bool(jnp.all(jnp.isfinite(out)))
    print("KERNEL_OK")
</pallas_src>

<mosaic_0001>
module attributes {stable_mosaic.version = 11 : i64} {
  func.func @_decoder_kernel(%arg0: i32, %arg1: memref<1x8x32xf32, #tpu.memory_space<vmem>>, %arg2: memref<1x8x32xf32, #tpu.memory_space<vmem>>, %arg3: memref<8x32xf32, #tpu.memory_space<vmem>>, %arg4: memref<8x8xf32, #tpu.memory_space<vmem>>, %arg5: memref<2x32x32xf32, #tpu.memory_space<vmem>>, %arg6: memref<2x32x32xf32, #tpu.memory_space<vmem>>, %arg7: memref<2x32x32xf32, #tpu.memory_space<vmem>>, %arg8: memref<2x32x32xf32, #tpu.memory_space<vmem>>, %arg9: memref<2x1x32xf32, #tpu.memory_space<vmem>>, %arg10: memref<2x1x32xf32, #tpu.memory_space<vmem>>, %arg11: memref<2x1x32xf32, #tpu.memory_space<vmem>>, %arg12: memref<2x32x32xf32, #tpu.memory_space<vmem>>, %arg13: memref<2x32x32xf32, #tpu.memory_space<vmem>>, %arg14: memref<2x32x32xf32, #tpu.memory_space<vmem>>, %arg15: memref<2x32x32xf32, #tpu.memory_space<vmem>>, %arg16: memref<2x1x32xf32, #tpu.memory_space<vmem>>, %arg17: memref<2x1x32xf32, #tpu.memory_space<vmem>>, %arg18: memref<2x1x32xf32, #tpu.memory_space<vmem>>, %arg19: memref<2x1x32xf32, #tpu.memory_space<vmem>>, %arg20: memref<2x1x32xf32, #tpu.memory_space<vmem>>, %arg21: memref<2x32x128xf32, #tpu.memory_space<vmem>>, %arg22: memref<2x1x128xf32, #tpu.memory_space<vmem>>, %arg23: memref<2x128x32xf32, #tpu.memory_space<vmem>>, %arg24: memref<2x1x32xf32, #tpu.memory_space<vmem>>, %arg25: memref<1x8x32xf32, #tpu.memory_space<vmem>>) attributes {dimension_semantics = [#tpu.dimension_semantics<parallel>], iteration_bounds = array<i64: 2>, scalar_prefetch = 0 : i64, scratch_operands = 0 : i64, tpu.core_type = #tpu.core_type<tc>, window_params = [{transform_indices = @transform_0, window_bounds = array<i64: 1, 8, 32>}, {transform_indices = @transform_1, window_bounds = array<i64: 1, 8, 32>}, {pipeline_mode = #tpu.pipeline_mode<synchronous>, transform_indices = @transform_2, window_bounds = array<i64: 8, 32>}, {pipeline_mode = #tpu.pipeline_mode<synchronous>, transform_indices = @transform_3, window_bounds = array<i64: 8, 8>}, {pipeline_mode = #tpu.pipeline_mode<synchronous>, transform_indices = @transform_4, window_bounds = array<i64: 2, 32, 32>}, {pipeline_mode = #tpu.pipeline_mode<synchronous>, transform_indices = @transform_5, window_bounds = array<i64: 2, 32, 32>}, {pipeline_mode = #tpu.pipeline_mode<synchronous>, transform_indices = @transform_6, window_bounds = array<i64: 2, 32, 32>}, {pipeline_mode = #tpu.pipeline_mode<synchronous>, transform_indices = @transform_7, window_bounds = array<i64: 2, 32, 32>}, {pipeline_mode = #tpu.pipeline_mode<synchronous>, transform_indices = @transform_8, window_bounds = array<i64: 2, 1, 32>}, {pipeline_mode = #tpu.pipeline_mode<synchronous>, transform_indices = @transform_9, window_bounds = array<i64: 2, 1, 32>}, {pipeline_mode = #tpu.pipeline_mode<synchronous>, transform_indices = @transform_10, window_bounds = array<i64: 2, 1, 32>}, {pipeline_mode = #tpu.pipeline_mode<synchronous>, transform_indices = @transform_11, window_bounds = array<i64: 2, 32, 32>}, {pipeline_mode = #tpu.pipeline_mode<synchronous>, transform_indices = @transform_12, window_bounds = array<i64: 2, 32, 32>}, {pipeline_mode = #tpu.pipeline_mode<synchronous>, transform_indices = @transform_13, window_bounds = array<i64: 2, 32, 32>}, {pipeline_mode = #tpu.pipeline_mode<synchronous>, transform_indices = @transform_14, window_bounds = array<i64: 2, 32, 32>}, {pipeline_mode = #tpu.pipeline_mode<synchronous>, transform_indices = @transform_15, window_bounds = array<i64: 2, 1, 32>}, {pipeline_mode = #tpu.pipeline_mode<synchronous>, transform_indices = @transform_16, window_bounds = array<i64: 2, 1, 32>}, {pipeline_mode = #tpu.pipeline_mode<synchronous>, transform_indices = @transform_17, window_bounds = array<i64: 2, 1, 32>}, {pipeline_mode = #tpu.pipeline_mode<synchronous>, transform_indices = @transform_18, window_bounds = array<i64: 2, 1, 32>}, {pipeline_mode = #tpu.pipeline_mode<synchronous>, transform_indices = @transform_19, window_bounds = array<i64: 2, 1, 32>}, {pipeline_mode = #tpu.pipeline_mode<synchronous>, transform_indices = @transform_20, window_bounds = array<i64: 2, 32, 128>}, {pipeline_mode = #tpu.pipeline_mode<synchronous>, transform_indices = @transform_21, window_bounds = array<i64: 2, 1, 128>}, {pipeline_mode = #tpu.pipeline_mode<synchronous>, transform_indices = @transform_22, window_bounds = array<i64: 2, 128, 32>}, {pipeline_mode = #tpu.pipeline_mode<synchronous>, transform_indices = @transform_23, window_bounds = array<i64: 2, 1, 32>}, {transform_indices = @transform_24, window_bounds = array<i64: 1, 8, 32>}]} {
    %c0 = arith.constant 0 : index
    %c0_0 = arith.constant 0 : index
    %c0_1 = arith.constant 0 : index
    %0 = vector.load %arg1[%c0, %c0_0, %c0_1] : memref<1x8x32xf32, #tpu.memory_space<vmem>>, vector<1x8x32xf32>
    %1 = vector.shape_cast %0 : vector<1x8x32xf32> to vector<8x32xf32>
    %cst = arith.constant 5.65685415 : f32
    %2 = vector.broadcast %cst : f32 to vector<8x32xf32>
    %3 = arith.mulf %1, %2 : vector<8x32xf32>
    %c0_2 = arith.constant 0 : index
    %c0_3 = arith.constant 0 : index
    %4 = vector.load %arg3[%c0_2, %c0_3] : memref<8x32xf32, #tpu.memory_space<vmem>>, vector<8x32xf32>
    %5 = arith.addf %3, %4 : vector<8x32xf32>
    %c0_4 = arith.constant 0 : index
    %c0_5 = arith.constant 0 : index
    %c0_6 = arith.constant 0 : index
    %6 = vector.load %arg2[%c0_4, %c0_5, %c0_6] : memref<1x8x32xf32, #tpu.memory_space<vmem>>, vector<1x8x32xf32>
    %7 = vector.shape_cast %6 : vector<1x8x32xf32> to vector<8x32xf32>
    %c0_7 = arith.constant 0 : index
    %c0_8 = arith.constant 0 : index
    %8 = vector.load %arg4[%c0_7, %c0_8] : memref<8x8xf32, #tpu.memory_space<vmem>>, vector<8x8xf32>
    %cst_9 = arith.constant 0.000000e+00 : f32
    %9 = vector.broadcast %cst_9 : f32 to vector<8x8xf32>
    %10 = arith.cmpf oeq, %8, %9 : vector<8x8xf32>
    %c0_10 = arith.constant 0 : index
    %c0_11 = arith.constant 0 : index
    %c0_12 = arith.constant 0 : index
    %11 = vector.load %arg5[%c0_10, %c0_11, %c0_12] : memref<2x32x32xf32, #tpu.memory_space<vmem>>, vector<1x32x32xf32>
    %12 = vector.shape_cast %11 : vector<1x32x32xf32> to vector<32x32xf32>
    %c0_13 = arith.constant 0 : index
    %c0_14 = arith.constant 0 : index
    %c0_15 = arith.constant 0 : index
    %13 = vector.load %arg6[%c0_13, %c0_14, %c0_15] : memref<2x32x32xf32, #tpu.memory_space<vmem>>, vector<1x32x32xf32>
    %14 = vector.shape_cast %13 : vector<1x32x32xf32> to vector<32x32xf32>
    %c0_16 = arith.constant 0 : index
    %c0_17 = arith.constant 0 : index
    %c0_18 = arith.constant 0 : index
    %15 = vector.load %arg7[%c0_16, %c0_17, %c0_18] : memref<2x32x32xf32, #tpu.memory_space<vmem>>, vector<1x32x32xf32>
    %16 = vector.shape_cast %15 : vector<1x32x32xf32> to vector<32x32xf32>
    %c0_19 = arith.constant 0 : index
    %c0_20 = arith.constant 0 : index
    %c0_21 = arith.constant 0 : index
    %17 = vector.load %arg8[%c0_19, %c0_20, %c0_21] : memref<2x32x32xf32, #tpu.memory_space<vmem>>, vector<1x32x32xf32>
    %18 = vector.shape_cast %17 : vector<1x32x32xf32> to vector<32x32xf32>
    %c0_22 = arith.constant 0 : index
    %c0_23 = arith.constant 0 : index
    %c0_24 = arith.constant 0 : index
    %19 = vector.load %arg9[%c0_22, %c0_23, %c0_24] : memref<2x1x32xf32, #tpu.memory_space<vmem>>, vector<1x1x32xf32>
    %20 = vector.shape_cast %19 : vector<1x1x32xf32> to vector<1x32xf32>
    %cst_25 = arith.constant dense<0.000000e+00> : vector<8x32xf32>
    %21 = tpu.matmul %7, %12, %cst_25 {dimension_numbers = #tpu.dot_dimension_numbers<[1], [0], [0], [1], [0, 0, 1, 1], [], []>} : vector<8x32xf32>, vector<32x32xf32>, vector<8x32xf32> -> vector<8x32xf32>
    %cst_26 = arith.constant 0.353553385 : f32
    %22 = vector.broadcast %cst_26 : f32 to vector<8x32xf32>
    %23 = arith.mulf %21, %22 : vector<8x32xf32>
    %cst_27 = arith.constant dense<0.000000e+00> : vector<8x32xf32>
    %24 = tpu.matmul %7, %14, %cst_27 {dimension_numbers = #tpu.dot_dimension_numbers<[1], [0], [0], [1], [0, 0, 1, 1], [], []>} : vector<8x32xf32>, vector<32x32xf32>, vector<8x32xf32> -> vector<8x32xf32>
    %cst_28 = arith.constant dense<0.000000e+00> : vector<8x32xf32>
    %25 = tpu.matmul %7, %16, %cst_28 {dimension_numbers = #tpu.dot_dimension_numbers<[1], [0], [0], [1], [0, 0, 1, 1], [], []>} : vector<8x32xf32>, vector<32x32xf32>, vector<8x32xf32> -> vector<8x32xf32>
    %cst_29 = arith.constant 0.000000e+00 : f32
    %26 = vector.broadcast %cst_29 : f32 to vector<8x32xf32>
    %27 = vector.extract_strided_slice %23 {offsets = [0, 0], sizes = [8, 8], strides = [1, 1]} : vector<8x32xf32> to vector<8x8xf32>
    %28 = vector.extract_strided_slice %24 {offsets = [0, 0], sizes = [8, 8], strides = [1, 1]} : vector<8x32xf32> to vector<8x8xf32>
    %cst_30 = arith.constant dense<0.000000e+00> : vector<8x8xf32>
    %29 = tpu.matmul %27, %28, %cst_30 {dimension_numbers = #tpu.dot_dimension_numbers<[1], [1], [0], [0], [0, 0, 1, 0], [], []>} : vector<8x8xf32>, vector<8x8xf32>, vector<8x8xf32> -> vector<8x8xf32>
    %cst_31 = arith.constant -1.000000e+20 : f32
    %30 = vector.broadcast %cst_31 : f32 to vector<8x8xf32>
    %31 = arith.select %10, %30, %29 : vector<8x8xi1>, vector<8x8xf32>
    %cst_32 = arith.constant dense<0xFF800000> : vector<8xf32>
    %32 = vector.multi_reduction <maximumf>, %31, %cst_32 [1] : vector<8x8xf32> to vector<8xf32>
    %33 = vector.shape_cast %32 : vector<8xf32> to vector<8x1xf32>
    %34 = vector.broadcast %33 : vector<8x1xf32> to vector<8x8xf32>
    %35 = arith.subf %31, %34 : vector<8x8xf32>
    %36 = math.exp %35 : vector<8x8xf32>
    %cst_33 = arith.constant dense<0.000000e+00> : vector<8xf32>
    %37 = vector.multi_reduction <add>, %36, %cst_33 [1] : vector<8x8xf32> to vector<8xf32>
    %38 = vector.shape_cast %37 : vector<8xf32> to vector<8x1xf32>
    %39 = tpu.reciprocal %38 {approx = true} : vector<8x1xf32> -> vector<8x1xf32>
    %40 = vector.broadcast %39 : vector<8x1xf32> to vector<8x8xf32>
    %41 = arith.mulf %36, %40 : vector<8x8xf32>
    %42 = vector.extract_strided_slice %25 {offsets = [0, 0], sizes = [8, 8], strides = [1, 1]} : vector<8x32xf32> to vector<8x8xf32>
    %cst_34 = arith.constant dense<0.000000e+00> : vector<8x8xf32>
    %43 = tpu.matmul %41, %42, %cst_34 {dimension_numbers = #tpu.dot_dimension_numbers<[1], [0], [0], [1], [0, 0, 1, 1], [], []>} : vector<8x8xf32>, vector<8x8xf32>, vector<8x8xf32> -> vector<8x8xf32>
    %44 = vector.extract_strided_slice %18 {offsets = [0, 0], sizes = [8, 32], strides = [1, 1]} : vector<32x32xf32> to vector<8x32xf32>
    %cst_35 = arith.constant dense<0.000000e+00> : vector<8x32xf32>
    %45 = tpu.matmul %43, %44, %cst_35 {dimension_numbers = #tpu.dot_dimension_numbers<[1], [0], [0], [1], [0, 0, 1, 1], [], []>} : vector<8x8xf32>, vector<8x32xf32>, vector<8x32xf32> -> vector<8x32xf32>
    %46 = arith.addf %26, %45 : vector<8x32xf32>
    %47 = vector.extract_strided_slice %23 {offsets = [0, 8], sizes = [8, 8], strides = [1, 1]} : vector<8x32xf32> to vector<8x8xf32>
    %48 = vector.extract_strided_slice %24 {offsets = [0, 8], sizes = [8, 8], strides = [1, 1]} : vector<8x32xf32> to vector<8x8xf32>
    %cst_36 = arith.constant dense<0.000000e+00> : vector<8x8xf32>
    %49 = tpu.matmul %47, %48, %cst_36 {dimension_numbers = #tpu.dot_dimension_numbers<[1], [1], [0], [0], [0, 0, 1, 0], [], []>} : vector<8x8xf32>, vector<8x8xf32>, vector<8x8xf32> -> vector<8x8xf32>
    %cst_37 = arith.constant -1.000000e+20 : f32
    %50 = vector.broadcast %cst_37 : f32 to vector<8x8xf32>
    %51 = arith.select %10, %50, %49 : vector<8x8xi1>, vector<8x8xf32>
    %cst_38 = arith.constant dense<0xFF800000> : vector<8xf32>
    %52 = vector.multi_reduction <maximumf>, %51, %cst_38 [1] : vector<8x8xf32> to vector<8xf32>
    %53 = vector.shape_cast %52 : vector<8xf32> to vector<8x1xf32>
    %54 = vector.broadcast %53 : vector<8x1xf32> to vector<8x8xf32>
    %55 = arith.subf %51, %54 : vector<8x8xf32>
    %56 = math.exp %55 : vector<8x8xf32>
    %cst_39 = arith.constant dense<0.000000e+00> : vector<8xf32>
    %57 = vector.multi_reduction <add>, %56, %cst_39 [1] : vector<8x8xf32> to vector<8xf32>
    %58 = vector.shape_cast %57 : vector<8xf32> to vector<8x1xf32>
    %59 = tpu.reciprocal %58 {approx = true} : vector<8x1xf32> -> vector<8x1xf32>
    %60 = vector.broadcast %59 : vector<8x1xf32> to vector<8x8xf32>
    %61 = arith.mulf %56, %60 : vector<8x8xf32>
    %62 = vector.extract_strided_slice %25 {offsets = [0, 8], sizes = [8, 8], strides = [1, 1]} : vector<8x32xf32> to vector<8x8xf32>
    %cst_40 = arith.constant dense<0.000000e+00> : vector<8x8xf32>
    %63 = tpu.matmul %61, %62, %cst_40 {dimension_numbers = #tpu.dot_dimension_numbers<[1], [0], [0], [1], [0, 0, 1, 1], [], []>} : vector<8x8xf32>, vector<8x8xf32>, vector<8x8xf32> -> vector<8x8xf32>
    %64 = vector.extract_strided_slice %18 {offsets = [8, 0], sizes = [8, 32], strides = [1, 1]} : vector<32x32xf32> to vector<8x32xf32>
    %cst_41 = arith.constant dense<0.000000e+00> : vector<8x32xf32>
    %65 = tpu.matmul %63, %64, %cst_41 {dimension_numbers = #tpu.dot_dimension_numbers<[1], [0], [0], [1], [0, 0, 1, 1], [], []>} : vector<8x8xf32>, vector<8x32xf32>, vector<8x32xf32> -> vector<8x32xf32>
    %66 = arith.addf %46, %65 : vector<8x32xf32>
    %67 = vector.extract_strided_slice %23 {offsets = [0, 16], sizes = [8, 8], strides = [1, 1]} : vector<8x32xf32> to vector<8x8xf32>
    %68 = vector.extract_strided_slice %24 {offsets = [0, 16], sizes = [8, 8], strides = [1, 1]} : vector<8x32xf32> to vector<8x8xf32>
    %cst_42 = arith.constant dense<0.000000e+00> : vector<8x8xf32>
    %69 = tpu.matmul %67, %68, %cst_42 {dimension_numbers = #tpu.dot_dimension_numbers<[1], [1], [0], [0], [0, 0, 1, 0], [], []>} : vector<8x8xf32>, vector<8x8xf32>, vector<8x8xf32> -> vector<8x8xf32>
    %cst_43 = arith.constant -1.000000e+20 : f32
    %70 = vector.broadcast %cst_43 : f32 to vector<8x8xf32>
    %71 = arith.select %10, %70, %69 : vector<8x8xi1>, vector<8x8xf32>
    %cst_44 = arith.constant dense<0xFF800000> : vector<8xf32>
    %72 = vector.multi_reduction <maximumf>, %71, %cst_44 [1] : vector<8x8xf32> to vector<8xf32>
    %73 = vector.shape_cast %72 : vector<8xf32> to vector<8x1xf32>
    %74 = vector.broadcast %73 : vector<8x1xf32> to vector<8x8xf32>
    %75 = arith.subf %71, %74 : vector<8x8xf32>
    %76 = math.exp %75 : vector<8x8xf32>
    %cst_45 = arith.constant dense<0.000000e+00> : vector<8xf32>
    %77 = vector.multi_reduction <add>, %76, %cst_45 [1] : vector<8x8xf32> to vector<8xf32>
    %78 = vector.shape_cast %77 : vector<8xf32> to vector<8x1xf32>
    %79 = tpu.reciprocal %78 {approx = true} : vector<8x1xf32> -> vector<8x1xf32>
    %80 = vector.broadcast %79 : vector<8x1xf32> to vector<8x8xf32>
    %81 = arith.mulf %76, %80 : vector<8x8xf32>
    %82 = vector.extract_strided_slice %25 {offsets = [0, 16], sizes = [8, 8], strides = [1, 1]} : vector<8x32xf32> to vector<8x8xf32>
    %cst_46 = arith.constant dense<0.000000e+00> : vector<8x8xf32>
    %83 = tpu.matmul %81, %82, %cst_46 {dimension_numbers = #tpu.dot_dimension_numbers<[1], [0], [0], [1], [0, 0, 1, 1], [], []>} : vector<8x8xf32>, vector<8x8xf32>, vector<8x8xf32> -> vector<8x8xf32>
    %84 = vector.extract_strided_slice %18 {offsets = [16, 0], sizes = [8, 32], strides = [1, 1]} : vector<32x32xf32> to vector<8x32xf32>
    %cst_47 = arith.constant dense<0.000000e+00> : vector<8x32xf32>
    %85 = tpu.matmul %83, %84, %cst_47 {dimension_numbers = #tpu.dot_dimension_numbers<[1], [0], [0], [1], [0, 0, 1, 1], [], []>} : vector<8x8xf32>, vector<8x32xf32>, vector<8x32xf32> -> vector<8x32xf32>
    %86 = arith.addf %66, %85 : vector<8x32xf32>
    %87 = vector.extract_strided_slice %23 {offsets = [0, 24], sizes = [8, 8], strides = [1, 1]} : vector<8x32xf32> to vector<8x8xf32>
    %88 = vector.extract_strided_slice %24 {offsets = [0, 24], sizes = [8, 8], strides = [1, 1]} : vector<8x32xf32> to vector<8x8xf32>
    %cst_48 = arith.constant dense<0.000000e+00> : vector<8x8xf32>
    %89 = tpu.matmul %87, %88, %cst_48 {dimension_numbers = #tpu.dot_dimension_numbers<[1], [1], [0], [0], [0, 0, 1, 0], [], []>} : vector<8x8xf32>, vector<8x8xf32>, vector<8x8xf32> -> vector<8x8xf32>
    %cst_49 = arith.constant -1.000000e+20 : f32
    %90 = vector.broadcast %cst_49 : f32 to vector<8x8xf32>
    %91 = arith.select %10, %90, %89 : vector<8x8xi1>, vector<8x8xf32>
    %cst_50 = arith.constant dense<0xFF800000> : vector<8xf32>
    %92 = vector.multi_reduction <maximumf>, %91, %cst_50 [1] : vector<8x8xf32> to vector<8xf32>
    %93 = vector.shape_cast %92 : vector<8xf32> to vector<8x1xf32>
    %94 = vector.broadcast %93 : vector<8x1xf32> to vector<8x8xf32>
    %95 = arith.subf %91, %94 : vector<8x8xf32>
    %96 = math.exp %95 : vector<8x8xf32>
    %cst_51 = arith.constant dense<0.000000e+00> : vector<8xf32>
    %97 = vector.multi_reduction <add>, %96, %cst_51 [1] : vector<8x8xf32> to vector<8xf32>
    %98 = vector.shape_cast %97 : vector<8xf32> to vector<8x1xf32>
    %99 = tpu.reciprocal %98 {approx = true} : vector<8x1xf32> -> vector<8x1xf32>
    %100 = vector.broadcast %99 : vector<8x1xf32> to vector<8x8xf32>
    %101 = arith.mulf %96, %100 : vector<8x8xf32>
    %102 = vector.extract_strided_slice %25 {offsets = [0, 24], sizes = [8, 8], strides = [1, 1]} : vector<8x32xf32> to vector<8x8xf32>
    %cst_52 = arith.constant dense<0.000000e+00> : vector<8x8xf32>
    %103 = tpu.matmul %101, %102, %cst_52 {dimension_numbers = #tpu.dot_dimension_numbers<[1], [0], [0], [1], [0, 0, 1, 1], [], []>} : vector<8x8xf32>, vector<8x8xf32>, vector<8x8xf32> -> vector<8x8xf32>
    %104 = vector.extract_strided_slice %18 {offsets = [24, 0], sizes = [8, 32], strides = [1, 1]} : vector<32x32xf32> to vector<8x32xf32>
    %cst_53 = arith.constant dense<0.000000e+00> : vector<8x32xf32>
    %105 = tpu.matmul %103, %104, %cst_53 {dimension_numbers = #tpu.dot_dimension_numbers<[1], [0], [0], [1], [0, 0, 1, 1], [], []>} : vector<8x8xf32>, vector<8x32xf32>, vector<8x32xf32> -> vector<8x32xf32>
    %106 = arith.addf %86, %105 : vector<8x32xf32>
    %107 = vector.broadcast %20 : vector<1x32xf32> to vector<8x32xf32>
    %108 = arith.addf %106, %107 : vector<8x32xf32>
    %109 = arith.addf %108, %7 : vector<8x32xf32>
    %c0_54 = arith.constant 0 : index
    %c0_55 = arith.constant 0 : index
    %c0_56 = arith.constant 0 : index
    %110 = vector.load %arg10[%c0_54, %c0_55, %c0_56] : memref<2x1x32xf32, #tpu.memory_space<vmem>>, vector<1x1x32xf32>
    %111 = vector.shape_cast %110 : vector<1x1x32xf32> to vector<1x32xf32>
    %c0_57 = arith.constant 0 : index
    %c0_58 = arith.constant 0 : index
    %c0_59 = arith.constant 0 : index
    %112 = vector.load %arg11[%c0_57, %c0_58, %c0_59] : memref<2x1x32xf32, #tpu.memory_space<vmem>>, vector<1x1x32xf32>
    %113 = vector.shape_cast %112 : vector<1x1x32xf32> to vector<1x32xf32>
    %cst_60 = arith.constant dense<0.000000e+00> : vector<8xf32>
    %114 = vector.multi_reduction <add>, %109, %cst_60 [1] : vector<8x32xf32> to vector<8xf32>
    %115 = vector.shape_cast %114 : vector<8xf32> to vector<8x1xf32>
    %cst_61 = arith.constant 3.200000e+01 : f32
    %116 = vector.broadcast %cst_61 : f32 to vector<8x1xf32>
    %117 = arith.divf %115, %116 : vector<8x1xf32>
    %118 = vector.broadcast %117 : vector<8x1xf32> to vector<8x32xf32>
    %119 = arith.subf %109, %118 : vector<8x32xf32>
    %120 = arith.mulf %119, %119 : vector<8x32xf32>
    %cst_62 = arith.constant dense<0.000000e+00> : vector<8xf32>
    %121 = vector.multi_reduction <add>, %120, %cst_62 [1] : vector<8x32xf32> to vector<8xf32>
    %122 = vector.shape_cast %121 : vector<8xf32> to vector<8x1xf32>
    %cst_63 = arith.constant 3.200000e+01 : f32
    %123 = vector.broadcast %cst_63 : f32 to vector<8x1xf32>
    %124 = arith.divf %122, %123 : vector<8x1xf32>
    %125 = vector.broadcast %117 : vector<8x1xf32> to vector<8x32xf32>
    %126 = arith.subf %109, %125 : vector<8x32xf32>
    %cst_64 = arith.constant 9.99999974E-6 : f32
    %127 = vector.broadcast %cst_64 : f32 to vector<8x1xf32>
    %128 = arith.addf %124, %127 : vector<8x1xf32>
    %129 = math.rsqrt %128 : vector<8x1xf32>
    %130 = vector.broadcast %129 : vector<8x1xf32> to vector<8x32xf32>
    %131 = arith.mulf %126, %130 : vector<8x32xf32>
    %132 = vector.broadcast %111 : vector<1x32xf32> to vector<8x32xf32>
    %133 = arith.mulf %131, %132 : vector<8x32xf32>
    %134 = vector.broadcast %113 : vector<1x32xf32> to vector<8x32xf32>
    %135 = arith.addf %133, %134 : vector<8x32xf32>
    %c0_65 = arith.constant 0 : index
    %c0_66 = arith.constant 0 : index
    %c0_67 = arith.constant 0 : index
    %136 = vector.load %arg12[%c0_65, %c0_66, %c0_67] : memref<2x32x32xf32, #tpu.memory_space<vmem>>, vector<1x32x32xf32>
    %137 = vector.shape_cast %136 : vector<1x32x32xf32> to vector<32x32xf32>
    %c0_68 = arith.constant 0 : index
    %c0_69 = arith.constant 0 : index
    %c0_70 = arith.constant 0 : index
    %138 = vector.load %arg13[%c0_68, %c0_69, %c0_70] : memref<2x32x32xf32, #tpu.memory_space<vmem>>, vector<1x32x32xf32>
    %139 = vector.shape_cast %138 : vector<1x32x32xf32> to vector<32x32xf32>
    %c0_71 = arith.constant 0 : index
    %c0_72 = arith.constant 0 : index
    %c0_73 = arith.constant 0 : index
    %140 = vector.load %arg14[%c0_71, %c0_72, %c0_73] : memref<2x32x32xf32, #tpu.memory_space<vmem>>, vector<1x32x32xf32>
    %141 = vector.shape_cast %140 : vector<1x32x32xf32> to vector<32x32xf32>
    %c0_74 = arith.constant 0 : index
    %c0_75 = arith.constant 0 : index
    %c0_76 = arith.constant 0 : index
    %142 = vector.load %arg15[%c0_74, %c0_75, %c0_76] : memref<2x32x32xf32, #tpu.memory_space<vmem>>, vector<1x32x32xf32>
    %143 = vector.shape_cast %142 : vector<1x32x32xf32> to vector<32x32xf32>
    %c0_77 = arith.constant 0 : index
    %c0_78 = arith.constant 0 : index
    %c0_79 = arith.constant 0 : index
    %144 = vector.load %arg16[%c0_77, %c0_78, %c0_79] : memref<2x1x32xf32, #tpu.memory_space<vmem>>, vector<1x1x32xf32>
    %145 = vector.shape_cast %144 : vector<1x1x32xf32> to vector<1x32xf32>
    %cst_80 = arith.constant dense<0.000000e+00> : vector<8x32xf32>
    %146 = tpu.matmul %5, %137, %cst_80 {dimension_numbers = #tpu.dot_dimension_numbers<[1], [0], [0], [1], [0, 0, 1, 1], [], []>} : vector<8x32xf32>, vector<32x32xf32>, vector<8x32xf32> -> vector<8x32xf32>
    %cst_81 = arith.constant 0.353553385 : f32
    %147 = vector.broadcast %cst_81 : f32 to vector<8x32xf32>
    %148 = arith.mulf %146, %147 : vector<8x32xf32>
    %cst_82 = arith.constant dense<0.000000e+00> : vector<8x32xf32>
    %149 = tpu.matmul %7, %139, %cst_82 {dimension_numbers = #tpu.dot_dimension_numbers<[1], [0], [0], [1], [0, 0, 1, 1], [], []>} : vector<8x32xf32>, vector<32x32xf32>, vector<8x32xf32> -> vector<8x32xf32>
    %cst_83 = arith.constant dense<0.000000e+00> : vector<8x32xf32>
    %150 = tpu.matmul %135, %141, %cst_83 {dimension_numbers = #tpu.dot_dimension_numbers<[1], [0], [0], [1], [0, 0, 1, 1], [], []>} : vector<8x32xf32>, vector<32x32xf32>, vector<8x32xf32> -> vector<8x32xf32>
    %cst_84 = arith.constant 0.000000e+00 : f32
    %151 = vector.broadcast %cst_84 : f32 to vector<8x32xf32>
    %152 = vector.extract_strided_slice %148 {offsets = [0, 0], sizes = [8, 8], strides = [1, 1]} : vector<8x32xf32> to vector<8x8xf32>
    %153 = vector.extract_strided_slice %149 {offsets = [0, 0], sizes = [8, 8], strides = [1, 1]} : vector<8x32xf32> to vector<8x8xf32>
    %cst_85 = arith.constant dense<0.000000e+00> : vector<8x8xf32>
    %154 = tpu.matmul %152, %153, %cst_85 {dimension_numbers = #tpu.dot_dimension_numbers<[1], [1], [0], [0], [0, 0, 1, 0], [], []>} : vector<8x8xf32>, vector<8x8xf32>, vector<8x8xf32> -> vector<8x8xf32>
    %cst_86 = arith.constant dense<0xFF800000> : vector<8xf32>
    %155 = vector.multi_reduction <maximumf>, %154, %cst_86 [1] : vector<8x8xf32> to vector<8xf32>
    %156 = vector.shape_cast %155 : vector<8xf32> to vector<8x1xf32>
    %157 = vector.broadcast %156 : vector<8x1xf32> to vector<8x8xf32>
    %158 = arith.subf %154, %157 : vector<8x8xf32>
    %159 = math.exp %158 : vector<8x8xf32>
    %cst_87 = arith.constant dense<0.000000e+00> : vector<8xf32>
    %160 = vector.multi_reduction <add>, %159, %cst_87 [1] : vector<8x8xf32> to vector<8xf32>
    %161 = vector.shape_cast %160 : vector<8xf32> to vector<8x1xf32>
    %162 = tpu.reciprocal %161 {approx = true} : vector<8x1xf32> -> vector<8x1xf32>
    %163 = vector.broadcast %162 : vector<8x1xf32> to vector<8x8xf32>
    %164 = arith.mulf %159, %163 : vector<8x8xf32>
    %165 = vector.extract_strided_slice %150 {offsets = [0, 0], sizes = [8, 8], strides = [1, 1]} : vector<8x32xf32> to vector<8x8xf32>
    %cst_88 = arith.constant dense<0.000000e+00> : vector<8x8xf32>
    %166 = tpu.matmul %164, %165, %cst_88 {dimension_numbers = #tpu.dot_dimension_numbers<[1], [0], [0], [1], [0, 0, 1, 1], [], []>} : vector<8x8xf32>, vector<8x8xf32>, vector<8x8xf32> -> vector<8x8xf32>
    %167 = vector.extract_strided_slice %143 {offsets = [0, 0], sizes = [8, 32], strides = [1, 1]} : vector<32x32xf32> to vector<8x32xf32>
    %cst_89 = arith.constant dense<0.000000e+00> : vector<8x32xf32>
    %168 = tpu.matmul %166, %167, %cst_89 {dimension_numbers = #tpu.dot_dimension_numbers<[1], [0], [0], [1], [0, 0, 1, 1], [], []>} : vector<8x8xf32>, vector<8x32xf32>, vector<8x32xf32> -> vector<8x32xf32>
    %169 = arith.addf %151, %168 : vector<8x32xf32>
    %170 = vector.extract_strided_slice %148 {offsets = [0, 8], sizes = [8, 8], strides = [1, 1]} : vector<8x32xf32> to vector<8x8xf32>
    %171 = vector.extract_strided_slice %149 {offsets = [0, 8], sizes = [8, 8], strides = [1, 1]} : vector<8x32xf32> to vector<8x8xf32>
    %cst_90 = arith.constant dense<0.000000e+00> : vector<8x8xf32>
    %172 = tpu.matmul %170, %171, %cst_90 {dimension_numbers = #tpu.dot_dimension_numbers<[1], [1], [0], [0], [0, 0, 1, 0], [], []>} : vector<8x8xf32>, vector<8x8xf32>, vector<8x8xf32> -> vector<8x8xf32>
    %cst_91 = arith.constant dense<0xFF800000> : vector<8xf32>
    %173 = vector.multi_reduction <maximumf>, %172, %cst_91 [1] : vector<8x8xf32> to vector<8xf32>
    %174 = vector.shape_cast %173 : vector<8xf32> to vector<8x1xf32>
    %175 = vector.broadcast %174 : vector<8x1xf32> to vector<8x8xf32>
    %176 = arith.subf %172, %175 : vector<8x8xf32>
    %177 = math.exp %176 : vector<8x8xf32>
    %cst_92 = arith.constant dense<0.000000e+00> : vector<8xf32>
    %178 = vector.multi_reduction <add>, %177, %cst_92 [1] : vector<8x8xf32> to vector<8xf32>
    %179 = vector.shape_cast %178 : vector<8xf32> to vector<8x1xf32>
    %180 = tpu.reciprocal %179 {approx = true} : vector<8x1xf32> -> vector<8x1xf32>
    %181 = vector.broadcast %180 : vector<8x1xf32> to vector<8x8xf32>
    %182 = arith.mulf %177, %181 : vector<8x8xf32>
    %183 = vector.extract_strided_slice %150 {offsets = [0, 8], sizes = [8, 8], strides = [1, 1]} : vector<8x32xf32> to vector<8x8xf32>
    %cst_93 = arith.constant dense<0.000000e+00> : vector<8x8xf32>
    %184 = tpu.matmul %182, %183, %cst_93 {dimension_numbers = #tpu.dot_dimension_numbers<[1], [0], [0], [1], [0, 0, 1, 1], [], []>} : vector<8x8xf32>, vector<8x8xf32>, vector<8x8xf32> -> vector<8x8xf32>
    %185 = vector.extract_strided_slice %143 {offsets = [8, 0], sizes = [8, 32], strides = [1, 1]} : vector<32x32xf32> to vector<8x32xf32>
    %cst_94 = arith.constant dense<0.000000e+00> : vector<8x32xf32>
    %186 = tpu.matmul %184, %185, %cst_94 {dimension_numbers = #tpu.dot_dimension_numbers<[1], [0], [0], [1], [0, 0, 1, 1], [], []>} : vector<8x8xf32>, vector<8x32xf32>, vector<8x32xf32> -> vector<8x32xf32>
    %187 = arith.addf %169, %186 : vector<8x32xf32>
    %188 = vector.extract_strided_slice %148 {offsets = [0, 16], sizes = [8, 8], strides = [1, 1]} : vector<8x32xf32> to vector<8x8xf32>
    %189 = vector.extract_strided_slice %149 {offsets = [0, 16], sizes = [8, 8], strides = [1, 1]} : vector<8x32xf32> to vector<8x8xf32>
    %cst_95 = arith.constant dense<0.000000e+00> : vector<8x8xf32>
    %190 = tpu.matmul %188, %189, %cst_95 {dimension_numbers = #tpu.dot_dimension_numbers<[1], [1], [0], [0], [0, 0, 1, 0], [], []>} : vector<8x8xf32>, vector<8x8xf32>, vector<8x8xf32> -> vector<8x8xf32>
    %cst_96 = arith.constant dense<0xFF800000> : vector<8xf32>
    %191 = vector.multi_reduction <maximumf>, %190, %cst_96 [1] : vector<8x8xf32> to vector<8xf32>
    %192 = vector.shape_cast %191 : vector<8xf32> to vector<8x1xf32>
    %193 = vector.broadcast %192 : vector<8x1xf32> to vector<8x8xf32>
    %194 = arith.subf %190, %193 : vector<8x8xf32>
    %195 = math.exp %194 : vector<8x8xf32>
    %cst_97 = arith.constant dense<0.000000e+00> : vector<8xf32>
    %196 = vector.multi_reduction <add>, %195, %cst_97 [1] : vector<8x8xf32> to vector<8xf32>
    %197 = vector.shape_cast %196 : vector<8xf32> to vector<8x1xf32>
    %198 = tpu.reciprocal %197 {approx = true} : vector<8x1xf32> -> vector<8x1xf32>
    %199 = vector.broadcast %198 : vector<8x1xf32> to vector<8x8xf32>
    %200 = arith.mulf %195, %199 : vector<8x8xf32>
    %201 = vector.extract_strided_slice %150 {offsets = [0, 16], sizes = [8, 8], strides = [1, 1]} : vector<8x32xf32> to vector<8x8xf32>
    %cst_98 = arith.constant dense<0.000000e+00> : vector<8x8xf32>
    %202 = tpu.matmul %200, %201, %cst_98 {dimension_numbers = #tpu.dot_dimension_numbers<[1], [0], [0], [1], [0, 0, 1, 1], [], []>} : vector<8x8xf32>, vector<8x8xf32>, vector<8x8xf32> -> vector<8x8xf32>
    %203 = vector.extract_strided_slice %143 {offsets = [16, 0], sizes = [8, 32], strides = [1, 1]} : vector<32x32xf32> to vector<8x32xf32>
    %cst_99 = arith.constant dense<0.000000e+00> : vector<8x32xf32>
    %204 = tpu.matmul %202, %203, %cst_99 {dimension_numbers = #tpu.dot_dimension_numbers<[1], [0], [0], [1], [0, 0, 1, 1], [], []>} : vector<8x8xf32>, vector<8x32xf32>, vector<8x32xf32> -> vector<8x32xf32>
    %205 = arith.addf %187, %204 : vector<8x32xf32>
    %206 = vector.extract_strided_slice %148 {offsets = [0, 24], sizes = [8, 8], strides = [1, 1]} : vector<8x32xf32> to vector<8x8xf32>
    %207 = vector.extract_strided_slice %149 {offsets = [0, 24], sizes = [8, 8], strides = [1, 1]} : vector<8x32xf32> to vector<8x8xf32>
    %cst_100 = arith.constant dense<0.000000e+00> : vector<8x8xf32>
    %208 = tpu.matmul %206, %207, %cst_100 {dimension_numbers = #tpu.dot_dimension_numbers<[1], [1], [0], [0], [0, 0, 1, 0], [], []>} : vector<8x8xf32>, vector<8x8xf32>, vector<8x8xf32> -> vector<8x8xf32>
    %cst_101 = arith.constant dense<0xFF800000> : vector<8xf32>
    %209 = vector.multi_reduction <maximumf>, %208, %cst_101 [1] : vector<8x8xf32> to vector<8xf32>
    %210 = vector.shape_cast %209 : vector<8xf32> to vector<8x1xf32>
    %211 = vector.broadcast %210 : vector<8x1xf32> to vector<8x8xf32>
    %212 = arith.subf %208, %211 : vector<8x8xf32>
    %213 = math.exp %212 : vector<8x8xf32>
    %cst_102 = arith.constant dense<0.000000e+00> : vector<8xf32>
    %214 = vector.multi_reduction <add>, %213, %cst_102 [1] : vector<8x8xf32> to vector<8xf32>
    %215 = vector.shape_cast %214 : vector<8xf32> to vector<8x1xf32>
    %216 = tpu.reciprocal %215 {approx = true} : vector<8x1xf32> -> vector<8x1xf32>
    %217 = vector.broadcast %216 : vector<8x1xf32> to vector<8x8xf32>
    %218 = arith.mulf %213, %217 : vector<8x8xf32>
    %219 = vector.extract_strided_slice %150 {offsets = [0, 24], sizes = [8, 8], strides = [1, 1]} : vector<8x32xf32> to vector<8x8xf32>
    %cst_103 = arith.constant dense<0.000000e+00> : vector<8x8xf32>
    %220 = tpu.matmul %218, %219, %cst_103 {dimension_numbers = #tpu.dot_dimension_numbers<[1], [0], [0], [1], [0, 0, 1, 1], [], []>} : vector<8x8xf32>, vector<8x8xf32>, vector<8x8xf32> -> vector<8x8xf32>
    %221 = vector.extract_strided_slice %143 {offsets = [24, 0], sizes = [8, 32], strides = [1, 1]} : vector<32x32xf32> to vector<8x32xf32>
    %cst_104 = arith.constant dense<0.000000e+00> : vector<8x32xf32>
    %222 = tpu.matmul %220, %221, %cst_104 {dimension_numbers = #tpu.dot_dimension_numbers<[1], [0], [0], [1], [0, 0, 1, 1], [], []>} : vector<8x8xf32>, vector<8x32xf32>, vector<8x32xf32> -> vector<8x32xf32>
    %223 = arith.addf %205, %222 : vector<8x32xf32>
    %224 = vector.broadcast %145 : vector<1x32xf32> to vector<8x32xf32>
    %225 = arith.addf %223, %224 : vector<8x32xf32>
    %226 = arith.addf %225, %135 : vector<8x32xf32>
    %c0_105 = arith.constant 0 : index
    %c0_106 = arith.constant 0 : index
    %c0_107 = arith.constant 0 : index
    %227 = vector.load %arg17[%c0_105, %c0_106, %c0_107] : memref<2x1x32xf32, #tpu.memory_space<vmem>>, vector<1x1x32xf32>
    %228 = vector.shape_cast %227 : vector<1x1x32xf32> to vector<1x32xf32>
    %c0_108 = arith.constant 0 : index
    %c0_109 = arith.constant 0 : index
    %c0_110 = arith.constant 0 : index
    %229 = vector.load %arg18[%c0_108, %c0_109, %c0_110] : memref<2x1x32xf32, #tpu.memory_space<vmem>>, vector<1x1x32xf32>
    %230 = vector.shape_cast %229 : vector<1x1x32xf32> to vector<1x32xf32>
    %cst_111 = arith.constant dense<0.000000e+00> : vector<8xf32>
    %231 = vector.multi_reduction <add>, %226, %cst_111 [1] : vector<8x32xf32> to vector<8xf32>
    %232 = vector.shape_cast %231 : vector<8xf32> to vector<8x1xf32>
    %cst_112 = arith.constant 3.200000e+01 : f32
    %233 = vector.broadcast %cst_112 : f32 to vector<8x1xf32>
    %234 = arith.divf %232, %233 : vector<8x1xf32>
    %235 = vector.broadcast %234 : vector<8x1xf32> to vector<8x32xf32>
    %236 = arith.subf %226, %235 : vector<8x32xf32>
    %237 = arith.mulf %236, %236 : vector<8x32xf32>
    %cst_113 = arith.constant dense<0.000000e+00> : vector<8xf32>
    %238 = vector.multi_reduction <add>, %237, %cst_113 [1] : vector<8x32xf32> to vector<8xf32>
    %239 = vector.shape_cast %238 : vector<8xf32> to vector<8x1xf32>
    %cst_114 = arith.constant 3.200000e+01 : f32
    %240 = vector.broadcast %cst_114 : f32 to vector<8x1xf32>
    %241 = arith.divf %239, %240 : vector<8x1xf32>
    %242 = vector.broadcast %234 : vector<8x1xf32> to vector<8x32xf32>
    %243 = arith.subf %226, %242 : vector<8x32xf32>
    %cst_115 = arith.constant 9.99999974E-6 : f32
    %244 = vector.broadcast %cst_115 : f32 to vector<8x1xf32>
    %245 = arith.addf %241, %244 : vector<8x1xf32>
    %246 = math.rsqrt %245 : vector<8x1xf32>
    %247 = vector.broadcast %246 : vector<8x1xf32> to vector<8x32xf32>
    %248 = arith.mulf %243, %247 : vector<8x32xf32>
    %249 = vector.broadcast %228 : vector<1x32xf32> to vector<8x32xf32>
    %250 = arith.mulf %248, %249 : vector<8x32xf32>
    %251 = vector.broadcast %230 : vector<1x32xf32> to vector<8x32xf32>
    %252 = arith.addf %250, %251 : vector<8x32xf32>
    %c0_116 = arith.constant 0 : index
    %c0_117 = arith.constant 0 : index
    %c0_118 = arith.constant 0 : index
    %253 = vector.load %arg21[%c0_116, %c0_117, %c0_118] : memref<2x32x128xf32, #tpu.memory_space<vmem>>, vector<1x32x128xf32>
    %254 = vector.shape_cast %253 : vector<1x32x128xf32> to vector<32x128xf32>
    %cst_119 = arith.constant dense<0.000000e+00> : vector<8x128xf32>
    %255 = tpu.matmul %252, %254, %cst_119 {dimension_numbers = #tpu.dot_dimension_numbers<[1], [0], [0], [1], [0, 0, 1, 1], [], []>} : vector<8x32xf32>, vector<32x128xf32>, vector<8x128xf32> -> vector<8x128xf32>
    %c0_120 = arith.constant 0 : index
    %c0_121 = arith.constant 0 : index
    %c0_122 = arith.constant 0 : index
    %256 = vector.load %arg22[%c0_120, %c0_121, %c0_122] : memref<2x1x128xf32, #tpu.memory_space<vmem>>, vector<1x1x128xf32>
    %257 = vector.shape_cast %256 : vector<1x1x128xf32> to vector<1x128xf32>
    %258 = vector.broadcast %257 : vector<1x128xf32> to vector<8x128xf32>
    %259 = arith.addf %255, %258 : vector<8x128xf32>
    %cst_123 = arith.constant 0.000000e+00 : f32
    %260 = vector.broadcast %cst_123 : f32 to vector<8x128xf32>
    %261 = arith.maximumf %259, %260 : vector<8x128xf32>
    %c0_124 = arith.constant 0 : index
    %c0_125 = arith.constant 0 : index
    %c0_126 = arith.constant 0 : index
    %262 = vector.load %arg23[%c0_124, %c0_125, %c0_126] : memref<2x128x32xf32, #tpu.memory_space<vmem>>, vector<1x128x32xf32>
    %263 = vector.shape_cast %262 : vector<1x128x32xf32> to vector<128x32xf32>
    %cst_127 = arith.constant dense<0.000000e+00> : vector<8x32xf32>
    %264 = tpu.matmul %261, %263, %cst_127 {dimension_numbers = #tpu.dot_dimension_numbers<[1], [0], [0], [1], [0, 0, 1, 1], [], []>} : vector<8x128xf32>, vector<128x32xf32>, vector<8x32xf32> -> vector<8x32xf32>
    %c0_128 = arith.constant 0 : index
    %c0_129 = arith.constant 0 : index
    %c0_130 = arith.constant 0 : index
    %265 = vector.load %arg24[%c0_128, %c0_129, %c0_130] : memref<2x1x32xf32, #tpu.memory_space<vmem>>, vector<1x1x32xf32>
    %266 = vector.shape_cast %265 : vector<1x1x32xf32> to vector<1x32xf32>
    %267 = vector.broadcast %266 : vector<1x32xf32> to vector<8x32xf32>
    %268 = arith.addf %264, %267 : vector<8x32xf32>
    %269 = arith.addf %268, %252 : vector<8x32xf32>
    %c0_131 = arith.constant 0 : index
    %c0_132 = arith.constant 0 : index
    %c0_133 = arith.constant 0 : index
    %270 = vector.load %arg19[%c0_131, %c0_132, %c0_133] : memref<2x1x32xf32, #tpu.memory_space<vmem>>, vector<1x1x32xf32>
    %271 = vector.shape_cast %270 : vector<1x1x32xf32> to vector<1x32xf32>
    %c0_134 = arith.constant 0 : index
    %c0_135 = arith.constant 0 : index
    %c0_136 = arith.constant 0 : index
    %272 = vector.load %arg20[%c0_134, %c0_135, %c0_136] : memref<2x1x32xf32, #tpu.memory_space<vmem>>, vector<1x1x32xf32>
    %273 = vector.shape_cast %272 : vector<1x1x32xf32> to vector<1x32xf32>
    %cst_137 = arith.constant dense<0.000000e+00> : vector<8xf32>
    %274 = vector.multi_reduction <add>, %269, %cst_137 [1] : vector<8x32xf32> to vector<8xf32>
    %275 = vector.shape_cast %274 : vector<8xf32> to vector<8x1xf32>
    %cst_138 = arith.constant 3.200000e+01 : f32
    %276 = vector.broadcast %cst_138 : f32 to vector<8x1xf32>
    %277 = arith.divf %275, %276 : vector<8x1xf32>
    %278 = vector.broadcast %277 : vector<8x1xf32> to vector<8x32xf32>
    %279 = arith.subf %269, %278 : vector<8x32xf32>
    %280 = arith.mulf %279, %279 : vector<8x32xf32>
    %cst_139 = arith.constant dense<0.000000e+00> : vector<8xf32>
    %281 = vector.multi_reduction <add>, %280, %cst_139 [1] : vector<8x32xf32> to vector<8xf32>
    %282 = vector.shape_cast %281 : vector<8xf32> to vector<8x1xf32>
    %cst_140 = arith.constant 3.200000e+01 : f32
    %283 = vector.broadcast %cst_140 : f32 to vector<8x1xf32>
    %284 = arith.divf %282, %283 : vector<8x1xf32>
    %285 = vector.broadcast %277 : vector<8x1xf32> to vector<8x32xf32>
    %286 = arith.subf %269, %285 : vector<8x32xf32>
    %cst_141 = arith.constant 9.99999974E-6 : f32
    %287 = vector.broadcast %cst_141 : f32 to vector<8x1xf32>
    %288 = arith.addf %284, %287 : vector<8x1xf32>
    %289 = math.rsqrt %288 : vector<8x1xf32>
    %290 = vector.broadcast %289 : vector<8x1xf32> to vector<8x32xf32>
    %291 = arith.mulf %286, %290 : vector<8x32xf32>
    %292 = vector.broadcast %271 : vector<1x32xf32> to vector<8x32xf32>
    %293 = arith.mulf %291, %292 : vector<8x32xf32>
    %294 = vector.broadcast %273 : vector<1x32xf32> to vector<8x32xf32>
    %295 = arith.addf %293, %294 : vector<8x32xf32>
    %c1 = arith.constant 1 : index
    %c0_142 = arith.constant 0 : index
    %c0_143 = arith.constant 0 : index
    %296 = vector.load %arg5[%c1, %c0_142, %c0_143] : memref<2x32x32xf32, #tpu.memory_space<vmem>>, vector<1x32x32xf32>
    %297 = vector.shape_cast %296 : vector<1x32x32xf32> to vector<32x32xf32>
    %c1_144 = arith.constant 1 : index
    %c0_145 = arith.constant 0 : index
    %c0_146 = arith.constant 0 : index
    %298 = vector.load %arg6[%c1_144, %c0_145, %c0_146] : memref<2x32x32xf32, #tpu.memory_space<vmem>>, vector<1x32x32xf32>
    %299 = vector.shape_cast %298 : vector<1x32x32xf32> to vector<32x32xf32>
    %c1_147 = arith.constant 1 : index
    %c0_148 = arith.constant 0 : index
    %c0_149 = arith.constant 0 : index
    %300 = vector.load %arg7[%c1_147, %c0_148, %c0_149] : memref<2x32x32xf32, #tpu.memory_space<vmem>>, vector<1x32x32xf32>
    %301 = vector.shape_cast %300 : vector<1x32x32xf32> to vector<32x32xf32>
    %c1_150 = arith.constant 1 : index
    %c0_151 = arith.constant 0 : index
    %c0_152 = arith.constant 0 : index
    %302 = vector.load %arg8[%c1_150, %c0_151, %c0_152] : memref<2x32x32xf32, #tpu.memory_space<vmem>>, vector<1x32x32xf32>
    %303 = vector.shape_cast %302 : vector<1x32x32xf32> to vector<32x32xf32>
    %c1_153 = arith.constant 1 : index
    %c0_154 = arith.constant 0 : index
    %c0_155 = arith.constant 0 : index
    %304 = vector.load %arg9[%c1_153, %c0_154, %c0_155] : memref<2x1x32xf32, #tpu.memory_space<vmem>>, vector<1x1x32xf32>
    %305 = vector.shape_cast %304 : vector<1x1x32xf32> to vector<1x32xf32>
    %cst_156 = arith.constant dense<0.000000e+00> : vector<8x32xf32>
    %306 = tpu.matmul %7, %297, %cst_156 {dimension_numbers = #tpu.dot_dimension_numbers<[1], [0], [0], [1], [0, 0, 1, 1], [], []>} : vector<8x32xf32>, vector<32x32xf32>, vector<8x32xf32> -> vector<8x32xf32>
    %cst_157 = arith.constant 0.353553385 : f32
    %307 = vector.broadcast %cst_157 : f32 to vector<8x32xf32>
    %308 = arith.mulf %306, %307 : vector<8x32xf32>
    %cst_158 = arith.constant dense<0.000000e+00> : vector<8x32xf32>
    %309 = tpu.matmul %7, %299, %cst_158 {dimension_numbers = #tpu.dot_dimension_numbers<[1], [0], [0], [1], [0, 0, 1, 1], [], []>} : vector<8x32xf32>, vector<32x32xf32>, vector<8x32xf32> -> vector<8x32xf32>
    %cst_159 = arith.constant dense<0.000000e+00> : vector<8x32xf32>
    %310 = tpu.matmul %7, %301, %cst_159 {dimension_numbers = #tpu.dot_dimension_numbers<[1], [0], [0], [1], [0, 0, 1, 1], [], []>} : vector<8x32xf32>, vector<32x32xf32>, vector<8x32xf32> -> vector<8x32xf32>
    %cst_160 = arith.constant 0.000000e+00 : f32
    %311 = vector.broadcast %cst_160 : f32 to vector<8x32xf32>
    %312 = vector.extract_strided_slice %308 {offsets = [0, 0], sizes = [8, 8], strides = [1, 1]} : vector<8x32xf32> to vector<8x8xf32>
    %313 = vector.extract_strided_slice %309 {offsets = [0, 0], sizes = [8, 8], strides = [1, 1]} : vector<8x32xf32> to vector<8x8xf32>
    %cst_161 = arith.constant dense<0.000000e+00> : vector<8x8xf32>
    %314 = tpu.matmul %312, %313, %cst_161 {dimension_numbers = #tpu.dot_dimension_numbers<[1], [1], [0], [0], [0, 0, 1, 0], [], []>} : vector<8x8xf32>, vector<8x8xf32>, vector<8x8xf32> -> vector<8x8xf32>
    %cst_162 = arith.constant -1.000000e+20 : f32
    %315 = vector.broadcast %cst_162 : f32 to vector<8x8xf32>
    %316 = arith.select %10, %315, %314 : vector<8x8xi1>, vector<8x8xf32>
    %cst_163 = arith.constant dense<0xFF800000> : vector<8xf32>
    %317 = vector.multi_reduction <maximumf>, %316, %cst_163 [1] : vector<8x8xf32> to vector<8xf32>
    %318 = vector.shape_cast %317 : vector<8xf32> to vector<8x1xf32>
    %319 = vector.broadcast %318 : vector<8x1xf32> to vector<8x8xf32>
    %320 = arith.subf %316, %319 : vector<8x8xf32>
    %321 = math.exp %320 : vector<8x8xf32>
    %cst_164 = arith.constant dense<0.000000e+00> : vector<8xf32>
    %322 = vector.multi_reduction <add>, %321, %cst_164 [1] : vector<8x8xf32> to vector<8xf32>
    %323 = vector.shape_cast %322 : vector<8xf32> to vector<8x1xf32>
    %324 = tpu.reciprocal %323 {approx = true} : vector<8x1xf32> -> vector<8x1xf32>
    %325 = vector.broadcast %324 : vector<8x1xf32> to vector<8x8xf32>
    %326 = arith.mulf %321, %325 : vector<8x8xf32>
    %327 = vector.extract_strided_slice %310 {offsets = [0, 0], sizes = [8, 8], strides = [1, 1]} : vector<8x32xf32> to vector<8x8xf32>
    %cst_165 = arith.constant dense<0.000000e+00> : vector<8x8xf32>
    %328 = tpu.matmul %326, %327, %cst_165 {dimension_numbers = #tpu.dot_dimension_numbers<[1], [0], [0], [1], [0, 0, 1, 1], [], []>} : vector<8x8xf32>, vector<8x8xf32>, vector<8x8xf32> -> vector<8x8xf32>
    %329 = vector.extract_strided_slice %303 {offsets = [0, 0], sizes = [8, 32], strides = [1, 1]} : vector<32x32xf32> to vector<8x32xf32>
    %cst_166 = arith.constant dense<0.000000e+00> : vector<8x32xf32>
    %330 = tpu.matmul %328, %329, %cst_166 {dimension_numbers = #tpu.dot_dimension_numbers<[1], [0], [0], [1], [0, 0, 1, 1], [], []>} : vector<8x8xf32>, vector<8x32xf32>, vector<8x32xf32> -> vector<8x32xf32>
    %331 = arith.addf %311, %330 : vector<8x32xf32>
    %332 = vector.extract_strided_slice %308 {offsets = [0, 8], sizes = [8, 8], strides = [1, 1]} : vector<8x32xf32> to vector<8x8xf32>
    %333 = vector.extract_strided_slice %309 {offsets = [0, 8], sizes = [8, 8], strides = [1, 1]} : vector<8x32xf32> to vector<8x8xf32>
    %cst_167 = arith.constant dense<0.000000e+00> : vector<8x8xf32>
    %334 = tpu.matmul %332, %333, %cst_167 {dimension_numbers = #tpu.dot_dimension_numbers<[1], [1], [0], [0], [0, 0, 1, 0], [], []>} : vector<8x8xf32>, vector<8x8xf32>, vector<8x8xf32> -> vector<8x8xf32>
    %cst_168 = arith.constant -1.000000e+20 : f32
    %335 = vector.broadcast %cst_168 : f32 to vector<8x8xf32>
    %336 = arith.select %10, %335, %334 : vector<8x8xi1>, vector<8x8xf32>
    %cst_169 = arith.constant dense<0xFF800000> : vector<8xf32>
    %337 = vector.multi_reduction <maximumf>, %336, %cst_169 [1] : vector<8x8xf32> to vector<8xf32>
    %338 = vector.shape_cast %337 : vector<8xf32> to vector<8x1xf32>
    %339 = vector.broadcast %338 : vector<8x1xf32> to vector<8x8xf32>
    %340 = arith.subf %336, %339 : vector<8x8xf32>
    %341 = math.exp %340 : vector<8x8xf32>
    %cst_170 = arith.constant dense<0.000000e+00> : vector<8xf32>
    %342 = vector.multi_reduction <add>, %341, %cst_170 [1] : vector<8x8xf32> to vector<8xf32>
    %343 = vector.shape_cast %342 : vector<8xf32> to vector<8x1xf32>
    %344 = tpu.reciprocal %343 {approx = true} : vector<8x1xf32> -> vector<8x1xf32>
    %345 = vector.broadcast %344 : vector<8x1xf32> to vector<8x8xf32>
    %346 = arith.mulf %341, %345 : vector<8x8xf32>
    %347 = vector.extract_strided_slice %310 {offsets = [0, 8], sizes = [8, 8], strides = [1, 1]} : vector<8x32xf32> to vector<8x8xf32>
    %cst_171 = arith.constant dense<0.000000e+00> : vector<8x8xf32>
    %348 = tpu.matmul %346, %347, %cst_171 {dimension_numbers = #tpu.dot_dimension_numbers<[1], [0], [0], [1], [0, 0, 1, 1], [], []>} : vector<8x8xf32>, vector<8x8xf32>, vector<8x8xf32> -> vector<8x8xf32>
    %349 = vector.extract_strided_slice %303 {offsets = [8, 0], sizes = [8, 32], strides = [1, 1]} : vector<32x32xf32> to vector<8x32xf32>
    %cst_172 = arith.constant dense<0.000000e+00> : vector<8x32xf32>
    %350 = tpu.matmul %348, %349, %cst_172 {dimension_numbers = #tpu.dot_dimension_numbers<[1], [0], [0], [1], [0, 0, 1, 1], [], []>} : vector<8x8xf32>, vector<8x32xf32>, vector<8x32xf32> -> vector<8x32xf32>
    %351 = arith.addf %331, %350 : vector<8x32xf32>
    %352 = vector.extract_strided_slice %308 {offsets = [0, 16], sizes = [8, 8], strides = [1, 1]} : vector<8x32xf32> to vector<8x8xf32>
    %353 = vector.extract_strided_slice %309 {offsets = [0, 16], sizes = [8, 8], strides = [1, 1]} : vector<8x32xf32> to vector<8x8xf32>
    %cst_173 = arith.constant dense<0.000000e+00> : vector<8x8xf32>
    %354 = tpu.matmul %352, %353, %cst_173 {dimension_numbers = #tpu.dot_dimension_numbers<[1], [1], [0], [0], [0, 0, 1, 0], [], []>} : vector<8x8xf32>, vector<8x8xf32>, vector<8x8xf32> -> vector<8x8xf32>
    %cst_174 = arith.constant -1.000000e+20 : f32
    %355 = vector.broadcast %cst_174 : f32 to vector<8x8xf32>
    %356 = arith.select %10, %355, %354 : vector<8x8xi1>, vector<8x8xf32>
    %cst_175 = arith.constant dense<0xFF800000> : vector<8xf32>
    %357 = vector.multi_reduction <maximumf>, %356, %cst_175 [1] : vector<8x8xf32> to vector<8xf32>
    %358 = vector.shape_cast %357 : vector<8xf32> to vector<8x1xf32>
    %359 = vector.broadcast %358 : vector<8x1xf32> to vector<8x8xf32>
    %360 = arith.subf %356, %359 : vector<8x8xf32>
    %361 = math.exp %360 : vector<8x8xf32>
    %cst_176 = arith.constant dense<0.000000e+00> : vector<8xf32>
    %362 = vector.multi_reduction <add>, %361, %cst_176 [1] : vector<8x8xf32> to vector<8xf32>
    %363 = vector.shape_cast %362 : vector<8xf32> to vector<8x1xf32>
    %364 = tpu.reciprocal %363 {approx = true} : vector<8x1xf32> -> vector<8x1xf32>
    %365 = vector.broadcast %364 : vector<8x1xf32> to vector<8x8xf32>
    %366 = arith.mulf %361, %365 : vector<8x8xf32>
    %367 = vector.extract_strided_slice %310 {offsets = [0, 16], sizes = [8, 8], strides = [1, 1]} : vector<8x32xf32> to vector<8x8xf32>
    %cst_177 = arith.constant dense<0.000000e+00> : vector<8x8xf32>
    %368 = tpu.matmul %366, %367, %cst_177 {dimension_numbers = #tpu.dot_dimension_numbers<[1], [0], [0], [1], [0, 0, 1, 1], [], []>} : vector<8x8xf32>, vector<8x8xf32>, vector<8x8xf32> -> vector<8x8xf32>
    %369 = vector.extract_strided_slice %303 {offsets = [16, 0], sizes = [8, 32], strides = [1, 1]} : vector<32x32xf32> to vector<8x32xf32>
    %cst_178 = arith.constant dense<0.000000e+00> : vector<8x32xf32>
    %370 = tpu.matmul %368, %369, %cst_178 {dimension_numbers = #tpu.dot_dimension_numbers<[1], [0], [0], [1], [0, 0, 1, 1], [], []>} : vector<8x8xf32>, vector<8x32xf32>, vector<8x32xf32> -> vector<8x32xf32>
    %371 = arith.addf %351, %370 : vector<8x32xf32>
    %372 = vector.extract_strided_slice %308 {offsets = [0, 24], sizes = [8, 8], strides = [1, 1]} : vector<8x32xf32> to vector<8x8xf32>
    %373 = vector.extract_strided_slice %309 {offsets = [0, 24], sizes = [8, 8], strides = [1, 1]} : vector<8x32xf32> to vector<8x8xf32>
    %cst_179 = arith.constant dense<0.000000e+00> : vector<8x8xf32>
    %374 = tpu.matmul %372, %373, %cst_179 {dimension_numbers = #tpu.dot_dimension_numbers<[1], [1], [0], [0], [0, 0, 1, 0], [], []>} : vector<8x8xf32>, vector<8x8xf32>, vector<8x8xf32> -> vector<8x8xf32>
    %cst_180 = arith.constant -1.000000e+20 : f32
    %375 = vector.broadcast %cst_180 : f32 to vector<8x8xf32>
    %376 = arith.select %10, %375, %374 : vector<8x8xi1>, vector<8x8xf32>
    %cst_181 = arith.constant dense<0xFF800000> : vector<8xf32>
    %377 = vector.multi_reduction <maximumf>, %376, %cst_181 [1] : vector<8x8xf32> to vector<8xf32>
    %378 = vector.shape_cast %377 : vector<8xf32> to vector<8x1xf32>
    %379 = vector.broadcast %378 : vector<8x1xf32> to vector<8x8xf32>
    %380 = arith.subf %376, %379 : vector<8x8xf32>
    %381 = math.exp %380 : vector<8x8xf32>
    %cst_182 = arith.constant dense<0.000000e+00> : vector<8xf32>
    %382 = vector.multi_reduction <add>, %381, %cst_182 [1] : vector<8x8xf32> to vector<8xf32>
    %383 = vector.shape_cast %382 : vector<8xf32> to vector<8x1xf32>
    %384 = tpu.reciprocal %383 {approx = true} : vector<8x1xf32> -> vector<8x1xf32>
    %385 = vector.broadcast %384 : vector<8x1xf32> to vector<8x8xf32>
    %386 = arith.mulf %381, %385 : vector<8x8xf32>
    %387 = vector.extract_strided_slice %310 {offsets = [0, 24], sizes = [8, 8], strides = [1, 1]} : vector<8x32xf32> to vector<8x8xf32>
    %cst_183 = arith.constant dense<0.000000e+00> : vector<8x8xf32>
    %388 = tpu.matmul %386, %387, %cst_183 {dimension_numbers = #tpu.dot_dimension_numbers<[1], [0], [0], [1], [0, 0, 1, 1], [], []>} : vector<8x8xf32>, vector<8x8xf32>, vector<8x8xf32> -> vector<8x8xf32>
    %389 = vector.extract_strided_slice %303 {offsets = [24, 0], sizes = [8, 32], strides = [1, 1]} : vector<32x32xf32> to vector<8x32xf32>
    %cst_184 = arith.constant dense<0.000000e+00> : vector<8x32xf32>
    %390 = tpu.matmul %388, %389, %cst_184 {dimension_numbers = #tpu.dot_dimension_numbers<[1], [0], [0], [1], [0, 0, 1, 1], [], []>} : vector<8x8xf32>, vector<8x32xf32>, vector<8x32xf32> -> vector<8x32xf32>
    %391 = arith.addf %371, %390 : vector<8x32xf32>
    %392 = vector.broadcast %305 : vector<1x32xf32> to vector<8x32xf32>
    %393 = arith.addf %391, %392 : vector<8x32xf32>
    %394 = arith.addf %393, %7 : vector<8x32xf32>
    %c1_185 = arith.constant 1 : index
    %c0_186 = arith.constant 0 : index
    %c0_187 = arith.constant 0 : index
    %395 = vector.load %arg10[%c1_185, %c0_186, %c0_187] : memref<2x1x32xf32, #tpu.memory_space<vmem>>, vector<1x1x32xf32>
    %396 = vector.shape_cast %395 : vector<1x1x32xf32> to vector<1x32xf32>
    %c1_188 = arith.constant 1 : index
    %c0_189 = arith.constant 0 : index
    %c0_190 = arith.constant 0 : index
    %397 = vector.load %arg11[%c1_188, %c0_189, %c0_190] : memref<2x1x32xf32, #tpu.memory_space<vmem>>, vector<1x1x32xf32>
    %398 = vector.shape_cast %397 : vector<1x1x32xf32> to vector<1x32xf32>
    %cst_191 = arith.constant dense<0.000000e+00> : vector<8xf32>
    %399 = vector.multi_reduction <add>, %394, %cst_191 [1] : vector<8x32xf32> to vector<8xf32>
    %400 = vector.shape_cast %399 : vector<8xf32> to vector<8x1xf32>
    %cst_192 = arith.constant 3.200000e+01 : f32
    %401 = vector.broadcast %cst_192 : f32 to vector<8x1xf32>
    %402 = arith.divf %400, %401 : vector<8x1xf32>
    %403 = vector.broadcast %402 : vector<8x1xf32> to vector<8x32xf32>
    %404 = arith.subf %394, %403 : vector<8x32xf32>
    %405 = arith.mulf %404, %404 : vector<8x32xf32>
    %cst_193 = arith.constant dense<0.000000e+00> : vector<8xf32>
    %406 = vector.multi_reduction <add>, %405, %cst_193 [1] : vector<8x32xf32> to vector<8xf32>
    %407 = vector.shape_cast %406 : vector<8xf32> to vector<8x1xf32>
    %cst_194 = arith.constant 3.200000e+01 : f32
    %408 = vector.broadcast %cst_194 : f32 to vector<8x1xf32>
    %409 = arith.divf %407, %408 : vector<8x1xf32>
    %410 = vector.broadcast %402 : vector<8x1xf32> to vector<8x32xf32>
    %411 = arith.subf %394, %410 : vector<8x32xf32>
    %cst_195 = arith.constant 9.99999974E-6 : f32
    %412 = vector.broadcast %cst_195 : f32 to vector<8x1xf32>
    %413 = arith.addf %409, %412 : vector<8x1xf32>
    %414 = math.rsqrt %413 : vector<8x1xf32>
    %415 = vector.broadcast %414 : vector<8x1xf32> to vector<8x32xf32>
    %416 = arith.mulf %411, %415 : vector<8x32xf32>
    %417 = vector.broadcast %396 : vector<1x32xf32> to vector<8x32xf32>
    %418 = arith.mulf %416, %417 : vector<8x32xf32>
    %419 = vector.broadcast %398 : vector<1x32xf32> to vector<8x32xf32>
    %420 = arith.addf %418, %419 : vector<8x32xf32>
    %c1_196 = arith.constant 1 : index
    %c0_197 = arith.constant 0 : index
    %c0_198 = arith.constant 0 : index
    %421 = vector.load %arg12[%c1_196, %c0_197, %c0_198] : memref<2x32x32xf32, #tpu.memory_space<vmem>>, vector<1x32x32xf32>
    %422 = vector.shape_cast %421 : vector<1x32x32xf32> to vector<32x32xf32>
    %c1_199 = arith.constant 1 : index
    %c0_200 = arith.constant 0 : index
    %c0_201 = arith.constant 0 : index
    %423 = vector.load %arg13[%c1_199, %c0_200, %c0_201] : memref<2x32x32xf32, #tpu.memory_space<vmem>>, vector<1x32x32xf32>
    %424 = vector.shape_cast %423 : vector<1x32x32xf32> to vector<32x32xf32>
    %c1_202 = arith.constant 1 : index
    %c0_203 = arith.constant 0 : index
    %c0_204 = arith.constant 0 : index
    %425 = vector.load %arg14[%c1_202, %c0_203, %c0_204] : memref<2x32x32xf32, #tpu.memory_space<vmem>>, vector<1x32x32xf32>
    %426 = vector.shape_cast %425 : vector<1x32x32xf32> to vector<32x32xf32>
    %c1_205 = arith.constant 1 : index
    %c0_206 = arith.constant 0 : index
    %c0_207 = arith.constant 0 : index
    %427 = vector.load %arg15[%c1_205, %c0_206, %c0_207] : memref<2x32x32xf32, #tpu.memory_space<vmem>>, vector<1x32x32xf32>
    %428 = vector.shape_cast %427 : vector<1x32x32xf32> to vector<32x32xf32>
    %c1_208 = arith.constant 1 : index
    %c0_209 = arith.constant 0 : index
    %c0_210 = arith.constant 0 : index
    %429 = vector.load %arg16[%c1_208, %c0_209, %c0_210] : memref<2x1x32xf32, #tpu.memory_space<vmem>>, vector<1x1x32xf32>
    %430 = vector.shape_cast %429 : vector<1x1x32xf32> to vector<1x32xf32>
    %cst_211 = arith.constant dense<0.000000e+00> : vector<8x32xf32>
    %431 = tpu.matmul %295, %422, %cst_211 {dimension_numbers = #tpu.dot_dimension_numbers<[1], [0], [0], [1], [0, 0, 1, 1], [], []>} : vector<8x32xf32>, vector<32x32xf32>, vector<8x32xf32> -> vector<8x32xf32>
    %cst_212 = arith.constant 0.353553385 : f32
    %432 = vector.broadcast %cst_212 : f32 to vector<8x32xf32>
    %433 = arith.mulf %431, %432 : vector<8x32xf32>
    %cst_213 = arith.constant dense<0.000000e+00> : vector<8x32xf32>
    %434 = tpu.matmul %7, %424, %cst_213 {dimension_numbers = #tpu.dot_dimension_numbers<[1], [0], [0], [1], [0, 0, 1, 1], [], []>} : vector<8x32xf32>, vector<32x32xf32>, vector<8x32xf32> -> vector<8x32xf32>
    %cst_214 = arith.constant dense<0.000000e+00> : vector<8x32xf32>
    %435 = tpu.matmul %420, %426, %cst_214 {dimension_numbers = #tpu.dot_dimension_numbers<[1], [0], [0], [1], [0, 0, 1, 1], [], []>} : vector<8x32xf32>, vector<32x32xf32>, vector<8x32xf32> -> vector<8x32xf32>
    %cst_215 = arith.constant 0.000000e+00 : f32
    %436 = vector.broadcast %cst_215 : f32 to vector<8x32xf32>
    %437 = vector.extract_strided_slice %433 {offsets = [0, 0], sizes = [8, 8], strides = [1, 1]} : vector<8x32xf32> to vector<8x8xf32>
    %438 = vector.extract_strided_slice %434 {offsets = [0, 0], sizes = [8, 8], strides = [1, 1]} : vector<8x32xf32> to vector<8x8xf32>
    %cst_216 = arith.constant dense<0.000000e+00> : vector<8x8xf32>
    %439 = tpu.matmul %437, %438, %cst_216 {dimension_numbers = #tpu.dot_dimension_numbers<[1], [1], [0], [0], [0, 0, 1, 0], [], []>} : vector<8x8xf32>, vector<8x8xf32>, vector<8x8xf32> -> vector<8x8xf32>
    %cst_217 = arith.constant dense<0xFF800000> : vector<8xf32>
    %440 = vector.multi_reduction <maximumf>, %439, %cst_217 [1] : vector<8x8xf32> to vector<8xf32>
    %441 = vector.shape_cast %440 : vector<8xf32> to vector<8x1xf32>
    %442 = vector.broadcast %441 : vector<8x1xf32> to vector<8x8xf32>
    %443 = arith.subf %439, %442 : vector<8x8xf32>
    %444 = math.exp %443 : vector<8x8xf32>
    %cst_218 = arith.constant dense<0.000000e+00> : vector<8xf32>
    %445 = vector.multi_reduction <add>, %444, %cst_218 [1] : vector<8x8xf32> to vector<8xf32>
    %446 = vector.shape_cast %445 : vector<8xf32> to vector<8x1xf32>
    %447 = tpu.reciprocal %446 {approx = true} : vector<8x1xf32> -> vector<8x1xf32>
    %448 = vector.broadcast %447 : vector<8x1xf32> to vector<8x8xf32>
    %449 = arith.mulf %444, %448 : vector<8x8xf32>
    %450 = vector.extract_strided_slice %435 {offsets = [0, 0], sizes = [8, 8], strides = [1, 1]} : vector<8x32xf32> to vector<8x8xf32>
    %cst_219 = arith.constant dense<0.000000e+00> : vector<8x8xf32>
    %451 = tpu.matmul %449, %450, %cst_219 {dimension_numbers = #tpu.dot_dimension_numbers<[1], [0], [0], [1], [0, 0, 1, 1], [], []>} : vector<8x8xf32>, vector<8x8xf32>, vector<8x8xf32> -> vector<8x8xf32>
    %452 = vector.extract_strided_slice %428 {offsets = [0, 0], sizes = [8, 32], strides = [1, 1]} : vector<32x32xf32> to vector<8x32xf32>
    %cst_220 = arith.constant dense<0.000000e+00> : vector<8x32xf32>
    %453 = tpu.matmul %451, %452, %cst_220 {dimension_numbers = #tpu.dot_dimension_numbers<[1], [0], [0], [1], [0, 0, 1, 1], [], []>} : vector<8x8xf32>, vector<8x32xf32>, vector<8x32xf32> -> vector<8x32xf32>
    %454 = arith.addf %436, %453 : vector<8x32xf32>
    %455 = vector.extract_strided_slice %433 {offsets = [0, 8], sizes = [8, 8], strides = [1, 1]} : vector<8x32xf32> to vector<8x8xf32>
    %456 = vector.extract_strided_slice %434 {offsets = [0, 8], sizes = [8, 8], strides = [1, 1]} : vector<8x32xf32> to vector<8x8xf32>
    %cst_221 = arith.constant dense<0.000000e+00> : vector<8x8xf32>
    %457 = tpu.matmul %455, %456, %cst_221 {dimension_numbers = #tpu.dot_dimension_numbers<[1], [1], [0], [0], [0, 0, 1, 0], [], []>} : vector<8x8xf32>, vector<8x8xf32>, vector<8x8xf32> -> vector<8x8xf32>
    %cst_222 = arith.constant dense<0xFF800000> : vector<8xf32>
    %458 = vector.multi_reduction <maximumf>, %457, %cst_222 [1] : vector<8x8xf32> to vector<8xf32>
    %459 = vector.shape_cast %458 : vector<8xf32> to vector<8x1xf32>
    %460 = vector.broadcast %459 : vector<8x1xf32> to vector<8x8xf32>
    %461 = arith.subf %457, %460 : vector<8x8xf32>
    %462 = math.exp %461 : vector<8x8xf32>
    %cst_223 = arith.constant dense<0.000000e+00> : vector<8xf32>
    %463 = vector.multi_reduction <add>, %462, %cst_223 [1] : vector<8x8xf32> to vector<8xf32>
    %464 = vector.shape_cast %463 : vector<8xf32> to vector<8x1xf32>
    %465 = tpu.reciprocal %464 {approx = true} : vector<8x1xf32> -> vector<8x1xf32>
    %466 = vector.broadcast %465 : vector<8x1xf32> to vector<8x8xf32>
    %467 = arith.mulf %462, %466 : vector<8x8xf32>
    %468 = vector.extract_strided_slice %435 {offsets = [0, 8], sizes = [8, 8], strides = [1, 1]} : vector<8x32xf32> to vector<8x8xf32>
    %cst_224 = arith.constant dense<0.000000e+00> : vector<8x8xf32>
    %469 = tpu.matmul %467, %468, %cst_224 {dimension_numbers = #tpu.dot_dimension_numbers<[1], [0], [0], [1], [0, 0, 1, 1], [], []>} : vector<8x8xf32>, vector<8x8xf32>, vector<8x8xf32> -> vector<8x8xf32>
    %470 = vector.extract_strided_slice %428 {offsets = [8, 0], sizes = [8, 32], strides = [1, 1]} : vector<32x32xf32> to vector<8x32xf32>
    %cst_225 = arith.constant dense<0.000000e+00> : vector<8x32xf32>
    %471 = tpu.matmul %469, %470, %cst_225 {dimension_numbers = #tpu.dot_dimension_numbers<[1], [0], [0], [1], [0, 0, 1, 1], [], []>} : vector<8x8xf32>, vector<8x32xf32>, vector<8x32xf32> -> vector<8x32xf32>
    %472 = arith.addf %454, %471 : vector<8x32xf32>
    %473 = vector.extract_strided_slice %433 {offsets = [0, 16], sizes = [8, 8], strides = [1, 1]} : vector<8x32xf32> to vector<8x8xf32>
    %474 = vector.extract_strided_slice %434 {offsets = [0, 16], sizes = [8, 8], strides = [1, 1]} : vector<8x32xf32> to vector<8x8xf32>
    %cst_226 = arith.constant dense<0.000000e+00> : vector<8x8xf32>
    %475 = tpu.matmul %473, %474, %cst_226 {dimension_numbers = #tpu.dot_dimension_numbers<[1], [1], [0], [0], [0, 0, 1, 0], [], []>} : vector<8x8xf32>, vector<8x8xf32>, vector<8x8xf32> -> vector<8x8xf32>
    %cst_227 = arith.constant dense<0xFF800000> : vector<8xf32>
    %476 = vector.multi_reduction <maximumf>, %475, %cst_227 [1] : vector<8x8xf32> to vector<8xf32>
    %477 = vector.shape_cast %476 : vector<8xf32> to vector<8x1xf32>
    %478 = vector.broadcast %477 : vector<8x1xf32> to vector<8x8xf32>
    %479 = arith.subf %475, %478 : vector<8x8xf32>
    %480 = math.exp %479 : vector<8x8xf32>
    %cst_228 = arith.constant dense<0.000000e+00> : vector<8xf32>
    %481 = vector.multi_reduction <add>, %480, %cst_228 [1] : vector<8x8xf32> to vector<8xf32>
    %482 = vector.shape_cast %481 : vector<8xf32> to vector<8x1xf32>
    %483 = tpu.reciprocal %482 {approx = true} : vector<8x1xf32> -> vector<8x1xf32>
    %484 = vector.broadcast %483 : vector<8x1xf32> to vector<8x8xf32>
    %485 = arith.mulf %480, %484 : vector<8x8xf32>
    %486 = vector.extract_strided_slice %435 {offsets = [0, 16], sizes = [8, 8], strides = [1, 1]} : vector<8x32xf32> to vector<8x8xf32>
    %cst_229 = arith.constant dense<0.000000e+00> : vector<8x8xf32>
    %487 = tpu.matmul %485, %486, %cst_229 {dimension_numbers = #tpu.dot_dimension_numbers<[1], [0], [0], [1], [0, 0, 1, 1], [], []>} : vector<8x8xf32>, vector<8x8xf32>, vector<8x8xf32> -> vector<8x8xf32>
    %488 = vector.extract_strided_slice %428 {offsets = [16, 0], sizes = [8, 32], strides = [1, 1]} : vector<32x32xf32> to vector<8x32xf32>
    %cst_230 = arith.constant dense<0.000000e+00> : vector<8x32xf32>
    %489 = tpu.matmul %487, %488, %cst_230 {dimension_numbers = #tpu.dot_dimension_numbers<[1], [0], [0], [1], [0, 0, 1, 1], [], []>} : vector<8x8xf32>, vector<8x32xf32>, vector<8x32xf32> -> vector<8x32xf32>
    %490 = arith.addf %472, %489 : vector<8x32xf32>
    %491 = vector.extract_strided_slice %433 {offsets = [0, 24], sizes = [8, 8], strides = [1, 1]} : vector<8x32xf32> to vector<8x8xf32>
    %492 = vector.extract_strided_slice %434 {offsets = [0, 24], sizes = [8, 8], strides = [1, 1]} : vector<8x32xf32> to vector<8x8xf32>
    %cst_231 = arith.constant dense<0.000000e+00> : vector<8x8xf32>
    %493 = tpu.matmul %491, %492, %cst_231 {dimension_numbers = #tpu.dot_dimension_numbers<[1], [1], [0], [0], [0, 0, 1, 0], [], []>} : vector<8x8xf32>, vector<8x8xf32>, vector<8x8xf32> -> vector<8x8xf32>
    %cst_232 = arith.constant dense<0xFF800000> : vector<8xf32>
    %494 = vector.multi_reduction <maximumf>, %493, %cst_232 [1] : vector<8x8xf32> to vector<8xf32>
    %495 = vector.shape_cast %494 : vector<8xf32> to vector<8x1xf32>
    %496 = vector.broadcast %495 : vector<8x1xf32> to vector<8x8xf32>
    %497 = arith.subf %493, %496 : vector<8x8xf32>
    %498 = math.exp %497 : vector<8x8xf32>
    %cst_233 = arith.constant dense<0.000000e+00> : vector<8xf32>
    %499 = vector.multi_reduction <add>, %498, %cst_233 [1] : vector<8x8xf32> to vector<8xf32>
    %500 = vector.shape_cast %499 : vector<8xf32> to vector<8x1xf32>
    %501 = tpu.reciprocal %500 {approx = true} : vector<8x1xf32> -> vector<8x1xf32>
    %502 = vector.broadcast %501 : vector<8x1xf32> to vector<8x8xf32>
    %503 = arith.mulf %498, %502 : vector<8x8xf32>
    %504 = vector.extract_strided_slice %435 {offsets = [0, 24], sizes = [8, 8], strides = [1, 1]} : vector<8x32xf32> to vector<8x8xf32>
    %cst_234 = arith.constant dense<0.000000e+00> : vector<8x8xf32>
    %505 = tpu.matmul %503, %504, %cst_234 {dimension_numbers = #tpu.dot_dimension_numbers<[1], [0], [0], [1], [0, 0, 1, 1], [], []>} : vector<8x8xf32>, vector<8x8xf32>, vector<8x8xf32> -> vector<8x8xf32>
    %506 = vector.extract_strided_slice %428 {offsets = [24, 0], sizes = [8, 32], strides = [1, 1]} : vector<32x32xf32> to vector<8x32xf32>
    %cst_235 = arith.constant dense<0.000000e+00> : vector<8x32xf32>
    %507 = tpu.matmul %505, %506, %cst_235 {dimension_numbers = #tpu.dot_dimension_numbers<[1], [0], [0], [1], [0, 0, 1, 1], [], []>} : vector<8x8xf32>, vector<8x32xf32>, vector<8x32xf32> -> vector<8x32xf32>
    %508 = arith.addf %490, %507 : vector<8x32xf32>
    %509 = vector.broadcast %430 : vector<1x32xf32> to vector<8x32xf32>
    %510 = arith.addf %508, %509 : vector<8x32xf32>
    %511 = arith.addf %510, %420 : vector<8x32xf32>
    %c1_236 = arith.constant 1 : index
    %c0_237 = arith.constant 0 : index
    %c0_238 = arith.constant 0 : index
    %512 = vector.load %arg17[%c1_236, %c0_237, %c0_238] : memref<2x1x32xf32, #tpu.memory_space<vmem>>, vector<1x1x32xf32>
    %513 = vector.shape_cast %512 : vector<1x1x32xf32> to vector<1x32xf32>
    %c1_239 = arith.constant 1 : index
    %c0_240 = arith.constant 0 : index
    %c0_241 = arith.constant 0 : index
    %514 = vector.load %arg18[%c1_239, %c0_240, %c0_241] : memref<2x1x32xf32, #tpu.memory_space<vmem>>, vector<1x1x32xf32>
    %515 = vector.shape_cast %514 : vector<1x1x32xf32> to vector<1x32xf32>
    %cst_242 = arith.constant dense<0.000000e+00> : vector<8xf32>
    %516 = vector.multi_reduction <add>, %511, %cst_242 [1] : vector<8x32xf32> to vector<8xf32>
    %517 = vector.shape_cast %516 : vector<8xf32> to vector<8x1xf32>
    %cst_243 = arith.constant 3.200000e+01 : f32
    %518 = vector.broadcast %cst_243 : f32 to vector<8x1xf32>
    %519 = arith.divf %517, %518 : vector<8x1xf32>
    %520 = vector.broadcast %519 : vector<8x1xf32> to vector<8x32xf32>
    %521 = arith.subf %511, %520 : vector<8x32xf32>
    %522 = arith.mulf %521, %521 : vector<8x32xf32>
    %cst_244 = arith.constant dense<0.000000e+00> : vector<8xf32>
    %523 = vector.multi_reduction <add>, %522, %cst_244 [1] : vector<8x32xf32> to vector<8xf32>
    %524 = vector.shape_cast %523 : vector<8xf32> to vector<8x1xf32>
    %cst_245 = arith.constant 3.200000e+01 : f32
    %525 = vector.broadcast %cst_245 : f32 to vector<8x1xf32>
    %526 = arith.divf %524, %525 : vector<8x1xf32>
    %527 = vector.broadcast %519 : vector<8x1xf32> to vector<8x32xf32>
    %528 = arith.subf %511, %527 : vector<8x32xf32>
    %cst_246 = arith.constant 9.99999974E-6 : f32
    %529 = vector.broadcast %cst_246 : f32 to vector<8x1xf32>
    %530 = arith.addf %526, %529 : vector<8x1xf32>
    %531 = math.rsqrt %530 : vector<8x1xf32>
    %532 = vector.broadcast %531 : vector<8x1xf32> to vector<8x32xf32>
    %533 = arith.mulf %528, %532 : vector<8x32xf32>
    %534 = vector.broadcast %513 : vector<1x32xf32> to vector<8x32xf32>
    %535 = arith.mulf %533, %534 : vector<8x32xf32>
    %536 = vector.broadcast %515 : vector<1x32xf32> to vector<8x32xf32>
    %537 = arith.addf %535, %536 : vector<8x32xf32>
    %c1_247 = arith.constant 1 : index
    %c0_248 = arith.constant 0 : index
    %c0_249 = arith.constant 0 : index
    %538 = vector.load %arg21[%c1_247, %c0_248, %c0_249] : memref<2x32x128xf32, #tpu.memory_space<vmem>>, vector<1x32x128xf32>
    %539 = vector.shape_cast %538 : vector<1x32x128xf32> to vector<32x128xf32>
    %cst_250 = arith.constant dense<0.000000e+00> : vector<8x128xf32>
    %540 = tpu.matmul %537, %539, %cst_250 {dimension_numbers = #tpu.dot_dimension_numbers<[1], [0], [0], [1], [0, 0, 1, 1], [], []>} : vector<8x32xf32>, vector<32x128xf32>, vector<8x128xf32> -> vector<8x128xf32>
    %c1_251 = arith.constant 1 : index
    %c0_252 = arith.constant 0 : index
    %c0_253 = arith.constant 0 : index
    %541 = vector.load %arg22[%c1_251, %c0_252, %c0_253] : memref<2x1x128xf32, #tpu.memory_space<vmem>>, vector<1x1x128xf32>
    %542 = vector.shape_cast %541 : vector<1x1x128xf32> to vector<1x128xf32>
    %543 = vector.broadcast %542 : vector<1x128xf32> to vector<8x128xf32>
    %544 = arith.addf %540, %543 : vector<8x128xf32>
    %cst_254 = arith.constant 0.000000e+00 : f32
    %545 = vector.broadcast %cst_254 : f32 to vector<8x128xf32>
    %546 = arith.maximumf %544, %545 : vector<8x128xf32>
    %c1_255 = arith.constant 1 : index
    %c0_256 = arith.constant 0 : index
    %c0_257 = arith.constant 0 : index
    %547 = vector.load %arg23[%c1_255, %c0_256, %c0_257] : memref<2x128x32xf32, #tpu.memory_space<vmem>>, vector<1x128x32xf32>
    %548 = vector.shape_cast %547 : vector<1x128x32xf32> to vector<128x32xf32>
    %cst_258 = arith.constant dense<0.000000e+00> : vector<8x32xf32>
    %549 = tpu.matmul %546, %548, %cst_258 {dimension_numbers = #tpu.dot_dimension_numbers<[1], [0], [0], [1], [0, 0, 1, 1], [], []>} : vector<8x128xf32>, vector<128x32xf32>, vector<8x32xf32> -> vector<8x32xf32>
    %c1_259 = arith.constant 1 : index
    %c0_260 = arith.constant 0 : index
    %c0_261 = arith.constant 0 : index
    %550 = vector.load %arg24[%c1_259, %c0_260, %c0_261] : memref<2x1x32xf32, #tpu.memory_space<vmem>>, vector<1x1x32xf32>
    %551 = vector.shape_cast %550 : vector<1x1x32xf32> to vector<1x32xf32>
    %552 = vector.broadcast %551 : vector<1x32xf32> to vector<8x32xf32>
    %553 = arith.addf %549, %552 : vector<8x32xf32>
    %554 = arith.addf %553, %537 : vector<8x32xf32>
    %c1_262 = arith.constant 1 : index
    %c0_263 = arith.constant 0 : index
    %c0_264 = arith.constant 0 : index
    %555 = vector.load %arg19[%c1_262, %c0_263, %c0_264] : memref<2x1x32xf32, #tpu.memory_space<vmem>>, vector<1x1x32xf32>
    %556 = vector.shape_cast %555 : vector<1x1x32xf32> to vector<1x32xf32>
    %c1_265 = arith.constant 1 : index
    %c0_266 = arith.constant 0 : index
    %c0_267 = arith.constant 0 : index
    %557 = vector.load %arg20[%c1_265, %c0_266, %c0_267] : memref<2x1x32xf32, #tpu.memory_space<vmem>>, vector<1x1x32xf32>
    %558 = vector.shape_cast %557 : vector<1x1x32xf32> to vector<1x32xf32>
    %cst_268 = arith.constant dense<0.000000e+00> : vector<8xf32>
    %559 = vector.multi_reduction <add>, %554, %cst_268 [1] : vector<8x32xf32> to vector<8xf32>
    %560 = vector.shape_cast %559 : vector<8xf32> to vector<8x1xf32>
    %cst_269 = arith.constant 3.200000e+01 : f32
    %561 = vector.broadcast %cst_269 : f32 to vector<8x1xf32>
    %562 = arith.divf %560, %561 : vector<8x1xf32>
    %563 = vector.broadcast %562 : vector<8x1xf32> to vector<8x32xf32>
    %564 = arith.subf %554, %563 : vector<8x32xf32>
    %565 = arith.mulf %564, %564 : vector<8x32xf32>
    %cst_270 = arith.constant dense<0.000000e+00> : vector<8xf32>
    %566 = vector.multi_reduction <add>, %565, %cst_270 [1] : vector<8x32xf32> to vector<8xf32>
    %567 = vector.shape_cast %566 : vector<8xf32> to vector<8x1xf32>
    %cst_271 = arith.constant 3.200000e+01 : f32
    %568 = vector.broadcast %cst_271 : f32 to vector<8x1xf32>
    %569 = arith.divf %567, %568 : vector<8x1xf32>
    %570 = vector.broadcast %562 : vector<8x1xf32> to vector<8x32xf32>
    %571 = arith.subf %554, %570 : vector<8x32xf32>
    %cst_272 = arith.constant 9.99999974E-6 : f32
    %572 = vector.broadcast %cst_272 : f32 to vector<8x1xf32>
    %573 = arith.addf %569, %572 : vector<8x1xf32>
    %574 = math.rsqrt %573 : vector<8x1xf32>
    %575 = vector.broadcast %574 : vector<8x1xf32> to vector<8x32xf32>
    %576 = arith.mulf %571, %575 : vector<8x32xf32>
    %577 = vector.broadcast %556 : vector<1x32xf32> to vector<8x32xf32>
    %578 = arith.mulf %576, %577 : vector<8x32xf32>
    %579 = vector.broadcast %558 : vector<1x32xf32> to vector<8x32xf32>
    %580 = arith.addf %578, %579 : vector<8x32xf32>
    %c0_273 = arith.constant 0 : index
    %c0_274 = arith.constant 0 : index
    %c0_275 = arith.constant 0 : index
    %581 = vector.load %arg25[%c0_273, %c0_274, %c0_275] : memref<1x8x32xf32, #tpu.memory_space<vmem>>, vector<1x8x32xf32>
    %582 = vector.shape_cast %581 : vector<1x8x32xf32> to vector<8x32xf32>
    %583 = vector.shape_cast %580 : vector<8x32xf32> to vector<1x8x32xf32>
    tpu.vector_store %arg25[%c0_273, %c0_274, %c0_275], %583 {strides = array<i32>} : memref<1x8x32xf32, #tpu.memory_space<vmem>>, vector<1x8x32xf32>,
    return
  }
  func.func @transform_0(%arg0: i32) -> (i32, i32, i32) {
    %c0_i32 = arith.constant 0 : i32
    %c0_i32_0 = arith.constant 0 : i32
    %c0_i32_1 = arith.constant 0 : i32
    return %arg0, %c0_i32, %c0_i32_0 : i32, i32, i32
  }
  func.func @transform_1(%arg0: i32) -> (i32, i32, i32) {
    %c0_i32 = arith.constant 0 : i32
    %c0_i32_0 = arith.constant 0 : i32
    %c0_i32_1 = arith.constant 0 : i32
    return %arg0, %c0_i32, %c0_i32_0 : i32, i32, i32
  }
  func.func @transform_2(%arg0: i32) -> (i32, i32) {
    %c0_i32 = arith.constant 0 : i32
    %c0_i32_0 = arith.constant 0 : i32
    %c0_i32_1 = arith.constant 0 : i32
    return %c0_i32, %c0_i32_0 : i32, i32
  }
  func.func @transform_3(%arg0: i32) -> (i32, i32) {
    %c0_i32 = arith.constant 0 : i32
    %c0_i32_0 = arith.constant 0 : i32
    %c0_i32_1 = arith.constant 0 : i32
    return %c0_i32, %c0_i32_0 : i32, i32
  }
  func.func @transform_4(%arg0: i32) -> (i32, i32, i32) {
    %c0_i32 = arith.constant 0 : i32
    %c0_i32_0 = arith.constant 0 : i32
    %c0_i32_1 = arith.constant 0 : i32
    %c0_i32_2 = arith.constant 0 : i32
    return %c0_i32, %c0_i32_0, %c0_i32_1 : i32, i32, i32
  }
  func.func @transform_5(%arg0: i32) -> (i32, i32, i32) {
    %c0_i32 = arith.constant 0 : i32
    %c0_i32_0 = arith.constant 0 : i32
    %c0_i32_1 = arith.constant 0 : i32
    %c0_i32_2 = arith.constant 0 : i32
    return %c0_i32, %c0_i32_0, %c0_i32_1 : i32, i32, i32
  }
  func.func @transform_6(%arg0: i32) -> (i32, i32, i32) {
    %c0_i32 = arith.constant 0 : i32
    %c0_i32_0 = arith.constant 0 : i32
    %c0_i32_1 = arith.constant 0 : i32
    %c0_i32_2 = arith.constant 0 : i32
    return %c0_i32, %c0_i32_0, %c0_i32_1 : i32, i32, i32
  }
  func.func @transform_7(%arg0: i32) -> (i32, i32, i32) {
    %c0_i32 = arith.constant 0 : i32
    %c0_i32_0 = arith.constant 0 : i32
    %c0_i32_1 = arith.constant 0 : i32
    %c0_i32_2 = arith.constant 0 : i32
    return %c0_i32, %c0_i32_0, %c0_i32_1 : i32, i32, i32
  }
  func.func @transform_8(%arg0: i32) -> (i32, i32, i32) {
    %c0_i32 = arith.constant 0 : i32
    %c0_i32_0 = arith.constant 0 : i32
    %c0_i32_1 = arith.constant 0 : i32
    %c0_i32_2 = arith.constant 0 : i32
    return %c0_i32, %c0_i32_0, %c0_i32_1 : i32, i32, i32
  }
  func.func @transform_9(%arg0: i32) -> (i32, i32, i32) {
    %c0_i32 = arith.constant 0 : i32
    %c0_i32_0 = arith.constant 0 : i32
    %c0_i32_1 = arith.constant 0 : i32
    %c0_i32_2 = arith.constant 0 : i32
    return %c0_i32, %c0_i32_0, %c0_i32_1 : i32, i32, i32
  }
  func.func @transform_10(%arg0: i32) -> (i32, i32, i32) {
    %c0_i32 = arith.constant 0 : i32
    %c0_i32_0 = arith.constant 0 : i32
    %c0_i32_1 = arith.constant 0 : i32
    %c0_i32_2 = arith.constant 0 : i32
    return %c0_i32, %c0_i32_0, %c0_i32_1 : i32, i32, i32
  }
  func.func @transform_11(%arg0: i32) -> (i32, i32, i32) {
    %c0_i32 = arith.constant 0 : i32
    %c0_i32_0 = arith.constant 0 : i32
    %c0_i32_1 = arith.constant 0 : i32
    %c0_i32_2 = arith.constant 0 : i32
    return %c0_i32, %c0_i32_0, %c0_i32_1 : i32, i32, i32
  }
  func.func @transform_12(%arg0: i32) -> (i32, i32, i32) {
    %c0_i32 = arith.constant 0 : i32
    %c0_i32_0 = arith.constant 0 : i32
    %c0_i32_1 = arith.constant 0 : i32
    %c0_i32_2 = arith.constant 0 : i32
    return %c0_i32, %c0_i32_0, %c0_i32_1 : i32, i32, i32
  }
  func.func @transform_13(%arg0: i32) -> (i32, i32, i32) {
    %c0_i32 = arith.constant 0 : i32
    %c0_i32_0 = arith.constant 0 : i32
    %c0_i32_1 = arith.constant 0 : i32
    %c0_i32_2 = arith.constant 0 : i32
    return %c0_i32, %c0_i32_0, %c0_i32_1 : i32, i32, i32
  }
  func.func @transform_14(%arg0: i32) -> (i32, i32, i32) {
    %c0_i32 = arith.constant 0 : i32
    %c0_i32_0 = arith.constant 0 : i32
    %c0_i32_1 = arith.constant 0 : i32
    %c0_i32_2 = arith.constant 0 : i32
    return %c0_i32, %c0_i32_0, %c0_i32_1 : i32, i32, i32
  }
  func.func @transform_15(%arg0: i32) -> (i32, i32, i32) {
    %c0_i32 = arith.constant 0 : i32
    %c0_i32_0 = arith.constant 0 : i32
    %c0_i32_1 = arith.constant 0 : i32
    %c0_i32_2 = arith.constant 0 : i32
    return %c0_i32, %c0_i32_0, %c0_i32_1 : i32, i32, i32
  }
  func.func @transform_16(%arg0: i32) -> (i32, i32, i32) {
    %c0_i32 = arith.constant 0 : i32
    %c0_i32_0 = arith.constant 0 : i32
    %c0_i32_1 = arith.constant 0 : i32
    %c0_i32_2 = arith.constant 0 : i32
    return %c0_i32, %c0_i32_0, %c0_i32_1 : i32, i32, i32
  }
  func.func @transform_17(%arg0: i32) -> (i32, i32, i32) {
    %c0_i32 = arith.constant 0 : i32
    %c0_i32_0 = arith.constant 0 : i32
    %c0_i32_1 = arith.constant 0 : i32
    %c0_i32_2 = arith.constant 0 : i32
    return %c0_i32, %c0_i32_0, %c0_i32_1 : i32, i32, i32
  }
  func.func @transform_18(%arg0: i32) -> (i32, i32, i32) {
    %c0_i32 = arith.constant 0 : i32
    %c0_i32_0 = arith.constant 0 : i32
    %c0_i32_1 = arith.constant 0 : i32
    %c0_i32_2 = arith.constant 0 : i32
    return %c0_i32, %c0_i32_0, %c0_i32_1 : i32, i32, i32
  }
  func.func @transform_19(%arg0: i32) -> (i32, i32, i32) {
    %c0_i32 = arith.constant 0 : i32
    %c0_i32_0 = arith.constant 0 : i32
    %c0_i32_1 = arith.constant 0 : i32
    %c0_i32_2 = arith.constant 0 : i32
    return %c0_i32, %c0_i32_0, %c0_i32_1 : i32, i32, i32
  }
  func.func @transform_20(%arg0: i32) -> (i32, i32, i32) {
    %c0_i32 = arith.constant 0 : i32
    %c0_i32_0 = arith.constant 0 : i32
    %c0_i32_1 = arith.constant 0 : i32
    %c0_i32_2 = arith.constant 0 : i32
    return %c0_i32, %c0_i32_0, %c0_i32_1 : i32, i32, i32
  }
  func.func @transform_21(%arg0: i32) -> (i32, i32, i32) {
    %c0_i32 = arith.constant 0 : i32
    %c0_i32_0 = arith.constant 0 : i32
    %c0_i32_1 = arith.constant 0 : i32
    %c0_i32_2 = arith.constant 0 : i32
    return %c0_i32, %c0_i32_0, %c0_i32_1 : i32, i32, i32
  }
  func.func @transform_22(%arg0: i32) -> (i32, i32, i32) {
    %c0_i32 = arith.constant 0 : i32
    %c0_i32_0 = arith.constant 0 : i32
    %c0_i32_1 = arith.constant 0 : i32
    %c0_i32_2 = arith.constant 0 : i32
    return %c0_i32, %c0_i32_0, %c0_i32_1 : i32, i32, i32
  }
  func.func @transform_23(%arg0: i32) -> (i32, i32, i32) {
    %c0_i32 = arith.constant 0 : i32
    %c0_i32_0 = arith.constant 0 : i32
    %c0_i32_1 = arith.constant 0 : i32
    %c0_i32_2 = arith.constant 0 : i32
    return %c0_i32, %c0_i32_0, %c0_i32_1 : i32, i32, i32
  }
  func.func @transform_24(%arg0: i32) -> (i32, i32, i32) {
    %c0_i32 = arith.constant 0 : i32
    %c0_i32_0 = arith.constant 0 : i32
    %c0_i32_1 = arith.constant 0 : i32
    return %arg0, %c0_i32, %c0_i32_0 : i32, i32, i32
  }
}

</mosaic_0001>

<llo_original>
// kernel: _lambda_.1
$region0: #{_lambda_.1}
  #allocation0 [shape = 'u32[]', space=smem, size = 0x4, offset = 0x4, fixed_abs, tag = 'smem constant byte address 0x4 - core index']
  #allocation1 [shape = 'u32[144,128]{1,0:T(1,128)}', space=vmem, size = 0x12000, scoped, tag = 'internal scratch']
  %s0 = inlined_call_operand.vmem [shape: f32[2,8,32], index: 0, kind: input, shape index: {}]
  %s1 = inlined_call_operand.vmem [shape: f32[2,8,32], index: 1, kind: input, shape index: {}]
  %s2 = inlined_call_operand.vmem [shape: f32[8,32], index: 2, kind: input, shape index: {}]
  %s3 = inlined_call_operand.vmem [shape: f32[8,8], index: 3, kind: input, shape index: {}]
  %s4 = inlined_call_operand.hbm [shape: f32[2,32,32], index: 4, kind: input, shape index: {}]
  %s5 = inlined_call_operand.hbm [shape: f32[2,32,32], index: 5, kind: input, shape index: {}]
  %s6 = inlined_call_operand.hbm [shape: f32[2,32,32], index: 6, kind: input, shape index: {}]
  %s7 = inlined_call_operand.hbm [shape: f32[2,32,32], index: 7, kind: input, shape index: {}]
  %s8 = inlined_call_operand.vmem [shape: f32[2,1,32], index: 8, kind: input, shape index: {}, may-alias: {8,10,15,17,19,23}]
  %s9 = inlined_call_operand.vmem [shape: f32[2,1,32], index: 9, kind: input, shape index: {}, may-alias: {9,16,18}]
  %s10 = inlined_call_operand.vmem [shape: f32[2,1,32], index: 10, kind: input, shape index: {}, may-alias: {8,10,15,17,19,23}]
  %s11 = inlined_call_operand.hbm [shape: f32[2,32,32], index: 11, kind: input, shape index: {}]
  %s12 = inlined_call_operand.hbm [shape: f32[2,32,32], index: 12, kind: input, shape index: {}]
  %s13 = inlined_call_operand.hbm [shape: f32[2,32,32], index: 13, kind: input, shape index: {}]
  %s14 = inlined_call_operand.vmem [shape: f32[2,32,32], index: 14, kind: input, shape index: {}]
  %s15 = inlined_call_operand.vmem [shape: f32[2,1,32], index: 15, kind: input, shape index: {}, may-alias: {8,10,15,17,19,23}]
  %s16 = inlined_call_operand.vmem [shape: f32[2,1,32], index: 16, kind: input, shape index: {}, may-alias: {9,16,18}]
  %s17 = inlined_call_operand.vmem [shape: f32[2,1,32], index: 17, kind: input, shape index: {}, may-alias: {8,10,15,17,19,23}]
  %s18 = inlined_call_operand.vmem [shape: f32[2,1,32], index: 18, kind: input, shape index: {}, may-alias: {9,16,18}]
  %s19 = inlined_call_operand.vmem [shape: f32[2,1,32], index: 19, kind: input, shape index: {}, may-alias: {8,10,15,17,19,23}]
  %s20 = inlined_call_operand.vmem [shape: f32[2,32,128], index: 20, kind: input, shape index: {}]
  %s21 = inlined_call_operand.vmem [shape: f32[2,1,128], index: 21, kind: input, shape index: {}]
  %s22 = inlined_call_operand.hbm [shape: f32[2,128,32], index: 22, kind: input, shape index: {}]
  %s23 = inlined_call_operand.vmem [shape: f32[2,1,32], index: 23, kind: input, shape index: {}, may-alias: {8,10,15,17,19,23}]
  %s24 = inlined_call_operand.hbm [shape: f32[2,8,32], index: 24, kind: output, shape index: {}]
  %s25 = sld [smem:[#allocation0]]
  $region161: #{_lambda_.1} parent=0
    _
  %s27 = ssub.s32 1, %s25
  %s28 = scalar_select 0, %s27, %s25
  $region1: #{_lambda_.1} parent=0
    #allocation2 [shape = 'u8[32768]{0}', space=vmem, size = 0x8000, scoped, tag = 'input window, operand 4, single buffered']
    #allocation3 [shape = 's32[2]{0}', space=sflag, size = 0x8, scoped, tag = 'scoped memory for _lambda_.1']
    #allocation4 [shape = 's32[2]{0}', space=sflag, size = 0x8, scoped, tag = 'scoped memory for _lambda_.1']
    #allocation5 [shape = 'u8[32768]{0}', space=vmem, size = 0x8000, scoped, tag = 'input window, operand 5, single buffered']
    #allocation6 [shape = 's32[1]{0}', space=sflag, size = 0x4, scoped, tag = 'scoped memory for _lambda_.1']
    #allocation7 [shape = 'u8[32768]{0}', space=vmem, size = 0x8000, scoped, tag = 'input window, operand 6, single buffered']
    #allocation8 [shape = 'u8[32768]{0}', space=vmem, size = 0x8000, scoped, tag = 'input window, operand 7, single buffered']
    #allocation9 [shape = 's32[1]{0}', space=sflag, size = 0x4, scoped, tag = 'scoped memory for _lambda_.1']
    #allocation10 [shape = 'u8[32768]{0}', space=vmem, size = 0x8000, scoped, tag = 'input window, operand 11, single buffered']
    #allocation11 [shape = 'u8[32768]{0}', space=vmem, size = 0x8000, scoped, tag = 'input window, operand 12, single buffered']
    #allocation12 [shape = 's32[1]{0}', space=sflag, size = 0x4, scoped, tag = 'scoped memory for _lambda_.1']
    #allocation13 [shape = 'u8[32768]{0}', space=vmem, size = 0x8000, scoped, tag = 'input window, operand 13, single buffered']
    #allocation14 [shape = 'u8[131072]{0}', space=vmem, size = 0x20000, scoped, tag = 'input window, operand 22, single buffered']
    #allocation15 [shape = 's32[1]{0}', space=sflag, size = 0x4, scoped, tag = 'scoped memory for _lambda_.1']
    #allocation16 [shape = 'u8[8192]{0}', space=vmem, size = 0x2000, scoped, tag = 'output window, operand 0']
    %29 = vsyncpa [#allocation3], 0
    %30 = vsyncpa [#allocation6], 0
    %31 = vsyncpa [#allocation9], 0
    %32 = vsyncpa [#allocation12], 0
    %33 = vsyncpa [#allocation15], 0
    %34 = vsyncpa [#allocation4], 0
    %s35 = scalar_lea.sflag [#allocation4], 1
    %36 = vsyncpa %s35, 0
    loop: start=0, step=1, limit=4
    $region2: #{_lambda_.1} parent=1 // loop_pre_header
      _
    $region3: #{_lambda_.1} parent=1 // loop_header
      %s38 = sphi 0, %s42
      %p39 = scmp.ge.s32.totalorder %s38, 4
      %s48 = sphi 0, %s50
      %s51 = sphi 0, %s48
      %s52 = sphi 0, %s51
      %s68 = sphi 0, %s52
      %s74 = sphi 0, %s76
      %s77 = sphi 0, %s74
      %s78 = sphi 0, %s77
      %s94 = sphi 0, %s78
      %s98 = sphi 0, %s98
      %s100 = sphi 0, %s98
      %s101 = sphi 0, %s100
      %s115 = sphi 0, %s101
      %s119 = sphi 0, %s119
      %s121 = sphi 0, %s119
      %s122 = sphi 0, %s121
      %s136 = sphi 0, %s122
      %s140 = sphi 0, %s140
      %s142 = sphi 0, %s140
      %s143 = sphi 0, %s142
      %s157 = sphi 0, %s143
      %s161 = sphi 0, %s161
      %s163 = sphi 0, %s161
      %s164 = sphi 0, %s163
      %s178 = sphi 0, %s164
      %s182 = sphi 0, %s182
      %s184 = sphi 0, %s182
      %s185 = sphi 0, %s184
      %s199 = sphi 0, %s185
      %s203 = sphi 0, %s203
      %s205 = sphi 0, %s203
      %s206 = sphi 0, %s205
      %s220 = sphi 0, %s206
      %s224 = sphi 0, %s224
      %s226 = sphi 0, %s224
      %s227 = sphi 0, %s226
      %s241 = sphi 0, %s227
      %s245 = sphi 0, %s245
      %s247 = sphi 0, %s245
      %s248 = sphi 0, %s247
      %s262 = sphi 0, %s248
      %s266 = sphi 0, %s266
      %s268 = sphi 0, %s266
      %s269 = sphi 0, %s268
      %s283 = sphi 0, %s269
      %s287 = sphi 0, %s287
      %s289 = sphi 0, %s287
      %s290 = sphi 0, %s289
      %s304 = sphi 0, %s290
      %s308 = sphi 0, %s308
      %s310 = sphi 0, %s308
      %s311 = sphi 0, %s310
      %s325 = sphi 0, %s311
      %s329 = sphi 0, %s329
      %s331 = sphi 0, %s329
      %s332 = sphi 0, %s331
      %s346 = sphi 0, %s332
      %s350 = sphi 0, %s350
      %s352 = sphi 0, %s350
      %s353 = sphi 0, %s352
      %s367 = sphi 0, %s353
      %s371 = sphi 0, %s371
      %s373 = sphi 0, %s371
      %s374 = sphi 0, %s373
      %s388 = sphi 0, %s374
      %s392 = sphi 0, %s392
      %s394 = sphi 0, %s392
      %s395 = sphi 0, %s394
      %s409 = sphi 0, %s395
      %s413 = sphi 0, %s413
      %s415 = sphi 0, %s413
      %s416 = sphi 0, %s415
      %s430 = sphi 0, %s416
      %s434 = sphi 0, %s434
      %s436 = sphi 0, %s434
      %s437 = sphi 0, %s436
      %s451 = sphi 0, %s437
      %s455 = sphi 0, %s455
      %s457 = sphi 0, %s455
      %s458 = sphi 0, %s457
      %s472 = sphi 0, %s458
      %s476 = sphi 0, %s476
      %s478 = sphi 0, %s476
      %s479 = sphi 0, %s478
      %s493 = sphi 0, %s479
      %s497 = sphi 0, %s497
      %s499 = sphi 0, %s497
      %s500 = sphi 0, %s499
      %s514 = sphi 0, %s500
      %s518 = sphi 0, %s518
      %s520 = sphi 0, %s518
      %s521 = sphi 0, %s520
      %s535 = sphi 0, %s521
      %s539 = sphi 0, %s539
      %s541 = sphi 0, %s539
      %s542 = sphi 0, %s541
      %s556 = sphi 0, %s542
      %s562 = sphi 0, %s564
      %s565 = sphi 0, %s562
      %s566 = sphi 0, %s565
      %s582 = sphi 0, %s566
    $region4: #{_lambda_.1} parent=1 // loop_header_branch
      %41 = sbr.rel (%p39) target = $region8
    $region5: #{_lambda_.1} parent=1 // loop_body
      %s43 = ssub.s32 %s38, 1
      %s44 = ssub.s32 %s38, 2
      %s45 = sadd.s32 %s38, 1
      %s46 = ssub.s32 %s38, %s45
      %p47 = scmp.eq.s32.totalorder %s46, 0
      %s49 = sadd.s32 %s48, 1
      %s50 = scalar_select %p47, %s48, %s49
      %p53 = pneg %p47
      %p54 = scmp.eq.s32.totalorder %s38, 1
      %p55 = por %p53, %p54
      %p56 = scmp.ne.s32.totalorder %s48, %s51
      %p57 = scmp.eq.s32.totalorder %s38, 0
      %p58 = por %p56, %p57
      %p59 = scmp.ne.s32.totalorder %s48, %s51
      %p60 = scmp.eq.s32.totalorder %s43, 1
      %p61 = por %p59, %p60
      %p62 = scmp.ne.s32.totalorder %s51, %s52
      %p63 = scmp.eq.s32.totalorder %s43, 0
      %p64 = por %p62, %p63
      %p65 = scmp.ne.s32.totalorder %s51, %s52
      %p66 = scmp.eq.s32.totalorder %s44, 1
      %p67 = por %p65, %p66
      %p69 = scmp.ne.s32.totalorder %s52, %s68
      %p70 = scmp.eq.s32.totalorder %s44, 0
      %p71 = por %p69, %p70
      %s72 = ssub.s32 %s38, %s45
      %p73 = scmp.eq.s32.totalorder %s72, 0
      %s75 = sadd.s32 %s74, 1
      %s76 = scalar_select %p73, %s74, %s75
      %p79 = pneg %p73
      %p80 = scmp.eq.s32.totalorder %s38, 1
      %p81 = por %p79, %p80
      %p82 = scmp.ne.s32.totalorder %s74, %s77
      %p83 = scmp.eq.s32.totalorder %s38, 0
      %p84 = por %p82, %p83
      %p85 = scmp.ne.s32.totalorder %s74, %s77
      %p86 = scmp.eq.s32.totalorder %s43, 1
      %p87 = por %p85, %p86
      %p88 = scmp.ne.s32.totalorder %s77, %s78
      %p89 = scmp.eq.s32.totalorder %s43, 0
      %p90 = por %p88, %p89
      %p91 = scmp.ne.s32.totalorder %s77, %s78
      %p92 = scmp.eq.s32.totalorder %s44, 1
      %p93 = por %p91, %p92
      %p95 = scmp.ne.s32.totalorder %s78, %s94
      %p96 = scmp.eq.s32.totalorder %s44, 0
      %p97 = por %p95, %p96
      %s99 = sadd.s32 %s98, 1
      %p102 = scmp.eq.s32.totalorder %s38, 1
      %p103 = scmp.ne.s32.totalorder %s98, %s100
      %p104 = scmp.eq.s32.totalorder %s38, 0
      %p105 = por %p103, %p104
      %p106 = scmp.ne.s32.totalorder %s98, %s100
      %p107 = scmp.eq.s32.totalorder %s43, 1
      %p108 = por %p106, %p107
      %p109 = scmp.ne.s32.totalorder %s100, %s101
      %p110 = scmp.eq.s32.totalorder %s43, 0
      %p111 = por %p109, %p110
      %p112 = scmp.ne.s32.totalorder %s100, %s101
      %p113 = scmp.eq.s32.totalorder %s44, 1
      %p114 = por %p112, %p113
      %p116 = scmp.ne.s32.totalorder %s101, %s115
      %p117 = scmp.eq.s32.totalorder %s44, 0
      %p118 = por %p116, %p117
      %s120 = sadd.s32 %s119, 1
      %p123 = scmp.eq.s32.totalorder %s38, 1
      %p124 = scmp.ne.s32.totalorder %s119, %s121
      %p125 = scmp.eq.s32.totalorder %s38, 0
      %p126 = por %p124, %p125
      %p127 = scmp.ne.s32.totalorder %s119, %s121
      %p128 = scmp.eq.s32.totalorder %s43, 1
      %p129 = por %p127, %p128
      %p130 = scmp.ne.s32.totalorder %s121, %s122
      %p131 = scmp.eq.s32.totalorder %s43, 0
      %p132 = por %p130, %p131
      %p133 = scmp.ne.s32.totalorder %s121, %s122
      %p134 = scmp.eq.s32.totalorder %s44, 1
      %p135 = por %p133, %p134
      %p137 = scmp.ne.s32.totalorder %s122, %s136
      %p138 = scmp.eq.s32.totalorder %s44, 0
      %p139 = por %p137, %p138
      %s141 = sadd.s32 %s140, 1
      %p144 = scmp.eq.s32.totalorder %s38, 1
      %p145 = scmp.ne.s32.totalorder %s140, %s142
      %p146 = scmp.eq.s32.totalorder %s38, 0
      %p147 = por %p145, %p146
      %p148 = scmp.ne.s32.totalorder %s140, %s142
      %p149 = scmp.eq.s32.totalorder %s43, 1
      %p150 = por %p148, %p149
      %p151 = scmp.ne.s32.totalorder %s142, %s143
      %p152 = scmp.eq.s32.totalorder %s43, 0
      %p153 = por %p151, %p152
      %p154 = scmp.ne.s32.totalorder %s142, %s143
      %p155 = scmp.eq.s32.totalorder %s44, 1
      %p156 = por %p154, %p155
      %p158 = scmp.ne.s32.totalorder %s143, %s157
      %p159 = scmp.eq.s32.totalorder %s44, 0
      %p160 = por %p158, %p159
      %s162 = sadd.s32 %s161, 1
      %p165 = scmp.eq.s32.totalorder %s38, 1
      %p166 = scmp.ne.s32.totalorder %s161, %s163
      %p167 = scmp.eq.s32.totalorder %s38, 0
      %p168 = por %p166, %p167
      %p169 = scmp.ne.s32.totalorder %s161, %s163
      %p170 = scmp.eq.s32.totalorder %s43, 1
      %p171 = por %p169, %p170
      %p172 = scmp.ne.s32.totalorder %s163, %s164
      %p173 = scmp.eq.s32.totalorder %s43, 0
      %p174 = por %p172, %p173
      %p175 = scmp.ne.s32.totalorder %s163, %s164
      %p176 = scmp.eq.s32.totalorder %s44, 1
      %p177 = por %p175, %p176
      %p179 = scmp.ne.s32.totalorder %s164, %s178
      %p180 = scmp.eq.s32.totalorder %s44, 0
      %p181 = por %p179, %p180
      %s183 = sadd.s32 %s182, 1
      %p186 = scmp.eq.s32.totalorder %s38, 1
      %p187 = scmp.ne.s32.totalorder %s182, %s184
      %p188 = scmp.eq.s32.totalorder %s38, 0
      %p189 = por %p187, %p188
      %p190 = scmp.ne.s32.totalorder %s182, %s184
      %p191 = scmp.eq.s32.totalorder %s43, 1
      %p192 = por %p190, %p191
      %p193 = scmp.ne.s32.totalorder %s184, %s185
      %p194 = scmp.eq.s32.totalorder %s43, 0
      %p195 = por %p193, %p194
      %p196 = scmp.ne.s32.totalorder %s184, %s185
      %p197 = scmp.eq.s32.totalorder %s44, 1
      %p198 = por %p196, %p197
      %p200 = scmp.ne.s32.totalorder %s185, %s199
      %p201 = scmp.eq.s32.totalorder %s44, 0
      %p202 = por %p200, %p201
      %s204 = sadd.s32 %s203, 1
      %p207 = scmp.eq.s32.totalorder %s38, 1
      %p208 = scmp.ne.s32.totalorder %s203, %s205
      %p209 = scmp.eq.s32.totalorder %s38, 0
      %p210 = por %p208, %p209
      %p211 = scmp.ne.s32.totalorder %s203, %s205
      %p212 = scmp.eq.s32.totalorder %s43, 1
      %p213 = por %p211, %p212
      %p214 = scmp.ne.s32.totalorder %s205, %s206
      %p215 = scmp.eq.s32.totalorder %s43, 0
      %p216 = por %p214, %p215
      %p217 = scmp.ne.s32.totalorder %s205, %s206
      %p218 = scmp.eq.s32.totalorder %s44, 1
      %p219 = por %p217, %p218
      %p221 = scmp.ne.s32.totalorder %s206, %s220
      %p222 = scmp.eq.s32.totalorder %s44, 0
      %p223 = por %p221, %p222
      %s225 = sadd.s32 %s224, 1
      %p228 = scmp.eq.s32.totalorder %s38, 1
      %p229 = scmp.ne.s32.totalorder %s224, %s226
      %p230 = scmp.eq.s32.totalorder %s38, 0
      %p231 = por %p229, %p230
      %p232 = scmp.ne.s32.totalorder %s224, %s226
      %p233 = scmp.eq.s32.totalorder %s43, 1
      %p234 = por %p232, %p233
      %p235 = scmp.ne.s32.totalorder %s226, %s227
      %p236 = scmp.eq.s32.totalorder %s43, 0
      %p237 = por %p235, %p236
      %p238 = scmp.ne.s32.totalorder %s226, %s227
      %p239 = scmp.eq.s32.totalorder %s44, 1
      %p240 = por %p238, %p239
      %p242 = scmp.ne.s32.totalorder %s227, %s241
      %p243 = scmp.eq.s32.totalorder %s44, 0
      %p244 = por %p242, %p243
      %s246 = sadd.s32 %s245, 1
      %p249 = scmp.eq.s32.totalorder %s38, 1
      %p250 = scmp.ne.s32.totalorder %s245, %s247
      %p251 = scmp.eq.s32.totalorder %s38, 0
      %p252 = por %p250, %p251
      %p253 = scmp.ne.s32.totalorder %s245, %s247
      %p254 = scmp.eq.s32.totalorder %s43, 1
      %p255 = por %p253, %p254
      %p256 = scmp.ne.s32.totalorder %s247, %s248
      %p257 = scmp.eq.s32.totalorder %s43, 0
      %p258 = por %p256, %p257
      %p259 = scmp.ne.s32.totalorder %s247, %s248
      %p260 = scmp.eq.s32.totalorder %s44, 1
      %p261 = por %p259, %p260
      %p263 = scmp.ne.s32.totalorder %s248, %s262
      %p264 = scmp.eq.s32.totalorder %s44, 0
      %p265 = por %p263, %p264
      %s267 = sadd.s32 %s266, 1
      %p270 = scmp.eq.s32.totalorder %s38, 1
      %p271 = scmp.ne.s32.totalorder %s266, %s268
      %p272 = scmp.eq.s32.totalorder %s38, 0
      %p273 = por %p271, %p272
      %p274 = scmp.ne.s32.totalorder %s266, %s268
      %p275 = scmp.eq.s32.totalorder %s43, 1
      %p276 = por %p274, %p275
      %p277 = scmp.ne.s32.totalorder %s268, %s269
      %p278 = scmp.eq.s32.totalorder %s43, 0
      %p279 = por %p277, %p278
      %p280 = scmp.ne.s32.totalorder %s268, %s269
      %p281 = scmp.eq.s32.totalorder %s44, 1
      %p282 = por %p280, %p281
      %p284 = scmp.ne.s32.totalorder %s269, %s283
      %p285 = scmp.eq.s32.totalorder %s44, 0
      %p286 = por %p284, %p285
      %s288 = sadd.s32 %s287, 1
      %p291 = scmp.eq.s32.totalorder %s38, 1
      %p292 = scmp.ne.s32.totalorder %s287, %s289
      %p293 = scmp.eq.s32.totalorder %s38, 0
      %p294 = por %p292, %p293
      %p295 = scmp.ne.s32.totalorder %s287, %s289
      %p296 = scmp.eq.s32.totalorder %s43, 1
      %p297 = por %p295, %p296
      %p298 = scmp.ne.s32.totalorder %s289, %s290
      %p299 = scmp.eq.s32.totalorder %s43, 0
      %p300 = por %p298, %p299
      %p301 = scmp.ne.s32.totalorder %s289, %s290
      %p302 = scmp.eq.s32.totalorder %s44, 1
      %p303 = por %p301, %p302
      %p305 = scmp.ne.s32.totalorder %s290, %s304
      %p306 = scmp.eq.s32.totalorder %s44, 0
      %p307 = por %p305, %p306
      %s309 = sadd.s32 %s308, 1
      %p312 = scmp.eq.s32.totalorder %s38, 1
      %p313 = scmp.ne.s32.totalorder %s308, %s310
      %p314 = scmp.eq.s32.totalorder %s38, 0
      %p315 = por %p313, %p314
      %p316 = scmp.ne.s32.totalorder %s308, %s310
      %p317 = scmp.eq.s32.totalorder %s43, 1
      %p318 = por %p316, %p317
      %p319 = scmp.ne.s32.totalorder %s310, %s311
      %p320 = scmp.eq.s32.totalorder %s43, 0
      %p321 = por %p319, %p320
      %p322 = scmp.ne.s32.totalorder %s310, %s311
      %p323 = scmp.eq.s32.totalorder %s44, 1
      %p324 = por %p322, %p323
      %p326 = scmp.ne.s32.totalorder %s311, %s325
      %p327 = scmp.eq.s32.totalorder %s44, 0
      %p328 = por %p326, %p327
      %s330 = sadd.s32 %s329, 1
      %p333 = scmp.eq.s32.totalorder %s38, 1
      %p334 = scmp.ne.s32.totalorder %s329, %s331
      %p335 = scmp.eq.s32.totalorder %s38, 0
      %p336 = por %p334, %p335
      %p337 = scmp.ne.s32.totalorder %s329, %s331
      %p338 = scmp.eq.s32.totalorder %s43, 1
      %p339 = por %p337, %p338
      %p340 = scmp.ne.s32.totalorder %s331, %s332
      %p341 = scmp.eq.s32.totalorder %s43, 0
      %p342 = por %p340, %p341
      %p343 = scmp.ne.s32.totalorder %s331, %s332
      %p344 = scmp.eq.s32.totalorder %s44, 1
      %p345 = por %p343, %p344
      %p347 = scmp.ne.s32.totalorder %s332, %s346
      %p348 = scmp.eq.s32.totalorder %s44, 0
      %p349 = por %p347, %p348
      %s351 = sadd.s32 %s350, 1
      %p354 = scmp.eq.s32.totalorder %s38, 1
      %p355 = scmp.ne.s32.totalorder %s350, %s352
      %p356 = scmp.eq.s32.totalorder %s38, 0
      %p357 = por %p355, %p356
      %p358 = scmp.ne.s32.totalorder %s350, %s352
      %p359 = scmp.eq.s32.totalorder %s43, 1
      %p360 = por %p358, %p359
      %p361 = scmp.ne.s32.totalorder %s352, %s353
      %p362 = scmp.eq.s32.totalorder %s43, 0
      %p363 = por %p361, %p362
      %p364 = scmp.ne.s32.totalorder %s352, %s353
      %p365 = scmp.eq.s32.totalorder %s44, 1
      %p366 = por %p364, %p365
      %p368 = scmp.ne.s32.totalorder %s353, %s367
      %p369 = scmp.eq.s32.totalorder %s44, 0
      %p370 = por %p368, %p369
      %s372 = sadd.s32 %s371, 1
      %p375 = scmp.eq.s32.totalorder %s38, 1
      %p376 = scmp.ne.s32.totalorder %s371, %s373
      %p377 = scmp.eq.s32.totalorder %s38, 0
      %p378 = por %p376, %p377
      %p379 = scmp.ne.s32.totalorder %s371, %s373
      %p380 = scmp.eq.s32.totalorder %s43, 1
      %p381 = por %p379, %p380
      %p382 = scmp.ne.s32.totalorder %s373, %s374
      %p383 = scmp.eq.s32.totalorder %s43, 0
      %p384 = por %p382, %p383
      %p385 = scmp.ne.s32.totalorder %s373, %s374
      %p386 = scmp.eq.s32.totalorder %s44, 1
      %p387 = por %p385, %p386
      %p389 = scmp.ne.s32.totalorder %s374, %s388
      %p390 = scmp.eq.s32.totalorder %s44, 0
      %p391 = por %p389, %p390
      %s393 = sadd.s32 %s392, 1
      %p396 = scmp.eq.s32.totalorder %s38, 1
      %p397 = scmp.ne.s32.totalorder %s392, %s394
      %p398 = scmp.eq.s32.totalorder %s38, 0
      %p399 = por %p397, %p398
      %p400 = scmp.ne.s32.totalorder %s392, %s394
      %p401 = scmp.eq.s32.totalorder %s43, 1
      %p402 = por %p400, %p401
      %p403 = scmp.ne.s32.totalorder %s394, %s395
      %p404 = scmp.eq.s32.totalorder %s43, 0
      %p405 = por %p403, %p404
      %p406 = scmp.ne.s32.totalorder %s394, %s395
      %p407 = scmp.eq.s32.totalorder %s44, 1
      %p408 = por %p406, %p407
      %p410 = scmp.ne.s32.totalorder %s395, %s409
      %p411 = scmp.eq.s32.totalorder %s44, 0
      %p412 = por %p410, %p411
      %s414 = sadd.s32 %s413, 1
      %p417 = scmp.eq.s32.totalorder %s38, 1
      %p418 = scmp.ne.s32.totalorder %s413, %s415
      %p419 = scmp.eq.s32.totalorder %s38, 0
      %p420 = por %p418, %p419
      %p421 = scmp.ne.s32.totalorder %s413, %s415
      %p422 = scmp.eq.s32.totalorder %s43, 1
      %p423 = por %p421, %p422
      %p424 = scmp.ne.s32.totalorder %s415, %s416
      %p425 = scmp.eq.s32.totalorder %s43, 0
      %p426 = por %p424, %p425
      %p427 = scmp.ne.s32.totalorder %s415, %s416
      %p428 = scmp.eq.s32.totalorder %s44, 1
      %p429 = por %p427, %p428
      %p431 = scmp.ne.s32.totalorder %s416, %s430
      %p432 = scmp.eq.s32.totalorder %s44, 0
      %p433 = por %p431, %p432
      %s435 = sadd.s32 %s434, 1
      %p438 = scmp.eq.s32.totalorder %s38, 1
      %p439 = scmp.ne.s32.totalorder %s434, %s436
      %p440 = scmp.eq.s32.totalorder %s38, 0
      %p441 = por %p439, %p440
      %p442 = scmp.ne.s32.totalorder %s434, %s436
      %p443 = scmp.eq.s32.totalorder %s43, 1
      %p444 = por %p442, %p443
      %p445 = scmp.ne.s32.totalorder %s436, %s437
      %p446 = scmp.eq.s32.totalorder %s43, 0
      %p447 = por %p445, %p446
      %p448 = scmp.ne.s32.totalorder %s436, %s437
      %p449 = scmp.eq.s32.totalorder %s44, 1
      %p450 = por %p448, %p449
      %p452 = scmp.ne.s32.totalorder %s437, %s451
      %p453 = scmp.eq.s32.totalorder %s44, 0
      %p454 = por %p452, %p453
      %s456 = sadd.s32 %s455, 1
      %p459 = scmp.eq.s32.totalorder %s38, 1
      %p460 = scmp.ne.s32.totalorder %s455, %s457
      %p461 = scmp.eq.s32.totalorder %s38, 0
      %p462 = por %p460, %p461
      %p463 = scmp.ne.s32.totalorder %s455, %s457
      %p464 = scmp.eq.s32.totalorder %s43, 1
      %p465 = por %p463, %p464
      %p466 = scmp.ne.s32.totalorder %s457, %s458
      %p467 = scmp.eq.s32.totalorder %s43, 0
      %p468 = por %p466, %p467
      %p469 = scmp.ne.s32.totalorder %s457, %s458
      %p470 = scmp.eq.s32.totalorder %s44, 1
      %p471 = por %p469, %p470
      %p473 = scmp.ne.s32.totalorder %s458, %s472
      %p474 = scmp.eq.s32.totalorder %s44, 0
      %p475 = por %p473, %p474
      %s477 = sadd.s32 %s476, 1
      %p480 = scmp.eq.s32.totalorder %s38, 1
      %p481 = scmp.ne.s32.totalorder %s476, %s478
      %p482 = scmp.eq.s32.totalorder %s38, 0
      %p483 = por %p481, %p482
      %p484 = scmp.ne.s32.totalorder %s476, %s478
      %p485 = scmp.eq.s32.totalorder %s43, 1
      %p486 = por %p484, %p485
      %p487 = scmp.ne.s32.totalorder %s478, %s479
      %p488 = scmp.eq.s32.totalorder %s43, 0
      %p489 = por %p487, %p488
      %p490 = scmp.ne.s32.totalorder %s478, %s479
      %p491 = scmp.eq.s32.totalorder %s44, 1
      %p492 = por %p490, %p491
      %p494 = scmp.ne.s32.totalorder %s479, %s493
      %p495 = scmp.eq.s32.totalorder %s44, 0
      %p496 = por %p494, %p495
      %s498 = sadd.s32 %s497, 1
      %p501 = scmp.eq.s32.totalorder %s38, 1
      %p502 = scmp.ne.s32.totalorder %s497, %s499
      %p503 = scmp.eq.s32.totalorder %s38, 0
      %p504 = por %p502, %p503
      %p505 = scmp.ne.s32.totalorder %s497, %s499
      %p506 = scmp.eq.s32.totalorder %s43, 1
      %p507 = por %p505, %p506
      %p508 = scmp.ne.s32.totalorder %s499, %s500
      %p509 = scmp.eq.s32.totalorder %s43, 0
      %p510 = por %p508, %p509
      %p511 = scmp.ne.s32.totalorder %s499, %s500
      %p512 = scmp.eq.s32.totalorder %s44, 1
      %p513 = por %p511, %p512
      %p515 = scmp.ne.s32.totalorder %s500, %s514
      %p516 = scmp.eq.s32.totalorder %s44, 0
      %p517 = por %p515, %p516
      %s519 = sadd.s32 %s518, 1
      %p522 = scmp.eq.s32.totalorder %s38, 1
      %p523 = scmp.ne.s32.totalorder %s518, %s520
      %p524 = scmp.eq.s32.totalorder %s38, 0
      %p525 = por %p523, %p524
      %p526 = scmp.ne.s32.totalorder %s518, %s520
      %p527 = scmp.eq.s32.totalorder %s43, 1
      %p528 = por %p526, %p527
      %p529 = scmp.ne.s32.totalorder %s520, %s521
      %p530 = scmp.eq.s32.totalorder %s43, 0
      %p531 = por %p529, %p530
      %p532 = scmp.ne.s32.totalorder %s520, %s521
      %p533 = scmp.eq.s32.totalorder %s44, 1
      %p534 = por %p532, %p533
      %p536 = scmp.ne.s32.totalorder %s521, %s535
      %p537 = scmp.eq.s32.totalorder %s44, 0
      %p538 = por %p536, %p537
      %s540 = sadd.s32 %s539, 1
      %p543 = scmp.eq.s32.totalorder %s38, 1
      %p544 = scmp.ne.s32.totalorder %s539, %s541
      %p545 = scmp.eq.s32.totalorder %s38, 0
      %p546 = por %p544, %p545
      %p547 = scmp.ne.s32.totalorder %s539, %s541
      %p548 = scmp.eq.s32.totalorder %s43, 1
      %p549 = por %p547, %p548
      %p550 = scmp.ne.s32.totalorder %s541, %s542
      %p551 = scmp.eq.s32.totalorder %s43, 0
      %p552 = por %p550, %p551
      %p553 = scmp.ne.s32.totalorder %s541, %s542
      %p554 = scmp.eq.s32.totalorder %s44, 1
      %p555 = por %p553, %p554
      %p557 = scmp.ne.s32.totalorder %s542, %s556
      %p558 = scmp.eq.s32.totalorder %s44, 0
      %p559 = por %p557, %p558
      %s560 = ssub.s32 %s38, %s45
      %p561 = scmp.eq.s32.totalorder %s560, 0
      %s563 = sadd.s32 %s562, 1
      %s564 = scalar_select %p561, %s562, %s563
      %p567 = pneg %p561
      %p568 = scmp.eq.s32.totalorder %s38, 1
      %p569 = por %p567, %p568
      %p570 = scmp.ne.s32.totalorder %s562, %s565
      %p571 = scmp.eq.s32.totalorder %s38, 0
      %p572 = por %p570, %p571
      %p573 = scmp.ne.s32.totalorder %s562, %s565
      %p574 = scmp.eq.s32.totalorder %s43, 1
      %p575 = por %p573, %p574
      %p576 = scmp.ne.s32.totalorder %s565, %s566
      %p577 = scmp.eq.s32.totalorder %s43, 0
      %p578 = por %p576, %p577
      %p579 = scmp.ne.s32.totalorder %s565, %s566
      %p580 = scmp.eq.s32.totalorder %s44, 1
      %p581 = por %p579, %p580
      %p583 = scmp.ne.s32.totalorder %s566, %s582
      %p584 = scmp.eq.s32.totalorder %s44, 0
      %p585 = por %p583, %p584
      %p586 = scmp.le.s32.totalorder 1, %s38
      %p587 = scmp.lt.s32.totalorder %s38, 3
      %p588 = pnand %p586, %p587
      %p589 = pneg %p588
      // Predicated region
      $region9: #{_lambda_.1} parent=5 // pred_check
        _
      $region10: #{_lambda_.1} parent=5 // pred_check_branch
        %591 = sbr.rel (%p588) target = $region12
      $region11: #{_lambda_.1} parent=5 // pred_region
        %s592 = ssub.s32 %s38, 1
        // Predicated region
        $region13: #{_lambda_.1} parent=11 // pred_check
          %p593 = pneg %p111
        $region14: #{_lambda_.1} parent=11 // pred_check_branch
          %595 = sbr.rel (%p593) target = $region16
        $region15: #{_lambda_.1} parent=11 // pred_region
          _
        $region16: #{_lambda_.1} parent=11 // pred_fallthru
          _
        // Predicated region
        $region17: #{_lambda_.1} parent=11 // pred_check
          %p596 = pneg %p132
        $region18: #{_lambda_.1} parent=11 // pred_check_branch
          %598 = sbr.rel (%p596) target = $region20
        $region19: #{_lambda_.1} parent=11 // pred_region
          _
        $region20: #{_lambda_.1} parent=11 // pred_fallthru
          _
        // Predicated region
        $region21: #{_lambda_.1} parent=11 // pred_check
          %p599 = pneg %p153
        $region22: #{_lambda_.1} parent=11 // pred_check_branch
          %601 = sbr.rel (%p599) target = $region24
        $region23: #{_lambda_.1} parent=11 // pred_region
          %s603 = ssub.s32 1024, 1024
          %604 = vsyncadd [#allocation3], %s603
          %s605 = sshll.u32 [#allocation2], 4
          %s606 = int_to_ptr.vmem [resolvable:$true] %s605
          %611 = dma.hbm_to_vmem [thread:$0]  %s4, 1024, %s606, [#allocation3], 128, 128, 8
        $region24: #{_lambda_.1} parent=11 // pred_fallthru
          _
        // Predicated region
        $region25: #{_lambda_.1} parent=11 // pred_check
          %p612 = pneg %p174
        $region26: #{_lambda_.1} parent=11 // pred_check_branch
          %614 = sbr.rel (%p612) target = $region28
        $region27: #{_lambda_.1} parent=11 // pred_region
          %s616 = ssub.s32 1024, 1024
          %617 = vsyncadd [#allocation6], %s616
          %s618 = sshll.u32 [#allocation5], 4
          %s619 = int_to_ptr.vmem [resolvable:$true] %s618
          %624 = dma.hbm_to_vmem [thread:$0]  %s5, 1024, %s619, [#allocation6], 128, 128, 8
        $region28: #{_lambda_.1} parent=11 // pred_fallthru
          _
        // Predicated region
        $region29: #{_lambda_.1} parent=11 // pred_check
          %p625 = pneg %p195
        $region30: #{_lambda_.1} parent=11 // pred_check_branch
          %627 = sbr.rel (%p625) target = $region32
        $region31: #{_lambda_.1} parent=11 // pred_region
          %s629 = ssub.s32 1024, 1024
          %630 = vsyncadd [#allocation6], %s629
          %s631 = sshll.u32 [#allocation7], 4
          %s632 = int_to_ptr.vmem [resolvable:$true] %s631
          %637 = dma.hbm_to_vmem [thread:$0]  %s6, 1024, %s632, [#allocation6], 128, 128, 8
        $region32: #{_lambda_.1} parent=11 // pred_fallthru
          _
        // Predicated region
        $region33: #{_lambda_.1} parent=11 // pred_check
          %p638 = pneg %p216
        $region34: #{_lambda_.1} parent=11 // pred_check_branch
          %640 = sbr.rel (%p638) target = $region36
        $region35: #{_lambda_.1} parent=11 // pred_region
          %s642 = ssub.s32 1024, 1024
          %643 = vsyncadd [#allocation9], %s642
          %s644 = sshll.u32 [#allocation8], 4
          %s645 = int_to_ptr.vmem [resolvable:$true] %s644
          %650 = dma.hbm_to_vmem [thread:$0]  %s7, 1024, %s645, [#allocation9], 128, 128, 8
        $region36: #{_lambda_.1} parent=11 // pred_fallthru
          _
        // Predicated region
        $region37: #{_lambda_.1} parent=11 // pred_check
          %p651 = pneg %p237
        $region38: #{_lambda_.1} parent=11 // pred_check_branch
          %653 = sbr.rel (%p651) target = $region40
        $region39: #{_lambda_.1} parent=11 // pred_region
          _
        $region40: #{_lambda_.1} parent=11 // pred_fallthru
          _
        // Predicated region
        $region41: #{_lambda_.1} parent=11 // pred_check
          %p654 = pneg %p258
        $region42: #{_lambda_.1} parent=11 // pred_check_branch
          %656 = sbr.rel (%p654) target = $region44
        $region43: #{_lambda_.1} parent=11 // pred_region
          _
        $region44: #{_lambda_.1} parent=11 // pred_fallthru
          _
        // Predicated region
        $region45: #{_lambda_.1} parent=11 // pred_check
          %p657 = pneg %p279
        $region46: #{_lambda_.1} parent=11 // pred_check_branch
          %659 = sbr.rel (%p657) target = $region48
        $region47: #{_lambda_.1} parent=11 // pred_region
          _
        $region48: #{_lambda_.1} parent=11 // pred_fallthru
          _
        // Predicated region
        $region49: #{_lambda_.1} parent=11 // pred_check
          %p660 = pneg %p300
        $region50: #{_lambda_.1} parent=11 // pred_check_branch
          %662 = sbr.rel (%p660) target = $region52
        $region51: #{_lambda_.1} parent=11 // pred_region
          %s664 = ssub.s32 1024, 1024
          %665 = vsyncadd [#allocation9], %s664
          %s666 = sshll.u32 [#allocation10], 4
          %s667 = int_to_ptr.vmem [resolvable:$true] %s666
          %672 = dma.hbm_to_vmem [thread:$0]  %s11, 1024, %s667, [#allocation9], 128, 128, 8
        $region52: #{_lambda_.1} parent=11 // pred_fallthru
          _
        // Predicated region
        $region53: #{_lambda_.1} parent=11 // pred_check
          %p673 = pneg %p321
        $region54: #{_lambda_.1} parent=11 // pred_check_branch
          %675 = sbr.rel (%p673) target = $region56
        $region55: #{_lambda_.1} parent=11 // pred_region
          %s677 = ssub.s32 1024, 1024
          %678 = vsyncadd [#allocation12], %s677
          %s679 = sshll.u32 [#allocation11], 4
          %s680 = int_to_ptr.vmem [resolvable:$true] %s679
          %685 = dma.hbm_to_vmem [thread:$0]  %s12, 1024, %s680, [#allocation12], 128, 128, 8
        $region56: #{_lambda_.1} parent=11 // pred_fallthru
          _
        // Predicated region
        $region57: #{_lambda_.1} parent=11 // pred_check
          %p686 = pneg %p342
        $region58: #{_lambda_.1} parent=11 // pred_check_branch
          %688 = sbr.rel (%p686) target = $region60
        $region59: #{_lambda_.1} parent=11 // pred_region
          %s690 = ssub.s32 1024, 1024
          %691 = vsyncadd [#allocation12], %s690
          %s692 = sshll.u32 [#allocation13], 4
          %s693 = int_to_ptr.vmem [resolvable:$true] %s692
          %698 = dma.hbm_to_vmem [thread:$0]  %s13, 1024, %s693, [#allocation12], 128, 128, 8
        $region60: #{_lambda_.1} parent=11 // pred_fallthru
          _
        // Predicated region
        $region61: #{_lambda_.1} parent=11 // pred_check
          %p699 = pneg %p363
        $region62: #{_lambda_.1} parent=11 // pred_check_branch
          %701 = sbr.rel (%p699) target = $region64
        $region63: #{_lambda_.1} parent=11 // pred_region
          _
        $region64: #{_lambda_.1} parent=11 // pred_fallthru
          _
        // Predicated region
        $region65: #{_lambda_.1} parent=11 // pred_check
          %p702 = pneg %p384
        $region66: #{_lambda_.1} parent=11 // pred_check_branch
          %704 = sbr.rel (%p702) target = $region68
        $region67: #{_lambda_.1} parent=11 // pred_region
          _
        $region68: #{_lambda_.1} parent=11 // pred_fallthru
          _
        // Predicated region
        $region69: #{_lambda_.1} parent=11 // pred_check
          %p705 = pneg %p405
        $region70: #{_lambda_.1} parent=11 // pred_check_branch
          %707 = sbr.rel (%p705) target = $region72
        $region71: #{_lambda_.1} parent=11 // pred_region
          _
        $region72: #{_lambda_.1} parent=11 // pred_fallthru
          _
        // Predicated region
        $region73: #{_lambda_.1} parent=11 // pred_check
          %p708 = pneg %p426
        $region74: #{_lambda_.1} parent=11 // pred_check_branch
          %710 = sbr.rel (%p708) target = $region76
        $region75: #{_lambda_.1} parent=11 // pred_region
          _
        $region76: #{_lambda_.1} parent=11 // pred_fallthru
          _
        // Predicated region
        $region77: #{_lambda_.1} parent=11 // pred_check
          %p711 = pneg %p447
        $region78: #{_lambda_.1} parent=11 // pred_check_branch
          %713 = sbr.rel (%p711) target = $region80
        $region79: #{_lambda_.1} parent=11 // pred_region
          _
        $region80: #{_lambda_.1} parent=11 // pred_fallthru
          _
        // Predicated region
        $region81: #{_lambda_.1} parent=11 // pred_check
          %p714 = pneg %p468
        $region82: #{_lambda_.1} parent=11 // pred_check_branch
          %716 = sbr.rel (%p714) target = $region84
        $region83: #{_lambda_.1} parent=11 // pred_region
          _
        $region84: #{_lambda_.1} parent=11 // pred_fallthru
          _
        // Predicated region
        $region85: #{_lambda_.1} parent=11 // pred_check
          %p717 = pneg %p489
        $region86: #{_lambda_.1} parent=11 // pred_check_branch
          %719 = sbr.rel (%p717) target = $region88
        $region87: #{_lambda_.1} parent=11 // pred_region
          _
        $region88: #{_lambda_.1} parent=11 // pred_fallthru
          _
        // Predicated region
        $region89: #{_lambda_.1} parent=11 // pred_check
          %p720 = pneg %p510
        $region90: #{_lambda_.1} parent=11 // pred_check_branch
          %722 = sbr.rel (%p720) target = $region92
        $region91: #{_lambda_.1} parent=11 // pred_region
          _
        $region92: #{_lambda_.1} parent=11 // pred_fallthru
          _
        // Predicated region
        $region93: #{_lambda_.1} parent=11 // pred_check
          %p723 = pneg %p531
        $region94: #{_lambda_.1} parent=11 // pred_check_branch
          %725 = sbr.rel (%p723) target = $region96
        $region95: #{_lambda_.1} parent=11 // pred_region
          %s727 = ssub.s32 4096, 4096
          %728 = vsyncadd [#allocation15], %s727
          %s729 = sshll.u32 [#allocation14], 4
          %s730 = int_to_ptr.vmem [resolvable:$true] %s729
          %735 = dma.hbm_to_vmem [thread:$0]  %s22, 4096, %s730, [#allocation15], 128, 128, 8
        $region96: #{_lambda_.1} parent=11 // pred_fallthru
          _
        // Predicated region
        $region97: #{_lambda_.1} parent=11 // pred_check
          %p736 = pneg %p552
        $region98: #{_lambda_.1} parent=11 // pred_check_branch
          %738 = sbr.rel (%p736) target = $region100
        $region99: #{_lambda_.1} parent=11 // pred_region
          _
        $region100: #{_lambda_.1} parent=11 // pred_fallthru
          _
      $region12: #{_lambda_.1} parent=5 // pred_fallthru
        _
      %p739 = scmp.lt.s32.totalorder %s38, 2
      // Predicated region
      $region101: #{_lambda_.1} parent=5 // pred_check
        %p740 = pneg %p739
      $region102: #{_lambda_.1} parent=5 // pred_check_branch
        %742 = sbr.rel (%p740) target = $region104
      $region103: #{_lambda_.1} parent=5 // pred_region
        // Predicated region
        $region105: #{_lambda_.1} parent=103 // pred_check
          %p743 = pneg %p58
        $region106: #{_lambda_.1} parent=103 // pred_check_branch
          %745 = sbr.rel (%p743) target = $region108
        $region107: #{_lambda_.1} parent=103 // pred_region
          %p746 = scmp.lt.s32.totalorder %s38, 1
          %s747 = scalar_select %p746, %s38, 1
          %s748 = smul.addr %s747, 8
          %s749 = scalar_lea.vmem %s0, %s748
        $region108: #{_lambda_.1} parent=103 // pred_fallthru
          _
        // Predicated region
        $region109: #{_lambda_.1} parent=103 // pred_check
          %p750 = pneg %p84
        $region110: #{_lambda_.1} parent=103 // pred_check_branch
          %752 = sbr.rel (%p750) target = $region112
        $region111: #{_lambda_.1} parent=103 // pred_region
          %p753 = scmp.lt.s32.totalorder %s38, 1
          %s754 = scalar_select %p753, %s38, 1
          %s755 = smul.addr %s754, 8
          %s756 = scalar_lea.vmem %s1, %s755
        $region112: #{_lambda_.1} parent=103 // pred_fallthru
          _
      $region104: #{_lambda_.1} parent=5 // pred_fallthru
        _
      %p757 = scmp.le.s32.totalorder 1, %s38
      %p758 = scmp.lt.s32.totalorder %s38, 3
      %p759 = pnand %p757, %p758
      %p760 = pneg %p759
      // Predicated region
      $region113: #{_lambda_.1} parent=5 // pred_check
        _
      $region114: #{_lambda_.1} parent=5 // pred_check_branch
        %762 = sbr.rel (%p759) target = $region116
      $region115: #{_lambda_.1} parent=5 // pred_region
        %s763 = ssub.s32 %s38, 1
        // Predicated region
        $region117: #{_lambda_.1} parent=115 // pred_check
          %p764 = pneg %p153
        $region118: #{_lambda_.1} parent=115 // pred_check_branch
          %766 = sbr.rel (%p764) target = $region120
        $region119: #{_lambda_.1} parent=115 // pred_region
          %767 = dma.done [#allocation3], 1024
        $region120: #{_lambda_.1} parent=115 // pred_fallthru
          _
        // Predicated region
        $region121: #{_lambda_.1} parent=115 // pred_check
          %p768 = pneg %p174
        $region122: #{_lambda_.1} parent=115 // pred_check_branch
          %770 = sbr.rel (%p768) target = $region124
        $region123: #{_lambda_.1} parent=115 // pred_region
          %771 = dma.done [#allocation6], 1024
        $region124: #{_lambda_.1} parent=115 // pred_fallthru
          _
        // Predicated region
        $region125: #{_lambda_.1} parent=115 // pred_check
          %p772 = pneg %p195
        $region126: #{_lambda_.1} parent=115 // pred_check_branch
          %774 = sbr.rel (%p772) target = $region128
        $region127: #{_lambda_.1} parent=115 // pred_region
          %775 = dma.done [#allocation6], 1024
        $region128: #{_lambda_.1} parent=115 // pred_fallthru
          _
        // Predicated region
        $region129: #{_lambda_.1} parent=115 // pred_check
          %p776 = pneg %p216
        $region130: #{_lambda_.1} parent=115 // pred_check_branch
          %778 = sbr.rel (%p776) target = $region132
        $region131: #{_lambda_.1} parent=115 // pred_region
          %779 = dma.done [#allocation9], 1024
        $region132: #{_lambda_.1} parent=115 // pred_fallthru
          _
        // Predicated region
        $region133: #{_lambda_.1} parent=115 // pred_check
          %p780 = pneg %p300
        $region134: #{_lambda_.1} parent=115 // pred_check_branch
          %782 = sbr.rel (%p780) target = $region136
        $region135: #{_lambda_.1} parent=115 // pred_region
          %783 = dma.done [#allocation9], 1024
        $region136: #{_lambda_.1} parent=115 // pred_fallthru
          _
        // Predicated region
        $region137: #{_lambda_.1} parent=115 // pred_check
          %p784 = pneg %p321
        $region138: #{_lambda_.1} parent=115 // pred_check_branch
          %786 = sbr.rel (%p784) target = $region140
        $region139: #{_lambda_.1} parent=115 // pred_region
          %787 = dma.done [#allocation12], 1024
        $region140: #{_lambda_.1} parent=115 // pred_fallthru
          _
        // Predicated region
        $region141: #{_lambda_.1} parent=115 // pred_check
          %p788 = pneg %p342
        $region142: #{_lambda_.1} parent=115 // pred_check_branch
          %790 = sbr.rel (%p788) target = $region144
        $region143: #{_lambda_.1} parent=115 // pred_region
          %791 = dma.done [#allocation12], 1024
        $region144: #{_lambda_.1} parent=115 // pred_fallthru
          _
        // Predicated region
        $region145: #{_lambda_.1} parent=115 // pred_check
          %p792 = pneg %p531
        $region146: #{_lambda_.1} parent=115 // pred_check_branch
          %794 = sbr.rel (%p792) target = $region148
        $region147: #{_lambda_.1} parent=115 // pred_region
          %795 = dma.done [#allocation15], 4096
        $region148: #{_lambda_.1} parent=115 // pred_fallthru
          _
        %p796 = scmp.lt.s32.totalorder %s43, 1
        %s797 = scalar_select %p796, %s43, 1
        %s798 = smul.addr %s797, 8
        %s799 = scalar_lea.vmem %s0, %s798
        %p800 = pneg %p64
        %p801 = pneg %p61
        %p802 = scmp.lt.s32.totalorder %s43, 1
        %s803 = scalar_select %p802, %s43, 1
        %s804 = smul.addr %s803, 8
        %s805 = scalar_lea.vmem %s1, %s804
        %p806 = pneg %p90
        %p807 = pneg %p87
        %p808 = pneg %p111
        %p809 = pneg %p108
        %p810 = pneg %p132
        %p811 = pneg %p129
        %p812 = pneg %p153
        %p813 = pneg %p150
        %p814 = pneg %p174
        %p815 = pneg %p171
        %p816 = pneg %p195
        %p817 = pneg %p192
        %p818 = pneg %p216
        %p819 = pneg %p213
        %p820 = pneg %p237
        %p821 = pneg %p234
        %p822 = pneg %p258
        %p823 = pneg %p255
        %p824 = pneg %p279
        %p825 = pneg %p276
        %p826 = pneg %p300
        %p827 = pneg %p297
        %p828 = pneg %p321
        %p829 = pneg %p318
        %p830 = pneg %p342
        %p831 = pneg %p339
        %p832 = pneg %p363
        %p833 = pneg %p360
        %p834 = pneg %p384
        %p835 = pneg %p381
        %p836 = pneg %p405
        %p837 = pneg %p402
        %p838 = pneg %p426
        %p839 = pneg %p423
        %p840 = pneg %p447
        %p841 = pneg %p444
        %p842 = pneg %p468
        %p843 = pneg %p465
        %p844 = pneg %p489
        %p845 = pneg %p486
        %p846 = pneg %p510
        %p847 = pneg %p507
        %p848 = pneg %p531
        %p849 = pneg %p528
        %p850 = pneg %p552
        %p851 = pneg %p549
        %p852 = pneg %p578
        %p853 = pneg %p575
        %s854 = sand.u32 %s565, 1
        %s855 = scalar_lea.sflag [#allocation4], %s854
        %s856 = sand.u32 %s565, 1
        %s857 = smul.addr %s856, 8
        %s858 = scalar_lea.vmem [#allocation16], %s857
        %p859 = scmp.lt.s32.totalorder %s43, 1
        %s860 = scalar_select %p859, %s43, 1
        %s861 = smul.addr %s860, 8
        %s862 = scalar_lea.vmem %s0, %s861
        %p863 = scmp.lt.s32.totalorder %s43, 1
        %s864 = scalar_select %p863, %s43, 1
        %s865 = smul.addr %s864, 8
        %s866 = scalar_lea.vmem %s1, %s865
        %v867 = vld [vmem:[%s862] sm:$0xff]
        %v868 = vmul.f32 %v867, 5.656854
        %v869 = vld [vmem:[%s2] sm:$0xff]
        %v870 = vadd.f32 %v868, %v869
        %v871 = vld [vmem:[%s866] sm:$0xff]
        %v872 = vld [vmem:[%s3] sm:$0xff]
        %vm873 = vcmp.eq.f32.partialorder %v872, 0.0
        %v874 = vld [vmem:[#allocation2] sm:$0xff]
        %v875 = vld [vmem:[#allocation2 + $0x8] sm:$0xff]
        %v876 = vld [vmem:[#allocation2 + $0x10] sm:$0xff]
        %v877 = vld [vmem:[#allocation2 + $0x18] sm:$0xff]
        %v878 = vld [vmem:[#allocation5] sm:$0xff]
        %v879 = vld [vmem:[#allocation5 + $0x8] sm:$0xff]
        %v880 = vld [vmem:[#allocation5 + $0x10] sm:$0xff]
        %v881 = vld [vmem:[#allocation5 + $0x18] sm:$0xff]
        %v882 = vld [vmem:[#allocation7] sm:$0xff]
        %v883 = vld [vmem:[#allocation7 + $0x8] sm:$0xff]
        %v884 = vld [vmem:[#allocation7 + $0x10] sm:$0xff]
        %v885 = vld [vmem:[#allocation7 + $0x18] sm:$0xff]
        %v886 = vld [vmem:[#allocation8] sm:$0xff]
        %v887 = vld [vmem:[#allocation8 + $0x8] sm:$0xff]
        %v888 = vld [vmem:[#allocation8 + $0x10] sm:$0xff]
        %v889 = vld [vmem:[#allocation8 + $0x18] sm:$0xff]
        %v890 = vld [vmem:[%s8] sm:$0x1]
        %vm891 = vcmask 261120
        %v893 = vsel %vm891, %v871, 0
        %895 = vmatprep.subr.mxu0 0.0
        %896 = vmatpush1.msra.mxu0 %v874
        %897 = vmatprep.subr.mxu0 0.0
        %898 = vmatpush1.msra.mxu0 %v875
        %899 = vmatprep.subr.mxu0 0.0
        %900 = vmatpush1.msra.mxu0 %v876
        %901 = vmatprep.subr.mxu0 0.0
        %902 = vmatpush1.msra.mxu0 %v877
        %903 = vmatprep.subr.mxu0 0.0
        %904 = vmatpush1.msra.mxu0 0.0
        %905 = vmatprep.subr.mxu0 0.0
        %906 = vmatpush1.msra.mxu0 0.0
        %907 = vmatprep.subr.mxu0 0.0
        %908 = vmatpush1.msra.mxu0 0.0
        %909 = vmatprep.subr.mxu0 0.0
        %910 = vmatpush1.msra.mxu0 0.0
        %911 = vmatprep.subr.mxu0 0.0
        %912 = vmatpush1.msra.mxu0 0.0
        %913 = vmatprep.subr.mxu0 0.0
        %914 = vmatpush1.msra.mxu0 0.0
        %915 = vmatprep.subr.mxu0 0.0
        %916 = vmatpush1.msra.mxu0 0.0
        %917 = vmatprep.subr.mxu0 0.0
        %918 = vmatpush1.msra.mxu0 0.0
        %919 = vmatprep.subr.mxu0 0.0
        %920 = vmatpush1.msra.mxu0 0.0
        %921 = vmatprep.subr.mxu0 0.0
        %922 = vmatpush1.msra.mxu0 0.0
        %923 = vmatprep.subr.mxu0 0.0
        %924 = vmatpush1.msra.mxu0 0.0
        %925 = vmatprep.subr.mxu0 0.0
        %926 = vmatpush1.msra.mxu0 0.0
        %927 = vmatprep.subr.mxu0 0.0
        %928 = vmatpush1.msra.mxu0 0.0
        %929 = vmatprep.subr.mxu0 0.0
        %930 = vmatpush1.msra.mxu0 0.0
        %931 = vmatprep.subr.mxu0 0.0
        %932 = vmatpush1.msra.mxu0 0.0
        %933 = vmatprep.subr.mxu0 0.0
        %934 = vmatpush1.msra.mxu0 0.0
        %935 = vmatprep.subr.mxu0 0.0
        %936 = vmatpush1.msra.mxu0 0.0
        %937 = vmatprep.subr.mxu0 0.0
        %938 = vmatpush1.msra.mxu0 0.0
        %939 = vmatprep.subr.mxu0 0.0
        %940 = vmatpush1.msra.mxu0 0.0
        %941 = vmatprep.subr.mxu0 0.0
        %942 = vmatpush1.msra.mxu0 0.0
        %943 = vmatprep.subr.mxu0 0.0
        %944 = vmatpush1.msra.mxu0 0.0
        %945 = vmatprep.subr.mxu0 0.0
        %946 = vmatpush1.msra.mxu0 0.0
        %947 = vmatprep.subr.mxu0 0.0
        %948 = vmatpush1.msra.mxu0 0.0
        %949 = vmatprep.subr.mxu0 0.0
        %950 = vmatpush1.msra.mxu0 0.0
        %951 = vmatprep.subr.mxu0 0.0
        %952 = vmatpush1.msra.mxu0 0.0
        %953 = vmatprep.subr.mxu0 0.0
        %954 = vmatpush1.msra.mxu0 0.0
        %955 = vmatprep.subr.mxu0 0.0
        %956 = vmatpush1.msra.mxu0 0.0
        %957 = vmatprep.subr.mxu0 0.0
        %958 = vmatpush1.msra.mxu0 0.0
        %959 = vmatprep.mubr.f32.mxu0 0.0
        %960 = vmatmul.mubr.f32.gmra.mrb[0].mxu0 %v893
        %v961 = vpop.f32.mrb[0].mxu0
        %v962 = vadd.f32 0.0, %v961
        %v963 = vpop.f32.mrb[0].mxu0
        %964 = vdwg.mxu0
        %v965 = vmul.f32 %v962, 0.35355338
        %966 = vmatprep.subr.mxu0 0.0
        %967 = vmatpush1.msra.mxu0 %v878
        %968 = vmatprep.subr.mxu0 0.0
        %969 = vmatpush1.msra.mxu0 %v879
        %970 = vmatprep.subr.mxu0 0.0
        %971 = vmatpush1.msra.mxu0 %v880
        %972 = vmatprep.subr.mxu0 0.0
        %973 = vmatpush1.msra.mxu0 %v881
        %974 = vmatprep.subr.mxu0 0.0
        %975 = vmatpush1.msra.mxu0 0.0
        %976 = vmatprep.subr.mxu0 0.0
        %977 = vmatpush1.msra.mxu0 0.0
        %978 = vmatprep.subr.mxu0 0.0
        %979 = vmatpush1.msra.mxu0 0.0
        %980 = vmatprep.subr.mxu0 0.0
        %981 = vmatpush1.msra.mxu0 0.0
        %982 = vmatprep.subr.mxu0 0.0
        %983 = vmatpush1.msra.mxu0 0.0
        %984 = vmatprep.subr.mxu0 0.0
        %985 = vmatpush1.msra.mxu0 0.0
        %986 = vmatprep.subr.mxu0 0.0
        %987 = vmatpush1.msra.mxu0 0.0
        %988 = vmatprep.subr.mxu0 0.0
        %989 = vmatpush1.msra.mxu0 0.0
        %990 = vmatprep.subr.mxu0 0.0
        %991 = vmatpush1.msra.mxu0 0.0
        %992 = vmatprep.subr.mxu0 0.0
        %993 = vmatpush1.msra.mxu0 0.0
        %994 = vmatprep.subr.mxu0 0.0
        %995 = vmatpush1.msra.mxu0 0.0
        %996 = vmatprep.subr.mxu0 0.0
        %997 = vmatpush1.msra.mxu0 0.0
        %998 = vmatprep.subr.mxu0 0.0
        %999 = vmatpush1.msra.mxu0 0.0
        %1000 = vmatprep.subr.mxu0 0.0
        %1001 = vmatpush1.msra.mxu0 0.0
        %1002 = vmatprep.subr.mxu0 0.0
        %1003 = vmatpush1.msra.mxu0 0.0
        %1004 = vmatprep.subr.mxu0 0.0
        %1005 = vmatpush1.msra.mxu0 0.0
        %1006 = vmatprep.subr.mxu0 0.0
        %1007 = vmatpush1.msra.mxu0 0.0
        %1008 = vmatprep.subr.mxu0 0.0
        %1009 = vmatpush1.msra.mxu0 0.0
        %1010 = vmatprep.subr.mxu0 0.0
        %1011 = vmatpush1.msra.mxu0 0.0
        %1012 = vmatprep.subr.mxu0 0.0
        %1013 = vmatpush1.msra.mxu0 0.0
        %1014 = vmatprep.subr.mxu0 0.0
        %1015 = vmatpush1.msra.mxu0 0.0
        %1016 = vmatprep.subr.mxu0 0.0
        %1017 = vmatpush1.msra.mxu0 0.0
        %1018 = vmatprep.subr.mxu0 0.0
        %1019 = vmatpush1.msra.mxu0 0.0
        %1020 = vmatprep.subr.mxu0 0.0
        %1021 = vmatpush1.msra.mxu0 0.0
        %1022 = vmatprep.subr.mxu0 0.0
        %1023 = vmatpush1.msra.mxu0 0.0
        %1024 = vmatprep.subr.mxu0 0.0
        %1025 = vmatpush1.msra.mxu0 0.0
        %1026 = vmatprep.subr.mxu0 0.0
        %1027 = vmatpush1.msra.mxu0 0.0
        %1028 = vmatprep.subr.mxu0 0.0
        %1029 = vmatpush1.msra.mxu0 0.0
        %1030 = vmatprep.mubr.f32.mxu0 0.0
        %1031 = vmatmul.mubr.f32.gmra.mrb[0].mxu0 %v893
        %v1032 = vpop.f32.mrb[0].mxu0
        %v1033 = vadd.f32 0.0, %v1032
        %v1034 = vpop.f32.mrb[0].mxu0
        %1035 = vdwg.mxu0
        %1036 = vmatprep.subr.mxu0 0.0
        %1037 = vmatpush1.msra.mxu0 %v882
        %1038 = vmatprep.subr.mxu0 0.0
        %1039 = vmatpush1.msra.mxu0 %v883
        %1040 = vmatprep.subr.mxu0 0.0
        %1041 = vmatpush1.msra.mxu0 %v884
        %1042 = vmatprep.subr.mxu0 0.0
        %1043 = vmatpush1.msra.mxu0 %v885
        %1044 = vmatprep.subr.mxu0 0.0
        %1045 = vmatpush1.msra.mxu0 0.0
        %1046 = vmatprep.subr.mxu0 0.0
        %1047 = vmatpush1.msra.mxu0 0.0
        %1048 = vmatprep.subr.mxu0 0.0
        %1049 = vmatpush1.msra.mxu0 0.0
        %1050 = vmatprep.subr.mxu0 0.0
        %1051 = vmatpush1.msra.mxu0 0.0
        %1052 = vmatprep.subr.mxu0 0.0
        %1053 = vmatpush1.msra.mxu0 0.0
        %1054 = vmatprep.subr.mxu0 0.0
        %1055 = vmatpush1.msra.mxu0 0.0
        %1056 = vmatprep.subr.mxu0 0.0
        %1057 = vmatpush1.msra.mxu0 0.0
        %1058 = vmatprep.subr.mxu0 0.0
        %1059 = vmatpush1.msra.mxu0 0.0
        %1060 = vmatprep.subr.mxu0 0.0
        %1061 = vmatpush1.msra.mxu0 0.0
        %1062 = vmatprep.subr.mxu0 0.0
        %1063 = vmatpush1.msra.mxu0 0.0
        %1064 = vmatprep.subr.mxu0 0.0
        %1065 = vmatpush1.msra.mxu0 0.0
        %1066 = vmatprep.subr.mxu0 0.0
        %1067 = vmatpush1.msra.mxu0 0.0
        %1068 = vmatprep.subr.mxu0 0.0
        %1069 = vmatpush1.msra.mxu0 0.0
        %1070 = vmatprep.subr.mxu0 0.0
        %1071 = vmatpush1.msra.mxu0 0.0
        %1072 = vmatprep.subr.mxu0 0.0
        %1073 = vmatpush1.msra.mxu0 0.0
        %1074 = vmatprep.subr.mxu0 0.0
        %1075 = vmatpush1.msra.mxu0 0.0
        %1076 = vmatprep.subr.mxu0 0.0
        %1077 = vmatpush1.msra.mxu0 0.0
        %1078 = vmatprep.subr.mxu0 0.0
        %1079 = vmatpush1.msra.mxu0 0.0
        %1080 = vmatprep.subr.mxu0 0.0
        %1081 = vmatpush1.msra.mxu0 0.0
        %1082 = vmatprep.subr.mxu0 0.0
        %1083 = vmatpush1.msra.mxu0 0.0
        %1084 = vmatprep.subr.mxu0 0.0
        %1085 = vmatpush1.msra.mxu0 0.0
        %1086 = vmatprep.subr.mxu0 0.0
        %1087 = vmatpush1.msra.mxu0 0.0
        %1088 = vmatprep.subr.mxu0 0.0
        %1089 = vmatpush1.msra.mxu0 0.0
        %1090 = vmatprep.subr.mxu0 0.0
        %1091 = vmatpush1.msra.mxu0 0.0
        %1092 = vmatprep.subr.mxu0 0.0
        %1093 = vmatpush1.msra.mxu0 0.0
        %1094 = vmatprep.subr.mxu0 0.0
        %1095 = vmatpush1.msra.mxu0 0.0
        %1096 = vmatprep.subr.mxu0 0.0
        %1097 = vmatpush1.msra.mxu0 0.0
        %1098 = vmatprep.subr.mxu0 0.0
        %1099 = vmatpush1.msra.mxu0 0.0
        %1100 = vmatprep.mubr.f32.mxu0 0.0
        %1101 = vmatmul.mubr.f32.gmra.mrb[0].mxu0 %v893
        %v1102 = vpop.f32.mrb[0].mxu0
        %v1103 = vadd.f32 0.0, %v1102
        %v1104 = vpop.f32.mrb[0].mxu0
        %1105 = vdwg.mxu0
        %vm1106 = vcmask 64512
        %v1108 = vsel %vm1106, %v965, 0
        %v1111 = vsel %vm1106, %v1033, 0
        %1113 = vmatprep.subr.mxu0 0.0
        %1114 = vmatpush1.xpose.msra.mxu0 %v1111
        %1115 = vmatprep.subr.mxu0 0.0
        %1116 = vmatpush1.xpose.msra.mxu0 0.0
        %1117 = vmatprep.subr.mxu0 0.0
        %1118 = vmatpush1.xpose.msra.mxu0 0.0
        %1119 = vmatprep.subr.mxu0 0.0
        %1120 = vmatpush1.xpose.msra.mxu0 0.0
        %1121 = vmatprep.subr.mxu0 0.0
        %1122 = vmatpush1.xpose.msra.mxu0 0.0
        %1123 = vmatprep.subr.mxu0 0.0
        %1124 = vmatpush1.xpose.msra.mxu0 0.0
        %1125 = vmatprep.subr.mxu0 0.0
        %1126 = vmatpush1.xpose.msra.mxu0 0.0
        %1127 = vmatprep.subr.mxu0 0.0
        %1128 = vmatpush1.xpose.msra.mxu0 0.0
        %1129 = vmatprep.subr.mxu0 0.0
        %1130 = vmatpush1.xpose.msra.mxu0 0.0
        %1131 = vmatprep.subr.mxu0 0.0
        %1132 = vmatpush1.xpose.msra.mxu0 0.0
        %1133 = vmatprep.subr.mxu0 0.0
        %1134 = vmatpush1.xpose.msra.mxu0 0.0
        %1135 = vmatprep.subr.mxu0 0.0
        %1136 = vmatpush1.xpose.msra.mxu0 0.0
        %1137 = vmatprep.subr.mxu0 0.0
        %1138 = vmatpush1.xpose.msra.mxu0 0.0
        %1139 = vmatprep.subr.mxu0 0.0
        %1140 = vmatpush1.xpose.msra.mxu0 0.0
        %1141 = vmatprep.subr.mxu0 0.0
        %1142 = vmatpush1.xpose.msra.mxu0 0.0
        %1143 = vmatprep.subr.mxu0 0.0
        %1144 = vmatpush1.xpose.msra.mxu0 0.0
        %1145 = vmatprep.subr.mxu0 0.0
        %1146 = vmatpush1.xpose.msra.mxu0 0.0
        %1147 = vmatprep.subr.mxu0 0.0
        %1148 = vmatpush1.xpose.msra.mxu0 0.0
        %1149 = vmatprep.subr.mxu0 0.0
        %1150 = vmatpush1.xpose.msra.mxu0 0.0
        %1151 = vmatprep.subr.mxu0 0.0
        %1152 = vmatpush1.xpose.msra.mxu0 0.0
        %1153 = vmatprep.subr.mxu0 0.0
        %1154 = vmatpush1.xpose.msra.mxu0 0.0
        %1155 = vmatprep.subr.mxu0 0.0
        %1156 = vmatpush1.xpose.msra.mxu0 0.0
        %1157 = vmatprep.subr.mxu0 0.0
        %1158 = vmatpush1.xpose.msra.mxu0 0.0
        %1159 = vmatprep.subr.mxu0 0.0
        %1160 = vmatpush1.xpose.msra.mxu0 0.0
        %1161 = vmatprep.subr.mxu0 0.0
        %1162 = vmatpush1.xpose.msra.mxu0 0.0
        %1163 = vmatprep.subr.mxu0 0.0
        %1164 = vmatpush1.xpose.msra.mxu0 0.0
        %1165 = vmatprep.subr.mxu0 0.0
        %1166 = vmatpush1.xpose.msra.mxu0 0.0
        %1167 = vmatprep.subr.mxu0 0.0
        %1168 = vmatpush1.xpose.msra.mxu0 0.0
        %1169 = vmatprep.subr.mxu0 0.0
        %1170 = vmatpush1.xpose.msra.mxu0 0.0
        %1171 = vmatprep.subr.mxu0 0.0
        %1172 = vmatpush1.xpose.msra.mxu0 0.0
        %1173 = vmatprep.subr.mxu0 0.0
        %1174 = vmatpush1.xpose.msra.mxu0 0.0
        %1175 = vmatprep.subr.mxu0 0.0
        %1176 = vmatpush1.xpose.msra.mxu0 0.0
        %1177 = vmatprep.mubr.f32.mxu0 0.0
        %1178 = vmatmul.mubr.f32.gmra.mrb[0].mxu0 %v1108
        %v1179 = vpop.f32.mrb[0].mxu0
        %v1180 = vadd.f32 0.0, %v1179
        %v1181 = vpop.f32.mrb[0].mxu0
        %1182 = vdwg.mxu0
        %v1183 = vsel %vm873, -1e+20, %v1180
        %v1184 = vsel %vm1106, %v1183, -inf
        %1185 = vmax.xlane.f32.xlu0 %v1184
        %v1186 = vpop.xlane.xlu0 %1185
        %v1187 = vsub.f32 %v1183, %v1186
        %v1188 = vmul.f32 %v1187, 1.442695
        %v1189 = vpow.pop %v1188
        %v1190 = vsel %vm1106, %v1189, 0.0
        %1191 = vadd.xlane.f32.xlu0 %v1190
        %v1192 = vpop.xlane.xlu0 %1191
        %v1193 = vrcp.pop %v1192
        %v1194 = vmul.f32 %v1189, %v1193
        %v1196 = vsel %vm1106, %v1194, 0
        %1198 = vmatprep.subr.mxu0 0.0
        %1199 = vmatpush1.msra.mxu0 %v1103
        %1200 = vmatprep.subr.mxu0 0.0
        %1201 = vmatpush1.msra.mxu0 0.0
        %1202 = vmatprep.subr.mxu0 0.0
        %1203 = vmatpush1.msra.mxu0 0.0
        %1204 = vmatprep.subr.mxu0 0.0
        %1205 = vmatpush1.msra.mxu0 0.0
        %1206 = vmatprep.subr.mxu0 0.0
        %1207 = vmatpush1.msra.mxu0 0.0
        %1208 = vmatprep.subr.mxu0 0.0
        %1209 = vmatpush1.msra.mxu0 0.0
        %1210 = vmatprep.subr.mxu0 0.0
        %1211 = vmatpush1.msra.mxu0 0.0
        %1212 = vmatprep.subr.mxu0 0.0
        %1213 = vmatpush1.msra.mxu0 0.0
        %1214 = vmatprep.subr.mxu0 0.0
        %1215 = vmatpush1.msra.mxu0 0.0
        %1216 = vmatprep.subr.mxu0 0.0
        %1217 = vmatpush1.msra.mxu0 0.0
        %1218 = vmatprep.subr.mxu0 0.0
        %1219 = vmatpush1.msra.mxu0 0.0
        %1220 = vmatprep.subr.mxu0 0.0
        %1221 = vmatpush1.msra.mxu0 0.0
        %1222 = vmatprep.subr.mxu0 0.0
        %1223 = vmatpush1.msra.mxu0 0.0
        %1224 = vmatprep.subr.mxu0 0.0
        %1225 = vmatpush1.msra.mxu0 0.0
        %1226 = vmatprep.subr.mxu0 0.0
        %1227 = vmatpush1.msra.mxu0 0.0
        %1228 = vmatprep.subr.mxu0 0.0
        %1229 = vmatpush1.msra.mxu0 0.0
        %1230 = vmatprep.subr.mxu0 0.0
        %1231 = vmatpush1.msra.mxu0 0.0
        %1232 = vmatprep.subr.mxu0 0.0
        %1233 = vmatpush1.msra.mxu0 0.0
        %1234 = vmatprep.subr.mxu0 0.0
        %1235 = vmatpush1.msra.mxu0 0.0
        %1236 = vmatprep.subr.mxu0 0.0
        %1237 = vmatpush1.msra.mxu0 0.0
        %1238 = vmatprep.subr.mxu0 0.0
        %1239 = vmatpush1.msra.mxu0 0.0
        %1240 = vmatprep.subr.mxu0 0.0
        %1241 = vmatpush1.msra.mxu0 0.0
        %1242 = vmatprep.subr.mxu0 0.0
        %1243 = vmatpush1.msra.mxu0 0.0
        %1244 = vmatprep.subr.mxu0 0.0
        %1245 = vmatpush1.msra.mxu0 0.0
        %1246 = vmatprep.subr.mxu0 0.0
        %1247 = vmatpush1.msra.mxu0 0.0
        %1248 = vmatprep.subr.mxu0 0.0
        %1249 = vmatpush1.msra.mxu0 0.0
        %1250 = vmatprep.subr.mxu0 0.0
        %1251 = vmatpush1.msra.mxu0 0.0
        %1252 = vmatprep.subr.mxu0 0.0
        %1253 = vmatpush1.msra.mxu0 0.0
        %1254 = vmatprep.subr.mxu0 0.0
        %1255 = vmatpush1.msra.mxu0 0.0
        %1256 = vmatprep.subr.mxu0 0.0
        %1257 = vmatpush1.msra.mxu0 0.0
        %1258 = vmatprep.subr.mxu0 0.0
        %1259 = vmatpush1.msra.mxu0 0.0
        %1260 = vmatprep.subr.mxu0 0.0
        %1261 = vmatpush1.msra.mxu0 0.0
        %1262 = vmatprep.mubr.f32.mxu0 0.0
        %1263 = vmatmul.mubr.f32.gmra.mrb[0].mxu0 %v1196
        %v1264 = vpop.f32.mrb[0].mxu0
        %v1265 = vadd.f32 0.0, %v1264
        %v1266 = vpop.f32.mrb[0].mxu0
        %1267 = vdwg.mxu0
        %1268 = vrot.lane.b32.xlu0 %v965, 120
        %v1269 = vpop.permute.xlu0 %1268
        %1270 = vrot.lane.b32.xlu0 %v1033, 120
        %v1271 = vpop.permute.xlu0 %1270
        %v1272 = vsel %vm1106, %v1269, 0
        %v1274 = vsel %vm1106, %v1271, 0
        %1276 = vmatprep.subr.mxu0 0.0
        %1277 = vmatpush1.xpose.msra.mxu0 %v1274
        %1278 = vmatprep.subr.mxu0 0.0
        %1279 = vmatpush1.xpose.msra.mxu0 0.0
        %1280 = vmatprep.subr.mxu0 0.0
        %1281 = vmatpush1.xpose.msra.mxu0 0.0
        %1282 = vmatprep.subr.mxu0 0.0
        %1283 = vmatpush1.xpose.msra.mxu0 0.0
        %1284 = vmatprep.subr.mxu0 0.0
        %1285 = vmatpush1.xpose.msra.mxu0 0.0
        %1286 = vmatprep.subr.mxu0 0.0
        %1287 = vmatpush1.xpose.msra.mxu0 0.0
        %1288 = vmatprep.subr.mxu0 0.0
        %1289 = vmatpush1.xpose.msra.mxu0 0.0
        %1290 = vmatprep.subr.mxu0 0.0
        %1291 = vmatpush1.xpose.msra.mxu0 0.0
        %1292 = vmatprep.subr.mxu0 0.0
        %1293 = vmatpush1.xpose.msra.mxu0 0.0
        %1294 = vmatprep.subr.mxu0 0.0
        %1295 = vmatpush1.xpose.msra.mxu0 0.0
        %1296 = vmatprep.subr.mxu0 0.0
        %1297 = vmatpush1.xpose.msra.mxu0 0.0
        %1298 = vmatprep.subr.mxu0 0.0
        %1299 = vmatpush1.xpose.msra.mxu0 0.0
        %1300 = vmatprep.subr.mxu0 0.0
        %1301 = vmatpush1.xpose.msra.mxu0 0.0
        %1302 = vmatprep.subr.mxu0 0.0
        %1303 = vmatpush1.xpose.msra.mxu0 0.0
        %1304 = vmatprep.subr.mxu0 0.0
        %1305 = vmatpush1.xpose.msra.mxu0 0.0
        %1306 = vmatprep.subr.mxu0 0.0
        %1307 = vmatpush1.xpose.msra.mxu0 0.0
        %1308 = vmatprep.subr.mxu0 0.0
        %1309 = vmatpush1.xpose.msra.mxu0 0.0
        %1310 = vmatprep.subr.mxu0 0.0
        %1311 = vmatpush1.xpose.msra.mxu0 0.0
        %1312 = vmatprep.subr.mxu0 0.0
        %1313 = vmatpush1.xpose.msra.mxu0 0.0
        %1314 = vmatprep.subr.mxu0 0.0
        %1315 = vmatpush1.xpose.msra.mxu0 0.0
        %1316 = vmatprep.subr.mxu0 0.0
        %1317 = vmatpush1.xpose.msra.mxu0 0.0
        %1318 = vmatprep.subr.mxu0 0.0
        %1319 = vmatpush1.xpose.msra.mxu0 0.0
        %1320 = vmatprep.subr.mxu0 0.0
        %1321 = vmatpush1.xpose.msra.mxu0 0.0
        %1322 = vmatprep.subr.mxu0 0.0
        %1323 = vmatpush1.xpose.msra.mxu0 0.0
        %1324 = vmatprep.subr.mxu0 0.0
        %1325 = vmatpush1.xpose.msra.mxu0 0.0
        %1326 = vmatprep.subr.mxu0 0.0
        %1327 = vmatpush1.xpose.msra.mxu0 0.0
        %1328 = vmatprep.subr.mxu0 0.0
        %1329 = vmatpush1.xpose.msra.mxu0 0.0
        %1330 = vmatprep.subr.mxu0 0.0
        %1331 = vmatpush1.xpose.msra.mxu0 0.0
        %1332 = vmatprep.subr.mxu0 0.0
        %1333 = vmatpush1.xpose.msra.mxu0 0.0
        %1334 = vmatprep.subr.mxu0 0.0
        %1335 = vmatpush1.xpose.msra.mxu0 0.0
        %1336 = vmatprep.subr.mxu0 0.0
        %1337 = vmatpush1.xpose.msra.mxu0 0.0
        %1338 = vmatprep.subr.mxu0 0.0
        %1339 = vmatpush1.xpose.msra.mxu0 0.0
        %1340 = vmatprep.mubr.f32.mxu0 0.0
        %1341 = vmatmul.mubr.f32.gmra.mrb[0].mxu0 %v1272
        %v1342 = vpop.f32.mrb[0].mxu0
        %v1343 = vadd.f32 0.0, %v1342
        %v1344 = vpop.f32.mrb[0].mxu0
        %1345 = vdwg.mxu0
        %v1346 = vsel %vm873, -1e+20, %v1343
        %v1347 = vsel %vm1106, %v1346, -inf
        %1348 = vmax.xlane.f32.xlu0 %v1347
        %v1349 = vpop.xlane.xlu0 %1348
        %v1350 = vsub.f32 %v1346, %v1349
        %v1351 = vmul.f32 %v1350, 1.442695
        %v1352 = vpow.pop %v1351
        %v1353 = vsel %vm1106, %v1352, 0.0
        %1354 = vadd.xlane.f32.xlu0 %v1353
        %v1355 = vpop.xlane.xlu0 %1354
        %v1356 = vrcp.pop %v1355
        %v1357 = vmul.f32 %v1352, %v1356
        %1359 = vrot.lane.b32.xlu0 %v1103, 120
        %v1360 = vpop.permute.xlu0 %1359
        %v1363 = vsel %vm1106, %v1357, 0
        %1365 = vmatprep.subr.mxu0 0.0
        %1366 = vmatpush1.msra.mxu0 %v1360
        %1367 = vmatprep.subr.mxu0 0.0
        %1368 = vmatpush1.msra.mxu0 0.0
        %1369 = vmatprep.subr.mxu0 0.0
        %1370 = vmatpush1.msra.mxu0 0.0
        %1371 = vmatprep.subr.mxu0 0.0
        %1372 = vmatpush1.msra.mxu0 0.0
        %1373 = vmatprep.subr.mxu0 0.0
        %1374 = vmatpush1.msra.mxu0 0.0
        %1375 = vmatprep.subr.mxu0 0.0
        %1376 = vmatpush1.msra.mxu0 0.0
        %1377 = vmatprep.subr.mxu0 0.0
        %1378 = vmatpush1.msra.mxu0 0.0
        %1379 = vmatprep.subr.mxu0 0.0
        %1380 = vmatpush1.msra.mxu0 0.0
        %1381 = vmatprep.subr.mxu0 0.0
        %1382 = vmatpush1.msra.mxu0 0.0
        %1383 = vmatprep.subr.mxu0 0.0
        %1384 = vmatpush1.msra.mxu0 0.0
        %1385 = vmatprep.subr.mxu0 0.0
        %1386 = vmatpush1.msra.mxu0 0.0
        %1387 = vmatprep.subr.mxu0 0.0
        %1388 = vmatpush1.msra.mxu0 0.0
        %1389 = vmatprep.subr.mxu0 0.0
        %1390 = vmatpush1.msra.mxu0 0.0
        %1391 = vmatprep.subr.mxu0 0.0
        %1392 = vmatpush1.msra.mxu0 0.0
        %1393 = vmatprep.subr.mxu0 0.0
        %1394 = vmatpush1.msra.mxu0 0.0
        %1395 = vmatprep.subr.mxu0 0.0
        %1396 = vmatpush1.msra.mxu0 0.0
        %1397 = vmatprep.subr.mxu0 0.0
        %1398 = vmatpush1.msra.mxu0 0.0
        %1399 = vmatprep.subr.mxu0 0.0
        %1400 = vmatpush1.msra.mxu0 0.0
        %1401 = vmatprep.subr.mxu0 0.0
        %1402 = vmatpush1.msra.mxu0 0.0
        %1403 = vmatprep.subr.mxu0 0.0
        %1404 = vmatpush1.msra.mxu0 0.0
        %1405 = vmatprep.subr.mxu0 0.0
        %1406 = vmatpush1.msra.mxu0 0.0
        %1407 = vmatprep.subr.mxu0 0.0
        %1408 = vmatpush1.msra.mxu0 0.0
        %1409 = vmatprep.subr.mxu0 0.0
        %1410 = vmatpush1.msra.mxu0 0.0
        %1411 = vmatprep.subr.mxu0 0.0
        %1412 = vmatpush1.msra.mxu0 0.0
        %1413 = vmatprep.subr.mxu0 0.0
        %1414 = vmatpush1.msra.mxu0 0.0
        %1415 = vmatprep.subr.mxu0 0.0
        %1416 = vmatpush1.msra.mxu0 0.0
        %1417 = vmatprep.subr.mxu0 0.0
        %1418 = vmatpush1.msra.mxu0 0.0
        %1419 = vmatprep.subr.mxu0 0.0
        %1420 = vmatpush1.msra.mxu0 0.0
        %1421 = vmatprep.subr.mxu0 0.0
        %1422 = vmatpush1.msra.mxu0 0.0
        %1423 = vmatprep.subr.mxu0 0.0
        %1424 = vmatpush1.msra.mxu0 0.0
        %1425 = vmatprep.subr.mxu0 0.0
        %1426 = vmatpush1.msra.mxu0 0.0
        %1427 = vmatprep.subr.mxu0 0.0
        %1428 = vmatpush1.msra.mxu0 0.0
        %1429 = vmatprep.mubr.f32.mxu0 0.0
        %1430 = vmatmul.mubr.f32.gmra.mrb[0].mxu0 %v1363
        %v1431 = vpop.f32.mrb[0].mxu0
        %v1432 = vadd.f32 0.0, %v1431
        %v1433 = vpop.f32.mrb[0].mxu0
        %1434 = vdwg.mxu0
        %v1436 = vsel %vm1106, %v1432, 0
        %1438 = vmatprep.subr.mxu0 0.0
        %1439 = vmatpush1.msra.mxu0 %v887
        %1440 = vmatprep.subr.mxu0 0.0
        %1441 = vmatpush1.msra.mxu0 0.0
        %1442 = vmatprep.subr.mxu0 0.0
        %1443 = vmatpush1.msra.mxu0 0.0
        %1444 = vmatprep.subr.mxu0 0.0
        %1445 = vmatpush1.msra.mxu0 0.0
        %1446 = vmatprep.subr.mxu0 0.0
        %1447 = vmatpush1.msra.mxu0 0.0
        %1448 = vmatprep.subr.mxu0 0.0
        %1449 = vmatpush1.msra.mxu0 0.0
        %1450 = vmatprep.subr.mxu0 0.0
        %1451 = vmatpush1.msra.mxu0 0.0
        %1452 = vmatprep.subr.mxu0 0.0
        %1453 = vmatpush1.msra.mxu0 0.0
        %1454 = vmatprep.subr.mxu0 0.0
        %1455 = vmatpush1.msra.mxu0 0.0
        %1456 = vmatprep.subr.mxu0 0.0
        %1457 = vmatpush1.msra.mxu0 0.0
        %1458 = vmatprep.subr.mxu0 0.0
        %1459 = vmatpush1.msra.mxu0 0.0
        %1460 = vmatprep.subr.mxu0 0.0
        %1461 = vmatpush1.msra.mxu0 0.0
        %1462 = vmatprep.subr.mxu0 0.0
        %1463 = vmatpush1.msra.mxu0 0.0
        %1464 = vmatprep.subr.mxu0 0.0
        %1465 = vmatpush1.msra.mxu0 0.0
        %1466 = vmatprep.subr.mxu0 0.0
        %1467 = vmatpush1.msra.mxu0 0.0
        %1468 = vmatprep.subr.mxu0 0.0
        %1469 = vmatpush1.msra.mxu0 0.0
        %1470 = vmatprep.subr.mxu0 0.0
        %1471 = vmatpush1.msra.mxu0 0.0
        %1472 = vmatprep.subr.mxu0 0.0
        %1473 = vmatpush1.msra.mxu0 0.0
        %1474 = vmatprep.subr.mxu0 0.0
        %1475 = vmatpush1.msra.mxu0 0.0
        %1476 = vmatprep.subr.mxu0 0.0
        %1477 = vmatpush1.msra.mxu0 0.0
        %1478 = vmatprep.subr.mxu0 0.0
        %1479 = vmatpush1.msra.mxu0 0.0
        %1480 = vmatprep.subr.mxu0 0.0
        %1481 = vmatpush1.msra.mxu0 0.0
        %1482 = vmatprep.subr.mxu0 0.0
        %1483 = vmatpush1.msra.mxu0 0.0
        %1484 = vmatprep.subr.mxu0 0.0
        %1485 = vmatpush1.msra.mxu0 0.0
        %1486 = vmatprep.subr.mxu0 0.0
        %1487 = vmatpush1.msra.mxu0 0.0
        %1488 = vmatprep.subr.mxu0 0.0
        %1489 = vmatpush1.msra.mxu0 0.0
        %1490 = vmatprep.subr.mxu0 0.0
        %1491 = vmatpush1.msra.mxu0 0.0
        %1492 = vmatprep.subr.mxu0 0.0
        %1493 = vmatpush1.msra.mxu0 0.0
        %1494 = vmatprep.subr.mxu0 0.0
        %1495 = vmatpush1.msra.mxu0 0.0
        %1496 = vmatprep.subr.mxu0 0.0
        %1497 = vmatpush1.msra.mxu0 0.0
        %1498 = vmatprep.subr.mxu0 0.0
        %1499 = vmatpush1.msra.mxu0 0.0
        %1500 = vmatprep.subr.mxu0 0.0
        %1501 = vmatpush1.msra.mxu0 0.0
        %1502 = vmatprep.mubr.f32.mxu0 0.0
        %1503 = vmatmul.mubr.f32.gmra.mrb[0].mxu0 %v1436
        %v1504 = vpop.f32.mrb[0].mxu0
        %v1505 = vadd.f32 0.0, %v1504
        %v1506 = vpop.f32.mrb[0].mxu0
        %1507 = vdwg.mxu0
        %v1509 = vsel %vm1106, %v1265, 0
        %1511 = vmatprep.subr.mxu0 0.0
        %1512 = vmatpush1.msra.mxu0 %v886
        %1513 = vmatprep.subr.mxu0 0.0
        %1514 = vmatpush1.msra.mxu0 0.0
        %1515 = vmatprep.subr.mxu0 0.0
        %1516 = vmatpush1.msra.mxu0 0.0
        %1517 = vmatprep.subr.mxu0 0.0
        %1518 = vmatpush1.msra.mxu0 0.0
        %1519 = vmatprep.subr.mxu0 0.0
        %1520 = vmatpush1.msra.mxu0 0.0
        %1521 = vmatprep.subr.mxu0 0.0
        %1522 = vmatpush1.msra.mxu0 0.0
        %1523 = vmatprep.subr.mxu0 0.0
        %1524 = vmatpush1.msra.mxu0 0.0
        %1525 = vmatprep.subr.mxu0 0.0
        %1526 = vmatpush1.msra.mxu0 0.0
        %1527 = vmatprep.subr.mxu0 0.0
        %1528 = vmatpush1.msra.mxu0 0.0
        %1529 = vmatprep.subr.mxu0 0.0
        %1530 = vmatpush1.msra.mxu0 0.0
        %1531 = vmatprep.subr.mxu0 0.0
        %1532 = vmatpush1.msra.mxu0 0.0
        %1533 = vmatprep.subr.mxu0 0.0
        %1534 = vmatpush1.msra.mxu0 0.0
        %1535 = vmatprep.subr.mxu0 0.0
        %1536 = vmatpush1.msra.mxu0 0.0
        %1537 = vmatprep.subr.mxu0 0.0
        %1538 = vmatpush1.msra.mxu0 0.0
        %1539 = vmatprep.subr.mxu0 0.0
        %1540 = vmatpush1.msra.mxu0 0.0
        %1541 = vmatprep.subr.mxu0 0.0
        %1542 = vmatpush1.msra.mxu0 0.0
        %1543 = vmatprep.subr.mxu0 0.0
        %1544 = vmatpush1.msra.mxu0 0.0
        %1545 = vmatprep.subr.mxu0 0.0
        %1546 = vmatpush1.msra.mxu0 0.0
        %1547 = vmatprep.subr.mxu0 0.0
        %1548 = vmatpush1.msra.mxu0 0.0
        %1549 = vmatprep.subr.mxu0 0.0
        %1550 = vmatpush1.msra.mxu0 0.0
        %1551 = vmatprep.subr.mxu0 0.0
        %1552 = vmatpush1.msra.mxu0 0.0
        %1553 = vmatprep.subr.mxu0 0.0
        %1554 = vmatpush1.msra.mxu0 0.0
        %1555 = vmatprep.subr.mxu0 0.0
        %1556 = vmatpush1.msra.mxu0 0.0
        %1557 = vmatprep.subr.mxu0 0.0
        %1558 = vmatpush1.msra.mxu0 0.0
        %1559 = vmatprep.subr.mxu0 0.0
        %1560 = vmatpush1.msra.mxu0 0.0
        %1561 = vmatprep.subr.mxu0 0.0
        %1562 = vmatpush1.msra.mxu0 0.0
        %1563 = vmatprep.subr.mxu0 0.0
        %1564 = vmatpush1.msra.mxu0 0.0
        %1565 = vmatprep.subr.mxu0 0.0
        %1566 = vmatpush1.msra.mxu0 0.0
        %1567 = vmatprep.subr.mxu0 0.0
        %1568 = vmatpush1.msra.mxu0 0.0
        %1569 = vmatprep.subr.mxu0 0.0
        %1570 = vmatpush1.msra.mxu0 0.0
        %1571 = vmatprep.subr.mxu0 0.0
        %1572 = vmatpush1.msra.mxu0 0.0
        %1573 = vmatprep.subr.mxu0 0.0
        %1574 = vmatpush1.msra.mxu0 0.0
        %1575 = vmatprep.mubr.f32.mxu0 0.0
        %1576 = vmatmul.mubr.f32.gmra.mrb[0].mxu0 %v1509
        %v1577 = vpop.f32.mrb[0].mxu0
        %v1578 = vadd.f32 %v1505, %v1577
        %v1579 = vpop.f32.mrb[0].mxu0
        %1580 = vdwg.mxu0
        %1581 = vrot.lane.b32.xlu0 %v965, 112
        %v1582 = vpop.permute.xlu0 %1581
        %1583 = vrot.lane.b32.xlu0 %v1033, 112
        %v1584 = vpop.permute.xlu0 %1583
        %v1585 = vsel %vm1106, %v1582, 0
        %v1587 = vsel %vm1106, %v1584, 0
        %1589 = vmatprep.subr.mxu0 0.0
        %1590 = vmatpush1.xpose.msra.mxu0 %v1587
        %1591 = vmatprep.subr.mxu0 0.0
        %1592 = vmatpush1.xpose.msra.mxu0 0.0
        %1593 = vmatprep.subr.mxu0 0.0
        %1594 = vmatpush1.xpose.msra.mxu0 0.0
        %1595 = vmatprep.subr.mxu0 0.0
        %1596 = vmatpush1.xpose.msra.mxu0 0.0
        %1597 = vmatprep.subr.mxu0 0.0
        %1598 = vmatpush1.xpose.msra.mxu0 0.0
        %1599 = vmatprep.subr.mxu0 0.0
        %1600 = vmatpush1.xpose.msra.mxu0 0.0
        %1601 = vmatprep.subr.mxu0 0.0
        %1602 = vmatpush1.xpose.msra.mxu0 0.0
        %1603 = vmatprep.subr.mxu0 0.0
        %1604 = vmatpush1.xpose.msra.mxu0 0.0
        %1605 = vmatprep.subr.mxu0 0.0
        %1606 = vmatpush1.xpose.msra.mxu0 0.0
        %1607 = vmatprep.subr.mxu0 0.0
        %1608 = vmatpush1.xpose.msra.mxu0 0.0
        %1609 = vmatprep.subr.mxu0 0.0
        %1610 = vmatpush1.xpose.msra.mxu0 0.0
        %1611 = vmatprep.subr.mxu0 0.0
        %1612 = vmatpush1.xpose.msra.mxu0 0.0
        %1613 = vmatprep.subr.mxu0 0.0
        %1614 = vmatpush1.xpose.msra.mxu0 0.0
        %1615 = vmatprep.subr.mxu0 0.0
        %1616 = vmatpush1.xpose.msra.mxu0 0.0
        %1617 = vmatprep.subr.mxu0 0.0
        %1618 = vmatpush1.xpose.msra.mxu0 0.0
        %1619 = vmatprep.subr.mxu0 0.0
        %1620 = vmatpush1.xpose.msra.mxu0 0.0
        %1621 = vmatprep.subr.mxu0 0.0
        %1622 = vmatpush1.xpose.msra.mxu0 0.0
        %1623 = vmatprep.subr.mxu0 0.0
        %1624 = vmatpush1.xpose.msra.mxu0 0.0
        %1625 = vmatprep.subr.mxu0 0.0
        %1626 = vmatpush1.xpose.msra.mxu0 0.0
        %1627 = vmatprep.subr.mxu0 0.0
        %1628 = vmatpush1.xpose.msra.mxu0 0.0
        %1629 = vmatprep.subr.mxu0 0.0
        %1630 = vmatpush1.xpose.msra.mxu0 0.0
        %1631 = vmatprep.subr.mxu0 0.0
        %1632 = vmatpush1.xpose.msra.mxu0 0.0
        %1633 = vmatprep.subr.mxu0 0.0
        %1634 = vmatpush1.xpose.msra.mxu0 0.0
        %1635 = vmatprep.subr.mxu0 0.0
        %1636 = vmatpush1.xpose.msra.mxu0 0.0
        %1637 = vmatprep.subr.mxu0 0.0
        %1638 = vmatpush1.xpose.msra.mxu0 0.0
        %1639 = vmatprep.subr.mxu0 0.0
        %1640 = vmatpush1.xpose.msra.mxu0 0.0
        %1641 = vmatprep.subr.mxu0 0.0
        %1642 = vmatpush1.xpose.msra.mxu0 0.0
        %1643 = vmatprep.subr.mxu0 0.0
        %1644 = vmatpush1.xpose.msra.mxu0 0.0
        %1645 = vmatprep.subr.mxu0 0.0
        %1646 = vmatpush1.xpose.msra.mxu0 0.0
        %1647 = vmatprep.subr.mxu0 0.0
        %1648 = vmatpush1.xpose.msra.mxu0 0.0
        %1649 = vmatprep.subr.mxu0 0.0
        %1650 = vmatpush1.xpose.msra.mxu0 0.0
        %1651 = vmatprep.subr.mxu0 0.0
        %1652 = vmatpush1.xpose.msra.mxu0 0.0
        %1653 = vmatprep.mubr.f32.mxu0 0.0
        %1654 = vmatmul.mubr.f32.gmra.mrb[0].mxu0 %v1585
        %v1655 = vpop.f32.mrb[0].mxu0
        %v1656 = vadd.f32 0.0, %v1655
        %v1657 = vpop.f32.mrb[0].mxu0
        %1658 = vdwg.mxu0
        %v1659 = vsel %vm873, -1e+20, %v1656
        %v1660 = vsel %vm1106, %v1659, -inf
        %1661 = vmax.xlane.f32.xlu0 %v1660
        %v1662 = vpop.xlane.xlu0 %1661
        %v1663 = vsub.f32 %v1659, %v1662
        %v1664 = vmul.f32 %v1663, 1.442695
        %v1665 = vpow.pop %v1664
        %v1666 = vsel %vm1106, %v1665, 0.0
        %1667 = vadd.xlane.f32.xlu0 %v1666
        %v1668 = vpop.xlane.xlu0 %1667
        %v1669 = vrcp.pop %v1668
        %v1670 = vmul.f32 %v1665, %v1669
        %1671 = vrot.lane.b32.xlu0 %v1103, 112
        %v1672 = vpop.permute.xlu0 %1671
        %v1675 = vsel %vm1106, %v1670, 0
        %1677 = vmatprep.subr.mxu0 0.0
        %1678 = vmatpush1.msra.mxu0 %v1672
        %1679 = vmatprep.subr.mxu0 0.0
        %1680 = vmatpush1.msra.mxu0 0.0
        %1681 = vmatprep.subr.mxu0 0.0
        %1682 = vmatpush1.msra.mxu0 0.0
        %1683 = vmatprep.subr.mxu0 0.0
        %1684 = vmatpush1.msra.mxu0 0.0
        %1685 = vmatprep.subr.mxu0 0.0
        %1686 = vmatpush1.msra.mxu0 0.0
        %1687 = vmatprep.subr.mxu0 0.0
        %1688 = vmatpush1.msra.mxu0 0.0
        %1689 = vmatprep.subr.mxu0 0.0
        %1690 = vmatpush1.msra.mxu0 0.0
        %1691 = vmatprep.subr.mxu0 0.0
        %1692 = vmatpush1.msra.mxu0 0.0
        %1693 = vmatprep.subr.mxu0 0.0
        %1694 = vmatpush1.msra.mxu0 0.0
        %1695 = vmatprep.subr.mxu0 0.0
        %1696 = vmatpush1.msra.mxu0 0.0
        %1697 = vmatprep.subr.mxu0 0.0
        %1698 = vmatpush1.msra.mxu0 0.0
        %1699 = vmatprep.subr.mxu0 0.0
        %1700 = vmatpush1.msra.mxu0 0.0
        %1701 = vmatprep.subr.mxu0 0.0
        %1702 = vmatpush1.msra.mxu0 0.0
        %1703 = vmatprep.subr.mxu0 0.0
        %1704 = vmatpush1.msra.mxu0 0.0
        %1705 = vmatprep.subr.mxu0 0.0
        %1706 = vmatpush1.msra.mxu0 0.0
        %1707 = vmatprep.subr.mxu0 0.0
        %1708 = vmatpush1.msra.mxu0 0.0
        %1709 = vmatprep.subr.mxu0 0.0
        %1710 = vmatpush1.msra.mxu0 0.0
        %1711 = vmatprep.subr.mxu0 0.0
        %1712 = vmatpush1.msra.mxu0 0.0
        %1713 = vmatprep.subr.mxu0 0.0
        %1714 = vmatpush1.msra.mxu0 0.0
        %1715 = vmatprep.subr.mxu0 0.0
        %1716 = vmatpush1.msra.mxu0 0.0
        %1717 = vmatprep.subr.mxu0 0.0
        %1718 = vmatpush1.msra.mxu0 0.0
        %1719 = vmatprep.subr.mxu0 0.0
        %1720 = vmatpush1.msra.mxu0 0.0
        %1721 = vmatprep.subr.mxu0 0.0
        %1722 = vmatpush1.msra.mxu0 0.0
        %1723 = vmatprep.subr.mxu0 0.0
        %1724 = vmatpush1.msra.mxu0 0.0
        %1725 = vmatprep.subr.mxu0 0.0
        %1726 = vmatpush1.msra.mxu0 0.0
        %1727 = vmatprep.subr.mxu0 0.0
        %1728 = vmatpush1.msra.mxu0 0.0
        %1729 = vmatprep.subr.mxu0 0.0
        %1730 = vmatpush1.msra.mxu0 0.0
        %1731 = vmatprep.subr.mxu0 0.0
        %1732 = vmatpush1.msra.mxu0 0.0
        %1733 = vmatprep.subr.mxu0 0.0
        %1734 = vmatpush1.msra.mxu0 0.0
        %1735 = vmatprep.subr.mxu0 0.0
        %1736 = vmatpush1.msra.mxu0 0.0
        %1737 = vmatprep.subr.mxu0 0.0
        %1738 = vmatpush1.msra.mxu0 0.0
        %1739 = vmatprep.subr.mxu0 0.0
        %1740 = vmatpush1.msra.mxu0 0.0
        %1741 = vmatprep.mubr.f32.mxu0 0.0
        %1742 = vmatmul.mubr.f32.gmra.mrb[0].mxu0 %v1675
        %v1743 = vpop.f32.mrb[0].mxu0
        %v1744 = vadd.f32 0.0, %v1743
        %v1745 = vpop.f32.mrb[0].mxu0
        %1746 = vdwg.mxu0
        %v1748 = vsel %vm1106, %v1744, 0
        %1750 = vmatprep.subr.mxu0 0.0
        %1751 = vmatpush1.msra.mxu0 %v888
        %1752 = vmatprep.subr.mxu0 0.0
        %1753 = vmatpush1.msra.mxu0 0.0
        %1754 = vmatprep.subr.mxu0 0.0
        %1755 = vmatpush1.msra.mxu0 0.0
        %1756 = vmatprep.subr.mxu0 0.0
        %1757 = vmatpush1.msra.mxu0 0.0
        %1758 = vmatprep.subr.mxu0 0.0
        %1759 = vmatpush1.msra.mxu0 0.0
        %1760 = vmatprep.subr.mxu0 0.0
        %1761 = vmatpush1.msra.mxu0 0.0
        %1762 = vmatprep.subr.mxu0 0.0
        %1763 = vmatpush1.msra.mxu0 0.0
        %1764 = vmatprep.subr.mxu0 0.0
        %1765 = vmatpush1.msra.mxu0 0.0
        %1766 = vmatprep.subr.mxu0 0.0
        %1767 = vmatpush1.msra.mxu0 0.0
        %1768 = vmatprep.subr.mxu0 0.0
        %1769 = vmatpush1.msra.mxu0 0.0
        %1770 = vmatprep.subr.mxu0 0.0
        %1771 = vmatpush1.msra.mxu0 0.0
        %1772 = vmatprep.subr.mxu0 0.0
        %1773 = vmatpush1.msra.mxu0 0.0
        %1774 = vmatprep.subr.mxu0 0.0
        %1775 = vmatpush1.msra.mxu0 0.0
        %1776 = vmatprep.subr.mxu0 0.0
        %1777 = vmatpush1.msra.mxu0 0.0
        %1778 = vmatprep.subr.mxu0 0.0
        %1779 = vmatpush1.msra.mxu0 0.0
        %1780 = vmatprep.subr.mxu0 0.0
        %1781 = vmatpush1.msra.mxu0 0.0
        %1782 = vmatprep.subr.mxu0 0.0
        %1783 = vmatpush1.msra.mxu0 0.0
        %1784 = vmatprep.subr.mxu0 0.0
        %1785 = vmatpush1.msra.mxu0 0.0
        %1786 = vmatprep.subr.mxu0 0.0
        %1787 = vmatpush1.msra.mxu0 0.0
        %1788 = vmatprep.subr.mxu0 0.0
        %1789 = vmatpush1.msra.mxu0 0.0
        %1790 = vmatprep.subr.mxu0 0.0
        %1791 = vmatpush1.msra.mxu0 0.0
        %1792 = vmatprep.subr.mxu0 0.0
        %1793 = vmatpush1.msra.mxu0 0.0
        %1794 = vmatprep.subr.mxu0 0.0
        %1795 = vmatpush1.msra.mxu0 0.0
        %1796 = vmatprep.subr.mxu0 0.0
        %1797 = vmatpush1.msra.mxu0 0.0
        %1798 = vmatprep.subr.mxu0 0.0
        %1799 = vmatpush1.msra.mxu0 0.0
        %1800 = vmatprep.subr.mxu0 0.0
        %1801 = vmatpush1.msra.mxu0 0.0
        %1802 = vmatprep.subr.mxu0 0.0
        %1803 = vmatpush1.msra.mxu0 0.0
        %1804 = vmatprep.subr.mxu0 0.0
        %1805 = vmatpush1.msra.mxu0 0.0
        %1806 = vmatprep.subr.mxu0 0.0
        %1807 = vmatpush1.msra.mxu0 0.0
        %1808 = vmatprep.subr.mxu0 0.0
        %1809 = vmatpush1.msra.mxu0 0.0
        %1810 = vmatprep.subr.mxu0 0.0
        %1811 = vmatpush1.msra.mxu0 0.0
        %1812 = vmatprep.subr.mxu0 0.0
        %1813 = vmatpush1.msra.mxu0 0.0
        %1814 = vmatprep.mubr.f32.mxu0 0.0
        %1815 = vmatmul.mubr.f32.gmra.mrb[0].mxu0 %v1748
        %v1816 = vpop.f32.mrb[0].mxu0
        %v1817 = vadd.f32 0.0, %v1816
        %v1818 = vpop.f32.mrb[0].mxu0
        %1819 = vdwg.mxu0
        %v1820 = vadd.f32 %v1578, %v1817
        %1821 = vrot.lane.b32.xlu0 %v965, 104
        %v1822 = vpop.permute.xlu0 %1821
        %1823 = vrot.lane.b32.xlu0 %v1033, 104
        %v1824 = vpop.permute.xlu0 %1823
        %v1825 = vsel %vm1106, %v1822, 0
        %v1827 = vsel %vm1106, %v1824, 0
        %1829 = vmatprep.subr.mxu0 0.0
        %1830 = vmatpush1.xpose.msra.mxu0 %v1827
        %1831 = vmatprep.subr.mxu0 0.0
        %1832 = vmatpush1.xpose.msra.mxu0 0.0
        %1833 = vmatprep.subr.mxu0 0.0
        %1834 = vmatpush1.xpose.msra.mxu0 0.0
        %1835 = vmatprep.subr.mxu0 0.0
        %1836 = vmatpush1.xpose.msra.mxu0 0.0
        %1837 = vmatprep.subr.mxu0 0.0
        %1838 = vmatpush1.xpose.msra.mxu0 0.0
        %1839 = vmatprep.subr.mxu0 0.0
        %1840 = vmatpush1.xpose.msra.mxu0 0.0
        %1841 = vmatprep.subr.mxu0 0.0
        %1842 = vmatpush1.xpose.msra.mxu0 0.0
        %1843 = vmatprep.subr.mxu0 0.0
        %1844 = vmatpush1.xpose.msra.mxu0 0.0
        %1845 = vmatprep.subr.mxu0 0.0
        %1846 = vmatpush1.xpose.msra.mxu0 0.0
        %1847 = vmatprep.subr.mxu0 0.0
        %1848 = vmatpush1.xpose.msra.mxu0 0.0
        %1849 = vmatprep.subr.mxu0 0.0
        %1850 = vmatpush1.xpose.msra.mxu0 0.0
        %1851 = vmatprep.subr.mxu0 0.0
        %1852 = vmatpush1.xpose.msra.mxu0 0.0
        %1853 = vmatprep.subr.mxu0 0.0
        %1854 = vmatpush1.xpose.msra.mxu0 0.0
        %1855 = vmatprep.subr.mxu0 0.0
        %1856 = vmatpush1.xpose.msra.mxu0 0.0
        %1857 = vmatprep.subr.mxu0 0.0
        %1858 = vmatpush1.xpose.msra.mxu0 0.0
        %1859 = vmatprep.subr.mxu0 0.0
        %1860 = vmatpush1.xpose.msra.mxu0 0.0
        %1861 = vmatprep.subr.mxu0 0.0
        %1862 = vmatpush1.xpose.msra.mxu0 0.0
        %1863 = vmatprep.subr.mxu0 0.0
        %1864 = vmatpush1.xpose.msra.mxu0 0.0
        %1865 = vmatprep.subr.mxu0 0.0
        %1866 = vmatpush1.xpose.msra.mxu0 0.0
        %1867 = vmatprep.subr.mxu0 0.0
        %1868 = vmatpush1.xpose.msra.mxu0 0.0
        %1869 = vmatprep.subr.mxu0 0.0
        %1870 = vmatpush1.xpose.msra.mxu0 0.0
        %1871 = vmatprep.subr.mxu0 0.0
        %1872 = vmatpush1.xpose.msra.mxu0 0.0
        %1873 = vmatprep.subr.mxu0 0.0
        %1874 = vmatpush1.xpose.msra.mxu0 0.0
        %1875 = vmatprep.subr.mxu0 0.0
        %1876 = vmatpush1.xpose.msra.mxu0 0.0
        %1877 = vmatprep.subr.mxu0 0.0
        %1878 = vmatpush1.xpose.msra.mxu0 0.0
        %1879 = vmatprep.subr.mxu0 0.0
        %1880 = vmatpush1.xpose.msra.mxu0 0.0
        %1881 = vmatprep.subr.mxu0 0.0
        %1882 = vmatpush1.xpose.msra.mxu0 0.0
        %1883 = vmatprep.subr.mxu0 0.0
        %1884 = vmatpush1.xpose.msra.mxu0 0.0
        %1885 = vmatprep.subr.mxu0 0.0
        %1886 = vmatpush1.xpose.msra.mxu0 0.0
        %1887 = vmatprep.subr.mxu0 0.0
        %1888 = vmatpush1.xpose.msra.mxu0 0.0
        %1889 = vmatprep.subr.mxu0 0.0
        %1890 = vmatpush1.xpose.msra.mxu0 0.0
        %1891 = vmatprep.subr.mxu0 0.0
        %1892 = vmatpush1.xpose.msra.mxu0 0.0
        %1893 = vmatprep.mubr.f32.mxu0 0.0
        %1894 = vmatmul.mubr.f32.gmra.mrb[0].mxu0 %v1825
        %v1895 = vpop.f32.mrb[0].mxu0
        %v1896 = vadd.f32 0.0, %v1895
        %v1897 = vpop.f32.mrb[0].mxu0
        %1898 = vdwg.mxu0
        %v1899 = vsel %vm873, -1e+20, %v1896
        %v1900 = vsel %vm1106, %v1899, -inf
        %1901 = vmax.xlane.f32.xlu0 %v1900
        %v1902 = vpop.xlane.xlu0 %1901
        %v1903 = vsub.f32 %v1899, %v1902
        %v1904 = vmul.f32 %v1903, 1.442695
        %v1905 = vpow.pop %v1904
        %v1906 = vsel %vm1106, %v1905, 0.0
        %1907 = vadd.xlane.f32.xlu0 %v1906
        %v1908 = vpop.xlane.xlu0 %1907
        %v1909 = vrcp.pop %v1908
        %v1910 = vmul.f32 %v1905, %v1909
        %1911 = vrot.lane.b32.xlu0 %v1103, 104
        %v1912 = vpop.permute.xlu0 %1911
        %v1915 = vsel %vm1106, %v1910, 0
        %1917 = vmatprep.subr.mxu0 0.0
        %1918 = vmatpush1.msra.mxu0 %v1912
        %1919 = vmatprep.subr.mxu0 0.0
        %1920 = vmatpush1.msra.mxu0 0.0
        %1921 = vmatprep.subr.mxu0 0.0
        %1922 = vmatpush1.msra.mxu0 0.0
        %1923 = vmatprep.subr.mxu0 0.0
        %1924 = vmatpush1.msra.mxu0 0.0
        %1925 = vmatprep.subr.mxu0 0.0
        %1926 = vmatpush1.msra.mxu0 0.0
        %1927 = vmatprep.subr.mxu0 0.0
        %1928 = vmatpush1.msra.mxu0 0.0
        %1929 = vmatprep.subr.mxu0 0.0
        %1930 = vmatpush1.msra.mxu0 0.0
        %1931 = vmatprep.subr.mxu0 0.0
        %1932 = vmatpush1.msra.mxu0 0.0
        %1933 = vmatprep.subr.mxu0 0.0
        %1934 = vmatpush1.msra.mxu0 0.0
        %1935 = vmatprep.subr.mxu0 0.0
        %1936 = vmatpush1.msra.mxu0 0.0
        %1937 = vmatprep.subr.mxu0 0.0
        %1938 = vmatpush1.msra.mxu0 0.0
        %1939 = vmatprep.subr.mxu0 0.0
        %1940 = vmatpush1.msra.mxu0 0.0
        %1941 = vmatprep.subr.mxu0 0.0
        %1942 = vmatpush1.msra.mxu0 0.0
        %1943 = vmatprep.subr.mxu0 0.0
        %1944 = vmatpush1.msra.mxu0 0.0
        %1945 = vmatprep.subr.mxu0 0.0
        %1946 = vmatpush1.msra.mxu0 0.0
        %1947 = vmatprep.subr.mxu0 0.0
        %1948 = vmatpush1.msra.mxu0 0.0
        %1949 = vmatprep.subr.mxu0 0.0
        %1950 = vmatpush1.msra.mxu0 0.0
        %1951 = vmatprep.subr.mxu0 0.0
        %1952 = vmatpush1.msra.mxu0 0.0
        %1953 = vmatprep.subr.mxu0 0.0
        %1954 = vmatpush1.msra.mxu0 0.0
        %1955 = vmatprep.subr.mxu0 0.0
        %1956 = vmatpush1.msra.mxu0 0.0
        %1957 = vmatprep.subr.mxu0 0.0
        %1958 = vmatpush1.msra.mxu0 0.0
        %1959 = vmatprep.subr.mxu0 0.0
        %1960 = vmatpush1.msra.mxu0 0.0
        %1961 = vmatprep.subr.mxu0 0.0
        %1962 = vmatpush1.msra.mxu0 0.0
        %1963 = vmatprep.subr.mxu0 0.0
        %1964 = vmatpush1.msra.mxu0 0.0
        %1965 = vmatprep.subr.mxu0 0.0
        %1966 = vmatpush1.msra.mxu0 0.0
        %1967 = vmatprep.subr.mxu0 0.0
        %1968 = vmatpush1.msra.mxu0 0.0
        %1969 = vmatprep.subr.mxu0 0.0
        %1970 = vmatpush1.msra.mxu0 0.0
        %1971 = vmatprep.subr.mxu0 0.0
        %1972 = vmatpush1.msra.mxu0 0.0
        %1973 = vmatprep.subr.mxu0 0.0
        %1974 = vmatpush1.msra.mxu0 0.0
        %1975 = vmatprep.subr.mxu0 0.0
        %1976 = vmatpush1.msra.mxu0 0.0
        %1977 = vmatprep.subr.mxu0 0.0
        %1978 = vmatpush1.msra.mxu0 0.0
        %1979 = vmatprep.subr.mxu0 0.0
        %1980 = vmatpush1.msra.mxu0 0.0
        %1981 = vmatprep.mubr.f32.mxu0 0.0
        %1982 = vmatmul.mubr.f32.gmra.mrb[0].mxu0 %v1915
        %v1983 = vpop.f32.mrb[0].mxu0
        %v1984 = vadd.f32 0.0, %v1983
        %v1985 = vpop.f32.mrb[0].mxu0
        %1986 = vdwg.mxu0
        %v1988 = vsel %vm1106, %v1984, 0
        %1990 = vmatprep.subr.mxu0 0.0
        %1991 = vmatpush1.msra.mxu0 %v889
        %1992 = vmatprep.subr.mxu0 0.0
        %1993 = vmatpush1.msra.mxu0 0.0
        %1994 = vmatprep.subr.mxu0 0.0
        %1995 = vmatpush1.msra.mxu0 0.0
        %1996 = vmatprep.subr.mxu0 0.0
        %1997 = vmatpush1.msra.mxu0 0.0
        %1998 = vmatprep.subr.mxu0 0.0
        %1999 = vmatpush1.msra.mxu0 0.0
        %2000 = vmatprep.subr.mxu0 0.0
        %2001 = vmatpush1.msra.mxu0 0.0
        %2002 = vmatprep.subr.mxu0 0.0
        %2003 = vmatpush1.msra.mxu0 0.0
        %2004 = vmatprep.subr.mxu0 0.0
        %2005 = vmatpush1.msra.mxu0 0.0
        %2006 = vmatprep.subr.mxu0 0.0
        %2007 = vmatpush1.msra.mxu0 0.0
        %2008 = vmatprep.subr.mxu0 0.0
        %2009 = vmatpush1.msra.mxu0 0.0
        %2010 = vmatprep.subr.mxu0 0.0
        %2011 = vmatpush1.msra.mxu0 0.0
        %2012 = vmatprep.subr.mxu0 0.0
        %2013 = vmatpush1.msra.mxu0 0.0
        %2014 = vmatprep.subr.mxu0 0.0
        %2015 = vmatpush1.msra.mxu0 0.0
        %2016 = vmatprep.subr.mxu0 0.0
        %2017 = vmatpush1.msra.mxu0 0.0
        %2018 = vmatprep.subr.mxu0 0.0
        %2019 = vmatpush1.msra.mxu0 0.0
        %2020 = vmatprep.subr.mxu0 0.0
        %2021 = vmatpush1.msra.mxu0 0.0
        %2022 = vmatprep.subr.mxu0 0.0
        %2023 = vmatpush1.msra.mxu0 0.0
        %2024 = vmatprep.subr.mxu0 0.0
        %2025 = vmatpush1.msra.mxu0 0.0
        %2026 = vmatprep.subr.mxu0 0.0
        %2027 = vmatpush1.msra.mxu0 0.0
        %2028 = vmatprep.subr.mxu0 0.0
        %2029 = vmatpush1.msra.mxu0 0.0
        %2030 = vmatprep.subr.mxu0 0.0
        %2031 = vmatpush1.msra.mxu0 0.0
        %2032 = vmatprep.subr.mxu0 0.0
        %2033 = vmatpush1.msra.mxu0 0.0
        %2034 = vmatprep.subr.mxu0 0.0
        %2035 = vmatpush1.msra.mxu0 0.0
        %2036 = vmatprep.subr.mxu0 0.0
        %2037 = vmatpush1.msra.mxu0 0.0
        %2038 = vmatprep.subr.mxu0 0.0
        %2039 = vmatpush1.msra.mxu0 0.0
        %2040 = vmatprep.subr.mxu0 0.0
        %2041 = vmatpush1.msra.mxu0 0.0
        %2042 = vmatprep.subr.mxu0 0.0
        %2043 = vmatpush1.msra.mxu0 0.0
        %2044 = vmatprep.subr.mxu0 0.0
        %2045 = vmatpush1.msra.mxu0 0.0
        %2046 = vmatprep.subr.mxu0 0.0
        %2047 = vmatpush1.msra.mxu0 0.0
        %2048 = vmatprep.subr.mxu0 0.0
        %2049 = vmatpush1.msra.mxu0 0.0
        %2050 = vmatprep.subr.mxu0 0.0
        %2051 = vmatpush1.msra.mxu0 0.0
        %2052 = vmatprep.subr.mxu0 0.0
        %2053 = vmatpush1.msra.mxu0 0.0
        %2054 = vmatprep.mubr.f32.mxu0 0.0
        %2055 = vmatmul.mubr.f32.gmra.mrb[0].mxu0 %v1988
        %v2056 = vpop.f32.mrb[0].mxu0
        %v2057 = vadd.f32 0.0, %v2056
        %v2058 = vpop.f32.mrb[0].mxu0
        %2059 = vdwg.mxu0
        %v2060 = vadd.f32 %v1820, %v2057
        %v2062 = vlaneseq
        %v2063 = vshrl.u32 %v2062, 7
        %v2064 = vsub.s32 0, %v2063
        %v2065 = vrot.slane %v890, %v2064
        %v2067 = vadd.f32 %v2060, %v2065
        %v2068 = vadd.f32 %v2067, %v871
        %v2069 = vld [vmem:[%s9] sm:$0x1]
        %v2070 = vld [vmem:[%s10] sm:$0x1]
        %v2071 = vsel %vm891, %v2068, 0.0
        %2072 = vadd.xlane.f32.xlu0 %v2071
        %v2073 = vpop.xlane.xlu0 %2072
        %v2074 = vrcp.pop 32.0
        %v2075 = vmul.f32 %v2073, %v2074
        %v2076 = vsub.f32 %v2068, %v2075
        %v2077 = vmul.f32 %v2076, %v2076
        %v2078 = vsel %vm891, %v2077, 0.0
        %2079 = vadd.xlane.f32.xlu0 %v2078
        %v2080 = vpop.xlane.xlu0 %2079
        %v2081 = vmul.f32 %v2080, %v2074
        %v2082 = vadd.f32 %v2081, 1e-05
        %v2083 = vrsqrt.pop %v2082
        %v2084 = vmul.f32 %v2076, %v2083
        %v2086 = vlaneseq
        %v2087 = vshrl.u32 %v2086, 7
        %v2088 = vsub.s32 0, %v2087
        %v2089 = vrot.slane %v2069, %v2088
        %v2091 = vmul.f32 %v2084, %v2089
        %v2093 = vlaneseq
        %v2094 = vshrl.u32 %v2093, 7
        %v2095 = vsub.s32 0, %v2094
        %v2096 = vrot.slane %v2070, %v2095
        %v2098 = vadd.f32 %v2091, %v2096
        %v2099 = vld [vmem:[#allocation10] sm:$0xff]
        %v2100 = vld [vmem:[#allocation10 + $0x8] sm:$0xff]
        %v2101 = vld [vmem:[#allocation10 + $0x10] sm:$0xff]
        %v2102 = vld [vmem:[#allocation10 + $0x18] sm:$0xff]
        %v2103 = vld [vmem:[#allocation11] sm:$0xff]
        %v2104 = vld [vmem:[#allocation11 + $0x8] sm:$0xff]
        %v2105 = vld [vmem:[#allocation11 + $0x10] sm:$0xff]
        %v2106 = vld [vmem:[#allocation11 + $0x18] sm:$0xff]
        %v2107 = vld [vmem:[#allocation13] sm:$0xff]
        %v2108 = vld [vmem:[#allocation13 + $0x8] sm:$0xff]
        %v2109 = vld [vmem:[#allocation13 + $0x10] sm:$0xff]
        %v2110 = vld [vmem:[#allocation13 + $0x18] sm:$0xff]
        %v2111 = vld [vmem:[%s14] sm:$0xff]
        %v2112 = vld [vmem:[%s14 + $0x8] sm:$0xff]
        %v2113 = vld [vmem:[%s14 + $0x10] sm:$0xff]
        %v2114 = vld [vmem:[%s14 + $0x18] sm:$0xff]
        %v2115 = vld [vmem:[%s15] sm:$0x1]
        %v2117 = vsel %vm891, %v870, 0
        %2119 = vmatprep.subr.mxu0 0.0
        %2120 = vmatpush1.msra.mxu0 %v2099
        %2121 = vmatprep.subr.mxu0 0.0
        %2122 = vmatpush1.msra.mxu0 %v2100
        %2123 = vmatprep.subr.mxu0 0.0
        %2124 = vmatpush1.msra.mxu0 %v2101
        %2125 = vmatprep.subr.mxu0 0.0
        %2126 = vmatpush1.msra.mxu0 %v2102
        %2127 = vmatprep.subr.mxu0 0.0
        %2128 = vmatpush1.msra.mxu0 0.0
        %2129 = vmatprep.subr.mxu0 0.0
        %2130 = vmatpush1.msra.mxu0 0.0
        %2131 = vmatprep.subr.mxu0 0.0
        %2132 = vmatpush1.msra.mxu0 0.0
        %2133 = vmatprep.subr.mxu0 0.0
        %2134 = vmatpush1.msra.mxu0 0.0
        %2135 = vmatprep.subr.mxu0 0.0
        %2136 = vmatpush1.msra.mxu0 0.0
        %2137 = vmatprep.subr.mxu0 0.0
        %2138 = vmatpush1.msra.mxu0 0.0
        %2139 = vmatprep.subr.mxu0 0.0
        %2140 = vmatpush1.msra.mxu0 0.0
        %2141 = vmatprep.subr.mxu0 0.0
        %2142 = vmatpush1.msra.mxu0 0.0
        %2143 = vmatprep.subr.mxu0 0.0
        %2144 = vmatpush1.msra.mxu0 0.0
        %2145 = vmatprep.subr.mxu0 0.0
        %2146 = vmatpush1.msra.mxu0 0.0
        %2147 = vmatprep.subr.mxu0 0.0
        %2148 = vmatpush1.msra.mxu0 0.0
        %2149 = vmatprep.subr.mxu0 0.0
        %2150 = vmatpush1.msra.mxu0 0.0
        %2151 = vmatprep.subr.mxu0 0.0
        %2152 = vmatpush1.msra.mxu0 0.0
        %2153 = vmatprep.subr.mxu0 0.0
        %2154 = vmatpush1.msra.mxu0 0.0
        %2155 = vmatprep.subr.mxu0 0.0
        %2156 = vmatpush1.msra.mxu0 0.0
        %2157 = vmatprep.subr.mxu0 0.0
        %2158 = vmatpush1.msra.mxu0 0.0
        %2159 = vmatprep.subr.mxu0 0.0
        %2160 = vmatpush1.msra.mxu0 0.0
        %2161 = vmatprep.subr.mxu0 0.0
        %2162 = vmatpush1.msra.mxu0 0.0
        %2163 = vmatprep.subr.mxu0 0.0
        %2164 = vmatpush1.msra.mxu0 0.0
        %2165 = vmatprep.subr.mxu0 0.0
        %2166 = vmatpush1.msra.mxu0 0.0
        %2167 = vmatprep.subr.mxu0 0.0
        %2168 = vmatpush1.msra.mxu0 0.0
        %2169 = vmatprep.subr.mxu0 0.0
        %2170 = vmatpush1.msra.mxu0 0.0
        %2171 = vmatprep.subr.mxu0 0.0
        %2172 = vmatpush1.msra.mxu0 0.0
        %2173 = vmatprep.subr.mxu0 0.0
        %2174 = vmatpush1.msra.mxu0 0.0
        %2175 = vmatprep.subr.mxu0 0.0
        %2176 = vmatpush1.msra.mxu0 0.0
        %2177 = vmatprep.subr.mxu0 0.0
        %2178 = vmatpush1.msra.mxu0 0.0
        %2179 = vmatprep.subr.mxu0 0.0
        %2180 = vmatpush1.msra.mxu0 0.0
        %2181 = vmatprep.subr.mxu0 0.0
        %2182 = vmatpush1.msra.mxu0 0.0
        %2183 = vmatprep.mubr.f32.mxu0 0.0
        %2184 = vmatmul.mubr.f32.gmra.mrb[0].mxu0 %v2117
        %v2185 = vpop.f32.mrb[0].mxu0
        %v2186 = vadd.f32 0.0, %v2185
        %v2187 = vpop.f32.mrb[0].mxu0
        %2188 = vdwg.mxu0
        %v2189 = vmul.f32 %v2186, 0.35355338
        %2190 = vmatprep.subr.mxu0 0.0
        %2191 = vmatpush1.msra.mxu0 %v2103
        %2192 = vmatprep.subr.mxu0 0.0
        %2193 = vmatpush1.msra.mxu0 %v2104
        %2194 = vmatprep.subr.mxu0 0.0
        %2195 = vmatpush1.msra.mxu0 %v2105
        %2196 = vmatprep.subr.mxu0 0.0
        %2197 = vmatpush1.msra.mxu0 %v2106
        %2198 = vmatprep.subr.mxu0 0.0
        %2199 = vmatpush1.msra.mxu0 0.0
        %2200 = vmatprep.subr.mxu0 0.0
        %2201 = vmatpush1.msra.mxu0 0.0
        %2202 = vmatprep.subr.mxu0 0.0
        %2203 = vmatpush1.msra.mxu0 0.0
        %2204 = vmatprep.subr.mxu0 0.0
        %2205 = vmatpush1.msra.mxu0 0.0
        %2206 = vmatprep.subr.mxu0 0.0
        %2207 = vmatpush1.msra.mxu0 0.0
        %2208 = vmatprep.subr.mxu0 0.0
        %2209 = vmatpush1.msra.mxu0 0.0
        %2210 = vmatprep.subr.mxu0 0.0
        %2211 = vmatpush1.msra.mxu0 0.0
        %2212 = vmatprep.subr.mxu0 0.0
        %2213 = vmatpush1.msra.mxu0 0.0
        %2214 = vmatprep.subr.mxu0 0.0
        %2215 = vmatpush1.msra.mxu0 0.0
        %2216 = vmatprep.subr.mxu0 0.0
        %2217 = vmatpush1.msra.mxu0 0.0
        %2218 = vmatprep.subr.mxu0 0.0
        %2219 = vmatpush1.msra.mxu0 0.0
        %2220 = vmatprep.subr.mxu0 0.0
        %2221 = vmatpush1.msra.mxu0 0.0
        %2222 = vmatprep.subr.mxu0 0.0
        %2223 = vmatpush1.msra.mxu0 0.0
        %2224 = vmatprep.subr.mxu0 0.0
        %2225 = vmatpush1.msra.mxu0 0.0
        %2226 = vmatprep.subr.mxu0 0.0
        %2227 = vmatpush1.msra.mxu0 0.0
        %2228 = vmatprep.subr.mxu0 0.0
        %2229 = vmatpush1.msra.mxu0 0.0
        %2230 = vmatprep.subr.mxu0 0.0
        %2231 = vmatpush1.msra.mxu0 0.0
        %2232 = vmatprep.subr.mxu0 0.0
        %2233 = vmatpush1.msra.mxu0 0.0
        %2234 = vmatprep.subr.mxu0 0.0
        %2235 = vmatpush1.msra.mxu0 0.0
        %2236 = vmatprep.subr.mxu0 0.0
        %2237 = vmatpush1.msra.mxu0 0.0
        %2238 = vmatprep.subr.mxu0 0.0
        %2239 = vmatpush1.msra.mxu0 0.0
        %2240 = vmatprep.subr.mxu0 0.0
        %2241 = vmatpush1.msra.mxu0 0.0
        %2242 = vmatprep.subr.mxu0 0.0
        %2243 = vmatpush1.msra.mxu0 0.0
        %2244 = vmatprep.subr.mxu0 0.0
        %2245 = vmatpush1.msra.mxu0 0.0
        %2246 = vmatprep.subr.mxu0 0.0
        %2247 = vmatpush1.msra.mxu0 0.0
        %2248 = vmatprep.subr.mxu0 0.0
        %2249 = vmatpush1.msra.mxu0 0.0
        %2250 = vmatprep.subr.mxu0 0.0
        %2251 = vmatpush1.msra.mxu0 0.0
        %2252 = vmatprep.subr.mxu0 0.0
        %2253 = vmatpush1.msra.mxu0 0.0
        %2254 = vmatprep.mubr.f32.mxu0 0.0
        %2255 = vmatmul.mubr.f32.gmra.mrb[0].mxu0 %v893
        %v2256 = vpop.f32.mrb[0].mxu0
        %v2257 = vadd.f32 0.0, %v2256
        %v2258 = vpop.f32.mrb[0].mxu0
        %2259 = vdwg.mxu0
        %v2261 = vsel %vm891, %v2098, 0
        %2263 = vmatprep.subr.mxu0 0.0
        %2264 = vmatpush1.msra.mxu0 %v2107
        %2265 = vmatprep.subr.mxu0 0.0
        %2266 = vmatpush1.msra.mxu0 %v2108
        %2267 = vmatprep.subr.mxu0 0.0
        %2268 = vmatpush1.msra.mxu0 %v2109
        %2269 = vmatprep.subr.mxu0 0.0
        %2270 = vmatpush1.msra.mxu0 %v2110
        %2271 = vmatprep.subr.mxu0 0.0
        %2272 = vmatpush1.msra.mxu0 0.0
        %2273 = vmatprep.subr.mxu0 0.0
        %2274 = vmatpush1.msra.mxu0 0.0
        %2275 = vmatprep.subr.mxu0 0.0
        %2276 = vmatpush1.msra.mxu0 0.0
        %2277 = vmatprep.subr.mxu0 0.0
        %2278 = vmatpush1.msra.mxu0 0.0
        %2279 = vmatprep.subr.mxu0 0.0
        %2280 = vmatpush1.msra.mxu0 0.0
        %2281 = vmatprep.subr.mxu0 0.0
        %2282 = vmatpush1.msra.mxu0 0.0
        %2283 = vmatprep.subr.mxu0 0.0
        %2284 = vmatpush1.msra.mxu0 0.0
        %2285 = vmatprep.subr.mxu0 0.0
        %2286 = vmatpush1.msra.mxu0 0.0
        %2287 = vmatprep.subr.mxu0 0.0
        %2288 = vmatpush1.msra.mxu0 0.0
        %2289 = vmatprep.subr.mxu0 0.0
        %2290 = vmatpush1.msra.mxu0 0.0
        %2291 = vmatprep.subr.mxu0 0.0
        %2292 = vmatpush1.msra.mxu0 0.0
        %2293 = vmatprep.subr.mxu0 0.0
        %2294 = vmatpush1.msra.mxu0 0.0
        %2295 = vmatprep.subr.mxu0 0.0
        %2296 = vmatpush1.msra.mxu0 0.0
        %2297 = vmatprep.subr.mxu0 0.0
        %2298 = vmatpush1.msra.mxu0 0.0
        %2299 = vmatprep.subr.mxu0 0.0
        %2300 = vmatpush1.msra.mxu0 0.0
        %2301 = vmatprep.subr.mxu0 0.0
        %2302 = vmatpush1.msra.mxu0 0.0
        %2303 = vmatprep.subr.mxu0 0.0
        %2304 = vmatpush1.msra.mxu0 0.0
        %2305 = vmatprep.subr.mxu0 0.0
        %2306 = vmatpush1.msra.mxu0 0.0
        %2307 = vmatprep.subr.mxu0 0.0
        %2308 = vmatpush1.msra.mxu0 0.0
        %2309 = vmatprep.subr.mxu0 0.0
        %2310 = vmatpush1.msra.mxu0 0.0
        %2311 = vmatprep.subr.mxu0 0.0
        %2312 = vmatpush1.msra.mxu0 0.0
        %2313 = vmatprep.subr.mxu0 0.0
        %2314 = vmatpush1.msra.mxu0 0.0
        %2315 = vmatprep.subr.mxu0 0.0
        %2316 = vmatpush1.msra.mxu0 0.0
        %2317 = vmatprep.subr.mxu0 0.0
        %2318 = vmatpush1.msra.mxu0 0.0
        %2319 = vmatprep.subr.mxu0 0.0
        %2320 = vmatpush1.msra.mxu0 0.0
        %2321 = vmatprep.subr.mxu0 0.0
        %2322 = vmatpush1.msra.mxu0 0.0
        %2323 = vmatprep.subr.mxu0 0.0
        %2324 = vmatpush1.msra.mxu0 0.0
        %2325 = vmatprep.subr.mxu0 0.0
        %2326 = vmatpush1.msra.mxu0 0.0
        %2327 = vmatprep.mubr.f32.mxu0 0.0
        %2328 = vmatmul.mubr.f32.gmra.mrb[0].mxu0 %v2261
        %v2329 = vpop.f32.mrb[0].mxu0
        %v2330 = vadd.f32 0.0, %v2329
        %v2331 = vpop.f32.mrb[0].mxu0
        %2332 = vdwg.mxu0
        %v2334 = vsel %vm1106, %v2189, 0
        %v2337 = vsel %vm1106, %v2257, 0
        %2339 = vmatprep.subr.mxu0 0.0
        %2340 = vmatpush1.xpose.msra.mxu0 %v2337
        %2341 = vmatprep.subr.mxu0 0.0
        %2342 = vmatpush1.xpose.msra.mxu0 0.0
        %2343 = vmatprep.subr.mxu0 0.0
        %2344 = vmatpush1.xpose.msra.mxu0 0.0
        %2345 = vmatprep.subr.mxu0 0.0
        %2346 = vmatpush1.xpose.msra.mxu0 0.0
        %2347 = vmatprep.subr.mxu0 0.0
        %2348 = vmatpush1.xpose.msra.mxu0 0.0
        %2349 = vmatprep.subr.mxu0 0.0
        %2350 = vmatpush1.xpose.msra.mxu0 0.0
        %2351 = vmatprep.subr.mxu0 0.0
        %2352 = vmatpush1.xpose.msra.mxu0 0.0
        %2353 = vmatprep.subr.mxu0 0.0
        %2354 = vmatpush1.xpose.msra.mxu0 0.0
        %2355 = vmatprep.subr.mxu0 0.0
        %2356 = vmatpush1.xpose.msra.mxu0 0.0
        %2357 = vmatprep.subr.mxu0 0.0
        %2358 = vmatpush1.xpose.msra.mxu0 0.0
        %2359 = vmatprep.subr.mxu0 0.0
        %2360 = vmatpush1.xpose.msra.mxu0 0.0
        %2361 = vmatprep.subr.mxu0 0.0
        %2362 = vmatpush1.xpose.msra.mxu0 0.0
        %2363 = vmatprep.subr.mxu0 0.0
        %2364 = vmatpush1.xpose.msra.mxu0 0.0
        %2365 = vmatprep.subr.mxu0 0.0
        %2366 = vmatpush1.xpose.msra.mxu0 0.0
        %2367 = vmatprep.subr.mxu0 0.0
        %2368 = vmatpush1.xpose.msra.mxu0 0.0
        %2369 = vmatprep.subr.mxu0 0.0
        %2370 = vmatpush1.xpose.msra.mxu0 0.0
        %2371 = vmatprep.subr.mxu0 0.0
        %2372 = vmatpush1.xpose.msra.mxu0 0.0
        %2373 = vmatprep.subr.mxu0 0.0
        %2374 = vmatpush1.xpose.msra.mxu0 0.0
        %2375 = vmatprep.subr.mxu0 0.0
        %2376 = vmatpush1.xpose.msra.mxu0 0.0
        %2377 = vmatprep.subr.mxu0 0.0
        %2378 = vmatpush1.xpose.msra.mxu0 0.0
        %2379 = vmatprep.subr.mxu0 0.0
        %2380 = vmatpush1.xpose.msra.mxu0 0.0
        %2381 = vmatprep.subr.mxu0 0.0
        %2382 = vmatpush1.xpose.msra.mxu0 0.0
        %2383 = vmatprep.subr.mxu0 0.0
        %2384 = vmatpush1.xpose.msra.mxu0 0.0
        %2385 = vmatprep.subr.mxu0 0.0
        %2386 = vmatpush1.xpose.msra.mxu0 0.0
        %2387 = vmatprep.subr.mxu0 0.0
        %2388 = vmatpush1.xpose.msra.mxu0 0.0
        %2389 = vmatprep.subr.mxu0 0.0
        %2390 = vmatpush1.xpose.msra.mxu0 0.0
        %2391 = vmatprep.subr.mxu0 0.0
        %2392 = vmatpush1.xpose.msra.mxu0 0.0
        %2393 = vmatprep.subr.mxu0 0.0
        %2394 = vmatpush1.xpose.msra.mxu0 0.0
        %2395 = vmatprep.subr.mxu0 0.0
        %2396 = vmatpush1.xpose.msra.mxu0 0.0
        %2397 = vmatprep.subr.mxu0 0.0
        %2398 = vmatpush1.xpose.msra.mxu0 0.0
        %2399 = vmatprep.subr.mxu0 0.0
        %2400 = vmatpush1.xpose.msra.mxu0 0.0
        %2401 = vmatprep.subr.mxu0 0.0
        %2402 = vmatpush1.xpose.msra.mxu0 0.0
        %2403 = vmatprep.mubr.f32.mxu0 0.0
        %2404 = vmatmul.mubr.f32.gmra.mrb[0].mxu0 %v2334
        %v2405 = vpop.f32.mrb[0].mxu0
        %v2406 = vadd.f32 0.0, %v2405
        %v2407 = vpop.f32.mrb[0].mxu0
        %2408 = vdwg.mxu0
        %v2409 = vsel %vm1106, %v2406, -inf
        %2410 = vmax.xlane.f32.xlu0 %v2409
        %v2411 = vpop.xlane.xlu0 %2410
        %v2412 = vsub.f32 %v2406, %v2411
        %v2413 = vmul.f32 %v2412, 1.442695
        %v2414 = vpow.pop %v2413
        %v2415 = vsel %vm1106, %v2414, 0.0
        %2416 = vadd.xlane.f32.xlu0 %v2415
        %v2417 = vpop.xlane.xlu0 %2416
        %v2418 = vrcp.pop %v2417
        %v2419 = vmul.f32 %v2414, %v2418
        %v2421 = vsel %vm1106, %v2419, 0
        %2423 = vmatprep.subr.mxu0 0.0
        %2424 = vmatpush1.msra.mxu0 %v2330
        %2425 = vmatprep.subr.mxu0 0.0
        %2426 = vmatpush1.msra.mxu0 0.0
        %2427 = vmatprep.subr.mxu0 0.0
        %2428 = vmatpush1.msra.mxu0 0.0
        %2429 = vmatprep.subr.mxu0 0.0
        %2430 = vmatpush1.msra.mxu0 0.0
        %2431 = vmatprep.subr.mxu0 0.0
        %2432 = vmatpush1.msra.mxu0 0.0
        %2433 = vmatprep.subr.mxu0 0.0
        %2434 = vmatpush1.msra.mxu0 0.0
        %2435 = vmatprep.subr.mxu0 0.0
        %2436 = vmatpush1.msra.mxu0 0.0
        %2437 = vmatprep.subr.mxu0 0.0
        %2438 = vmatpush1.msra.mxu0 0.0
        %2439 = vmatprep.subr.mxu0 0.0
        %2440 = vmatpush1.msra.mxu0 0.0
        %2441 = vmatprep.subr.mxu0 0.0
        %2442 = vmatpush1.msra.mxu0 0.0
        %2443 = vmatprep.subr.mxu0 0.0
        %2444 = vmatpush1.msra.mxu0 0.0
        %2445 = vmatprep.subr.mxu0 0.0
        %2446 = vmatpush1.msra.mxu0 0.0
        %2447 = vmatprep.subr.mxu0 0.0
        %2448 = vmatpush1.msra.mxu0 0.0
        %2449 = vmatprep.subr.mxu0 0.0
        %2450 = vmatpush1.msra.mxu0 0.0
        %2451 = vmatprep.subr.mxu0 0.0
        %2452 = vmatpush1.msra.mxu0 0.0
        %2453 = vmatprep.subr.mxu0 0.0
        %2454 = vmatpush1.msra.mxu0 0.0
        %2455 = vmatprep.subr.mxu0 0.0
        %2456 = vmatpush1.msra.mxu0 0.0
        %2457 = vmatprep.subr.mxu0 0.0
        %2458 = vmatpush1.msra.mxu0 0.0
        %2459 = vmatprep.subr.mxu0 0.0
        %2460 = vmatpush1.msra.mxu0 0.0
        %2461 = vmatprep.subr.mxu0 0.0
        %2462 = vmatpush1.msra.mxu0 0.0
        %2463 = vmatprep.subr.mxu0 0.0
        %2464 = vmatpush1.msra.mxu0 0.0
        %2465 = vmatprep.subr.mxu0 0.0
        %2466 = vmatpush1.msra.mxu0 0.0
        %2467 = vmatprep.subr.mxu0 0.0
        %2468 = vmatpush1.msra.mxu0 0.0
        %2469 = vmatprep.subr.mxu0 0.0
        %2470 = vmatpush1.msra.mxu0 0.0
        %2471 = vmatprep.subr.mxu0 0.0
        %2472 = vmatpush1.msra.mxu0 0.0
        %2473 = vmatprep.subr.mxu0 0.0
        %2474 = vmatpush1.msra.mxu0 0.0
        %2475 = vmatprep.subr.mxu0 0.0
        %2476 = vmatpush1.msra.mxu0 0.0
        %2477 = vmatprep.subr.mxu0 0.0
        %2478 = vmatpush1.msra.mxu0 0.0
        %2479 = vmatprep.subr.mxu0 0.0
        %2480 = vmatpush1.msra.mxu0 0.0
        %2481 = vmatprep.subr.mxu0 0.0
        %2482 = vmatpush1.msra.mxu0 0.0
        %2483 = vmatprep.subr.mxu0 0.0
        %2484 = vmatpush1.msra.mxu0 0.0
        %2485 = vmatprep.subr.mxu0 0.0
        %2486 = vmatpush1.msra.mxu0 0.0
        %2487 = vmatprep.mubr.f32.mxu0 0.0
        %2488 = vmatmul.mubr.f32.gmra.mrb[0].mxu0 %v2421
        %v2489 = vpop.f32.mrb[0].mxu0
        %v2490 = vadd.f32 0.0, %v2489
        %v2491 = vpop.f32.mrb[0].mxu0
        %2492 = vdwg.mxu0
        %2493 = vrot.lane.b32.xlu0 %v2189, 120
        %v2494 = vpop.permute.xlu0 %2493
        %2495 = vrot.lane.b32.xlu0 %v2257, 120
        %v2496 = vpop.permute.xlu0 %2495
        %v2497 = vsel %vm1106, %v2494, 0
        %v2499 = vsel %vm1106, %v2496, 0
        %2501 = vmatprep.subr.mxu0 0.0
        %2502 = vmatpush1.xpose.msra.mxu0 %v2499
        %2503 = vmatprep.subr.mxu0 0.0
        %2504 = vmatpush1.xpose.msra.mxu0 0.0
        %2505 = vmatprep.subr.mxu0 0.0
        %2506 = vmatpush1.xpose.msra.mxu0 0.0
        %2507 = vmatprep.subr.mxu0 0.0
        %2508 = vmatpush1.xpose.msra.mxu0 0.0
        %2509 = vmatprep.subr.mxu0 0.0
        %2510 = vmatpush1.xpose.msra.mxu0 0.0
        %2511 = vmatprep.subr.mxu0 0.0
        %2512 = vmatpush1.xpose.msra.mxu0 0.0
        %2513 = vmatprep.subr.mxu0 0.0
        %2514 = vmatpush1.xpose.msra.mxu0 0.0
        %2515 = vmatprep.subr.mxu0 0.0
        %2516 = vmatpush1.xpose.msra.mxu0 0.0
        %2517 = vmatprep.subr.mxu0 0.0
        %2518 = vmatpush1.xpose.msra.mxu0 0.0
        %2519 = vmatprep.subr.mxu0 0.0
        %2520 = vmatpush1.xpose.msra.mxu0 0.0
        %2521 = vmatprep.subr.mxu0 0.0
        %2522 = vmatpush1.xpose.msra.mxu0 0.0
        %2523 = vmatprep.subr.mxu0 0.0
        %2524 = vmatpush1.xpose.msra.mxu0 0.0
        %2525 = vmatprep.subr.mxu0 0.0
        %2526 = vmatpush1.xpose.msra.mxu0 0.0
        %2527 = vmatprep.subr.mxu0 0.0
        %2528 = vmatpush1.xpose.msra.mxu0 0.0
        %2529 = vmatprep.subr.mxu0 0.0
        %2530 = vmatpush1.xpose.msra.mxu0 0.0
        %2531 = vmatprep.subr.mxu0 0.0
        %2532 = vmatpush1.xpose.msra.mxu0 0.0
        %2533 = vmatprep.subr.mxu0 0.0
        %2534 = vmatpush1.xpose.msra.mxu0 0.0
        %2535 = vmatprep.subr.mxu0 0.0
        %2536 = vmatpush1.xpose.msra.mxu0 0.0
        %2537 = vmatprep.subr.mxu0 0.0
        %2538 = vmatpush1.xpose.msra.mxu0 0.0
        %2539 = vmatprep.subr.mxu0 0.0
        %2540 = vmatpush1.xpose.msra.mxu0 0.0
        %2541 = vmatprep.subr.mxu0 0.0
        %2542 = vmatpush1.xpose.msra.mxu0 0.0
        %2543 = vmatprep.subr.mxu0 0.0
        %2544 = vmatpush1.xpose.msra.mxu0 0.0
        %2545 = vmatprep.subr.mxu0 0.0
        %2546 = vmatpush1.xpose.msra.mxu0 0.0
        %2547 = vmatprep.subr.mxu0 0.0
        %2548 = vmatpush1.xpose.msra.mxu0 0.0
        %2549 = vmatprep.subr.mxu0 0.0
        %2550 = vmatpush1.xpose.msra.mxu0 0.0
        %2551 = vmatprep.subr.mxu0 0.0
        %2552 = vmatpush1.xpose.msra.mxu0 0.0
        %2553 = vmatprep.subr.mxu0 0.0
        %2554 = vmatpush1.xpose.msra.mxu0 0.0
        %2555 = vmatprep.subr.mxu0 0.0
        %2556 = vmatpush1.xpose.msra.mxu0 0.0
        %2557 = vmatprep.subr.mxu0 0.0
        %2558 = vmatpush1.xpose.msra.mxu0 0.0
        %2559 = vmatprep.subr.mxu0 0.0
        %2560 = vmatpush1.xpose.msra.mxu0 0.0
        %2561 = vmatprep.subr.mxu0 0.0
        %2562 = vmatpush1.xpose.msra.mxu0 0.0
        %2563 = vmatprep.subr.mxu0 0.0
        %2564 = vmatpush1.xpose.msra.mxu0 0.0
        %2565 = vmatprep.mubr.f32.mxu0 0.0
        %2566 = vmatmul.mubr.f32.gmra.mrb[0].mxu0 %v2497
        %v2567 = vpop.f32.mrb[0].mxu0
        %v2568 = vadd.f32 0.0, %v2567
        %v2569 = vpop.f32.mrb[0].mxu0
        %2570 = vdwg.mxu0
        %v2571 = vsel %vm1106, %v2568, -inf
        %2572 = vmax.xlane.f32.xlu0 %v2571
        %v2573 = vpop.xlane.xlu0 %2572
        %v2574 = vsub.f32 %v2568, %v2573
        %v2575 = vmul.f32 %v2574, 1.442695
        %v2576 = vpow.pop %v2575
        %v2577 = vsel %vm1106, %v2576, 0.0
        %2578 = vadd.xlane.f32.xlu0 %v2577
        %v2579 = vpop.xlane.xlu0 %2578
        %v2580 = vrcp.pop %v2579
        %v2581 = vmul.f32 %v2576, %v2580
        %2583 = vrot.lane.b32.xlu0 %v2330, 120
        %v2584 = vpop.permute.xlu0 %2583
        %v2587 = vsel %vm1106, %v2581, 0
        %2589 = vmatprep.subr.mxu0 0.0
        %2590 = vmatpush1.msra.mxu0 %v2584
        %2591 = vmatprep.subr.mxu0 0.0
        %2592 = vmatpush1.msra.mxu0 0.0
        %2593 = vmatprep.subr.mxu0 0.0
        %2594 = vmatpush1.msra.mxu0 0.0
        %2595 = vmatprep.subr.mxu0 0.0
        %2596 = vmatpush1.msra.mxu0 0.0
        %2597 = vmatprep.subr.mxu0 0.0
        %2598 = vmatpush1.msra.mxu0 0.0
        %2599 = vmatprep.subr.mxu0 0.0
        %2600 = vmatpush1.msra.mxu0 0.0
        %2601 = vmatprep.subr.mxu0 0.0
        %2602 = vmatpush1.msra.mxu0 0.0
        %2603 = vmatprep.subr.mxu0 0.0
        %2604 = vmatpush1.msra.mxu0 0.0
        %2605 = vmatprep.subr.mxu0 0.0
        %2606 = vmatpush1.msra.mxu0 0.0
        %2607 = vmatprep.subr.mxu0 0.0
        %2608 = vmatpush1.msra.mxu0 0.0
        %2609 = vmatprep.subr.mxu0 0.0
        %2610 = vmatpush1.msra.mxu0 0.0
        %2611 = vmatprep.subr.mxu0 0.0
        %2612 = vmatpush1.msra.mxu0 0.0
        %2613 = vmatprep.subr.mxu0 0.0
        %2614 = vmatpush1.msra.mxu0 0.0
        %2615 = vmatprep.subr.mxu0 0.0
        %2616 = vmatpush1.msra.mxu0 0.0
        %2617 = vmatprep.subr.mxu0 0.0
        %2618 = vmatpush1.msra.mxu0 0.0
        %2619 = vmatprep.subr.mxu0 0.0
        %2620 = vmatpush1.msra.mxu0 0.0
        %2621 = vmatprep.subr.mxu0 0.0
        %2622 = vmatpush1.msra.mxu0 0.0
        %2623 = vmatprep.subr.mxu0 0.0
        %2624 = vmatpush1.msra.mxu0 0.0
        %2625 = vmatprep.subr.mxu0 0.0
        %2626 = vmatpush1.msra.mxu0 0.0
        %2627 = vmatprep.subr.mxu0 0.0
        %2628 = vmatpush1.msra.mxu0 0.0
        %2629 = vmatprep.subr.mxu0 0.0
        %2630 = vmatpush1.msra.mxu0 0.0
        %2631 = vmatprep.subr.mxu0 0.0
        %2632 = vmatpush1.msra.mxu0 0.0
        %2633 = vmatprep.subr.mxu0 0.0
        %2634 = vmatpush1.msra.mxu0 0.0
        %2635 = vmatprep.subr.mxu0 0.0
        %2636 = vmatpush1.msra.mxu0 0.0
        %2637 = vmatprep.subr.mxu0 0.0
        %2638 = vmatpush1.msra.mxu0 0.0
        %2639 = vmatprep.subr.mxu0 0.0
        %2640 = vmatpush1.msra.mxu0 0.0
        %2641 = vmatprep.subr.mxu0 0.0
        %2642 = vmatpush1.msra.mxu0 0.0
        %2643 = vmatprep.subr.mxu0 0.0
        %2644 = vmatpush1.msra.mxu0 0.0
        %2645 = vmatprep.subr.mxu0 0.0
        %2646 = vmatpush1.msra.mxu0 0.0
        %2647 = vmatprep.subr.mxu0 0.0
        %2648 = vmatpush1.msra.mxu0 0.0
        %2649 = vmatprep.subr.mxu0 0.0
        %2650 = vmatpush1.msra.mxu0 0.0
        %2651 = vmatprep.subr.mxu0 0.0
        %2652 = vmatpush1.msra.mxu0 0.0
        %2653 = vmatprep.mubr.f32.mxu0 0.0
        %2654 = vmatmul.mubr.f32.gmra.mrb[0].mxu0 %v2587
        %v2655 = vpop.f32.mrb[0].mxu0
        %v2656 = vadd.f32 0.0, %v2655
        %v2657 = vpop.f32.mrb[0].mxu0
        %2658 = vdwg.mxu0
        %v2660 = vsel %vm1106, %v2656, 0
        %2662 = vmatprep.subr.mxu0 0.0
        %2663 = vmatpush1.msra.mxu0 %v2112
        %2664 = vmatprep.subr.mxu0 0.0
        %2665 = vmatpush1.msra.mxu0 0.0
        %2666 = vmatprep.subr.mxu0 0.0
        %2667 = vmatpush1.msra.mxu0 0.0
        %2668 = vmatprep.subr.mxu0 0.0
        %2669 = vmatpush1.msra.mxu0 0.0
        %2670 = vmatprep.subr.mxu0 0.0
        %2671 = vmatpush1.msra.mxu0 0.0
        %2672 = vmatprep.subr.mxu0 0.0
        %2673 = vmatpush1.msra.mxu0 0.0
        %2674 = vmatprep.subr.mxu0 0.0
        %2675 = vmatpush1.msra.mxu0 0.0
        %2676 = vmatprep.subr.mxu0 0.0
        %2677 = vmatpush1.msra.mxu0 0.0
        %2678 = vmatprep.subr.mxu0 0.0
        %2679 = vmatpush1.msra.mxu0 0.0
        %2680 = vmatprep.subr.mxu0 0.0
        %2681 = vmatpush1.msra.mxu0 0.0
        %2682 = vmatprep.subr.mxu0 0.0
        %2683 = vmatpush1.msra.mxu0 0.0
        %2684 = vmatprep.subr.mxu0 0.0
        %2685 = vmatpush1.msra.mxu0 0.0
        %2686 = vmatprep.subr.mxu0 0.0
        %2687 = vmatpush1.msra.mxu0 0.0
        %2688 = vmatprep.subr.mxu0 0.0
        %2689 = vmatpush1.msra.mxu0 0.0
        %2690 = vmatprep.subr.mxu0 0.0
        %2691 = vmatpush1.msra.mxu0 0.0
        %2692 = vmatprep.subr.mxu0 0.0
        %2693 = vmatpush1.msra.mxu0 0.0
        %2694 = vmatprep.subr.mxu0 0.0
        %2695 = vmatpush1.msra.mxu0 0.0
        %2696 = vmatprep.subr.mxu0 0.0
        %2697 = vmatpush1.msra.mxu0 0.0
        %2698 = vmatprep.subr.mxu0 0.0
        %2699 = vmatpush1.msra.mxu0 0.0
        %2700 = vmatprep.subr.mxu0 0.0
        %2701 = vmatpush1.msra.mxu0 0.0
        %2702 = vmatprep.subr.mxu0 0.0
        %2703 = vmatpush1.msra.mxu0 0.0
        %2704 = vmatprep.subr.mxu0 0.0
        %2705 = vmatpush1.msra.mxu0 0.0
        %2706 = vmatprep.subr.mxu0 0.0
        %2707 = vmatpush1.msra.mxu0 0.0
        %2708 = vmatprep.subr.mxu0 0.0
        %2709 = vmatpush1.msra.mxu0 0.0
        %2710 = vmatprep.subr.mxu0 0.0
        %2711 = vmatpush1.msra.mxu0 0.0
        %2712 = vmatprep.subr.mxu0 0.0
        %2713 = vmatpush1.msra.mxu0 0.0
        %2714 = vmatprep.subr.mxu0 0.0
        %2715 = vmatpush1.msra.mxu0 0.0
        %2716 = vmatprep.subr.mxu0 0.0
        %2717 = vmatpush1.msra.mxu0 0.0
        %2718 = vmatprep.subr.mxu0 0.0
        %2719 = vmatpush1.msra.mxu0 0.0
        %2720 = vmatprep.subr.mxu0 0.0
        %2721 = vmatpush1.msra.mxu0 0.0
        %2722 = vmatprep.subr.mxu0 0.0
        %2723 = vmatpush1.msra.mxu0 0.0
        %2724 = vmatprep.subr.mxu0 0.0
        %2725 = vmatpush1.msra.mxu0 0.0
        %2726 = vmatprep.mubr.f32.mxu0 0.0
        %2727 = vmatmul.mubr.f32.gmra.mrb[0].mxu0 %v2660
        %v2728 = vpop.f32.mrb[0].mxu0
        %v2729 = vadd.f32 0.0, %v2728
        %v2730 = vpop.f32.mrb[0].mxu0
        %2731 = vdwg.mxu0
        %v2733 = vsel %vm1106, %v2490, 0
        %2735 = vmatprep.subr.mxu0 0.0
        %2736 = vmatpush1.msra.mxu0 %v2111
        %2737 = vmatprep.subr.mxu0 0.0
        %2738 = vmatpush1.msra.mxu0 0.0
        %2739 = vmatprep.subr.mxu0 0.0
        %2740 = vmatpush1.msra.mxu0 0.0
        %2741 = vmatprep.subr.mxu0 0.0
        %2742 = vmatpush1.msra.mxu0 0.0
        %2743 = vmatprep.subr.mxu0 0.0
        %2744 = vmatpush1.msra.mxu0 0.0
        %2745 = vmatprep.subr.mxu0 0.0
        %2746 = vmatpush1.msra.mxu0 0.0
        %2747 = vmatprep.subr.mxu0 0.0
        %2748 = vmatpush1.msra.mxu0 0.0
        %2749 = vmatprep.subr.mxu0 0.0
        %2750 = vmatpush1.msra.mxu0 0.0
        %2751 = vmatprep.subr.mxu0 0.0
        %2752 = vmatpush1.msra.mxu0 0.0
        %2753 = vmatprep.subr.mxu0 0.0
        %2754 = vmatpush1.msra.mxu0 0.0
        %2755 = vmatprep.subr.mxu0 0.0
        %2756 = vmatpush1.msra.mxu0 0.0
        %2757 = vmatprep.subr.mxu0 0.0
        %2758 = vmatpush1.msra.mxu0 0.0
        %2759 = vmatprep.subr.mxu0 0.0
        %2760 = vmatpush1.msra.mxu0 0.0
        %2761 = vmatprep.subr.mxu0 0.0
        %2762 = vmatpush1.msra.mxu0 0.0
        %2763 = vmatprep.subr.mxu0 0.0
        %2764 = vmatpush1.msra.mxu0 0.0
        %2765 = vmatprep.subr.mxu0 0.0
        %2766 = vmatpush1.msra.mxu0 0.0
        %2767 = vmatprep.subr.mxu0 0.0
        %2768 = vmatpush1.msra.mxu0 0.0
        %2769 = vmatprep.subr.mxu0 0.0
        %2770 = vmatpush1.msra.mxu0 0.0
        %2771 = vmatprep.subr.mxu0 0.0
        %2772 = vmatpush1.msra.mxu0 0.0
        %2773 = vmatprep.subr.mxu0 0.0
        %2774 = vmatpush1.msra.mxu0 0.0
        %2775 = vmatprep.subr.mxu0 0.0
        %2776 = vmatpush1.msra.mxu0 0.0
        %2777 = vmatprep.subr.mxu0 0.0
        %2778 = vmatpush1.msra.mxu0 0.0
        %2779 = vmatprep.subr.mxu0 0.0
        %2780 = vmatpush1.msra.mxu0 0.0
        %2781 = vmatprep.subr.mxu0 0.0
        %2782 = vmatpush1.msra.mxu0 0.0
        %2783 = vmatprep.subr.mxu0 0.0
        %2784 = vmatpush1.msra.mxu0 0.0
        %2785 = vmatprep.subr.mxu0 0.0
        %2786 = vmatpush1.msra.mxu0 0.0
        %2787 = vmatprep.subr.mxu0 0.0
        %2788 = vmatpush1.msra.mxu0 0.0
        %2789 = vmatprep.subr.mxu0 0.0
        %2790 = vmatpush1.msra.mxu0 0.0
        %2791 = vmatprep.subr.mxu0 0.0
        %2792 = vmatpush1.msra.mxu0 0.0
        %2793 = vmatprep.subr.mxu0 0.0
        %2794 = vmatpush1.msra.mxu0 0.0
        %2795 = vmatprep.subr.mxu0 0.0
        %2796 = vmatpush1.msra.mxu0 0.0
        %2797 = vmatprep.subr.mxu0 0.0
        %2798 = vmatpush1.msra.mxu0 0.0
        %2799 = vmatprep.mubr.f32.mxu0 0.0
        %2800 = vmatmul.mubr.f32.gmra.mrb[0].mxu0 %v2733
        %v2801 = vpop.f32.mrb[0].mxu0
        %v2802 = vadd.f32 %v2729, %v2801
        %v2803 = vpop.f32.mrb[0].mxu0
        %2804 = vdwg.mxu0
        %2805 = vrot.lane.b32.xlu0 %v2189, 112
        %v2806 = vpop.permute.xlu0 %2805
        %2807 = vrot.lane.b32.xlu0 %v2257, 112
        %v2808 = vpop.permute.xlu0 %2807
        %v2809 = vsel %vm1106, %v2806, 0
        %v2811 = vsel %vm1106, %v2808, 0
        %2813 = vmatprep.subr.mxu0 0.0
        %2814 = vmatpush1.xpose.msra.mxu0 %v2811
        %2815 = vmatprep.subr.mxu0 0.0
        %2816 = vmatpush1.xpose.msra.mxu0 0.0
        %2817 = vmatprep.subr.mxu0 0.0
        %2818 = vmatpush1.xpose.msra.mxu0 0.0
        %2819 = vmatprep.subr.mxu0 0.0
        %2820 = vmatpush1.xpose.msra.mxu0 0.0
        %2821 = vmatprep.subr.mxu0 0.0
        %2822 = vmatpush1.xpose.msra.mxu0 0.0
        %2823 = vmatprep.subr.mxu0 0.0
        %2824 = vmatpush1.xpose.msra.mxu0 0.0
        %2825 = vmatprep.subr.mxu0 0.0
        %2826 = vmatpush1.xpose.msra.mxu0 0.0
        %2827 = vmatprep.subr.mxu0 0.0
        %2828 = vmatpush1.xpose.msra.mxu0 0.0
        %2829 = vmatprep.subr.mxu0 0.0
        %2830 = vmatpush1.xpose.msra.mxu0 0.0
        %2831 = vmatprep.subr.mxu0 0.0
        %2832 = vmatpush1.xpose.msra.mxu0 0.0
        %2833 = vmatprep.subr.mxu0 0.0
        %2834 = vmatpush1.xpose.msra.mxu0 0.0
        %2835 = vmatprep.subr.mxu0 0.0
        %2836 = vmatpush1.xpose.msra.mxu0 0.0
        %2837 = vmatprep.subr.mxu0 0.0
        %2838 = vmatpush1.xpose.msra.mxu0 0.0
        %2839 = vmatprep.subr.mxu0 0.0
        %2840 = vmatpush1.xpose.msra.mxu0 0.0
        %2841 = vmatprep.subr.mxu0 0.0
        %2842 = vmatpush1.xpose.msra.mxu0 0.0
        %2843 = vmatprep.subr.mxu0 0.0
        %2844 = vmatpush1.xpose.msra.mxu0 0.0
        %2845 = vmatprep.subr.mxu0 0.0
        %2846 = vmatpush1.xpose.msra.mxu0 0.0
        %2847 = vmatprep.subr.mxu0 0.0
        %2848 = vmatpush1.xpose.msra.mxu0 0.0
        %2849 = vmatprep.subr.mxu0 0.0
        %2850 = vmatpush1.xpose.msra.mxu0 0.0
        %2851 = vmatprep.subr.mxu0 0.0
        %2852 = vmatpush1.xpose.msra.mxu0 0.0
        %2853 = vmatprep.subr.mxu0 0.0
        %2854 = vmatpush1.xpose.msra.mxu0 0.0
        %2855 = vmatprep.subr.mxu0 0.0
        %2856 = vmatpush1.xpose.msra.mxu0 0.0
        %2857 = vmatprep.subr.mxu0 0.0
        %2858 = vmatpush1.xpose.msra.mxu0 0.0
        %2859 = vmatprep.subr.mxu0 0.0
        %2860 = vmatpush1.xpose.msra.mxu0 0.0
        %2861 = vmatprep.subr.mxu0 0.0
        %2862 = vmatpush1.xpose.msra.mxu0 0.0
        %2863 = vmatprep.subr.mxu0 0.0
        %2864 = vmatpush1.xpose.msra.mxu0 0.0
        %2865 = vmatprep.subr.mxu0 0.0
        %2866 = vmatpush1.xpose.msra.mxu0 0.0
        %2867 = vmatprep.subr.mxu0 0.0
        %2868 = vmatpush1.xpose.msra.mxu0 0.0
        %2869 = vmatprep.subr.mxu0 0.0
        %2870 = vmatpush1.xpose.msra.mxu0 0.0
        %2871 = vmatprep.subr.mxu0 0.0
        %2872 = vmatpush1.xpose.msra.mxu0 0.0
        %2873 = vmatprep.subr.mxu0 0.0
        %2874 = vmatpush1.xpose.msra.mxu0 0.0
        %2875 = vmatprep.subr.mxu0 0.0
        %2876 = vmatpush1.xpose.msra.mxu0 0.0
        %2877 = vmatprep.mubr.f32.mxu0 0.0
        %2878 = vmatmul.mubr.f32.gmra.mrb[0].mxu0 %v2809
        %v2879 = vpop.f32.mrb[0].mxu0
        %v2880 = vadd.f32 0.0, %v2879
        %v2881 = vpop.f32.mrb[0].mxu0
        %2882 = vdwg.mxu0
        %v2883 = vsel %vm1106, %v2880, -inf
        %2884 = vmax.xlane.f32.xlu0 %v2883
        %v2885 = vpop.xlane.xlu0 %2884
        %v2886 = vsub.f32 %v2880, %v2885
        %v2887 = vmul.f32 %v2886, 1.442695
        %v2888 = vpow.pop %v2887
        %v2889 = vsel %vm1106, %v2888, 0.0
        %2890 = vadd.xlane.f32.xlu0 %v2889
        %v2891 = vpop.xlane.xlu0 %2890
        %v2892 = vrcp.pop %v2891
        %v2893 = vmul.f32 %v2888, %v2892
        %2894 = vrot.lane.b32.xlu0 %v2330, 112
        %v2895 = vpop.permute.xlu0 %2894
        %v2898 = vsel %vm1106, %v2893, 0
        %2900 = vmatprep.subr.mxu0 0.0
        %2901 = vmatpush1.msra.mxu0 %v2895
        %2902 = vmatprep.subr.mxu0 0.0
        %2903 = vmatpush1.msra.mxu0 0.0
        %2904 = vmatprep.subr.mxu0 0.0
        %2905 = vmatpush1.msra.mxu0 0.0
        %2906 = vmatprep.subr.mxu0 0.0
        %2907 = vmatpush1.msra.mxu0 0.0
        %2908 = vmatprep.subr.mxu0 0.0
        %2909 = vmatpush1.msra.mxu0 0.0
        %2910 = vmatprep.subr.mxu0 0.0
        %2911 = vmatpush1.msra.mxu0 0.0
        %2912 = vmatprep.subr.mxu0 0.0
        %2913 = vmatpush1.msra.mxu0 0.0
        %2914 = vmatprep.subr.mxu0 0.0
        %2915 = vmatpush1.msra.mxu0 0.0
        %2916 = vmatprep.subr.mxu0 0.0
        %2917 = vmatpush1.msra.mxu0 0.0
        %2918 = vmatprep.subr.mxu0 0.0
        %2919 = vmatpush1.msra.mxu0 0.0
        %2920 = vmatprep.subr.mxu0 0.0
        %2921 = vmatpush1.msra.mxu0 0.0
        %2922 = vmatprep.subr.mxu0 0.0
        %2923 = vmatpush1.msra.mxu0 0.0
        %2924 = vmatprep.subr.mxu0 0.0
        %2925 = vmatpush1.msra.mxu0 0.0
        %2926 = vmatprep.subr.mxu0 0.0
        %2927 = vmatpush1.msra.mxu0 0.0
        %2928 = vmatprep.subr.mxu0 0.0
        %2929 = vmatpush1.msra.mxu0 0.0
        %2930 = vmatprep.subr.mxu0 0.0
        %2931 = vmatpush1.msra.mxu0 0.0
        %2932 = vmatprep.subr.mxu0 0.0
        %2933 = vmatpush1.msra.mxu0 0.0
        %2934 = vmatprep.subr.mxu0 0.0
        %2935 = vmatpush1.msra.mxu0 0.0
        %2936 = vmatprep.subr.mxu0 0.0
        %2937 = vmatpush1.msra.mxu0 0.0
        %2938 = vmatprep.subr.mxu0 0.0
        %2939 = vmatpush1.msra.mxu0 0.0
        %2940 = vmatprep.subr.mxu0 0.0
        %2941 = vmatpush1.msra.mxu0 0.0
        %2942 = vmatprep.subr.mxu0 0.0
        %2943 = vmatpush1.msra.mxu0 0.0
        %2944 = vmatprep.subr.mxu0 0.0
        %2945 = vmatpush1.msra.mxu0 0.0
        %2946 = vmatprep.subr.mxu0 0.0
        %2947 = vmatpush1.msra.mxu0 0.0
        %2948 = vmatprep.subr.mxu0 0.0
        %2949 = vmatpush1.msra.mxu0 0.0
        %2950 = vmatprep.subr.mxu0 0.0
        %2951 = vmatpush1.msra.mxu0 0.0
        %2952 = vmatprep.subr.mxu0 0.0
        %2953 = vmatpush1.msra.mxu0 0.0
        %2954 = vmatprep.subr.mxu0 0.0
        %2955 = vmatpush1.msra.mxu0 0.0
        %2956 = vmatprep.subr.mxu0 0.0
        %2957 = vmatpush1.msra.mxu0 0.0
        %2958 = vmatprep.subr.mxu0 0.0
        %2959 = vmatpush1.msra.mxu0 0.0
        %2960 = vmatprep.subr.mxu0 0.0
        %2961 = vmatpush1.msra.mxu0 0.0
        %2962 = vmatprep.subr.mxu0 0.0
        %2963 = vmatpush1.msra.mxu0 0.0
        %2964 = vmatprep.mubr.f32.mxu0 0.0
        %2965 = vmatmul.mubr.f32.gmra.mrb[0].mxu0 %v2898
        %v2966 = vpop.f32.mrb[0].mxu0
        %v2967 = vadd.f32 0.0, %v2966
        %v2968 = vpop.f32.mrb[0].mxu0
        %2969 = vdwg.mxu0
        %v2971 = vsel %vm1106, %v2967, 0
        %2973 = vmatprep.subr.mxu0 0.0
        %2974 = vmatpush1.msra.mxu0 %v2113
        %2975 = vmatprep.subr.mxu0 0.0
        %2976 = vmatpush1.msra.mxu0 0.0
        %2977 = vmatprep.subr.mxu0 0.0
        %2978 = vmatpush1.msra.mxu0 0.0
        %2979 = vmatprep.subr.mxu0 0.0
        %2980 = vmatpush1.msra.mxu0 0.0
        %2981 = vmatprep.subr.mxu0 0.0
        %2982 = vmatpush1.msra.mxu0 0.0
        %2983 = vmatprep.subr.mxu0 0.0
        %2984 = vmatpush1.msra.mxu0 0.0
        %2985 = vmatprep.subr.mxu0 0.0
        %2986 = vmatpush1.msra.mxu0 0.0
        %2987 = vmatprep.subr.mxu0 0.0
        %2988 = vmatpush1.msra.mxu0 0.0
        %2989 = vmatprep.subr.mxu0 0.0
        %2990 = vmatpush1.msra.mxu0 0.0
        %2991 = vmatprep.subr.mxu0 0.0
        %2992 = vmatpush1.msra.mxu0 0.0
        %2993 = vmatprep.subr.mxu0 0.0
        %2994 = vmatpush1.msra.mxu0 0.0
        %2995 = vmatprep.subr.mxu0 0.0
        %2996 = vmatpush1.msra.mxu0 0.0
        %2997 = vmatprep.subr.mxu0 0.0
        %2998 = vmatpush1.msra.mxu0 0.0
        %2999 = vmatprep.subr.mxu0 0.0
        %3000 = vmatpush1.msra.mxu0 0.0
        %3001 = vmatprep.subr.mxu0 0.0
        %3002 = vmatpush1.msra.mxu0 0.0
        %3003 = vmatprep.subr.mxu0 0.0
        %3004 = vmatpush1.msra.mxu0 0.0
        %3005 = vmatprep.subr.mxu0 0.0
        %3006 = vmatpush1.msra.mxu0 0.0
        %3007 = vmatprep.subr.mxu0 0.0
        %3008 = vmatpush1.msra.mxu0 0.0
        %3009 = vmatprep.subr.mxu0 0.0
        %3010 = vmatpush1.msra.mxu0 0.0
        %3011 = vmatprep.subr.mxu0 0.0
        %3012 = vmatpush1.msra.mxu0 0.0
        %3013 = vmatprep.subr.mxu0 0.0
        %3014 = vmatpush1.msra.mxu0 0.0
        %3015 = vmatprep.subr.mxu0 0.0
        %3016 = vmatpush1.msra.mxu0 0.0
        %3017 = vmatprep.subr.mxu0 0.0
        %3018 = vmatpush1.msra.mxu0 0.0
        %3019 = vmatprep.subr.mxu0 0.0
        %3020 = vmatpush1.msra.mxu0 0.0
        %3021 = vmatprep.subr.mxu0 0.0
        %3022 = vmatpush1.msra.mxu0 0.0
        %3023 = vmatprep.subr.mxu0 0.0
        %3024 = vmatpush1.msra.mxu0 0.0
        %3025 = vmatprep.subr.mxu0 0.0
        %3026 = vmatpush1.msra.mxu0 0.0
        %3027 = vmatprep.subr.mxu0 0.0
        %3028 = vmatpush1.msra.mxu0 0.0
        %3029 = vmatprep.subr.mxu0 0.0
        %3030 = vmatpush1.msra.mxu0 0.0
        %3031 = vmatprep.subr.mxu0 0.0
        %3032 = vmatpush1.msra.mxu0 0.0
        %3033 = vmatprep.subr.mxu0 0.0
        %3034 = vmatpush1.msra.mxu0 0.0
        %3035 = vmatprep.subr.mxu0 0.0
        %3036 = vmatpush1.msra.mxu0 0.0
        %3037 = vmatprep.mubr.f32.mxu0 0.0
        %3038 = vmatmul.mubr.f32.gmra.mrb[0].mxu0 %v2971
        %v3039 = vpop.f32.mrb[0].mxu0
        %v3040 = vadd.f32 0.0, %v3039
        %v3041 = vpop.f32.mrb[0].mxu0
        %3042 = vdwg.mxu0
        %v3043 = vadd.f32 %v2802, %v3040
        %3044 = vrot.lane.b32.xlu0 %v2189, 104
        %v3045 = vpop.permute.xlu0 %3044
        %3046 = vrot.lane.b32.xlu0 %v2257, 104
        %v3047 = vpop.permute.xlu0 %3046
        %v3048 = vsel %vm1106, %v3045, 0
        %v3050 = vsel %vm1106, %v3047, 0
        %3052 = vmatprep.subr.mxu0 0.0
        %3053 = vmatpush1.xpose.msra.mxu0 %v3050
        %3054 = vmatprep.subr.mxu0 0.0
        %3055 = vmatpush1.xpose.msra.mxu0 0.0
        %3056 = vmatprep.subr.mxu0 0.0
        %3057 = vmatpush1.xpose.msra.mxu0 0.0
        %3058 = vmatprep.subr.mxu0 0.0
        %3059 = vmatpush1.xpose.msra.mxu0 0.0
        %3060 = vmatprep.subr.mxu0 0.0
        %3061 = vmatpush1.xpose.msra.mxu0 0.0
        %3062 = vmatprep.subr.mxu0 0.0
        %3063 = vmatpush1.xpose.msra.mxu0 0.0
        %3064 = vmatprep.subr.mxu0 0.0
        %3065 = vmatpush1.xpose.msra.mxu0 0.0
        %3066 = vmatprep.subr.mxu0 0.0
        %3067 = vmatpush1.xpose.msra.mxu0 0.0
        %3068 = vmatprep.subr.mxu0 0.0
        %3069 = vmatpush1.xpose.msra.mxu0 0.0
        %3070 = vmatprep.subr.mxu0 0.0
        %3071 = vmatpush1.xpose.msra.mxu0 0.0
        %3072 = vmatprep.subr.mxu0 0.0
        %3073 = vmatpush1.xpose.msra.mxu0 0.0
        %3074 = vmatprep.subr.mxu0 0.0
        %3075 = vmatpush1.xpose.msra.mxu0 0.0
        %3076 = vmatprep.subr.mxu0 0.0
        %3077 = vmatpush1.xpose.msra.mxu0 0.0
        %3078 = vmatprep.subr.mxu0 0.0
        %3079 = vmatpush1.xpose.msra.mxu0 0.0
        %3080 = vmatprep.subr.mxu0 0.0
        %3081 = vmatpush1.xpose.msra.mxu0 0.0
        %3082 = vmatprep.subr.mxu0 0.0
        %3083 = vmatpush1.xpose.msra.mxu0 0.0
        %3084 = vmatprep.subr.mxu0 0.0
        %3085 = vmatpush1.xpose.msra.mxu0 0.0
        %3086 = vmatprep.subr.mxu0 0.0
        %3087 = vmatpush1.xpose.msra.mxu0 0.0
        %3088 = vmatprep.subr.mxu0 0.0
        %3089 = vmatpush1.xpose.msra.mxu0 0.0
        %3090 = vmatprep.subr.mxu0 0.0
        %3091 = vmatpush1.xpose.msra.mxu0 0.0
        %3092 = vmatprep.subr.mxu0 0.0
        %3093 = vmatpush1.xpose.msra.mxu0 0.0
        %3094 = vmatprep.subr.mxu0 0.0
        %3095 = vmatpush1.xpose.msra.mxu0 0.0
        %3096 = vmatprep.subr.mxu0 0.0
        %3097 = vmatpush1.xpose.msra.mxu0 0.0
        %3098 = vmatprep.subr.mxu0 0.0
        %3099 = vmatpush1.xpose.msra.mxu0 0.0
        %3100 = vmatprep.subr.mxu0 0.0
        %3101 = vmatpush1.xpose.msra.mxu0 0.0
        %3102 = vmatprep.subr.mxu0 0.0
        %3103 = vmatpush1.xpose.msra.mxu0 0.0
        %3104 = vmatprep.subr.mxu0 0.0
        %3105 = vmatpush1.xpose.msra.mxu0 0.0
        %3106 = vmatprep.subr.mxu0 0.0
        %3107 = vmatpush1.xpose.msra.mxu0 0.0
        %3108 = vmatprep.subr.mxu0 0.0
        %3109 = vmatpush1.xpose.msra.mxu0 0.0
        %3110 = vmatprep.subr.mxu0 0.0
        %3111 = vmatpush1.xpose.msra.mxu0 0.0
        %3112 = vmatprep.subr.mxu0 0.0
        %3113 = vmatpush1.xpose.msra.mxu0 0.0
        %3114 = vmatprep.subr.mxu0 0.0
        %3115 = vmatpush1.xpose.msra.mxu0 0.0
        %3116 = vmatprep.mubr.f32.mxu0 0.0
        %3117 = vmatmul.mubr.f32.gmra.mrb[0].mxu0 %v3048
        %v3118 = vpop.f32.mrb[0].mxu0
        %v3119 = vadd.f32 0.0, %v3118
        %v3120 = vpop.f32.mrb[0].mxu0
        %3121 = vdwg.mxu0
        %v3122 = vsel %vm1106, %v3119, -inf
        %3123 = vmax.xlane.f32.xlu0 %v3122
        %v3124 = vpop.xlane.xlu0 %3123
        %v3125 = vsub.f32 %v3119, %v3124
        %v3126 = vmul.f32 %v3125, 1.442695
        %v3127 = vpow.pop %v3126
        %v3128 = vsel %vm1106, %v3127, 0.0
        %3129 = vadd.xlane.f32.xlu0 %v3128
        %v3130 = vpop.xlane.xlu0 %3129
        %v3131 = vrcp.pop %v3130
        %v3132 = vmul.f32 %v3127, %v3131
        %3133 = vrot.lane.b32.xlu0 %v2330, 104
        %v3134 = vpop.permute.xlu0 %3133
        %v3137 = vsel %vm1106, %v3132, 0
        %3139 = vmatprep.subr.mxu0 0.0
        %3140 = vmatpush1.msra.mxu0 %v3134
        %3141 = vmatprep.subr.mxu0 0.0
        %3142 = vmatpush1.msra.mxu0 0.0
        %3143 = vmatprep.subr.mxu0 0.0
        %3144 = vmatpush1.msra.mxu0 0.0
        %3145 = vmatprep.subr.mxu0 0.0
        %3146 = vmatpush1.msra.mxu0 0.0
        %3147 = vmatprep.subr.mxu0 0.0
        %3148 = vmatpush1.msra.mxu0 0.0
        %3149 = vmatprep.subr.mxu0 0.0
        %3150 = vmatpush1.msra.mxu0 0.0
        %3151 = vmatprep.subr.mxu0 0.0
        %3152 = vmatpush1.msra.mxu0 0.0
        %3153 = vmatprep.subr.mxu0 0.0
        %3154 = vmatpush1.msra.mxu0 0.0
        %3155 = vmatprep.subr.mxu0 0.0
        %3156 = vmatpush1.msra.mxu0 0.0
        %3157 = vmatprep.subr.mxu0 0.0
        %3158 = vmatpush1.msra.mxu0 0.0
        %3159 = vmatprep.subr.mxu0 0.0
        %3160 = vmatpush1.msra.mxu0 0.0
        %3161 = vmatprep.subr.mxu0 0.0
        %3162 = vmatpush1.msra.mxu0 0.0
        %3163 = vmatprep.subr.mxu0 0.0
        %3164 = vmatpush1.msra.mxu0 0.0
        %3165 = vmatprep.subr.mxu0 0.0
        %3166 = vmatpush1.msra.mxu0 0.0
        %3167 = vmatprep.subr.mxu0 0.0
        %3168 = vmatpush1.msra.mxu0 0.0
        %3169 = vmatprep.subr.mxu0 0.0
        %3170 = vmatpush1.msra.mxu0 0.0
        %3171 = vmatprep.subr.mxu0 0.0
        %3172 = vmatpush1.msra.mxu0 0.0
        %3173 = vmatprep.subr.mxu0 0.0
        %3174 = vmatpush1.msra.mxu0 0.0
        %3175 = vmatprep.subr.mxu0 0.0
        %3176 = vmatpush1.msra.mxu0 0.0
        %3177 = vmatprep.subr.mxu0 0.0
        %3178 = vmatpush1.msra.mxu0 0.0
        %3179 = vmatprep.subr.mxu0 0.0
        %3180 = vmatpush1.msra.mxu0 0.0
        %3181 = vmatprep.subr.mxu0 0.0
        %3182 = vmatpush1.msra.mxu0 0.0
        %3183 = vmatprep.subr.mxu0 0.0
        %3184 = vmatpush1.msra.mxu0 0.0
        %3185 = vmatprep.subr.mxu0 0.0
        %3186 = vmatpush1.msra.mxu0 0.0
        %3187 = vmatprep.subr.mxu0 0.0
        %3188 = vmatpush1.msra.mxu0 0.0
        %3189 = vmatprep.subr.mxu0 0.0
        %3190 = vmatpush1.msra.mxu0 0.0
        %3191 = vmatprep.subr.mxu0 0.0
        %3192 = vmatpush1.msra.mxu0 0.0
        %3193 = vmatprep.subr.mxu0 0.0
        %3194 = vmatpush1.msra.mxu0 0.0
        %3195 = vmatprep.subr.mxu0 0.0
        %3196 = vmatpush1.msra.mxu0 0.0
        %3197 = vmatprep.subr.mxu0 0.0
        %3198 = vmatpush1.msra.mxu0 0.0
        %3199 = vmatprep.subr.mxu0 0.0
        %3200 = vmatpush1.msra.mxu0 0.0
        %3201 = vmatprep.subr.mxu0 0.0
        %3202 = vmatpush1.msra.mxu0 0.0
        %3203 = vmatprep.mubr.f32.mxu0 0.0
        %3204 = vmatmul.mubr.f32.gmra.mrb[0].mxu0 %v3137
        %v3205 = vpop.f32.mrb[0].mxu0
        %v3206 = vadd.f32 0.0, %v3205
        %v3207 = vpop.f32.mrb[0].mxu0
        %3208 = vdwg.mxu0
        %v3210 = vsel %vm1106, %v3206, 0
        %3212 = vmatprep.subr.mxu0 0.0
        %3213 = vmatpush1.msra.mxu0 %v2114
        %3214 = vmatprep.subr.mxu0 0.0
        %3215 = vmatpush1.msra.mxu0 0.0
        %3216 = vmatprep.subr.mxu0 0.0
        %3217 = vmatpush1.msra.mxu0 0.0
        %3218 = vmatprep.subr.mxu0 0.0
        %3219 = vmatpush1.msra.mxu0 0.0
        %3220 = vmatprep.subr.mxu0 0.0
        %3221 = vmatpush1.msra.mxu0 0.0
        %3222 = vmatprep.subr.mxu0 0.0
        %3223 = vmatpush1.msra.mxu0 0.0
        %3224 = vmatprep.subr.mxu0 0.0
        %3225 = vmatpush1.msra.mxu0 0.0
        %3226 = vmatprep.subr.mxu0 0.0
        %3227 = vmatpush1.msra.mxu0 0.0
        %3228 = vmatprep.subr.mxu0 0.0
        %3229 = vmatpush1.msra.mxu0 0.0
        %3230 = vmatprep.subr.mxu0 0.0
        %3231 = vmatpush1.msra.mxu0 0.0
        %3232 = vmatprep.subr.mxu0 0.0
        %3233 = vmatpush1.msra.mxu0 0.0
        %3234 = vmatprep.subr.mxu0 0.0
        %3235 = vmatpush1.msra.mxu0 0.0
        %3236 = vmatprep.subr.mxu0 0.0
        %3237 = vmatpush1.msra.mxu0 0.0
        %3238 = vmatprep.subr.mxu0 0.0
        %3239 = vmatpush1.msra.mxu0 0.0
        %3240 = vmatprep.subr.mxu0 0.0
        %3241 = vmatpush1.msra.mxu0 0.0
        %3242 = vmatprep.subr.mxu0 0.0
        %3243 = vmatpush1.msra.mxu0 0.0
        %3244 = vmatprep.subr.mxu0 0.0
        %3245 = vmatpush1.msra.mxu0 0.0
        %3246 = vmatprep.subr.mxu0 0.0
        %3247 = vmatpush1.msra.mxu0 0.0
        %3248 = vmatprep.subr.mxu0 0.0
        %3249 = vmatpush1.msra.mxu0 0.0
        %3250 = vmatprep.subr.mxu0 0.0
        %3251 = vmatpush1.msra.mxu0 0.0
        %3252 = vmatprep.subr.mxu0 0.0
        %3253 = vmatpush1.msra.mxu0 0.0
        %3254 = vmatprep.subr.mxu0 0.0
        %3255 = vmatpush1.msra.mxu0 0.0
        %3256 = vmatprep.subr.mxu0 0.0
        %3257 = vmatpush1.msra.mxu0 0.0
        %3258 = vmatprep.subr.mxu0 0.0
        %3259 = vmatpush1.msra.mxu0 0.0
        %3260 = vmatprep.subr.mxu0 0.0
        %3261 = vmatpush1.msra.mxu0 0.0
        %3262 = vmatprep.subr.mxu0 0.0
        %3263 = vmatpush1.msra.mxu0 0.0
        %3264 = vmatprep.subr.mxu0 0.0
        %3265 = vmatpush1.msra.mxu0 0.0
        %3266 = vmatprep.subr.mxu0 0.0
        %3267 = vmatpush1.msra.mxu0 0.0
        %3268 = vmatprep.subr.mxu0 0.0
        %3269 = vmatpush1.msra.mxu0 0.0
        %3270 = vmatprep.subr.mxu0 0.0
        %3271 = vmatpush1.msra.mxu0 0.0
        %3272 = vmatprep.subr.mxu0 0.0
        %3273 = vmatpush1.msra.mxu0 0.0
        %3274 = vmatprep.subr.mxu0 0.0
        %3275 = vmatpush1.msra.mxu0 0.0
        %3276 = vmatprep.mubr.f32.mxu0 0.0
        %3277 = vmatmul.mubr.f32.gmra.mrb[0].mxu0 %v3210
        %v3278 = vpop.f32.mrb[0].mxu0
        %v3279 = vadd.f32 0.0, %v3278
        %v3280 = vpop.f32.mrb[0].mxu0
        %3281 = vdwg.mxu0
        %v3282 = vadd.f32 %v3043, %v3279
        %v3284 = vlaneseq
        %v3285 = vshrl.u32 %v3284, 7
        %v3286 = vsub.s32 0, %v3285
        %v3287 = vrot.slane %v2115, %v3286
        %v3289 = vadd.f32 %v3282, %v3287
        %v3290 = vadd.f32 %v3289, %v2098
        %v3291 = vld [vmem:[%s16] sm:$0x1]
        %v3292 = vld [vmem:[%s17] sm:$0x1]
        %v3293 = vsel %vm891, %v3290, 0.0
        %3294 = vadd.xlane.f32.xlu0 %v3293
        %v3295 = vpop.xlane.xlu0 %3294
        %v3296 = vmul.f32 %v3295, %v2074
        %v3297 = vsub.f32 %v3290, %v3296
        %v3298 = vmul.f32 %v3297, %v3297
        %v3299 = vsel %vm891, %v3298, 0.0
        %3300 = vadd.xlane.f32.xlu0 %v3299
        %v3301 = vpop.xlane.xlu0 %3300
        %v3302 = vmul.f32 %v3301, %v2074
        %v3303 = vadd.f32 %v3302, 1e-05
        %v3304 = vrsqrt.pop %v3303
        %v3305 = vmul.f32 %v3297, %v3304
        %v3307 = vlaneseq
        %v3308 = vshrl.u32 %v3307, 7
        %v3309 = vsub.s32 0, %v3308
        %v3310 = vrot.slane %v3291, %v3309
        %v3312 = vmul.f32 %v3305, %v3310
        %v3314 = vlaneseq
        %v3315 = vshrl.u32 %v3314, 7
        %v3316 = vsub.s32 0, %v3315
        %v3317 = vrot.slane %v3292, %v3316
        %v3319 = vadd.f32 %v3312, %v3317
        %v3320 = vld [vmem:[%s20] sm:$0xff]
        %v3321 = vld [vmem:[%s20 + $0x8] sm:$0xff]
        %v3322 = vld [vmem:[%s20 + $0x10] sm:$0xff]
        %v3323 = vld [vmem:[%s20 + $0x18] sm:$0xff]
        %v3324 = vld [vmem:[%s21] sm:$0x1]
        %v3326 = vlaneseq
        %v3327 = vshrl.u32 %v3326, 7
        %v3328 = vsub.s32 0, %v3327
        %v3329 = vrot.slane %v3324, %v3328
        %v3332 = vsel %vm891, %v3319, 0
        %3334 = vmatprep.subr.mxu0 0.0
        %3335 = vmatpush1.msra.mxu0 %v3320
        %3336 = vmatprep.subr.mxu0 0.0
        %3337 = vmatpush1.msra.mxu0 %v3321
        %3338 = vmatprep.subr.mxu0 0.0
        %3339 = vmatpush1.msra.mxu0 %v3322
        %3340 = vmatprep.subr.mxu0 0.0
        %3341 = vmatpush1.msra.mxu0 %v3323
        %3342 = vmatprep.subr.mxu0 0.0
        %3343 = vmatpush1.msra.mxu0 0.0
        %3344 = vmatprep.subr.mxu0 0.0
        %3345 = vmatpush1.msra.mxu0 0.0
        %3346 = vmatprep.subr.mxu0 0.0
        %3347 = vmatpush1.msra.mxu0 0.0
        %3348 = vmatprep.subr.mxu0 0.0
        %3349 = vmatpush1.msra.mxu0 0.0
        %3350 = vmatprep.subr.mxu0 0.0
        %3351 = vmatpush1.msra.mxu0 0.0
        %3352 = vmatprep.subr.mxu0 0.0
        %3353 = vmatpush1.msra.mxu0 0.0
        %3354 = vmatprep.subr.mxu0 0.0
        %3355 = vmatpush1.msra.mxu0 0.0
        %3356 = vmatprep.subr.mxu0 0.0
        %3357 = vmatpush1.msra.mxu0 0.0
        %3358 = vmatprep.subr.mxu0 0.0
        %3359 = vmatpush1.msra.mxu0 0.0
        %3360 = vmatprep.subr.mxu0 0.0
        %3361 = vmatpush1.msra.mxu0 0.0
        %3362 = vmatprep.subr.mxu0 0.0
        %3363 = vmatpush1.msra.mxu0 0.0
        %3364 = vmatprep.subr.mxu0 0.0
        %3365 = vmatpush1.msra.mxu0 0.0
        %3366 = vmatprep.subr.mxu0 0.0
        %3367 = vmatpush1.msra.mxu0 0.0
        %3368 = vmatprep.subr.mxu0 0.0
        %3369 = vmatpush1.msra.mxu0 0.0
        %3370 = vmatprep.subr.mxu0 0.0
        %3371 = vmatpush1.msra.mxu0 0.0
        %3372 = vmatprep.subr.mxu0 0.0
        %3373 = vmatpush1.msra.mxu0 0.0
        %3374 = vmatprep.subr.mxu0 0.0
        %3375 = vmatpush1.msra.mxu0 0.0
        %3376 = vmatprep.subr.mxu0 0.0
        %3377 = vmatpush1.msra.mxu0 0.0
        %3378 = vmatprep.subr.mxu0 0.0
        %3379 = vmatpush1.msra.mxu0 0.0
        %3380 = vmatprep.subr.mxu0 0.0
        %3381 = vmatpush1.msra.mxu0 0.0
        %3382 = vmatprep.subr.mxu0 0.0
        %3383 = vmatpush1.msra.mxu0 0.0
        %3384 = vmatprep.subr.mxu0 0.0
        %3385 = vmatpush1.msra.mxu0 0.0
        %3386 = vmatprep.subr.mxu0 0.0
        %3387 = vmatpush1.msra.mxu0 0.0
        %3388 = vmatprep.subr.mxu0 0.0
        %3389 = vmatpush1.msra.mxu0 0.0
        %3390 = vmatprep.subr.mxu0 0.0
        %3391 = vmatpush1.msra.mxu0 0.0
        %3392 = vmatprep.subr.mxu0 0.0
        %3393 = vmatpush1.msra.mxu0 0.0
        %3394 = vmatprep.subr.mxu0 0.0
        %3395 = vmatpush1.msra.mxu0 0.0
        %3396 = vmatprep.subr.mxu0 0.0
        %3397 = vmatpush1.msra.mxu0 0.0
        %3398 = vmatprep.mubr.f32.mxu0 0.0
        %3399 = vmatmul.mubr.f32.gmra.mrb[0].mxu0 %v3332
        %v3400 = vpop.f32.mrb[0].mxu0
        %v3401 = vadd.f32 %v3329, %v3400
        %v3402 = vpop.f32.mrb[0].mxu0
        %3403 = vdwg.mxu0
        %v3404 = vmax.f32 %v3401, 0.0
        %v3405 = vld [vmem:[#allocation14] sm:$0xff]
        %v3406 = vld [vmem:[#allocation14 + $0x8] sm:$0xff]
        %v3407 = vld [vmem:[#allocation14 + $0x10] sm:$0xff]
        %v3408 = vld [vmem:[#allocation14 + $0x18] sm:$0xff]
        %v3409 = vld [vmem:[#allocation14 + $0x20] sm:$0xff]
        %v3410 = vld [vmem:[#allocation14 + $0x28] sm:$0xff]
        %v3411 = vld [vmem:[#allocation14 + $0x30] sm:$0xff]
        %v3412 = vld [vmem:[#allocation14 + $0x38] sm:$0xff]
        %v3413 = vld [vmem:[#allocation14 + $0x40] sm:$0xff]
        %v3414 = vld [vmem:[#allocation14 + $0x48] sm:$0xff]
        %v3415 = vld [vmem:[#allocation14 + $0x50] sm:$0xff]
        %v3416 = vld [vmem:[#allocation14 + $0x58] sm:$0xff]
        %v3417 = vld [vmem:[#allocation14 + $0x60] sm:$0xff]
        %v3418 = vld [vmem:[#allocation14 + $0x68] sm:$0xff]
        %v3419 = vld [vmem:[#allocation14 + $0x70] sm:$0xff]
        %v3420 = vld [vmem:[#allocation14 + $0x78] sm:$0xff]
        %v3421 = vld [vmem:[%s23] sm:$0x1]
        %v3423 = vlaneseq
        %v3424 = vshrl.u32 %v3423, 7
        %v3425 = vsub.s32 0, %v3424
        %v3426 = vrot.slane %v3421, %v3425
        %3428 = vmatprep.subr.mxu0 0.0
        %3429 = vmatpush1.msra.mxu0 %v3405
        %3430 = vmatprep.subr.mxu0 0.0
        %3431 = vmatpush1.msra.mxu0 %v3406
        %3432 = vmatprep.subr.mxu0 0.0
        %3433 = vmatpush1.msra.mxu0 %v3407
        %3434 = vmatprep.subr.mxu0 0.0
        %3435 = vmatpush1.msra.mxu0 %v3408
        %3436 = vmatprep.subr.mxu0 0.0
        %3437 = vmatpush1.msra.mxu0 %v3409
        %3438 = vmatprep.subr.mxu0 0.0
        %3439 = vmatpush1.msra.mxu0 %v3410
        %3440 = vmatprep.subr.mxu0 0.0
        %3441 = vmatpush1.msra.mxu0 %v3411
        %3442 = vmatprep.subr.mxu0 0.0
        %3443 = vmatpush1.msra.mxu0 %v3412
        %3444 = vmatprep.subr.mxu0 0.0
        %3445 = vmatpush1.msra.mxu0 %v3413
        %3446 = vmatprep.subr.mxu0 0.0
        %3447 = vmatpush1.msra.mxu0 %v3414
        %3448 = vmatprep.subr.mxu0 0.0
        %3449 = vmatpush1.msra.mxu0 %v3415
        %3450 = vmatprep.subr.mxu0 0.0
        %3451 = vmatpush1.msra.mxu0 %v3416
        %3452 = vmatprep.subr.mxu0 0.0
        %3453 = vmatpush1.msra.mxu0 %v3417
        %3454 = vmatprep.subr.mxu0 0.0
        %3455 = vmatpush1.msra.mxu0 %v3418
        %3456 = vmatprep.subr.mxu0 0.0
        %3457 = vmatpush1.msra.mxu0 %v3419
        %3458 = vmatprep.subr.mxu0 0.0
        %3459 = vmatpush1.msra.mxu0 %v3420
        %3460 = vmatprep.subr.mxu0 0.0
        %3461 = vmatpush1.msra.mxu0 0.0
        %3462 = vmatprep.subr.mxu0 0.0
        %3463 = vmatpush1.msra.mxu0 0.0
        %3464 = vmatprep.subr.mxu0 0.0
        %3465 = vmatpush1.msra.mxu0 0.0
        %3466 = vmatprep.subr.mxu0 0.0
        %3467 = vmatpush1.msra.mxu0 0.0
        %3468 = vmatprep.subr.mxu0 0.0
        %3469 = vmatpush1.msra.mxu0 0.0
        %3470 = vmatprep.subr.mxu0 0.0
        %3471 = vmatpush1.msra.mxu0 0.0
        %3472 = vmatprep.subr.mxu0 0.0
        %3473 = vmatpush1.msra.mxu0 0.0
        %3474 = vmatprep.subr.mxu0 0.0
        %3475 = vmatpush1.msra.mxu0 0.0
        %3476 = vmatprep.subr.mxu0 0.0
        %3477 = vmatpush1.msra.mxu0 0.0
        %3478 = vmatprep.subr.mxu0 0.0
        %3479 = vmatpush1.msra.mxu0 0.0
        %3480 = vmatprep.subr.mxu0 0.0
        %3481 = vmatpush1.msra.mxu0 0.0
        %3482 = vmatprep.subr.mxu0 0.0
        %3483 = vmatpush1.msra.mxu0 0.0
        %3484 = vmatprep.subr.mxu0 0.0
        %3485 = vmatpush1.msra.mxu0 0.0
        %3486 = vmatprep.subr.mxu0 0.0
        %3487 = vmatpush1.msra.mxu0 0.0
        %3488 = vmatprep.subr.mxu0 0.0
        %3489 = vmatpush1.msra.mxu0 0.0
        %3490 = vmatprep.subr.mxu0 0.0
        %3491 = vmatpush1.msra.mxu0 0.0
        %3492 = vmatprep.mubr.f32.mxu0 0.0
        %3493 = vmatmul.mubr.f32.gmra.mrb[0].mxu0 %v3404
        %v3494 = vpop.f32.mrb[0].mxu0
        %v3495 = vadd.f32 %v3426, %v3494
        %v3496 = vpop.f32.mrb[0].mxu0
        %3497 = vdwg.mxu0
        %v3498 = vadd.f32 %v3495, %v3319
        %v3499 = vld [vmem:[%s18] sm:$0x1]
        %v3500 = vld [vmem:[%s19] sm:$0x1]
        %v3501 = vsel %vm891, %v3498, 0.0
        %3502 = vadd.xlane.f32.xlu0 %v3501
        %v3503 = vpop.xlane.xlu0 %3502
        %v3504 = vmul.f32 %v3503, %v2074
        %v3505 = vsub.f32 %v3498, %v3504
        %v3506 = vmul.f32 %v3505, %v3505
        %v3507 = vsel %vm891, %v3506, 0.0
        %3508 = vadd.xlane.f32.xlu0 %v3507
        %v3509 = vpop.xlane.xlu0 %3508
        %v3510 = vmul.f32 %v3509, %v2074
        %v3511 = vadd.f32 %v3510, 1e-05
        %v3512 = vrsqrt.pop %v3511
        %v3513 = vmul.f32 %v3505, %v3512
        %v3515 = vlaneseq
        %v3516 = vshrl.u32 %v3515, 7
        %v3517 = vsub.s32 0, %v3516
        %v3518 = vrot.slane %v3499, %v3517
        %v3520 = vmul.f32 %v3513, %v3518
        %v3522 = vlaneseq
        %v3523 = vshrl.u32 %v3522, 7
        %v3524 = vsub.s32 0, %v3523
        %v3525 = vrot.slane %v3500, %v3524
        %v3527 = vadd.f32 %v3520, %v3525
        %s3528 = scalar_lea.vmem [#allocation2], 32
        %v3529 = vld [vmem:[%s3528] sm:$0xff]
        %v3530 = vld [vmem:[%s3528 + $0x8] sm:$0xff]
        %v3531 = vld [vmem:[%s3528 + $0x10] sm:$0xff]
        %v3532 = vld [vmem:[%s3528 + $0x18] sm:$0xff]
        %s3533 = scalar_lea.vmem [#allocation5], 32
        %v3534 = vld [vmem:[%s3533] sm:$0xff]
        %v3535 = vld [vmem:[%s3533 + $0x8] sm:$0xff]
        %v3536 = vld [vmem:[%s3533 + $0x10] sm:$0xff]
        %v3537 = vld [vmem:[%s3533 + $0x18] sm:$0xff]
        %s3538 = scalar_lea.vmem [#allocation7], 32
        %v3539 = vld [vmem:[%s3538] sm:$0xff]
        %v3540 = vld [vmem:[%s3538 + $0x8] sm:$0xff]
        %v3541 = vld [vmem:[%s3538 + $0x10] sm:$0xff]
        %v3542 = vld [vmem:[%s3538 + $0x18] sm:$0xff]
        %s3543 = scalar_lea.vmem [#allocation8], 32
        %v3544 = vld [vmem:[%s3543] sm:$0xff]
        %v3545 = vld [vmem:[%s3543 + $0x8] sm:$0xff]
        %v3546 = vld [vmem:[%s3543 + $0x10] sm:$0xff]
        %v3547 = vld [vmem:[%s3543 + $0x18] sm:$0xff]
        %s3548 = scalar_lea.vmem %s8, 1
        %v3549 = vld [vmem:[%s3548] sm:$0x1]
        %3550 = vmatprep.subr.mxu0 0.0
        %3551 = vmatpush1.msra.mxu0 %v3529
        %3552 = vmatprep.subr.mxu0 0.0
        %3553 = vmatpush1.msra.mxu0 %v3530
        %3554 = vmatprep.subr.mxu0 0.0
        %3555 = vmatpush1.msra.mxu0 %v3531
        %3556 = vmatprep.subr.mxu0 0.0
        %3557 = vmatpush1.msra.mxu0 %v3532
        %3558 = vmatprep.subr.mxu0 0.0
        %3559 = vmatpush1.msra.mxu0 0.0
        %3560 = vmatprep.subr.mxu0 0.0
        %3561 = vmatpush1.msra.mxu0 0.0
        %3562 = vmatprep.subr.mxu0 0.0
        %3563 = vmatpush1.msra.mxu0 0.0
        %3564 = vmatprep.subr.mxu0 0.0
        %3565 = vmatpush1.msra.mxu0 0.0
        %3566 = vmatprep.subr.mxu0 0.0
        %3567 = vmatpush1.msra.mxu0 0.0
        %3568 = vmatprep.subr.mxu0 0.0
        %3569 = vmatpush1.msra.mxu0 0.0
        %3570 = vmatprep.subr.mxu0 0.0
        %3571 = vmatpush1.msra.mxu0 0.0
        %3572 = vmatprep.subr.mxu0 0.0
        %3573 = vmatpush1.msra.mxu0 0.0
        %3574 = vmatprep.subr.mxu0 0.0
        %3575 = vmatpush1.msra.mxu0 0.0
        %3576 = vmatprep.subr.mxu0 0.0
        %3577 = vmatpush1.msra.mxu0 0.0
        %3578 = vmatprep.subr.mxu0 0.0
        %3579 = vmatpush1.msra.mxu0 0.0
        %3580 = vmatprep.subr.mxu0 0.0
        %3581 = vmatpush1.msra.mxu0 0.0
        %3582 = vmatprep.subr.mxu0 0.0
        %3583 = vmatpush1.msra.mxu0 0.0
        %3584 = vmatprep.subr.mxu0 0.0
        %3585 = vmatpush1.msra.mxu0 0.0
        %3586 = vmatprep.subr.mxu0 0.0
        %3587 = vmatpush1.msra.mxu0 0.0
        %3588 = vmatprep.subr.mxu0 0.0
        %3589 = vmatpush1.msra.mxu0 0.0
        %3590 = vmatprep.subr.mxu0 0.0
        %3591 = vmatpush1.msra.mxu0 0.0
        %3592 = vmatprep.subr.mxu0 0.0
        %3593 = vmatpush1.msra.mxu0 0.0
        %3594 = vmatprep.subr.mxu0 0.0
        %3595 = vmatpush1.msra.mxu0 0.0
        %3596 = vmatprep.subr.mxu0 0.0
        %3597 = vmatpush1.msra.mxu0 0.0
        %3598 = vmatprep.subr.mxu0 0.0
        %3599 = vmatpush1.msra.mxu0 0.0
        %3600 = vmatprep.subr.mxu0 0.0
        %3601 = vmatpush1.msra.mxu0 0.0
        %3602 = vmatprep.subr.mxu0 0.0
        %3603 = vmatpush1.msra.mxu0 0.0
        %3604 = vmatprep.subr.mxu0 0.0
        %3605 = vmatpush1.msra.mxu0 0.0
        %3606 = vmatprep.subr.mxu0 0.0
        %3607 = vmatpush1.msra.mxu0 0.0
        %3608 = vmatprep.subr.mxu0 0.0
        %3609 = vmatpush1.msra.mxu0 0.0
        %3610 = vmatprep.subr.mxu0 0.0
        %3611 = vmatpush1.msra.mxu0 0.0
        %3612 = vmatprep.subr.mxu0 0.0
        %3613 = vmatpush1.msra.mxu0 0.0
        %3614 = vmatprep.mubr.f32.mxu0 0.0
        %3615 = vmatmul.mubr.f32.gmra.mrb[0].mxu0 %v893
        %v3616 = vpop.f32.mrb[0].mxu0
        %v3617 = vadd.f32 0.0, %v3616
        %v3618 = vpop.f32.mrb[0].mxu0
        %3619 = vdwg.mxu0
        %v3620 = vmul.f32 %v3617, 0.35355338
        %3621 = vmatprep.subr.mxu0 0.0
        %3622 = vmatpush1.msra.mxu0 %v3534
        %3623 = vmatprep.subr.mxu0 0.0
        %3624 = vmatpush1.msra.mxu0 %v3535
        %3625 = vmatprep.subr.mxu0 0.0
        %3626 = vmatpush1.msra.mxu0 %v3536
        %3627 = vmatprep.subr.mxu0 0.0
        %3628 = vmatpush1.msra.mxu0 %v3537
        %3629 = vmatprep.subr.mxu0 0.0
        %3630 = vmatpush1.msra.mxu0 0.0
        %3631 = vmatprep.subr.mxu0 0.0
        %3632 = vmatpush1.msra.mxu0 0.0
        %3633 = vmatprep.subr.mxu0 0.0
        %3634 = vmatpush1.msra.mxu0 0.0
        %3635 = vmatprep.subr.mxu0 0.0
        %3636 = vmatpush1.msra.mxu0 0.0
        %3637 = vmatprep.subr.mxu0 0.0
        %3638 = vmatpush1.msra.mxu0 0.0
        %3639 = vmatprep.subr.mxu0 0.0
        %3640 = vmatpush1.msra.mxu0 0.0
        %3641 = vmatprep.subr.mxu0 0.0
        %3642 = vmatpush1.msra.mxu0 0.0
        %3643 = vmatprep.subr.mxu0 0.0
        %3644 = vmatpush1.msra.mxu0 0.0
        %3645 = vmatprep.subr.mxu0 0.0
        %3646 = vmatpush1.msra.mxu0 0.0
        %3647 = vmatprep.subr.mxu0 0.0
        %3648 = vmatpush1.msra.mxu0 0.0
        %3649 = vmatprep.subr.mxu0 0.0
        %3650 = vmatpush1.msra.mxu0 0.0
        %3651 = vmatprep.subr.mxu0 0.0
        %3652 = vmatpush1.msra.mxu0 0.0
        %3653 = vmatprep.subr.mxu0 0.0
        %3654 = vmatpush1.msra.mxu0 0.0
        %3655 = vmatprep.subr.mxu0 0.0
        %3656 = vmatpush1.msra.mxu0 0.0
        %3657 = vmatprep.subr.mxu0 0.0
        %3658 = vmatpush1.msra.mxu0 0.0
        %3659 = vmatprep.subr.mxu0 0.0
        %3660 = vmatpush1.msra.mxu0 0.0
        %3661 = vmatprep.subr.mxu0 0.0
        %3662 = vmatpush1.msra.mxu0 0.0
        %3663 = vmatprep.subr.mxu0 0.0
        %3664 = vmatpush1.msra.mxu0 0.0
        %3665 = vmatprep.subr.mxu0 0.0
        %3666 = vmatpush1.msra.mxu0 0.0
        %3667 = vmatprep.subr.mxu0 0.0
        %3668 = vmatpush1.msra.mxu0 0.0
        %3669 = vmatprep.subr.mxu0 0.0
        %3670 = vmatpush1.msra.mxu0 0.0
        %3671 = vmatprep.subr.mxu0 0.0
        %3672 = vmatpush1.msra.mxu0 0.0
        %3673 = vmatprep.subr.mxu0 0.0
        %3674 = vmatpush1.msra.mxu0 0.0
        %3675 = vmatprep.subr.mxu0 0.0
        %3676 = vmatpush1.msra.mxu0 0.0
        %3677 = vmatprep.subr.mxu0 0.0
        %3678 = vmatpush1.msra.mxu0 0.0
        %3679 = vmatprep.subr.mxu0 0.0
        %3680 = vmatpush1.msra.mxu0 0.0
        %3681 = vmatprep.subr.mxu0 0.0
        %3682 = vmatpush1.msra.mxu0 0.0
        %3683 = vmatprep.subr.mxu0 0.0
        %3684 = vmatpush1.msra.mxu0 0.0
        %3685 = vmatprep.mubr.f32.mxu0 0.0
        %3686 = vmatmul.mubr.f32.gmra.mrb[0].mxu0 %v893
        %v3687 = vpop.f32.mrb[0].mxu0
        %v3688 = vadd.f32 0.0, %v3687
        %v3689 = vpop.f32.mrb[0].mxu0
        %3690 = vdwg.mxu0
        %3691 = vmatprep.subr.mxu0 0.0
        %3692 = vmatpush1.msra.mxu0 %v3539
        %3693 = vmatprep.subr.mxu0 0.0
        %3694 = vmatpush1.msra.mxu0 %v3540
        %3695 = vmatprep.subr.mxu0 0.0
        %3696 = vmatpush1.msra.mxu0 %v3541
        %3697 = vmatprep.subr.mxu0 0.0
        %3698 = vmatpush1.msra.mxu0 %v3542
        %3699 = vmatprep.subr.mxu0 0.0
        %3700 = vmatpush1.msra.mxu0 0.0
        %3701 = vmatprep.subr.mxu0 0.0
        %3702 = vmatpush1.msra.mxu0 0.0
        %3703 = vmatprep.subr.mxu0 0.0
        %3704 = vmatpush1.msra.mxu0 0.0
        %3705 = vmatprep.subr.mxu0 0.0
        %3706 = vmatpush1.msra.mxu0 0.0
        %3707 = vmatprep.subr.mxu0 0.0
        %3708 = vmatpush1.msra.mxu0 0.0
        %3709 = vmatprep.subr.mxu0 0.0
        %3710 = vmatpush1.msra.mxu0 0.0
        %3711 = vmatprep.subr.mxu0 0.0
        %3712 = vmatpush1.msra.mxu0 0.0
        %3713 = vmatprep.subr.mxu0 0.0
        %3714 = vmatpush1.msra.mxu0 0.0
        %3715 = vmatprep.subr.mxu0 0.0
        %3716 = vmatpush1.msra.mxu0 0.0
        %3717 = vmatprep.subr.mxu0 0.0
        %3718 = vmatpush1.msra.mxu0 0.0
        %3719 = vmatprep.subr.mxu0 0.0
        %3720 = vmatpush1.msra.mxu0 0.0
        %3721 = vmatprep.subr.mxu0 0.0
        %3722 = vmatpush1.msra.mxu0 0.0
        %3723 = vmatprep.subr.mxu0 0.0
        %3724 = vmatpush1.msra.mxu0 0.0
        %3725 = vmatprep.subr.mxu0 0.0
        %3726 = vmatpush1.msra.mxu0 0.0
        %3727 = vmatprep.subr.mxu0 0.0
        %3728 = vmatpush1.msra.mxu0 0.0
        %3729 = vmatprep.subr.mxu0 0.0
        %3730 = vmatpush1.msra.mxu0 0.0
        %3731 = vmatprep.subr.mxu0 0.0
        %3732 = vmatpush1.msra.mxu0 0.0
        %3733 = vmatprep.subr.mxu0 0.0
        %3734 = vmatpush1.msra.mxu0 0.0
        %3735 = vmatprep.subr.mxu0 0.0
        %3736 = vmatpush1.msra.mxu0 0.0
        %3737 = vmatprep.subr.mxu0 0.0
        %3738 = vmatpush1.msra.mxu0 0.0
        %3739 = vmatprep.subr.mxu0 0.0
        %3740 = vmatpush1.msra.mxu0 0.0
        %3741 = vmatprep.subr.mxu0 0.0
        %3742 = vmatpush1.msra.mxu0 0.0
        %3743 = vmatprep.subr.mxu0 0.0
        %3744 = vmatpush1.msra.mxu0 0.0
        %3745 = vmatprep.subr.mxu0 0.0
        %3746 = vmatpush1.msra.mxu0 0.0
        %3747 = vmatprep.subr.mxu0 0.0
        %3748 = vmatpush1.msra.mxu0 0.0
        %3749 = vmatprep.subr.mxu0 0.0
        %3750 = vmatpush1.msra.mxu0 0.0
        %3751 = vmatprep.subr.mxu0 0.0
        %3752 = vmatpush1.msra.mxu0 0.0
        %3753 = vmatprep.subr.mxu0 0.0
        %3754 = vmatpush1.msra.mxu0 0.0
        %3755 = vmatprep.mubr.f32.mxu0 0.0
        %3756 = vmatmul.mubr.f32.gmra.mrb[0].mxu0 %v893
        %v3757 = vpop.f32.mrb[0].mxu0
        %v3758 = vadd.f32 0.0, %v3757
        %v3759 = vpop.f32.mrb[0].mxu0
        %3760 = vdwg.mxu0
        %v3762 = vsel %vm1106, %v3620, 0
        %v3765 = vsel %vm1106, %v3688, 0
        %3767 = vmatprep.subr.mxu0 0.0
        %3768 = vmatpush1.xpose.msra.mxu0 %v3765
        %3769 = vmatprep.subr.mxu0 0.0
        %3770 = vmatpush1.xpose.msra.mxu0 0.0
        %3771 = vmatprep.subr.mxu0 0.0
        %3772 = vmatpush1.xpose.msra.mxu0 0.0
        %3773 = vmatprep.subr.mxu0 0.0
        %3774 = vmatpush1.xpose.msra.mxu0 0.0
        %3775 = vmatprep.subr.mxu0 0.0
        %3776 = vmatpush1.xpose.msra.mxu0 0.0
        %3777 = vmatprep.subr.mxu0 0.0
        %3778 = vmatpush1.xpose.msra.mxu0 0.0
        %3779 = vmatprep.subr.mxu0 0.0
        %3780 = vmatpush1.xpose.msra.mxu0 0.0
        %3781 = vmatprep.subr.mxu0 0.0
        %3782 = vmatpush1.xpose.msra.mxu0 0.0
        %3783 = vmatprep.subr.mxu0 0.0
        %3784 = vmatpush1.xpose.msra.mxu0 0.0
        %3785 = vmatprep.subr.mxu0 0.0
        %3786 = vmatpush1.xpose.msra.mxu0 0.0
        %3787 = vmatprep.subr.mxu0 0.0
        %3788 = vmatpush1.xpose.msra.mxu0 0.0
        %3789 = vmatprep.subr.mxu0 0.0
        %3790 = vmatpush1.xpose.msra.mxu0 0.0
        %3791 = vmatprep.subr.mxu0 0.0
        %3792 = vmatpush1.xpose.msra.mxu0 0.0
        %3793 = vmatprep.subr.mxu0 0.0
        %3794 = vmatpush1.xpose.msra.mxu0 0.0
        %3795 = vmatprep.subr.mxu0 0.0
        %3796 = vmatpush1.xpose.msra.mxu0 0.0
        %3797 = vmatprep.subr.mxu0 0.0
        %3798 = vmatpush1.xpose.msra.mxu0 0.0
        %3799 = vmatprep.subr.mxu0 0.0
        %3800 = vmatpush1.xpose.msra.mxu0 0.0
        %3801 = vmatprep.subr.mxu0 0.0
        %3802 = vmatpush1.xpose.msra.mxu0 0.0
        %3803 = vmatprep.subr.mxu0 0.0
        %3804 = vmatpush1.xpose.msra.mxu0 0.0
        %3805 = vmatprep.subr.mxu0 0.0
        %3806 = vmatpush1.xpose.msra.mxu0 0.0
        %3807 = vmatprep.subr.mxu0 0.0
        %3808 = vmatpush1.xpose.msra.mxu0 0.0
        %3809 = vmatprep.subr.mxu0 0.0
        %3810 = vmatpush1.xpose.msra.mxu0 0.0
        %3811 = vmatprep.subr.mxu0 0.0
        %3812 = vmatpush1.xpose.msra.mxu0 0.0
        %3813 = vmatprep.subr.mxu0 0.0
        %3814 = vmatpush1.xpose.msra.mxu0 0.0
        %3815 = vmatprep.subr.mxu0 0.0
        %3816 = vmatpush1.xpose.msra.mxu0 0.0
        %3817 = vmatprep.subr.mxu0 0.0
        %3818 = vmatpush1.xpose.msra.mxu0 0.0
        %3819 = vmatprep.subr.mxu0 0.0
        %3820 = vmatpush1.xpose.msra.mxu0 0.0
        %3821 = vmatprep.subr.mxu0 0.0
        %3822 = vmatpush1.xpose.msra.mxu0 0.0
        %3823 = vmatprep.subr.mxu0 0.0
        %3824 = vmatpush1.xpose.msra.mxu0 0.0
        %3825 = vmatprep.subr.mxu0 0.0
        %3826 = vmatpush1.xpose.msra.mxu0 0.0
        %3827 = vmatprep.subr.mxu0 0.0
        %3828 = vmatpush1.xpose.msra.mxu0 0.0
        %3829 = vmatprep.subr.mxu0 0.0
        %3830 = vmatpush1.xpose.msra.mxu0 0.0
        %3831 = vmatprep.mubr.f32.mxu0 0.0
        %3832 = vmatmul.mubr.f32.gmra.mrb[0].mxu0 %v3762
        %v3833 = vpop.f32.mrb[0].mxu0
        %v3834 = vadd.f32 0.0, %v3833
        %v3835 = vpop.f32.mrb[0].mxu0
        %3836 = vdwg.mxu0
        %v3837 = vsel %vm873, -1e+20, %v3834
        %v3838 = vsel %vm1106, %v3837, -inf
        %3839 = vmax.xlane.f32.xlu0 %v3838
        %v3840 = vpop.xlane.xlu0 %3839
        %v3841 = vsub.f32 %v3837, %v3840
        %v3842 = vmul.f32 %v3841, 1.442695
        %v3843 = vpow.pop %v3842
        %v3844 = vsel %vm1106, %v3843, 0.0
        %3845 = vadd.xlane.f32.xlu0 %v3844
        %v3846 = vpop.xlane.xlu0 %3845
        %v3847 = vrcp.pop %v3846
        %v3848 = vmul.f32 %v3843, %v3847
        %v3850 = vsel %vm1106, %v3848, 0
        %3852 = vmatprep.subr.mxu0 0.0
        %3853 = vmatpush1.msra.mxu0 %v3758
        %3854 = vmatprep.subr.mxu0 0.0
        %3855 = vmatpush1.msra.mxu0 0.0
        %3856 = vmatprep.subr.mxu0 0.0
        %3857 = vmatpush1.msra.mxu0 0.0
        %3858 = vmatprep.subr.mxu0 0.0
        %3859 = vmatpush1.msra.mxu0 0.0
        %3860 = vmatprep.subr.mxu0 0.0
        %3861 = vmatpush1.msra.mxu0 0.0
        %3862 = vmatprep.subr.mxu0 0.0
        %3863 = vmatpush1.msra.mxu0 0.0
        %3864 = vmatprep.subr.mxu0 0.0
        %3865 = vmatpush1.msra.mxu0 0.0
        %3866 = vmatprep.subr.mxu0 0.0
        %3867 = vmatpush1.msra.mxu0 0.0
        %3868 = vmatprep.subr.mxu0 0.0
        %3869 = vmatpush1.msra.mxu0 0.0
        %3870 = vmatprep.subr.mxu0 0.0
        %3871 = vmatpush1.msra.mxu0 0.0
        %3872 = vmatprep.subr.mxu0 0.0
        %3873 = vmatpush1.msra.mxu0 0.0
        %3874 = vmatprep.subr.mxu0 0.0
        %3875 = vmatpush1.msra.mxu0 0.0
        %3876 = vmatprep.subr.mxu0 0.0
        %3877 = vmatpush1.msra.mxu0 0.0
        %3878 = vmatprep.subr.mxu0 0.0
        %3879 = vmatpush1.msra.mxu0 0.0
        %3880 = vmatprep.subr.mxu0 0.0
        %3881 = vmatpush1.msra.mxu0 0.0
        %3882 = vmatprep.subr.mxu0 0.0
        %3883 = vmatpush1.msra.mxu0 0.0
        %3884 = vmatprep.subr.mxu0 0.0
        %3885 = vmatpush1.msra.mxu0 0.0
        %3886 = vmatprep.subr.mxu0 0.0
        %3887 = vmatpush1.msra.mxu0 0.0
        %3888 = vmatprep.subr.mxu0 0.0
        %3889 = vmatpush1.msra.mxu0 0.0
        %3890 = vmatprep.subr.mxu0 0.0
        %3891 = vmatpush1.msra.mxu0 0.0
        %3892 = vmatprep.subr.mxu0 0.0
        %3893 = vmatpush1.msra.mxu0 0.0
        %3894 = vmatprep.subr.mxu0 0.0
        %3895 = vmatpush1.msra.mxu0 0.0
        %3896 = vmatprep.subr.mxu0 0.0
        %3897 = vmatpush1.msra.mxu0 0.0
        %3898 = vmatprep.subr.mxu0 0.0
        %3899 = vmatpush1.msra.mxu0 0.0
        %3900 = vmatprep.subr.mxu0 0.0
        %3901 = vmatpush1.msra.mxu0 0.0
        %3902 = vmatprep.subr.mxu0 0.0
        %3903 = vmatpush1.msra.mxu0 0.0
        %3904 = vmatprep.subr.mxu0 0.0
        %3905 = vmatpush1.msra.mxu0 0.0
        %3906 = vmatprep.subr.mxu0 0.0
        %3907 = vmatpush1.msra.mxu0 0.0
        %3908 = vmatprep.subr.mxu0 0.0
        %3909 = vmatpush1.msra.mxu0 0.0
        %3910 = vmatprep.subr.mxu0 0.0
        %3911 = vmatpush1.msra.mxu0 0.0
        %3912 = vmatprep.subr.mxu0 0.0
        %3913 = vmatpush1.msra.mxu0 0.0
        %3914 = vmatprep.subr.mxu0 0.0
        %3915 = vmatpush1.msra.mxu0 0.0
        %3916 = vmatprep.mubr.f32.mxu0 0.0
        %3917 = vmatmul.mubr.f32.gmra.mrb[0].mxu0 %v3850
        %v3918 = vpop.f32.mrb[0].mxu0
        %v3919 = vadd.f32 0.0, %v3918
        %v3920 = vpop.f32.mrb[0].mxu0
        %3921 = vdwg.mxu0
        %3922 = vrot.lane.b32.xlu0 %v3620, 120
        %v3923 = vpop.permute.xlu0 %3922
        %3924 = vrot.lane.b32.xlu0 %v3688, 120
        %v3925 = vpop.permute.xlu0 %3924
        %v3926 = vsel %vm1106, %v3923, 0
        %v3928 = vsel %vm1106, %v3925, 0
        %3930 = vmatprep.subr.mxu0 0.0
        %3931 = vmatpush1.xpose.msra.mxu0 %v3928
        %3932 = vmatprep.subr.mxu0 0.0
        %3933 = vmatpush1.xpose.msra.mxu0 0.0
        %3934 = vmatprep.subr.mxu0 0.0
        %3935 = vmatpush1.xpose.msra.mxu0 0.0
        %3936 = vmatprep.subr.mxu0 0.0
        %3937 = vmatpush1.xpose.msra.mxu0 0.0
        %3938 = vmatprep.subr.mxu0 0.0
        %3939 = vmatpush1.xpose.msra.mxu0 0.0
        %3940 = vmatprep.subr.mxu0 0.0
        %3941 = vmatpush1.xpose.msra.mxu0 0.0
        %3942 = vmatprep.subr.mxu0 0.0
        %3943 = vmatpush1.xpose.msra.mxu0 0.0
        %3944 = vmatprep.subr.mxu0 0.0
        %3945 = vmatpush1.xpose.msra.mxu0 0.0
        %3946 = vmatprep.subr.mxu0 0.0
        %3947 = vmatpush1.xpose.msra.mxu0 0.0
        %3948 = vmatprep.subr.mxu0 0.0
        %3949 = vmatpush1.xpose.msra.mxu0 0.0
        %3950 = vmatprep.subr.mxu0 0.0
        %3951 = vmatpush1.xpose.msra.mxu0 0.0
        %3952 = vmatprep.subr.mxu0 0.0
        %3953 = vmatpush1.xpose.msra.mxu0 0.0
        %3954 = vmatprep.subr.mxu0 0.0
        %3955 = vmatpush1.xpose.msra.mxu0 0.0
        %3956 = vmatprep.subr.mxu0 0.0
        %3957 = vmatpush1.xpose.msra.mxu0 0.0
        %3958 = vmatprep.subr.mxu0 0.0
        %3959 = vmatpush1.xpose.msra.mxu0 0.0
        %3960 = vmatprep.subr.mxu0 0.0
        %3961 = vmatpush1.xpose.msra.mxu0 0.0
        %3962 = vmatprep.subr.mxu0 0.0
        %3963 = vmatpush1.xpose.msra.mxu0 0.0
        %3964 = vmatprep.subr.mxu0 0.0
        %3965 = vmatpush1.xpose.msra.mxu0 0.0
        %3966 = vmatprep.subr.mxu0 0.0
        %3967 = vmatpush1.xpose.msra.mxu0 0.0
        %3968 = vmatprep.subr.mxu0 0.0
        %3969 = vmatpush1.xpose.msra.mxu0 0.0
        %3970 = vmatprep.subr.mxu0 0.0
        %3971 = vmatpush1.xpose.msra.mxu0 0.0
        %3972 = vmatprep.subr.mxu0 0.0
        %3973 = vmatpush1.xpose.msra.mxu0 0.0
        %3974 = vmatprep.subr.mxu0 0.0
        %3975 = vmatpush1.xpose.msra.mxu0 0.0
        %3976 = vmatprep.subr.mxu0 0.0
        %3977 = vmatpush1.xpose.msra.mxu0 0.0
        %3978 = vmatprep.subr.mxu0 0.0
        %3979 = vmatpush1.xpose.msra.mxu0 0.0
        %3980 = vmatprep.subr.mxu0 0.0
        %3981 = vmatpush1.xpose.msra.mxu0 0.0
        %3982 = vmatprep.subr.mxu0 0.0
        %3983 = vmatpush1.xpose.msra.mxu0 0.0
        %3984 = vmatprep.subr.mxu0 0.0
        %3985 = vmatpush1.xpose.msra.mxu0 0.0
        %3986 = vmatprep.subr.mxu0 0.0
        %3987 = vmatpush1.xpose.msra.mxu0 0.0
        %3988 = vmatprep.subr.mxu0 0.0
        %3989 = vmatpush1.xpose.msra.mxu0 0.0
        %3990 = vmatprep.subr.mxu0 0.0
        %3991 = vmatpush1.xpose.msra.mxu0 0.0
        %3992 = vmatprep.subr.mxu0 0.0
        %3993 = vmatpush1.xpose.msra.mxu0 0.0
        %3994 = vmatprep.mubr.f32.mxu0 0.0
        %3995 = vmatmul.mubr.f32.gmra.mrb[0].mxu0 %v3926
        %v3996 = vpop.f32.mrb[0].mxu0
        %v3997 = vadd.f32 0.0, %v3996
        %v3998 = vpop.f32.mrb[0].mxu0
        %3999 = vdwg.mxu0
        %v4000 = vsel %vm873, -1e+20, %v3997
        %v4001 = vsel %vm1106, %v4000, -inf
        %4002 = vmax.xlane.f32.xlu0 %v4001
        %v4003 = vpop.xlane.xlu0 %4002
        %v4004 = vsub.f32 %v4000, %v4003
        %v4005 = vmul.f32 %v4004, 1.442695
        %v4006 = vpow.pop %v4005
        %v4007 = vsel %vm1106, %v4006, 0.0
        %4008 = vadd.xlane.f32.xlu0 %v4007
        %v4009 = vpop.xlane.xlu0 %4008
        %v4010 = vrcp.pop %v4009
        %v4011 = vmul.f32 %v4006, %v4010
        %4013 = vrot.lane.b32.xlu0 %v3758, 120
        %v4014 = vpop.permute.xlu0 %4013
        %v4017 = vsel %vm1106, %v4011, 0
        %4019 = vmatprep.subr.mxu0 0.0
        %4020 = vmatpush1.msra.mxu0 %v4014
        %4021 = vmatprep.subr.mxu0 0.0
        %4022 = vmatpush1.msra.mxu0 0.0
        %4023 = vmatprep.subr.mxu0 0.0
        %4024 = vmatpush1.msra.mxu0 0.0
        %4025 = vmatprep.subr.mxu0 0.0
        %4026 = vmatpush1.msra.mxu0 0.0
        %4027 = vmatprep.subr.mxu0 0.0
        %4028 = vmatpush1.msra.mxu0 0.0
        %4029 = vmatprep.subr.mxu0 0.0
        %4030 = vmatpush1.msra.mxu0 0.0
        %4031 = vmatprep.subr.mxu0 0.0
        %4032 = vmatpush1.msra.mxu0 0.0
        %4033 = vmatprep.subr.mxu0 0.0
        %4034 = vmatpush1.msra.mxu0 0.0
        %4035 = vmatprep.subr.mxu0 0.0
        %4036 = vmatpush1.msra.mxu0 0.0
        %4037 = vmatprep.subr.mxu0 0.0
        %4038 = vmatpush1.msra.mxu0 0.0
        %4039 = vmatprep.subr.mxu0 0.0
        %4040 = vmatpush1.msra.mxu0 0.0
        %4041 = vmatprep.subr.mxu0 0.0
        %4042 = vmatpush1.msra.mxu0 0.0
        %4043 = vmatprep.subr.mxu0 0.0
        %4044 = vmatpush1.msra.mxu0 0.0
        %4045 = vmatprep.subr.mxu0 0.0
        %4046 = vmatpush1.msra.mxu0 0.0
        %4047 = vmatprep.subr.mxu0 0.0
        %4048 = vmatpush1.msra.mxu0 0.0
        %4049 = vmatprep.subr.mxu0 0.0
        %4050 = vmatpush1.msra.mxu0 0.0
        %4051 = vmatprep.subr.mxu0 0.0
        %4052 = vmatpush1.msra.mxu0 0.0
        %4053 = vmatprep.subr.mxu0 0.0
        %4054 = vmatpush1.msra.mxu0 0.0
        %4055 = vmatprep.subr.mxu0 0.0
        %4056 = vmatpush1.msra.mxu0 0.0
        %4057 = vmatprep.subr.mxu0 0.0
        %4058 = vmatpush1.msra.mxu0 0.0
        %4059 = vmatprep.subr.mxu0 0.0
        %4060 = vmatpush1.msra.mxu0 0.0
        %4061 = vmatprep.subr.mxu0 0.0
        %4062 = vmatpush1.msra.mxu0 0.0
        %4063 = vmatprep.subr.mxu0 0.0
        %4064 = vmatpush1.msra.mxu0 0.0
        %4065 = vmatprep.subr.mxu0 0.0
        %4066 = vmatpush1.msra.mxu0 0.0
        %4067 = vmatprep.subr.mxu0 0.0
        %4068 = vmatpush1.msra.mxu0 0.0
        %4069 = vmatprep.subr.mxu0 0.0
        %4070 = vmatpush1.msra.mxu0 0.0
        %4071 = vmatprep.subr.mxu0 0.0
        %4072 = vmatpush1.msra.mxu0 0.0
        %4073 = vmatprep.subr.mxu0 0.0
        %4074 = vmatpush1.msra.mxu0 0.0
        %4075 = vmatprep.subr.mxu0 0.0
        %4076 = vmatpush1.msra.mxu0 0.0
        %4077 = vmatprep.subr.mxu0 0.0
        %4078 = vmatpush1.msra.mxu0 0.0
        %4079 = vmatprep.subr.mxu0 0.0
        %4080 = vmatpush1.msra.mxu0 0.0
        %4081 = vmatprep.subr.mxu0 0.0
        %4082 = vmatpush1.msra.mxu0 0.0
        %4083 = vmatprep.mubr.f32.mxu0 0.0
        %4084 = vmatmul.mubr.f32.gmra.mrb[0].mxu0 %v4017
        %v4085 = vpop.f32.mrb[0].mxu0
        %v4086 = vadd.f32 0.0, %v4085
        %v4087 = vpop.f32.mrb[0].mxu0
        %4088 = vdwg.mxu0
        %v4090 = vsel %vm1106, %v4086, 0
        %4092 = vmatprep.subr.mxu0 0.0
        %4093 = vmatpush1.msra.mxu0 %v3545
        %4094 = vmatprep.subr.mxu0 0.0
        %4095 = vmatpush1.msra.mxu0 0.0
        %4096 = vmatprep.subr.mxu0 0.0
        %4097 = vmatpush1.msra.mxu0 0.0
        %4098 = vmatprep.subr.mxu0 0.0
        %4099 = vmatpush1.msra.mxu0 0.0
        %4100 = vmatprep.subr.mxu0 0.0
        %4101 = vmatpush1.msra.mxu0 0.0
        %4102 = vmatprep.subr.mxu0 0.0
        %4103 = vmatpush1.msra.mxu0 0.0
        %4104 = vmatprep.subr.mxu0 0.0
        %4105 = vmatpush1.msra.mxu0 0.0
        %4106 = vmatprep.subr.mxu0 0.0
        %4107 = vmatpush1.msra.mxu0 0.0
        %4108 = vmatprep.subr.mxu0 0.0
        %4109 = vmatpush1.msra.mxu0 0.0
        %4110 = vmatprep.subr.mxu0 0.0
        %4111 = vmatpush1.msra.mxu0 0.0
        %4112 = vmatprep.subr.mxu0 0.0
        %4113 = vmatpush1.msra.mxu0 0.0
        %4114 = vmatprep.subr.mxu0 0.0
        %4115 = vmatpush1.msra.mxu0 0.0
        %4116 = vmatprep.subr.mxu0 0.0
        %4117 = vmatpush1.msra.mxu0 0.0
        %4118 = vmatprep.subr.mxu0 0.0
        %4119 = vmatpush1.msra.mxu0 0.0
        %4120 = vmatprep.subr.mxu0 0.0
        %4121 = vmatpush1.msra.mxu0 0.0
        %4122 = vmatprep.subr.mxu0 0.0
        %4123 = vmatpush1.msra.mxu0 0.0
        %4124 = vmatprep.subr.mxu0 0.0
        %4125 = vmatpush1.msra.mxu0 0.0
        %4126 = vmatprep.subr.mxu0 0.0
        %4127 = vmatpush1.msra.mxu0 0.0
        %4128 = vmatprep.subr.mxu0 0.0
        %4129 = vmatpush1.msra.mxu0 0.0
        %4130 = vmatprep.subr.mxu0 0.0
        %4131 = vmatpush1.msra.mxu0 0.0
        %4132 = vmatprep.subr.mxu0 0.0
        %4133 = vmatpush1.msra.mxu0 0.0
        %4134 = vmatprep.subr.mxu0 0.0
        %4135 = vmatpush1.msra.mxu0 0.0
        %4136 = vmatprep.subr.mxu0 0.0
        %4137 = vmatpush1.msra.mxu0 0.0
        %4138 = vmatprep.subr.mxu0 0.0
        %4139 = vmatpush1.msra.mxu0 0.0
        %4140 = vmatprep.subr.mxu0 0.0
        %4141 = vmatpush1.msra.mxu0 0.0
        %4142 = vmatprep.subr.mxu0 0.0
        %4143 = vmatpush1.msra.mxu0 0.0
        %4144 = vmatprep.subr.mxu0 0.0
        %4145 = vmatpush1.msra.mxu0 0.0
        %4146 = vmatprep.subr.mxu0 0.0
        %4147 = vmatpush1.msra.mxu0 0.0
        %4148 = vmatprep.subr.mxu0 0.0
        %4149 = vmatpush1.msra.mxu0 0.0
        %4150 = vmatprep.subr.mxu0 0.0
        %4151 = vmatpush1.msra.mxu0 0.0
        %4152 = vmatprep.subr.mxu0 0.0
        %4153 = vmatpush1.msra.mxu0 0.0
        %4154 = vmatprep.subr.mxu0 0.0
        %4155 = vmatpush1.msra.mxu0 0.0
        %4156 = vmatprep.mubr.f32.mxu0 0.0
        %4157 = vmatmul.mubr.f32.gmra.mrb[0].mxu0 %v4090
        %v4158 = vpop.f32.mrb[0].mxu0
        %v4159 = vadd.f32 0.0, %v4158
        %v4160 = vpop.f32.mrb[0].mxu0
        %4161 = vdwg.mxu0
        %v4163 = vsel %vm1106, %v3919, 0
        %4165 = vmatprep.subr.mxu0 0.0
        %4166 = vmatpush1.msra.mxu0 %v3544
        %4167 = vmatprep.subr.mxu0 0.0
        %4168 = vmatpush1.msra.mxu0 0.0
        %4169 = vmatprep.subr.mxu0 0.0
        %4170 = vmatpush1.msra.mxu0 0.0
        %4171 = vmatprep.subr.mxu0 0.0
        %4172 = vmatpush1.msra.mxu0 0.0
        %4173 = vmatprep.subr.mxu0 0.0
        %4174 = vmatpush1.msra.mxu0 0.0
        %4175 = vmatprep.subr.mxu0 0.0
        %4176 = vmatpush1.msra.mxu0 0.0
        %4177 = vmatprep.subr.mxu0 0.0
        %4178 = vmatpush1.msra.mxu0 0.0
        %4179 = vmatprep.subr.mxu0 0.0
        %4180 = vmatpush1.msra.mxu0 0.0
        %4181 = vmatprep.subr.mxu0 0.0
        %4182 = vmatpush1.msra.mxu0 0.0
        %4183 = vmatprep.subr.mxu0 0.0
        %4184 = vmatpush1.msra.mxu0 0.0
        %4185 = vmatprep.subr.mxu0 0.0
        %4186 = vmatpush1.msra.mxu0 0.0
        %4187 = vmatprep.subr.mxu0 0.0
        %4188 = vmatpush1.msra.mxu0 0.0
        %4189 = vmatprep.subr.mxu0 0.0
        %4190 = vmatpush1.msra.mxu0 0.0
        %4191 = vmatprep.subr.mxu0 0.0
        %4192 = vmatpush1.msra.mxu0 0.0
        %4193 = vmatprep.subr.mxu0 0.0
        %4194 = vmatpush1.msra.mxu0 0.0
        %4195 = vmatprep.subr.mxu0 0.0
        %4196 = vmatpush1.msra.mxu0 0.0
        %4197 = vmatprep.subr.mxu0 0.0
        %4198 = vmatpush1.msra.mxu0 0.0
        %4199 = vmatprep.subr.mxu0 0.0
        %4200 = vmatpush1.msra.mxu0 0.0
        %4201 = vmatprep.subr.mxu0 0.0
        %4202 = vmatpush1.msra.mxu0 0.0
        %4203 = vmatprep.subr.mxu0 0.0
        %4204 = vmatpush1.msra.mxu0 0.0
        %4205 = vmatprep.subr.mxu0 0.0
        %4206 = vmatpush1.msra.mxu0 0.0
        %4207 = vmatprep.subr.mxu0 0.0
        %4208 = vmatpush1.msra.mxu0 0.0
        %4209 = vmatprep.subr.mxu0 0.0
        %4210 = vmatpush1.msra.mxu0 0.0
        %4211 = vmatprep.subr.mxu0 0.0
        %4212 = vmatpush1.msra.mxu0 0.0
        %4213 = vmatprep.subr.mxu0 0.0
        %4214 = vmatpush1.msra.mxu0 0.0
        %4215 = vmatprep.subr.mxu0 0.0
        %4216 = vmatpush1.msra.mxu0 0.0
        %4217 = vmatprep.subr.mxu0 0.0
        %4218 = vmatpush1.msra.mxu0 0.0
        %4219 = vmatprep.subr.mxu0 0.0
        %4220 = vmatpush1.msra.mxu0 0.0
        %4221 = vmatprep.subr.mxu0 0.0
        %4222 = vmatpush1.msra.mxu0 0.0
        %4223 = vmatprep.subr.mxu0 0.0
        %4224 = vmatpush1.msra.mxu0 0.0
        %4225 = vmatprep.subr.mxu0 0.0
        %4226 = vmatpush1.msra.mxu0 0.0
        %4227 = vmatprep.subr.mxu0 0.0
        %4228 = vmatpush1.msra.mxu0 0.0
        %4229 = vmatprep.mubr.f32.mxu0 0.0
        %4230 = vmatmul.mubr.f32.gmra.mrb[0].mxu0 %v4163
        %v4231 = vpop.f32.mrb[0].mxu0
        %v4232 = vadd.f32 %v4159, %v4231
        %v4233 = vpop.f32.mrb[0].mxu0
        %4234 = vdwg.mxu0
        %4235 = vrot.lane.b32.xlu0 %v3620, 112
        %v4236 = vpop.permute.xlu0 %4235
        %4237 = vrot.lane.b32.xlu0 %v3688, 112
        %v4238 = vpop.permute.xlu0 %4237
        %v4239 = vsel %vm1106, %v4236, 0
        %v4241 = vsel %vm1106, %v4238, 0
        %4243 = vmatprep.subr.mxu0 0.0
        %4244 = vmatpush1.xpose.msra.mxu0 %v4241
        %4245 = vmatprep.subr.mxu0 0.0
        %4246 = vmatpush1.xpose.msra.mxu0 0.0
        %4247 = vmatprep.subr.mxu0 0.0
        %4248 = vmatpush1.xpose.msra.mxu0 0.0
        %4249 = vmatprep.subr.mxu0 0.0
        %4250 = vmatpush1.xpose.msra.mxu0 0.0
        %4251 = vmatprep.subr.mxu0 0.0
        %4252 = vmatpush1.xpose.msra.mxu0 0.0
        %4253 = vmatprep.subr.mxu0 0.0
        %4254 = vmatpush1.xpose.msra.mxu0 0.0
        %4255 = vmatprep.subr.mxu0 0.0
        %4256 = vmatpush1.xpose.msra.mxu0 0.0
        %4257 = vmatprep.subr.mxu0 0.0
        %4258 = vmatpush1.xpose.msra.mxu0 0.0
        %4259 = vmatprep.subr.mxu0 0.0
        %4260 = vmatpush1.xpose.msra.mxu0 0.0
        %4261 = vmatprep.subr.mxu0 0.0
        %4262 = vmatpush1.xpose.msra.mxu0 0.0
        %4263 = vmatprep.subr.mxu0 0.0
        %4264 = vmatpush1.xpose.msra.mxu0 0.0
        %4265 = vmatprep.subr.mxu0 0.0
        %4266 = vmatpush1.xpose.msra.mxu0 0.0
        %4267 = vmatprep.subr.mxu0 0.0
        %4268 = vmatpush1.xpose.msra.mxu0 0.0
        %4269 = vmatprep.subr.mxu0 0.0
        %4270 = vmatpush1.xpose.msra.mxu0 0.0
        %4271 = vmatprep.subr.mxu0 0.0
        %4272 = vmatpush1.xpose.msra.mxu0 0.0
        %4273 = vmatprep.subr.mxu0 0.0
        %4274 = vmatpush1.xpose.msra.mxu0 0.0
        %4275 = vmatprep.subr.mxu0 0.0
        %4276 = vmatpush1.xpose.msra.mxu0 0.0
        %4277 = vmatprep.subr.mxu0 0.0
        %4278 = vmatpush1.xpose.msra.mxu0 0.0
        %4279 = vmatprep.subr.mxu0 0.0
        %4280 = vmatpush1.xpose.msra.mxu0 0.0
        %4281 = vmatprep.subr.mxu0 0.0
        %4282 = vmatpush1.xpose.msra.mxu0 0.0
        %4283 = vmatprep.subr.mxu0 0.0
        %4284 = vmatpush1.xpose.msra.mxu0 0.0
        %4285 = vmatprep.subr.mxu0 0.0
        %4286 = vmatpush1.xpose.msra.mxu0 0.0
        %4287 = vmatprep.subr.mxu0 0.0
        %4288 = vmatpush1.xpose.msra.mxu0 0.0
        %4289 = vmatprep.subr.mxu0 0.0
        %4290 = vmatpush1.xpose.msra.mxu0 0.0
        %4291 = vmatprep.subr.mxu0 0.0
        %4292 = vmatpush1.xpose.msra.mxu0 0.0
        %4293 = vmatprep.subr.mxu0 0.0
        %4294 = vmatpush1.xpose.msra.mxu0 0.0
        %4295 = vmatprep.subr.mxu0 0.0
        %4296 = vmatpush1.xpose.msra.mxu0 0.0
        %4297 = vmatprep.subr.mxu0 0.0
        %4298 = vmatpush1.xpose.msra.mxu0 0.0
        %4299 = vmatprep.subr.mxu0 0.0
        %4300 = vmatpush1.xpose.msra.mxu0 0.0
        %4301 = vmatprep.subr.mxu0 0.0
        %4302 = vmatpush1.xpose.msra.mxu0 0.0
        %4303 = vmatprep.subr.mxu0 0.0
        %4304 = vmatpush1.xpose.msra.mxu0 0.0
        %4305 = vmatprep.subr.mxu0 0.0
        %4306 = vmatpush1.xpose.msra.mxu0 0.0
        %4307 = vmatprep.mubr.f32.mxu0 0.0
        %4308 = vmatmul.mubr.f32.gmra.mrb[0].mxu0 %v4239
        %v4309 = vpop.f32.mrb[0].mxu0
        %v4310 = vadd.f32 0.0, %v4309
        %v4311 = vpop.f32.mrb[0].mxu0
        %4312 = vdwg.mxu0
        %v4313 = vsel %vm873, -1e+20, %v4310
        %v4314 = vsel %vm1106, %v4313, -inf
        %4315 = vmax.xlane.f32.xlu0 %v4314
        %v4316 = vpop.xlane.xlu0 %4315
        %v4317 = vsub.f32 %v4313, %v4316
        %v4318 = vmul.f32 %v4317, 1.442695
        %v4319 = vpow.pop %v4318
        %v4320 = vsel %vm1106, %v4319, 0.0
        %4321 = vadd.xlane.f32.xlu0 %v4320
        %v4322 = vpop.xlane.xlu0 %4321
        %v4323 = vrcp.pop %v4322
        %v4324 = vmul.f32 %v4319, %v4323
        %4325 = vrot.lane.b32.xlu0 %v3758, 112
        %v4326 = vpop.permute.xlu0 %4325
        %v4329 = vsel %vm1106, %v4324, 0
        %4331 = vmatprep.subr.mxu0 0.0
        %4332 = vmatpush1.msra.mxu0 %v4326
        %4333 = vmatprep.subr.mxu0 0.0
        %4334 = vmatpush1.msra.mxu0 0.0
        %4335 = vmatprep.subr.mxu0 0.0
        %4336 = vmatpush1.msra.mxu0 0.0
        %4337 = vmatprep.subr.mxu0 0.0
        %4338 = vmatpush1.msra.mxu0 0.0
        %4339 = vmatprep.subr.mxu0 0.0
        %4340 = vmatpush1.msra.mxu0 0.0
        %4341 = vmatprep.subr.mxu0 0.0
        %4342 = vmatpush1.msra.mxu0 0.0
        %4343 = vmatprep.subr.mxu0 0.0
        %4344 = vmatpush1.msra.mxu0 0.0
        %4345 = vmatprep.subr.mxu0 0.0
        %4346 = vmatpush1.msra.mxu0 0.0
        %4347 = vmatprep.subr.mxu0 0.0
        %4348 = vmatpush1.msra.mxu0 0.0
        %4349 = vmatprep.subr.mxu0 0.0
        %4350 = vmatpush1.msra.mxu0 0.0
        %4351 = vmatprep.subr.mxu0 0.0
        %4352 = vmatpush1.msra.mxu0 0.0
        %4353 = vmatprep.subr.mxu0 0.0
        %4354 = vmatpush1.msra.mxu0 0.0
        %4355 = vmatprep.subr.mxu0 0.0
        %4356 = vmatpush1.msra.mxu0 0.0
        %4357 = vmatprep.subr.mxu0 0.0
        %4358 = vmatpush1.msra.mxu0 0.0
        %4359 = vmatprep.subr.mxu0 0.0
        %4360 = vmatpush1.msra.mxu0 0.0
        %4361 = vmatprep.subr.mxu0 0.0
        %4362 = vmatpush1.msra.mxu0 0.0
        %4363 = vmatprep.subr.mxu0 0.0
        %4364 = vmatpush1.msra.mxu0 0.0
        %4365 = vmatprep.subr.mxu0 0.0
        %4366 = vmatpush1.msra.mxu0 0.0
        %4367 = vmatprep.subr.mxu0 0.0
        %4368 = vmatpush1.msra.mxu0 0.0
        %4369 = vmatprep.subr.mxu0 0.0
        %4370 = vmatpush1.msra.mxu0 0.0
        %4371 = vmatprep.subr.mxu0 0.0
        %4372 = vmatpush1.msra.mxu0 0.0
        %4373 = vmatprep.subr.mxu0 0.0
        %4374 = vmatpush1.msra.mxu0 0.0
        %4375 = vmatprep.subr.mxu0 0.0
        %4376 = vmatpush1.msra.mxu0 0.0
        %4377 = vmatprep.subr.mxu0 0.0
        %4378 = vmatpush1.msra.mxu0 0.0
        %4379 = vmatprep.subr.mxu0 0.0
        %4380 = vmatpush1.msra.mxu0 0.0
        %4381 = vmatprep.subr.mxu0 0.0
        %4382 = vmatpush1.msra.mxu0 0.0
        %4383 = vmatprep.subr.mxu0 0.0
        %4384 = vmatpush1.msra.mxu0 0.0
        %4385 = vmatprep.subr.mxu0 0.0
        %4386 = vmatpush1.msra.mxu0 0.0
        %4387 = vmatprep.subr.mxu0 0.0
        %4388 = vmatpush1.msra.mxu0 0.0
        %4389 = vmatprep.subr.mxu0 0.0
        %4390 = vmatpush1.msra.mxu0 0.0
        %4391 = vmatprep.subr.mxu0 0.0
        %4392 = vmatpush1.msra.mxu0 0.0
        %4393 = vmatprep.subr.mxu0 0.0
        %4394 = vmatpush1.msra.mxu0 0.0
        %4395 = vmatprep.mubr.f32.mxu0 0.0
        %4396 = vmatmul.mubr.f32.gmra.mrb[0].mxu0 %v4329
        %v4397 = vpop.f32.mrb[0].mxu0
        %v4398 = vadd.f32 0.0, %v4397
        %v4399 = vpop.f32.mrb[0].mxu0
        %4400 = vdwg.mxu0
        %v4402 = vsel %vm1106, %v4398, 0
        %4404 = vmatprep.subr.mxu0 0.0
        %4405 = vmatpush1.msra.mxu0 %v3546
        %4406 = vmatprep.subr.mxu0 0.0
        %4407 = vmatpush1.msra.mxu0 0.0
        %4408 = vmatprep.subr.mxu0 0.0
        %4409 = vmatpush1.msra.mxu0 0.0
        %4410 = vmatprep.subr.mxu0 0.0
        %4411 = vmatpush1.msra.mxu0 0.0
        %4412 = vmatprep.subr.mxu0 0.0
        %4413 = vmatpush1.msra.mxu0 0.0
        %4414 = vmatprep.subr.mxu0 0.0
        %4415 = vmatpush1.msra.mxu0 0.0
        %4416 = vmatprep.subr.mxu0 0.0
        %4417 = vmatpush1.msra.mxu0 0.0
        %4418 = vmatprep.subr.mxu0 0.0
        %4419 = vmatpush1.msra.mxu0 0.0
        %4420 = vmatprep.subr.mxu0 0.0
        %4421 = vmatpush1.msra.mxu0 0.0
        %4422 = vmatprep.subr.mxu0 0.0
        %4423 = vmatpush1.msra.mxu0 0.0
        %4424 = vmatprep.subr.mxu0 0.0
        %4425 = vmatpush1.msra.mxu0 0.0
        %4426 = vmatprep.subr.mxu0 0.0
        %4427 = vmatpush1.msra.mxu0 0.0
        %4428 = vmatprep.subr.mxu0 0.0
        %4429 = vmatpush1.msra.mxu0 0.0
        %4430 = vmatprep.subr.mxu0 0.0
        %4431 = vmatpush1.msra.mxu0 0.0
        %4432 = vmatprep.subr.mxu0 0.0
        %4433 = vmatpush1.msra.mxu0 0.0
        %4434 = vmatprep.subr.mxu0 0.0
        %4435 = vmatpush1.msra.mxu0 0.0
        %4436 = vmatprep.subr.mxu0 0.0
        %4437 = vmatpush1.msra.mxu0 0.0
        %4438 = vmatprep.subr.mxu0 0.0
        %4439 = vmatpush1.msra.mxu0 0.0
        %4440 = vmatprep.subr.mxu0 0.0
        %4441 = vmatpush1.msra.mxu0 0.0
        %4442 = vmatprep.subr.mxu0 0.0
        %4443 = vmatpush1.msra.mxu0 0.0
        %4444 = vmatprep.subr.mxu0 0.0
        %4445 = vmatpush1.msra.mxu0 0.0
        %4446 = vmatprep.subr.mxu0 0.0
        %4447 = vmatpush1.msra.mxu0 0.0
        %4448 = vmatprep.subr.mxu0 0.0
        %4449 = vmatpush1.msra.mxu0 0.0
        %4450 = vmatprep.subr.mxu0 0.0
        %4451 = vmatpush1.msra.mxu0 0.0
        %4452 = vmatprep.subr.mxu0 0.0
        %4453 = vmatpush1.msra.mxu0 0.0
        %4454 = vmatprep.subr.mxu0 0.0
        %4455 = vmatpush1.msra.mxu0 0.0
        %4456 = vmatprep.subr.mxu0 0.0
        %4457 = vmatpush1.msra.mxu0 0.0
        %4458 = vmatprep.subr.mxu0 0.0
        %4459 = vmatpush1.msra.mxu0 0.0
        %4460 = vmatprep.subr.mxu0 0.0
        %4461 = vmatpush1.msra.mxu0 0.0
        %4462 = vmatprep.subr.mxu0 0.0
        %4463 = vmatpush1.msra.mxu0 0.0
        %4464 = vmatprep.subr.mxu0 0.0
        %4465 = vmatpush1.msra.mxu0 0.0
        %4466 = vmatprep.subr.mxu0 0.0
        %4467 = vmatpush1.msra.mxu0 0.0
        %4468 = vmatprep.mubr.f32.mxu0 0.0
        %4469 = vmatmul.mubr.f32.gmra.mrb[0].mxu0 %v4402
        %v4470 = vpop.f32.mrb[0].mxu0
        %v4471 = vadd.f32 0.0, %v4470
        %v4472 = vpop.f32.mrb[0].mxu0
        %4473 = vdwg.mxu0
        %v4474 = vadd.f32 %v4232, %v4471
        %4475 = vrot.lane.b32.xlu0 %v3620, 104
        %v4476 = vpop.permute.xlu0 %4475
        %4477 = vrot.lane.b32.xlu0 %v3688, 104
        %v4478 = vpop.permute.xlu0 %4477
        %v4479 = vsel %vm1106, %v4476, 0
        %v4481 = vsel %vm1106, %v4478, 0
        %4483 = vmatprep.subr.mxu0 0.0
        %4484 = vmatpush1.xpose.msra.mxu0 %v4481
        %4485 = vmatprep.subr.mxu0 0.0
        %4486 = vmatpush1.xpose.msra.mxu0 0.0
        %4487 = vmatprep.subr.mxu0 0.0
        %4488 = vmatpush1.xpose.msra.mxu0 0.0
        %4489 = vmatprep.subr.mxu0 0.0
        %4490 = vmatpush1.xpose.msra.mxu0 0.0
        %4491 = vmatprep.subr.mxu0 0.0
        %4492 = vmatpush1.xpose.msra.mxu0 0.0
        %4493 = vmatprep.subr.mxu0 0.0
        %4494 = vmatpush1.xpose.msra.mxu0 0.0
        %4495 = vmatprep.subr.mxu0 0.0
        %4496 = vmatpush1.xpose.msra.mxu0 0.0
        %4497 = vmatprep.subr.mxu0 0.0
        %4498 = vmatpush1.xpose.msra.mxu0 0.0
        %4499 = vmatprep.subr.mxu0 0.0
        %4500 = vmatpush1.xpose.msra.mxu0 0.0
        %4501 = vmatprep.subr.mxu0 0.0
        %4502 = vmatpush1.xpose.msra.mxu0 0.0
        %4503 = vmatprep.subr.mxu0 0.0
        %4504 = vmatpush1.xpose.msra.mxu0 0.0
        %4505 = vmatprep.subr.mxu0 0.0
        %4506 = vmatpush1.xpose.msra.mxu0 0.0
        %4507 = vmatprep.subr.mxu0 0.0
        %4508 = vmatpush1.xpose.msra.mxu0 0.0
        %4509 = vmatprep.subr.mxu0 0.0
        %4510 = vmatpush1.xpose.msra.mxu0 0.0
        %4511 = vmatprep.subr.mxu0 0.0
        %4512 = vmatpush1.xpose.msra.mxu0 0.0
        %4513 = vmatprep.subr.mxu0 0.0
        %4514 = vmatpush1.xpose.msra.mxu0 0.0
        %4515 = vmatprep.subr.mxu0 0.0
        %4516 = vmatpush1.xpose.msra.mxu0 0.0
        %4517 = vmatprep.subr.mxu0 0.0
        %4518 = vmatpush1.xpose.msra.mxu0 0.0
        %4519 = vmatprep.subr.mxu0 0.0
        %4520 = vmatpush1.xpose.msra.mxu0 0.0
        %4521 = vmatprep.subr.mxu0 0.0
        %4522 = vmatpush1.xpose.msra.mxu0 0.0
        %4523 = vmatprep.subr.mxu0 0.0
        %4524 = vmatpush1.xpose.msra.mxu0 0.0
        %4525 = vmatprep.subr.mxu0 0.0
        %4526 = vmatpush1.xpose.msra.mxu0 0.0
        %4527 = vmatprep.subr.mxu0 0.0
        %4528 = vmatpush1.xpose.msra.mxu0 0.0
        %4529 = vmatprep.subr.mxu0 0.0
        %4530 = vmatpush1.xpose.msra.mxu0 0.0
        %4531 = vmatprep.subr.mxu0 0.0
        %4532 = vmatpush1.xpose.msra.mxu0 0.0
        %4533 = vmatprep.subr.mxu0 0.0
        %4534 = vmatpush1.xpose.msra.mxu0 0.0
        %4535 = vmatprep.subr.mxu0 0.0
        %4536 = vmatpush1.xpose.msra.mxu0 0.0
        %4537 = vmatprep.subr.mxu0 0.0
        %4538 = vmatpush1.xpose.msra.mxu0 0.0
        %4539 = vmatprep.subr.mxu0 0.0
        %4540 = vmatpush1.xpose.msra.mxu0 0.0
        %4541 = vmatprep.subr.mxu0 0.0
        %4542 = vmatpush1.xpose.msra.mxu0 0.0
        %4543 = vmatprep.subr.mxu0 0.0
        %4544 = vmatpush1.xpose.msra.mxu0 0.0
        %4545 = vmatprep.subr.mxu0 0.0
        %4546 = vmatpush1.xpose.msra.mxu0 0.0
        %4547 = vmatprep.mubr.f32.mxu0 0.0
        %4548 = vmatmul.mubr.f32.gmra.mrb[0].mxu0 %v4479
        %v4549 = vpop.f32.mrb[0].mxu0
        %v4550 = vadd.f32 0.0, %v4549
        %v4551 = vpop.f32.mrb[0].mxu0
        %4552 = vdwg.mxu0
        %v4553 = vsel %vm873, -1e+20, %v4550
        %v4554 = vsel %vm1106, %v4553, -inf
        %4555 = vmax.xlane.f32.xlu0 %v4554
        %v4556 = vpop.xlane.xlu0 %4555
        %v4557 = vsub.f32 %v4553, %v4556
        %v4558 = vmul.f32 %v4557, 1.442695
        %v4559 = vpow.pop %v4558
        %v4560 = vsel %vm1106, %v4559, 0.0
        %4561 = vadd.xlane.f32.xlu0 %v4560
        %v4562 = vpop.xlane.xlu0 %4561
        %v4563 = vrcp.pop %v4562
        %v4564 = vmul.f32 %v4559, %v4563
        %4565 = vrot.lane.b32.xlu0 %v3758, 104
        %v4566 = vpop.permute.xlu0 %4565
        %v4569 = vsel %vm1106, %v4564, 0
        %4571 = vmatprep.subr.mxu0 0.0
        %4572 = vmatpush1.msra.mxu0 %v4566
        %4573 = vmatprep.subr.mxu0 0.0
        %4574 = vmatpush1.msra.mxu0 0.0
        %4575 = vmatprep.subr.mxu0 0.0
        %4576 = vmatpush1.msra.mxu0 0.0
        %4577 = vmatprep.subr.mxu0 0.0
        %4578 = vmatpush1.msra.mxu0 0.0
        %4579 = vmatprep.subr.mxu0 0.0
        %4580 = vmatpush1.msra.mxu0 0.0
        %4581 = vmatprep.subr.mxu0 0.0
        %4582 = vmatpush1.msra.mxu0 0.0
        %4583 = vmatprep.subr.mxu0 0.0
        %4584 = vmatpush1.msra.mxu0 0.0
        %4585 = vmatprep.subr.mxu0 0.0
        %4586 = vmatpush1.msra.mxu0 0.0
        %4587 = vmatprep.subr.mxu0 0.0
        %4588 = vmatpush1.msra.mxu0 0.0
        %4589 = vmatprep.subr.mxu0 0.0
        %4590 = vmatpush1.msra.mxu0 0.0
        %4591 = vmatprep.subr.mxu0 0.0
        %4592 = vmatpush1.msra.mxu0 0.0
        %4593 = vmatprep.subr.mxu0 0.0
        %4594 = vmatpush1.msra.mxu0 0.0
        %4595 = vmatprep.subr.mxu0 0.0
        %4596 = vmatpush1.msra.mxu0 0.0
        %4597 = vmatprep.subr.mxu0 0.0
        %4598 = vmatpush1.msra.mxu0 0.0
        %4599 = vmatprep.subr.mxu0 0.0
        %4600 = vmatpush1.msra.mxu0 0.0
        %4601 = vmatprep.subr.mxu0 0.0
        %4602 = vmatpush1.msra.mxu0 0.0
        %4603 = vmatprep.subr.mxu0 0.0
        %4604 = vmatpush1.msra.mxu0 0.0
        %4605 = vmatprep.subr.mxu0 0.0
        %4606 = vmatpush1.msra.mxu0 0.0
        %4607 = vmatprep.subr.mxu0 0.0
        %4608 = vmatpush1.msra.mxu0 0.0
        %4609 = vmatprep.subr.mxu0 0.0
        %4610 = vmatpush1.msra.mxu0 0.0
        %4611 = vmatprep.subr.mxu0 0.0
        %4612 = vmatpush1.msra.mxu0 0.0
        %4613 = vmatprep.subr.mxu0 0.0
        %4614 = vmatpush1.msra.mxu0 0.0
        %4615 = vmatprep.subr.mxu0 0.0
        %4616 = vmatpush1.msra.mxu0 0.0
        %4617 = vmatprep.subr.mxu0 0.0
        %4618 = vmatpush1.msra.mxu0 0.0
        %4619 = vmatprep.subr.mxu0 0.0
        %4620 = vmatpush1.msra.mxu0 0.0
        %4621 = vmatprep.subr.mxu0 0.0
        %4622 = vmatpush1.msra.mxu0 0.0
        %4623 = vmatprep.subr.mxu0 0.0
        %4624 = vmatpush1.msra.mxu0 0.0
        %4625 = vmatprep.subr.mxu0 0.0
        %4626 = vmatpush1.msra.mxu0 0.0
        %4627 = vmatprep.subr.mxu0 0.0
        %4628 = vmatpush1.msra.mxu0 0.0
        %4629 = vmatprep.subr.mxu0 0.0
        %4630 = vmatpush1.msra.mxu0 0.0
        %4631 = vmatprep.subr.mxu0 0.0
        %4632 = vmatpush1.msra.mxu0 0.0
        %4633 = vmatprep.subr.mxu0 0.0
        %4634 = vmatpush1.msra.mxu0 0.0
        %4635 = vmatprep.mubr.f32.mxu0 0.0
        %4636 = vmatmul.mubr.f32.gmra.mrb[0].mxu0 %v4569
        %v4637 = vpop.f32.mrb[0].mxu0
        %v4638 = vadd.f32 0.0, %v4637
        %v4639 = vpop.f32.mrb[0].mxu0
        %4640 = vdwg.mxu0
        %v4642 = vsel %vm1106, %v4638, 0
        %4644 = vmatprep.subr.mxu0 0.0
        %4645 = vmatpush1.msra.mxu0 %v3547
        %4646 = vmatprep.subr.mxu0 0.0
        %4647 = vmatpush1.msra.mxu0 0.0
        %4648 = vmatprep.subr.mxu0 0.0
        %4649 = vmatpush1.msra.mxu0 0.0
        %4650 = vmatprep.subr.mxu0 0.0
        %4651 = vmatpush1.msra.mxu0 0.0
        %4652 = vmatprep.subr.mxu0 0.0
        %4653 = vmatpush1.msra.mxu0 0.0
        %4654 = vmatprep.subr.mxu0 0.0
        %4655 = vmatpush1.msra.mxu0 0.0
        %4656 = vmatprep.subr.mxu0 0.0
        %4657 = vmatpush1.msra.mxu0 0.0
        %4658 = vmatprep.subr.mxu0 0.0
        %4659 = vmatpush1.msra.mxu0 0.0
        %4660 = vmatprep.subr.mxu0 0.0
        %4661 = vmatpush1.msra.mxu0 0.0
        %4662 = vmatprep.subr.mxu0 0.0
        %4663 = vmatpush1.msra.mxu0 0.0
        %4664 = vmatprep.subr.mxu0 0.0
        %4665 = vmatpush1.msra.mxu0 0.0
        %4666 = vmatprep.subr.mxu0 0.0
        %4667 = vmatpush1.msra.mxu0 0.0
        %4668 = vmatprep.subr.mxu0 0.0
        %4669 = vmatpush1.msra.mxu0 0.0
        %4670 = vmatprep.subr.mxu0 0.0
        %4671 = vmatpush1.msra.mxu0 0.0
        %4672 = vmatprep.subr.mxu0 0.0
        %4673 = vmatpush1.msra.mxu0 0.0
        %4674 = vmatprep.subr.mxu0 0.0
        %4675 = vmatpush1.msra.mxu0 0.0
        %4676 = vmatprep.subr.mxu0 0.0
        %4677 = vmatpush1.msra.mxu0 0.0
        %4678 = vmatprep.subr.mxu0 0.0
        %4679 = vmatpush1.msra.mxu0 0.0
        %4680 = vmatprep.subr.mxu0 0.0
        %4681 = vmatpush1.msra.mxu0 0.0
        %4682 = vmatprep.subr.mxu0 0.0
        %4683 = vmatpush1.msra.mxu0 0.0
        %4684 = vmatprep.subr.mxu0 0.0
        %4685 = vmatpush1.msra.mxu0 0.0
        %4686 = vmatprep.subr.mxu0 0.0
        %4687 = vmatpush1.msra.mxu0 0.0
        %4688 = vmatprep.subr.mxu0 0.0
        %4689 = vmatpush1.msra.mxu0 0.0
        %4690 = vmatprep.subr.mxu0 0.0
        %4691 = vmatpush1.msra.mxu0 0.0
        %4692 = vmatprep.subr.mxu0 0.0
        %4693 = vmatpush1.msra.mxu0 0.0
        %4694 = vmatprep.subr.mxu0 0.0
        %4695 = vmatpush1.msra.mxu0 0.0
        %4696 = vmatprep.subr.mxu0 0.0
        %4697 = vmatpush1.msra.mxu0 0.0
        %4698 = vmatprep.subr.mxu0 0.0
        %4699 = vmatpush1.msra.mxu0 0.0
        %4700 = vmatprep.subr.mxu0 0.0
        %4701 = vmatpush1.msra.mxu0 0.0
        %4702 = vmatprep.subr.mxu0 0.0
        %4703 = vmatpush1.msra.mxu0 0.0
        %4704 = vmatprep.subr.mxu0 0.0
        %4705 = vmatpush1.msra.mxu0 0.0
        %4706 = vmatprep.subr.mxu0 0.0
        %4707 = vmatpush1.msra.mxu0 0.0
        %4708 = vmatprep.mubr.f32.mxu0 0.0
        %4709 = vmatmul.mubr.f32.gmra.mrb[0].mxu0 %v4642
        %v4710 = vpop.f32.mrb[0].mxu0
        %v4711 = vadd.f32 0.0, %v4710
        %v4712 = vpop.f32.mrb[0].mxu0
        %4713 = vdwg.mxu0
        %v4714 = vadd.f32 %v4474, %v4711
        %v4716 = vlaneseq
        %v4717 = vshrl.u32 %v4716, 7
        %v4718 = vsub.s32 0, %v4717
        %v4719 = vrot.slane %v3549, %v4718
        %v4721 = vadd.f32 %v4714, %v4719
        %v4722 = vadd.f32 %v4721, %v871
        %s4723 = scalar_lea.vmem %s9, 1
        %v4724 = vld [vmem:[%s4723] sm:$0x1]
        %s4725 = scalar_lea.vmem %s10, 1
        %v4726 = vld [vmem:[%s4725] sm:$0x1]
        %v4727 = vsel %vm891, %v4722, 0.0
        %4728 = vadd.xlane.f32.xlu0 %v4727
        %v4729 = vpop.xlane.xlu0 %4728
        %v4730 = vmul.f32 %v4729, %v2074
        %v4731 = vsub.f32 %v4722, %v4730
        %v4732 = vmul.f32 %v4731, %v4731
        %v4733 = vsel %vm891, %v4732, 0.0
        %4734 = vadd.xlane.f32.xlu0 %v4733
        %v4735 = vpop.xlane.xlu0 %4734
        %v4736 = vmul.f32 %v4735, %v2074
        %v4737 = vadd.f32 %v4736, 1e-05
        %v4738 = vrsqrt.pop %v4737
        %v4739 = vmul.f32 %v4731, %v4738
        %v4741 = vlaneseq
        %v4742 = vshrl.u32 %v4741, 7
        %v4743 = vsub.s32 0, %v4742
        %v4744 = vrot.slane %v4724, %v4743
        %v4746 = vmul.f32 %v4739, %v4744
        %v4748 = vlaneseq
        %v4749 = vshrl.u32 %v4748, 7
        %v4750 = vsub.s32 0, %v4749
        %v4751 = vrot.slane %v4726, %v4750
        %v4753 = vadd.f32 %v4746, %v4751
        %s4754 = scalar_lea.vmem [#allocation10], 32
        %v4755 = vld [vmem:[%s4754] sm:$0xff]
        %v4756 = vld [vmem:[%s4754 + $0x8] sm:$0xff]
        %v4757 = vld [vmem:[%s4754 + $0x10] sm:$0xff]
        %v4758 = vld [vmem:[%s4754 + $0x18] sm:$0xff]
        %s4759 = scalar_lea.vmem [#allocation11], 32
        %v4760 = vld [vmem:[%s4759] sm:$0xff]
        %v4761 = vld [vmem:[%s4759 + $0x8] sm:$0xff]
        %v4762 = vld [vmem:[%s4759 + $0x10] sm:$0xff]
        %v4763 = vld [vmem:[%s4759 + $0x18] sm:$0xff]
        %s4764 = scalar_lea.vmem [#allocation13], 32
        %v4765 = vld [vmem:[%s4764] sm:$0xff]
        %v4766 = vld [vmem:[%s4764 + $0x8] sm:$0xff]
        %v4767 = vld [vmem:[%s4764 + $0x10] sm:$0xff]
        %v4768 = vld [vmem:[%s4764 + $0x18] sm:$0xff]
        %s4769 = scalar_lea.vmem %s14, 32
        %v4770 = vld [vmem:[%s4769] sm:$0xff]
        %v4771 = vld [vmem:[%s4769 + $0x8] sm:$0xff]
        %v4772 = vld [vmem:[%s4769 + $0x10] sm:$0xff]
        %v4773 = vld [vmem:[%s4769 + $0x18] sm:$0xff]
        %s4774 = scalar_lea.vmem %s15, 1
        %v4775 = vld [vmem:[%s4774] sm:$0x1]
        %v4777 = vsel %vm891, %v3527, 0
        %4779 = vmatprep.subr.mxu0 0.0
        %4780 = vmatpush1.msra.mxu0 %v4755
        %4781 = vmatprep.subr.mxu0 0.0
        %4782 = vmatpush1.msra.mxu0 %v4756
        %4783 = vmatprep.subr.mxu0 0.0
        %4784 = vmatpush1.msra.mxu0 %v4757
        %4785 = vmatprep.subr.mxu0 0.0
        %4786 = vmatpush1.msra.mxu0 %v4758
        %4787 = vmatprep.subr.mxu0 0.0
        %4788 = vmatpush1.msra.mxu0 0.0
        %4789 = vmatprep.subr.mxu0 0.0
        %4790 = vmatpush1.msra.mxu0 0.0
        %4791 = vmatprep.subr.mxu0 0.0
        %4792 = vmatpush1.msra.mxu0 0.0
        %4793 = vmatprep.subr.mxu0 0.0
        %4794 = vmatpush1.msra.mxu0 0.0
        %4795 = vmatprep.subr.mxu0 0.0
        %4796 = vmatpush1.msra.mxu0 0.0
        %4797 = vmatprep.subr.mxu0 0.0
        %4798 = vmatpush1.msra.mxu0 0.0
        %4799 = vmatprep.subr.mxu0 0.0
        %4800 = vmatpush1.msra.mxu0 0.0
        %4801 = vmatprep.subr.mxu0 0.0
        %4802 = vmatpush1.msra.mxu0 0.0
        %4803 = vmatprep.subr.mxu0 0.0
        %4804 = vmatpush1.msra.mxu0 0.0
        %4805 = vmatprep.subr.mxu0 0.0
        %4806 = vmatpush1.msra.mxu0 0.0
        %4807 = vmatprep.subr.mxu0 0.0
        %4808 = vmatpush1.msra.mxu0 0.0
        %4809 = vmatprep.subr.mxu0 0.0
        %4810 = vmatpush1.msra.mxu0 0.0
        %4811 = vmatprep.subr.mxu0 0.0
        %4812 = vmatpush1.msra.mxu0 0.0
        %4813 = vmatprep.subr.mxu0 0.0
        %4814 = vmatpush1.msra.mxu0 0.0
        %4815 = vmatprep.subr.mxu0 0.0
        %4816 = vmatpush1.msra.mxu0 0.0
        %4817 = vmatprep.subr.mxu0 0.0
        %4818 = vmatpush1.msra.mxu0 0.0
        %4819 = vmatprep.subr.mxu0 0.0
        %4820 = vmatpush1.msra.mxu0 0.0
        %4821 = vmatprep.subr.mxu0 0.0
        %4822 = vmatpush1.msra.mxu0 0.0
        %4823 = vmatprep.subr.mxu0 0.0
        %4824 = vmatpush1.msra.mxu0 0.0
        %4825 = vmatprep.subr.mxu0 0.0
        %4826 = vmatpush1.msra.mxu0 0.0
        %4827 = vmatprep.subr.mxu0 0.0
        %4828 = vmatpush1.msra.mxu0 0.0
        %4829 = vmatprep.subr.mxu0 0.0
        %4830 = vmatpush1.msra.mxu0 0.0
        %4831 = vmatprep.subr.mxu0 0.0
        %4832 = vmatpush1.msra.mxu0 0.0
        %4833 = vmatprep.subr.mxu0 0.0
        %4834 = vmatpush1.msra.mxu0 0.0
        %4835 = vmatprep.subr.mxu0 0.0
        %4836 = vmatpush1.msra.mxu0 0.0
        %4837 = vmatprep.subr.mxu0 0.0
        %4838 = vmatpush1.msra.mxu0 0.0
        %4839 = vmatprep.subr.mxu0 0.0
        %4840 = vmatpush1.msra.mxu0 0.0
        %4841 = vmatprep.subr.mxu0 0.0
        %4842 = vmatpush1.msra.mxu0 0.0
        %4843 = vmatprep.mubr.f32.mxu0 0.0
        %4844 = vmatmul.mubr.f32.gmra.mrb[0].mxu0 %v4777
        %v4845 = vpop.f32.mrb[0].mxu0
        %v4846 = vadd.f32 0.0, %v4845
        %v4847 = vpop.f32.mrb[0].mxu0
        %4848 = vdwg.mxu0
        %v4849 = vmul.f32 %v4846, 0.35355338
        %4850 = vmatprep.subr.mxu0 0.0
        %4851 = vmatpush1.msra.mxu0 %v4760
        %4852 = vmatprep.subr.mxu0 0.0
        %4853 = vmatpush1.msra.mxu0 %v4761
        %4854 = vmatprep.subr.mxu0 0.0
        %4855 = vmatpush1.msra.mxu0 %v4762
        %4856 = vmatprep.subr.mxu0 0.0
        %4857 = vmatpush1.msra.mxu0 %v4763
        %4858 = vmatprep.subr.mxu0 0.0
        %4859 = vmatpush1.msra.mxu0 0.0
        %4860 = vmatprep.subr.mxu0 0.0
        %4861 = vmatpush1.msra.mxu0 0.0
        %4862 = vmatprep.subr.mxu0 0.0
        %4863 = vmatpush1.msra.mxu0 0.0
        %4864 = vmatprep.subr.mxu0 0.0
        %4865 = vmatpush1.msra.mxu0 0.0
        %4866 = vmatprep.subr.mxu0 0.0
        %4867 = vmatpush1.msra.mxu0 0.0
        %4868 = vmatprep.subr.mxu0 0.0
        %4869 = vmatpush1.msra.mxu0 0.0
        %4870 = vmatprep.subr.mxu0 0.0
        %4871 = vmatpush1.msra.mxu0 0.0
        %4872 = vmatprep.subr.mxu0 0.0
        %4873 = vmatpush1.msra.mxu0 0.0
        %4874 = vmatprep.subr.mxu0 0.0
        %4875 = vmatpush1.msra.mxu0 0.0
        %4876 = vmatprep.subr.mxu0 0.0
        %4877 = vmatpush1.msra.mxu0 0.0
        %4878 = vmatprep.subr.mxu0 0.0
        %4879 = vmatpush1.msra.mxu0 0.0
        %4880 = vmatprep.subr.mxu0 0.0
        %4881 = vmatpush1.msra.mxu0 0.0
        %4882 = vmatprep.subr.mxu0 0.0
        %4883 = vmatpush1.msra.mxu0 0.0
        %4884 = vmatprep.subr.mxu0 0.0
        %4885 = vmatpush1.msra.mxu0 0.0
        %4886 = vmatprep.subr.mxu0 0.0
        %4887 = vmatpush1.msra.mxu0 0.0
        %4888 = vmatprep.subr.mxu0 0.0
        %4889 = vmatpush1.msra.mxu0 0.0
        %4890 = vmatprep.subr.mxu0 0.0
        %4891 = vmatpush1.msra.mxu0 0.0
        %4892 = vmatprep.subr.mxu0 0.0
        %4893 = vmatpush1.msra.mxu0 0.0
        %4894 = vmatprep.subr.mxu0 0.0
        %4895 = vmatpush1.msra.mxu0 0.0
        %4896 = vmatprep.subr.mxu0 0.0
        %4897 = vmatpush1.msra.mxu0 0.0
        %4898 = vmatprep.subr.mxu0 0.0
        %4899 = vmatpush1.msra.mxu0 0.0
        %4900 = vmatprep.subr.mxu0 0.0
        %4901 = vmatpush1.msra.mxu0 0.0
        %4902 = vmatprep.subr.mxu0 0.0
        %4903 = vmatpush1.msra.mxu0 0.0
        %4904 = vmatprep.subr.mxu0 0.0
        %4905 = vmatpush1.msra.mxu0 0.0
        %4906 = vmatprep.subr.mxu0 0.0
        %4907 = vmatpush1.msra.mxu0 0.0
        %4908 = vmatprep.subr.mxu0 0.0
        %4909 = vmatpush1.msra.mxu0 0.0
        %4910 = vmatprep.subr.mxu0 0.0
        %4911 = vmatpush1.msra.mxu0 0.0
        %4912 = vmatprep.subr.mxu0 0.0
        %4913 = vmatpush1.msra.mxu0 0.0
        %4914 = vmatprep.mubr.f32.mxu0 0.0
        %4915 = vmatmul.mubr.f32.gmra.mrb[0].mxu0 %v893
        %v4916 = vpop.f32.mrb[0].mxu0
        %v4917 = vadd.f32 0.0, %v4916
        %v4918 = vpop.f32.mrb[0].mxu0
        %4919 = vdwg.mxu0
        %v4921 = vsel %vm891, %v4753, 0
        %4923 = vmatprep.subr.mxu0 0.0
        %4924 = vmatpush1.msra.mxu0 %v4765
        %4925 = vmatprep.subr.mxu0 0.0
        %4926 = vmatpush1.msra.mxu0 %v4766
        %4927 = vmatprep.subr.mxu0 0.0
        %4928 = vmatpush1.msra.mxu0 %v4767
        %4929 = vmatprep.subr.mxu0 0.0
        %4930 = vmatpush1.msra.mxu0 %v4768
        %4931 = vmatprep.subr.mxu0 0.0
        %4932 = vmatpush1.msra.mxu0 0.0
        %4933 = vmatprep.subr.mxu0 0.0
        %4934 = vmatpush1.msra.mxu0 0.0
        %4935 = vmatprep.subr.mxu0 0.0
        %4936 = vmatpush1.msra.mxu0 0.0
        %4937 = vmatprep.subr.mxu0 0.0
        %4938 = vmatpush1.msra.mxu0 0.0
        %4939 = vmatprep.subr.mxu0 0.0
        %4940 = vmatpush1.msra.mxu0 0.0
        %4941 = vmatprep.subr.mxu0 0.0
        %4942 = vmatpush1.msra.mxu0 0.0
        %4943 = vmatprep.subr.mxu0 0.0
        %4944 = vmatpush1.msra.mxu0 0.0
        %4945 = vmatprep.subr.mxu0 0.0
        %4946 = vmatpush1.msra.mxu0 0.0
        %4947 = vmatprep.subr.mxu0 0.0
        %4948 = vmatpush1.msra.mxu0 0.0
        %4949 = vmatprep.subr.mxu0 0.0
        %4950 = vmatpush1.msra.mxu0 0.0
        %4951 = vmatprep.subr.mxu0 0.0
        %4952 = vmatpush1.msra.mxu0 0.0
        %4953 = vmatprep.subr.mxu0 0.0
        %4954 = vmatpush1.msra.mxu0 0.0
        %4955 = vmatprep.subr.mxu0 0.0
        %4956 = vmatpush1.msra.mxu0 0.0
        %4957 = vmatprep.subr.mxu0 0.0
        %4958 = vmatpush1.msra.mxu0 0.0
        %4959 = vmatprep.subr.mxu0 0.0
        %4960 = vmatpush1.msra.mxu0 0.0
        %4961 = vmatprep.subr.mxu0 0.0
        %4962 = vmatpush1.msra.mxu0 0.0
        %4963 = vmatprep.subr.mxu0 0.0
        %4964 = vmatpush1.msra.mxu0 0.0
        %4965 = vmatprep.subr.mxu0 0.0
        %4966 = vmatpush1.msra.mxu0 0.0
        %4967 = vmatprep.subr.mxu0 0.0
        %4968 = vmatpush1.msra.mxu0 0.0
        %4969 = vmatprep.subr.mxu0 0.0
        %4970 = vmatpush1.msra.mxu0 0.0
        %4971 = vmatprep.subr.mxu0 0.0
        %4972 = vmatpush1.msra.mxu0 0.0
        %4973 = vmatprep.subr.mxu0 0.0
        %4974 = vmatpush1.msra.mxu0 0.0
        %4975 = vmatprep.subr.mxu0 0.0
        %4976 = vmatpush1.msra.mxu0 0.0
        %4977 = vmatprep.subr.mxu0 0.0
        %4978 = vmatpush1.msra.mxu0 0.0
        %4979 = vmatprep.subr.mxu0 0.0
        %4980 = vmatpush1.msra.mxu0 0.0
        %4981 = vmatprep.subr.mxu0 0.0
        %4982 = vmatpush1.msra.mxu0 0.0
        %4983 = vmatprep.subr.mxu0 0.0
        %4984 = vmatpush1.msra.mxu0 0.0
        %4985 = vmatprep.subr.mxu0 0.0
        %4986 = vmatpush1.msra.mxu0 0.0
        %4987 = vmatprep.mubr.f32.mxu0 0.0
        %4988 = vmatmul.mubr.f32.gmra.mrb[0].mxu0 %v4921
        %v4989 = vpop.f32.mrb[0].mxu0
        %v4990 = vadd.f32 0.0, %v4989
        %v4991 = vpop.f32.mrb[0].mxu0
        %4992 = vdwg.mxu0
        %v4994 = vsel %vm1106, %v4849, 0
        %v4997 = vsel %vm1106, %v4917, 0
        %4999 = vmatprep.subr.mxu0 0.0
        %5000 = vmatpush1.xpose.msra.mxu0 %v4997
        %5001 = vmatprep.subr.mxu0 0.0
        %5002 = vmatpush1.xpose.msra.mxu0 0.0
        %5003 = vmatprep.subr.mxu0 0.0
        %5004 = vmatpush1.xpose.msra.mxu0 0.0
        %5005 = vmatprep.subr.mxu0 0.0
        %5006 = vmatpush1.xpose.msra.mxu0 0.0
        %5007 = vmatprep.subr.mxu0 0.0
        %5008 = vmatpush1.xpose.msra.mxu0 0.0
        %5009 = vmatprep.subr.mxu0 0.0
        %5010 = vmatpush1.xpose.msra.mxu0 0.0
        %5011 = vmatprep.subr.mxu0 0.0
        %5012 = vmatpush1.xpose.msra.mxu0 0.0
        %5013 = vmatprep.subr.mxu0 0.0
        %5014 = vmatpush1.xpose.msra.mxu0 0.0
        %5015 = vmatprep.subr.mxu0 0.0
        %5016 = vmatpush1.xpose.msra.mxu0 0.0
        %5017 = vmatprep.subr.mxu0 0.0
        %5018 = vmatpush1.xpose.msra.mxu0 0.0
        %5019 = vmatprep.subr.mxu0 0.0
        %5020 = vmatpush1.xpose.msra.mxu0 0.0
        %5021 = vmatprep.subr.mxu0 0.0
        %5022 = vmatpush1.xpose.msra.mxu0 0.0
        %5023 = vmatprep.subr.mxu0 0.0
        %5024 = vmatpush1.xpose.msra.mxu0 0.0
        %5025 = vmatprep.subr.mxu0 0.0
        %5026 = vmatpush1.xpose.msra.mxu0 0.0
        %5027 = vmatprep.subr.mxu0 0.0
        %5028 = vmatpush1.xpose.msra.mxu0 0.0
        %5029 = vmatprep.subr.mxu0 0.0
        %5030 = vmatpush1.xpose.msra.mxu0 0.0
        %5031 = vmatprep.subr.mxu0 0.0
        %5032 = vmatpush1.xpose.msra.mxu0 0.0
        %5033 = vmatprep.subr.mxu0 0.0
        %5034 = vmatpush1.xpose.msra.mxu0 0.0
        %5035 = vmatprep.subr.mxu0 0.0
        %5036 = vmatpush1.xpose.msra.mxu0 0.0
        %5037 = vmatprep.subr.mxu0 0.0
        %5038 = vmatpush1.xpose.msra.mxu0 0.0
        %5039 = vmatprep.subr.mxu0 0.0
        %5040 = vmatpush1.xpose.msra.mxu0 0.0
        %5041 = vmatprep.subr.mxu0 0.0
        %5042 = vmatpush1.xpose.msra.mxu0 0.0
        %5043 = vmatprep.subr.mxu0 0.0
        %5044 = vmatpush1.xpose.msra.mxu0 0.0
        %5045 = vmatprep.subr.mxu0 0.0
        %5046 = vmatpush1.xpose.msra.mxu0 0.0
        %5047 = vmatprep.subr.mxu0 0.0
        %5048 = vmatpush1.xpose.msra.mxu0 0.0
        %5049 = vmatprep.subr.mxu0 0.0
        %5050 = vmatpush1.xpose.msra.mxu0 0.0
        %5051 = vmatprep.subr.mxu0 0.0
        %5052 = vmatpush1.xpose.msra.mxu0 0.0
        %5053 = vmatprep.subr.mxu0 0.0
        %5054 = vmatpush1.xpose.msra.mxu0 0.0
        %5055 = vmatprep.subr.mxu0 0.0
        %5056 = vmatpush1.xpose.msra.mxu0 0.0
        %5057 = vmatprep.subr.mxu0 0.0
        %5058 = vmatpush1.xpose.msra.mxu0 0.0
        %5059 = vmatprep.subr.mxu0 0.0
        %5060 = vmatpush1.xpose.msra.mxu0 0.0
        %5061 = vmatprep.subr.mxu0 0.0
        %5062 = vmatpush1.xpose.msra.mxu0 0.0
        %5063 = vmatprep.mubr.f32.mxu0 0.0
        %5064 = vmatmul.mubr.f32.gmra.mrb[0].mxu0 %v4994
        %v5065 = vpop.f32.mrb[0].mxu0
        %v5066 = vadd.f32 0.0, %v5065
        %v5067 = vpop.f32.mrb[0].mxu0
        %5068 = vdwg.mxu0
        %v5069 = vsel %vm1106, %v5066, -inf
        %5070 = vmax.xlane.f32.xlu0 %v5069
        %v5071 = vpop.xlane.xlu0 %5070
        %v5072 = vsub.f32 %v5066, %v5071
        %v5073 = vmul.f32 %v5072, 1.442695
        %v5074 = vpow.pop %v5073
        %v5075 = vsel %vm1106, %v5074, 0.0
        %5076 = vadd.xlane.f32.xlu0 %v5075
        %v5077 = vpop.xlane.xlu0 %5076
        %v5078 = vrcp.pop %v5077
        %v5079 = vmul.f32 %v5074, %v5078
        %v5081 = vsel %vm1106, %v5079, 0
        %5083 = vmatprep.subr.mxu0 0.0
        %5084 = vmatpush1.msra.mxu0 %v4990
        %5085 = vmatprep.subr.mxu0 0.0
        %5086 = vmatpush1.msra.mxu0 0.0
        %5087 = vmatprep.subr.mxu0 0.0
        %5088 = vmatpush1.msra.mxu0 0.0
        %5089 = vmatprep.subr.mxu0 0.0
        %5090 = vmatpush1.msra.mxu0 0.0
        %5091 = vmatprep.subr.mxu0 0.0
        %5092 = vmatpush1.msra.mxu0 0.0
        %5093 = vmatprep.subr.mxu0 0.0
        %5094 = vmatpush1.msra.mxu0 0.0
        %5095 = vmatprep.subr.mxu0 0.0
        %5096 = vmatpush1.msra.mxu0 0.0
        %5097 = vmatprep.subr.mxu0 0.0
        %5098 = vmatpush1.msra.mxu0 0.0
        %5099 = vmatprep.subr.mxu0 0.0
        %5100 = vmatpush1.msra.mxu0 0.0
        %5101 = vmatprep.subr.mxu0 0.0
        %5102 = vmatpush1.msra.mxu0 0.0
        %5103 = vmatprep.subr.mxu0 0.0
        %5104 = vmatpush1.msra.mxu0 0.0
        %5105 = vmatprep.subr.mxu0 0.0
        %5106 = vmatpush1.msra.mxu0 0.0
        %5107 = vmatprep.subr.mxu0 0.0
        %5108 = vmatpush1.msra.mxu0 0.0
        %5109 = vmatprep.subr.mxu0 0.0
        %5110 = vmatpush1.msra.mxu0 0.0
        %5111 = vmatprep.subr.mxu0 0.0
        %5112 = vmatpush1.msra.mxu0 0.0
        %5113 = vmatprep.subr.mxu0 0.0
        %5114 = vmatpush1.msra.mxu0 0.0
        %5115 = vmatprep.subr.mxu0 0.0
        %5116 = vmatpush1.msra.mxu0 0.0
        %5117 = vmatprep.subr.mxu0 0.0
        %5118 = vmatpush1.msra.mxu0 0.0
        %5119 = vmatprep.subr.mxu0 0.0
        %5120 = vmatpush1.msra.mxu0 0.0
        %5121 = vmatprep.subr.mxu0 0.0
        %5122 = vmatpush1.msra.mxu0 0.0
        %5123 = vmatprep.subr.mxu0 0.0
        %5124 = vmatpush1.msra.mxu0 0.0
        %5125 = vmatprep.subr.mxu0 0.0
        %5126 = vmatpush1.msra.mxu0 0.0
        %5127 = vmatprep.subr.mxu0 0.0
        %5128 = vmatpush1.msra.mxu0 0.0
        %5129 = vmatprep.subr.mxu0 0.0
        %5130 = vmatpush1.msra.mxu0 0.0
        %5131 = vmatprep.subr.mxu0 0.0
        %5132 = vmatpush1.msra.mxu0 0.0
        %5133 = vmatprep.subr.mxu0 0.0
        %5134 = vmatpush1.msra.mxu0 0.0
        %5135 = vmatprep.subr.mxu0 0.0
        %5136 = vmatpush1.msra.mxu0 0.0
        %5137 = vmatprep.subr.mxu0 0.0
        %5138 = vmatpush1.msra.mxu0 0.0
        %5139 = vmatprep.subr.mxu0 0.0
        %5140 = vmatpush1.msra.mxu0 0.0
        %5141 = vmatprep.subr.mxu0 0.0
        %5142 = vmatpush1.msra.mxu0 0.0
        %5143 = vmatprep.subr.mxu0 0.0
        %5144 = vmatpush1.msra.mxu0 0.0
        %5145 = vmatprep.subr.mxu0 0.0
        %5146 = vmatpush1.msra.mxu0 0.0
        %5147 = vmatprep.mubr.f32.mxu0 0.0
        %5148 = vmatmul.mubr.f32.gmra.mrb[0].mxu0 %v5081
        %v5149 = vpop.f32.mrb[0].mxu0
        %v5150 = vadd.f32 0.0, %v5149
        %v5151 = vpop.f32.mrb[0].mxu0
        %5152 = vdwg.mxu0
        %5153 = vrot.lane.b32.xlu0 %v4849, 120
        %v5154 = vpop.permute.xlu0 %5153
        %5155 = vrot.lane.b32.xlu0 %v4917, 120
        %v5156 = vpop.permute.xlu0 %5155
        %v5157 = vsel %vm1106, %v5154, 0
        %v5159 = vsel %vm1106, %v5156, 0
        %5161 = vmatprep.subr.mxu0 0.0
        %5162 = vmatpush1.xpose.msra.mxu0 %v5159
        %5163 = vmatprep.subr.mxu0 0.0
        %5164 = vmatpush1.xpose.msra.mxu0 0.0
        %5165 = vmatprep.subr.mxu0 0.0
        %5166 = vmatpush1.xpose.msra.mxu0 0.0
        %5167 = vmatprep.subr.mxu0 0.0
        %5168 = vmatpush1.xpose.msra.mxu0 0.0
        %5169 = vmatprep.subr.mxu0 0.0
        %5170 = vmatpush1.xpose.msra.mxu0 0.0
        %5171 = vmatprep.subr.mxu0 0.0
        %5172 = vmatpush1.xpose.msra.mxu0 0.0
        %5173 = vmatprep.subr.mxu0 0.0
        %5174 = vmatpush1.xpose.msra.mxu0 0.0
        %5175 = vmatprep.subr.mxu0 0.0
        %5176 = vmatpush1.xpose.msra.mxu0 0.0
        %5177 = vmatprep.subr.mxu0 0.0
        %5178 = vmatpush1.xpose.msra.mxu0 0.0
        %5179 = vmatprep.subr.mxu0 0.0
        %5180 = vmatpush1.xpose.msra.mxu0 0.0
        %5181 = vmatprep.subr.mxu0 0.0
        %5182 = vmatpush1.xpose.msra.mxu0 0.0
        %5183 = vmatprep.subr.mxu0 0.0
        %5184 = vmatpush1.xpose.msra.mxu0 0.0
        %5185 = vmatprep.subr.mxu0 0.0
        %5186 = vmatpush1.xpose.msra.mxu0 0.0
        %5187 = vmatprep.subr.mxu0 0.0
        %5188 = vmatpush1.xpose.msra.mxu0 0.0
        %5189 = vmatprep.subr.mxu0 0.0
        %5190 = vmatpush1.xpose.msra.mxu0 0.0
        %5191 = vmatprep.subr.mxu0 0.0
        %5192 = vmatpush1.xpose.msra.mxu0 0.0
        %5193 = vmatprep.subr.mxu0 0.0
        %5194 = vmatpush1.xpose.msra.mxu0 0.0
        %5195 = vmatprep.subr.mxu0 0.0
        %5196 = vmatpush1.xpose.msra.mxu0 0.0
        %5197 = vmatprep.subr.mxu0 0.0
        %5198 = vmatpush1.xpose.msra.mxu0 0.0
        %5199 = vmatprep.subr.mxu0 0.0
        %5200 = vmatpush1.xpose.msra.mxu0 0.0
        %5201 = vmatprep.subr.mxu0 0.0
        %5202 = vmatpush1.xpose.msra.mxu0 0.0
        %5203 = vmatprep.subr.mxu0 0.0
        %5204 = vmatpush1.xpose.msra.mxu0 0.0
        %5205 = vmatprep.subr.mxu0 0.0
        %5206 = vmatpush1.xpose.msra.mxu0 0.0
        %5207 = vmatprep.subr.mxu0 0.0
        %5208 = vmatpush1.xpose.msra.mxu0 0.0
        %5209 = vmatprep.subr.mxu0 0.0
        %5210 = vmatpush1.xpose.msra.mxu0 0.0
        %5211 = vmatprep.subr.mxu0 0.0
        %5212 = vmatpush1.xpose.msra.mxu0 0.0
        %5213 = vmatprep.subr.mxu0 0.0
        %5214 = vmatpush1.xpose.msra.mxu0 0.0
        %5215 = vmatprep.subr.mxu0 0.0
        %5216 = vmatpush1.xpose.msra.mxu0 0.0
        %5217 = vmatprep.subr.mxu0 0.0
        %5218 = vmatpush1.xpose.msra.mxu0 0.0
        %5219 = vmatprep.subr.mxu0 0.0
        %5220 = vmatpush1.xpose.msra.mxu0 0.0
        %5221 = vmatprep.subr.mxu0 0.0
        %5222 = vmatpush1.xpose.msra.mxu0 0.0
        %5223 = vmatprep.subr.mxu0 0.0
        %5224 = vmatpush1.xpose.msra.mxu0 0.0
        %5225 = vmatprep.mubr.f32.mxu0 0.0
        %5226 = vmatmul.mubr.f32.gmra.mrb[0].mxu0 %v5157
        %v5227 = vpop.f32.mrb[0].mxu0
        %v5228 = vadd.f32 0.0, %v5227
        %v5229 = vpop.f32.mrb[0].mxu0
        %5230 = vdwg.mxu0
        %v5231 = vsel %vm1106, %v5228, -inf
        %5232 = vmax.xlane.f32.xlu0 %v5231
        %v5233 = vpop.xlane.xlu0 %5232
        %v5234 = vsub.f32 %v5228, %v5233
        %v5235 = vmul.f32 %v5234, 1.442695
        %v5236 = vpow.pop %v5235
        %v5237 = vsel %vm1106, %v5236, 0.0
        %5238 = vadd.xlane.f32.xlu0 %v5237
        %v5239 = vpop.xlane.xlu0 %5238
        %v5240 = vrcp.pop %v5239
        %v5241 = vmul.f32 %v5236, %v5240
        %5243 = vrot.lane.b32.xlu0 %v4990, 120
        %v5244 = vpop.permute.xlu0 %5243
        %v5247 = vsel %vm1106, %v5241, 0
        %5249 = vmatprep.subr.mxu0 0.0
        %5250 = vmatpush1.msra.mxu0 %v5244
        %5251 = vmatprep.subr.mxu0 0.0
        %5252 = vmatpush1.msra.mxu0 0.0
        %5253 = vmatprep.subr.mxu0 0.0
        %5254 = vmatpush1.msra.mxu0 0.0
        %5255 = vmatprep.subr.mxu0 0.0
        %5256 = vmatpush1.msra.mxu0 0.0
        %5257 = vmatprep.subr.mxu0 0.0
        %5258 = vmatpush1.msra.mxu0 0.0
        %5259 = vmatprep.subr.mxu0 0.0
        %5260 = vmatpush1.msra.mxu0 0.0
        %5261 = vmatprep.subr.mxu0 0.0
        %5262 = vmatpush1.msra.mxu0 0.0
        %5263 = vmatprep.subr.mxu0 0.0
        %5264 = vmatpush1.msra.mxu0 0.0
        %5265 = vmatprep.subr.mxu0 0.0
        %5266 = vmatpush1.msra.mxu0 0.0
        %5267 = vmatprep.subr.mxu0 0.0
        %5268 = vmatpush1.msra.mxu0 0.0
        %5269 = vmatprep.subr.mxu0 0.0
        %5270 = vmatpush1.msra.mxu0 0.0
        %5271 = vmatprep.subr.mxu0 0.0
        %5272 = vmatpush1.msra.mxu0 0.0
        %5273 = vmatprep.subr.mxu0 0.0
        %5274 = vmatpush1.msra.mxu0 0.0
        %5275 = vmatprep.subr.mxu0 0.0
        %5276 = vmatpush1.msra.mxu0 0.0
        %5277 = vmatprep.subr.mxu0 0.0
        %5278 = vmatpush1.msra.mxu0 0.0
        %5279 = vmatprep.subr.mxu0 0.0
        %5280 = vmatpush1.msra.mxu0 0.0
        %5281 = vmatprep.subr.mxu0 0.0
        %5282 = vmatpush1.msra.mxu0 0.0
        %5283 = vmatprep.subr.mxu0 0.0
        %5284 = vmatpush1.msra.mxu0 0.0
        %5285 = vmatprep.subr.mxu0 0.0
        %5286 = vmatpush1.msra.mxu0 0.0
        %5287 = vmatprep.subr.mxu0 0.0
        %5288 = vmatpush1.msra.mxu0 0.0
        %5289 = vmatprep.subr.mxu0 0.0
        %5290 = vmatpush1.msra.mxu0 0.0
        %5291 = vmatprep.subr.mxu0 0.0
        %5292 = vmatpush1.msra.mxu0 0.0
        %5293 = vmatprep.subr.mxu0 0.0
        %5294 = vmatpush1.msra.mxu0 0.0
        %5295 = vmatprep.subr.mxu0 0.0
        %5296 = vmatpush1.msra.mxu0 0.0
        %5297 = vmatprep.subr.mxu0 0.0
        %5298 = vmatpush1.msra.mxu0 0.0
        %5299 = vmatprep.subr.mxu0 0.0
        %5300 = vmatpush1.msra.mxu0 0.0
        %5301 = vmatprep.subr.mxu0 0.0
        %5302 = vmatpush1.msra.mxu0 0.0
        %5303 = vmatprep.subr.mxu0 0.0
        %5304 = vmatpush1.msra.mxu0 0.0
        %5305 = vmatprep.subr.mxu0 0.0
        %5306 = vmatpush1.msra.mxu0 0.0
        %5307 = vmatprep.subr.mxu0 0.0
        %5308 = vmatpush1.msra.mxu0 0.0
        %5309 = vmatprep.subr.mxu0 0.0
        %5310 = vmatpush1.msra.mxu0 0.0
        %5311 = vmatprep.subr.mxu0 0.0
        %5312 = vmatpush1.msra.mxu0 0.0
        %5313 = vmatprep.mubr.f32.mxu0 0.0
        %5314 = vmatmul.mubr.f32.gmra.mrb[0].mxu0 %v5247
        %v5315 = vpop.f32.mrb[0].mxu0
        %v5316 = vadd.f32 0.0, %v5315
        %v5317 = vpop.f32.mrb[0].mxu0
        %5318 = vdwg.mxu0
        %v5320 = vsel %vm1106, %v5316, 0
        %5322 = vmatprep.subr.mxu0 0.0
        %5323 = vmatpush1.msra.mxu0 %v4771
        %5324 = vmatprep.subr.mxu0 0.0
        %5325 = vmatpush1.msra.mxu0 0.0
        %5326 = vmatprep.subr.mxu0 0.0
        %5327 = vmatpush1.msra.mxu0 0.0
        %5328 = vmatprep.subr.mxu0 0.0
        %5329 = vmatpush1.msra.mxu0 0.0
        %5330 = vmatprep.subr.mxu0 0.0
        %5331 = vmatpush1.msra.mxu0 0.0
        %5332 = vmatprep.subr.mxu0 0.0
        %5333 = vmatpush1.msra.mxu0 0.0
        %5334 = vmatprep.subr.mxu0 0.0
        %5335 = vmatpush1.msra.mxu0 0.0
        %5336 = vmatprep.subr.mxu0 0.0
        %5337 = vmatpush1.msra.mxu0 0.0
        %5338 = vmatprep.subr.mxu0 0.0
        %5339 = vmatpush1.msra.mxu0 0.0
        %5340 = vmatprep.subr.mxu0 0.0
        %5341 = vmatpush1.msra.mxu0 0.0
        %5342 = vmatprep.subr.mxu0 0.0
        %5343 = vmatpush1.msra.mxu0 0.0
        %5344 = vmatprep.subr.mxu0 0.0
        %5345 = vmatpush1.msra.mxu0 0.0
        %5346 = vmatprep.subr.mxu0 0.0
        %5347 = vmatpush1.msra.mxu0 0.0
        %5348 = vmatprep.subr.mxu0 0.0
        %5349 = vmatpush1.msra.mxu0 0.0
        %5350 = vmatprep.subr.mxu0 0.0
        %5351 = vmatpush1.msra.mxu0 0.0
        %5352 = vmatprep.subr.mxu0 0.0
        %5353 = vmatpush1.msra.mxu0 0.0
        %5354 = vmatprep.subr.mxu0 0.0
        %5355 = vmatpush1.msra.mxu0 0.0
        %5356 = vmatprep.subr.mxu0 0.0
        %5357 = vmatpush1.msra.mxu0 0.0
        %5358 = vmatprep.subr.mxu0 0.0
        %5359 = vmatpush1.msra.mxu0 0.0
        %5360 = vmatprep.subr.mxu0 0.0
        %5361 = vmatpush1.msra.mxu0 0.0
        %5362 = vmatprep.subr.mxu0 0.0
        %5363 = vmatpush1.msra.mxu0 0.0
        %5364 = vmatprep.subr.mxu0 0.0
        %5365 = vmatpush1.msra.mxu0 0.0
        %5366 = vmatprep.subr.mxu0 0.0
        %5367 = vmatpush1.msra.mxu0 0.0
        %5368 = vmatprep.subr.mxu0 0.0
        %5369 = vmatpush1.msra.mxu0 0.0
        %5370 = vmatprep.subr.mxu0 0.0
        %5371 = vmatpush1.msra.mxu0 0.0
        %5372 = vmatprep.subr.mxu0 0.0
        %5373 = vmatpush1.msra.mxu0 0.0
        %5374 = vmatprep.subr.mxu0 0.0
        %5375 = vmatpush1.msra.mxu0 0.0
        %5376 = vmatprep.subr.mxu0 0.0
        %5377 = vmatpush1.msra.mxu0 0.0
        %5378 = vmatprep.subr.mxu0 0.0
        %5379 = vmatpush1.msra.mxu0 0.0
        %5380 = vmatprep.subr.mxu0 0.0
        %5381 = vmatpush1.msra.mxu0 0.0
        %5382 = vmatprep.subr.mxu0 0.0
        %5383 = vmatpush1.msra.mxu0 0.0
        %5384 = vmatprep.subr.mxu0 0.0
        %5385 = vmatpush1.msra.mxu0 0.0
        %5386 = vmatprep.mubr.f32.mxu0 0.0
        %5387 = vmatmul.mubr.f32.gmra.mrb[0].mxu0 %v5320
        %v5388 = vpop.f32.mrb[0].mxu0
        %v5389 = vadd.f32 0.0, %v5388
        %v5390 = vpop.f32.mrb[0].mxu0
        %5391 = vdwg.mxu0
        %v5393 = vsel %vm1106, %v5150, 0
        %5395 = vmatprep.subr.mxu0 0.0
        %5396 = vmatpush1.msra.mxu0 %v4770
        %5397 = vmatprep.subr.mxu0 0.0
        %5398 = vmatpush1.msra.mxu0 0.0
        %5399 = vmatprep.subr.mxu0 0.0
        %5400 = vmatpush1.msra.mxu0 0.0
        %5401 = vmatprep.subr.mxu0 0.0
        %5402 = vmatpush1.msra.mxu0 0.0
        %5403 = vmatprep.subr.mxu0 0.0
        %5404 = vmatpush1.msra.mxu0 0.0
        %5405 = vmatprep.subr.mxu0 0.0
        %5406 = vmatpush1.msra.mxu0 0.0
        %5407 = vmatprep.subr.mxu0 0.0
        %5408 = vmatpush1.msra.mxu0 0.0
        %5409 = vmatprep.subr.mxu0 0.0
        %5410 = vmatpush1.msra.mxu0 0.0
        %5411 = vmatprep.subr.mxu0 0.0
        %5412 = vmatpush1.msra.mxu0 0.0
        %5413 = vmatprep.subr.mxu0 0.0
        %5414 = vmatpush1.msra.mxu0 0.0
        %5415 = vmatprep.subr.mxu0 0.0
        %5416 = vmatpush1.msra.mxu0 0.0
        %5417 = vmatprep.subr.mxu0 0.0
        %5418 = vmatpush1.msra.mxu0 0.0
        %5419 = vmatprep.subr.mxu0 0.0
        %5420 = vmatpush1.msra.mxu0 0.0
        %5421 = vmatprep.subr.mxu0 0.0
        %5422 = vmatpush1.msra.mxu0 0.0
        %5423 = vmatprep.subr.mxu0 0.0
        %5424 = vmatpush1.msra.mxu0 0.0
        %5425 = vmatprep.subr.mxu0 0.0
        %5426 = vmatpush1.msra.mxu0 0.0
        %5427 = vmatprep.subr.mxu0 0.0
        %5428 = vmatpush1.msra.mxu0 0.0
        %5429 = vmatprep.subr.mxu0 0.0
        %5430 = vmatpush1.msra.mxu0 0.0
        %5431 = vmatprep.subr.mxu0 0.0
        %5432 = vmatpush1.msra.mxu0 0.0
        %5433 = vmatprep.subr.mxu0 0.0
        %5434 = vmatpush1.msra.mxu0 0.0
        %5435 = vmatprep.subr.mxu0 0.0
        %5436 = vmatpush1.msra.mxu0 0.0
        %5437 = vmatprep.subr.mxu0 0.0
        %5438 = vmatpush1.msra.mxu0 0.0
        %5439 = vmatprep.subr.mxu0 0.0
        %5440 = vmatpush1.msra.mxu0 0.0
        %5441 = vmatprep.subr.mxu0 0.0
        %5442 = vmatpush1.msra.mxu0 0.0
        %5443 = vmatprep.subr.mxu0 0.0
        %5444 = vmatpush1.msra.mxu0 0.0
        %5445 = vmatprep.subr.mxu0 0.0
        %5446 = vmatpush1.msra.mxu0 0.0
        %5447 = vmatprep.subr.mxu0 0.0
        %5448 = vmatpush1.msra.mxu0 0.0
        %5449 = vmatprep.subr.mxu0 0.0
        %5450 = vmatpush1.msra.mxu0 0.0
        %5451 = vmatprep.subr.mxu0 0.0
        %5452 = vmatpush1.msra.mxu0 0.0
        %5453 = vmatprep.subr.mxu0 0.0
        %5454 = vmatpush1.msra.mxu0 0.0
        %5455 = vmatprep.subr.mxu0 0.0
        %5456 = vmatpush1.msra.mxu0 0.0
        %5457 = vmatprep.subr.mxu0 0.0
        %5458 = vmatpush1.msra.mxu0 0.0
        %5459 = vmatprep.mubr.f32.mxu0 0.0
        %5460 = vmatmul.mubr.f32.gmra.mrb[0].mxu0 %v5393
        %v5461 = vpop.f32.mrb[0].mxu0
        %v5462 = vadd.f32 %v5389, %v5461
        %v5463 = vpop.f32.mrb[0].mxu0
        %5464 = vdwg.mxu0
        %5465 = vrot.lane.b32.xlu0 %v4849, 112
        %v5466 = vpop.permute.xlu0 %5465
        %5467 = vrot.lane.b32.xlu0 %v4917, 112
        %v5468 = vpop.permute.xlu0 %5467
        %v5469 = vsel %vm1106, %v5466, 0
        %v5471 = vsel %vm1106, %v5468, 0
        %5473 = vmatprep.subr.mxu0 0.0
        %5474 = vmatpush1.xpose.msra.mxu0 %v5471
        %5475 = vmatprep.subr.mxu0 0.0
        %5476 = vmatpush1.xpose.msra.mxu0 0.0
        %5477 = vmatprep.subr.mxu0 0.0
        %5478 = vmatpush1.xpose.msra.mxu0 0.0
        %5479 = vmatprep.subr.mxu0 0.0
        %5480 = vmatpush1.xpose.msra.mxu0 0.0
        %5481 = vmatprep.subr.mxu0 0.0
        %5482 = vmatpush1.xpose.msra.mxu0 0.0
        %5483 = vmatprep.subr.mxu0 0.0
        %5484 = vmatpush1.xpose.msra.mxu0 0.0
        %5485 = vmatprep.subr.mxu0 0.0
        %5486 = vmatpush1.xpose.msra.mxu0 0.0
        %5487 = vmatprep.subr.mxu0 0.0
        %5488 = vmatpush1.xpose.msra.mxu0 0.0
        %5489 = vmatprep.subr.mxu0 0.0
        %5490 = vmatpush1.xpose.msra.mxu0 0.0
        %5491 = vmatprep.subr.mxu0 0.0
        %5492 = vmatpush1.xpose.msra.mxu0 0.0
        %5493 = vmatprep.subr.mxu0 0.0
        %5494 = vmatpush1.xpose.msra.mxu0 0.0
        %5495 = vmatprep.subr.mxu0 0.0
        %5496 = vmatpush1.xpose.msra.mxu0 0.0
        %5497 = vmatprep.subr.mxu0 0.0
        %5498 = vmatpush1.xpose.msra.mxu0 0.0
        %5499 = vmatprep.subr.mxu0 0.0
        %5500 = vmatpush1.xpose.msra.mxu0 0.0
        %5501 = vmatprep.subr.mxu0 0.0
        %5502 = vmatpush1.xpose.msra.mxu0 0.0
        %5503 = vmatprep.subr.mxu0 0.0
        %5504 = vmatpush1.xpose.msra.mxu0 0.0
        %5505 = vmatprep.subr.mxu0 0.0
        %5506 = vmatpush1.xpose.msra.mxu0 0.0
        %5507 = vmatprep.subr.mxu0 0.0
        %5508 = vmatpush1.xpose.msra.mxu0 0.0
        %5509 = vmatprep.subr.mxu0 0.0
        %5510 = vmatpush1.xpose.msra.mxu0 0.0
        %5511 = vmatprep.subr.mxu0 0.0
        %5512 = vmatpush1.xpose.msra.mxu0 0.0
        %5513 = vmatprep.subr.mxu0 0.0
        %5514 = vmatpush1.xpose.msra.mxu0 0.0
        %5515 = vmatprep.subr.mxu0 0.0
        %5516 = vmatpush1.xpose.msra.mxu0 0.0
        %5517 = vmatprep.subr.mxu0 0.0
        %5518 = vmatpush1.xpose.msra.mxu0 0.0
        %5519 = vmatprep.subr.mxu0 0.0
        %5520 = vmatpush1.xpose.msra.mxu0 0.0
        %5521 = vmatprep.subr.mxu0 0.0
        %5522 = vmatpush1.xpose.msra.mxu0 0.0
        %5523 = vmatprep.subr.mxu0 0.0
        %5524 = vmatpush1.xpose.msra.mxu0 0.0
        %5525 = vmatprep.subr.mxu0 0.0
        %5526 = vmatpush1.xpose.msra.mxu0 0.0
        %5527 = vmatprep.subr.mxu0 0.0
        %5528 = vmatpush1.xpose.msra.mxu0 0.0
        %5529 = vmatprep.subr.mxu0 0.0
        %5530 = vmatpush1.xpose.msra.mxu0 0.0
        %5531 = vmatprep.subr.mxu0 0.0
        %5532 = vmatpush1.xpose.msra.mxu0 0.0
        %5533 = vmatprep.subr.mxu0 0.0
        %5534 = vmatpush1.xpose.msra.mxu0 0.0
        %5535 = vmatprep.subr.mxu0 0.0
        %5536 = vmatpush1.xpose.msra.mxu0 0.0
        %5537 = vmatprep.mubr.f32.mxu0 0.0
        %5538 = vmatmul.mubr.f32.gmra.mrb[0].mxu0 %v5469
        %v5539 = vpop.f32.mrb[0].mxu0
        %v5540 = vadd.f32 0.0, %v5539
        %v5541 = vpop.f32.mrb[0].mxu0
        %5542 = vdwg.mxu0
        %v5543 = vsel %vm1106, %v5540, -inf
        %5544 = vmax.xlane.f32.xlu0 %v5543
        %v5545 = vpop.xlane.xlu0 %5544
        %v5546 = vsub.f32 %v5540, %v5545
        %v5547 = vmul.f32 %v5546, 1.442695
        %v5548 = vpow.pop %v5547
        %v5549 = vsel %vm1106, %v5548, 0.0
        %5550 = vadd.xlane.f32.xlu0 %v5549
        %v5551 = vpop.xlane.xlu0 %5550
        %v5552 = vrcp.pop %v5551
        %v5553 = vmul.f32 %v5548, %v5552
        %5554 = vrot.lane.b32.xlu0 %v4990, 112
        %v5555 = vpop.permute.xlu0 %5554
        %v5558 = vsel %vm1106, %v5553, 0
        %5560 = vmatprep.subr.mxu0 0.0
        %5561 = vmatpush1.msra.mxu0 %v5555
        %5562 = vmatprep.subr.mxu0 0.0
        %5563 = vmatpush1.msra.mxu0 0.0
        %5564 = vmatprep.subr.mxu0 0.0
        %5565 = vmatpush1.msra.mxu0 0.0
        %5566 = vmatprep.subr.mxu0 0.0
        %5567 = vmatpush1.msra.mxu0 0.0
        %5568 = vmatprep.subr.mxu0 0.0
        %5569 = vmatpush1.msra.mxu0 0.0
        %5570 = vmatprep.subr.mxu0 0.0
        %5571 = vmatpush1.msra.mxu0 0.0
        %5572 = vmatprep.subr.mxu0 0.0
        %5573 = vmatpush1.msra.mxu0 0.0
        %5574 = vmatprep.subr.mxu0 0.0
        %5575 = vmatpush1.msra.mxu0 0.0
        %5576 = vmatprep.subr.mxu0 0.0
        %5577 = vmatpush1.msra.mxu0 0.0
        %5578 = vmatprep.subr.mxu0 0.0
        %5579 = vmatpush1.msra.mxu0 0.0
        %5580 = vmatprep.subr.mxu0 0.0
        %5581 = vmatpush1.msra.mxu0 0.0
        %5582 = vmatprep.subr.mxu0 0.0
        %5583 = vmatpush1.msra.mxu0 0.0
        %5584 = vmatprep.subr.mxu0 0.0
        %5585 = vmatpush1.msra.mxu0 0.0
        %5586 = vmatprep.subr.mxu0 0.0
        %5587 = vmatpush1.msra.mxu0 0.0
        %5588 = vmatprep.subr.mxu0 0.0
        %5589 = vmatpush1.msra.mxu0 0.0
        %5590 = vmatprep.subr.mxu0 0.0
        %5591 = vmatpush1.msra.mxu0 0.0
        %5592 = vmatprep.subr.mxu0 0.0
        %5593 = vmatpush1.msra.mxu0 0.0
        %5594 = vmatprep.subr.mxu0 0.0
        %5595 = vmatpush1.msra.mxu0 0.0
        %5596 = vmatprep.subr.mxu0 0.0
        %5597 = vmatpush1.msra.mxu0 0.0
        %5598 = vmatprep.subr.mxu0 0.0
        %5599 = vmatpush1.msra.mxu0 0.0
        %5600 = vmatprep.subr.mxu0 0.0
        %5601 = vmatpush1.msra.mxu0 0.0
        %5602 = vmatprep.subr.mxu0 0.0
        %5603 = vmatpush1.msra.mxu0 0.0
        %5604 = vmatprep.subr.mxu0 0.0
        %5605 = vmatpush1.msra.mxu0 0.0
        %5606 = vmatprep.subr.mxu0 0.0
        %5607 = vmatpush1.msra.mxu0 0.0
        %5608 = vmatprep.subr.mxu0 0.0
        %5609 = vmatpush1.msra.mxu0 0.0
        %5610 = vmatprep.subr.mxu0 0.0
        %5611 = vmatpush1.msra.mxu0 0.0
        %5612 = vmatprep.subr.mxu0 0.0
        %5613 = vmatpush1.msra.mxu0 0.0
        %5614 = vmatprep.subr.mxu0 0.0
        %5615 = vmatpush1.msra.mxu0 0.0
        %5616 = vmatprep.subr.mxu0 0.0
        %5617 = vmatpush1.msra.mxu0 0.0
        %5618 = vmatprep.subr.mxu0 0.0
        %5619 = vmatpush1.msra.mxu0 0.0
        %5620 = vmatprep.subr.mxu0 0.0
        %5621 = vmatpush1.msra.mxu0 0.0
        %5622 = vmatprep.subr.mxu0 0.0
        %5623 = vmatpush1.msra.mxu0 0.0
        %5624 = vmatprep.mubr.f32.mxu0 0.0
        %5625 = vmatmul.mubr.f32.gmra.mrb[0].mxu0 %v5558
        %v5626 = vpop.f32.mrb[0].mxu0
        %v5627 = vadd.f32 0.0, %v5626
        %v5628 = vpop.f32.mrb[0].mxu0
        %5629 = vdwg.mxu0
        %v5631 = vsel %vm1106, %v5627, 0
        %5633 = vmatprep.subr.mxu0 0.0
        %5634 = vmatpush1.msra.mxu0 %v4772
        %5635 = vmatprep.subr.mxu0 0.0
        %5636 = vmatpush1.msra.mxu0 0.0
        %5637 = vmatprep.subr.mxu0 0.0
        %5638 = vmatpush1.msra.mxu0 0.0
        %5639 = vmatprep.subr.mxu0 0.0
        %5640 = vmatpush1.msra.mxu0 0.0
        %5641 = vmatprep.subr.mxu0 0.0
        %5642 = vmatpush1.msra.mxu0 0.0
        %5643 = vmatprep.subr.mxu0 0.0
        %5644 = vmatpush1.msra.mxu0 0.0
        %5645 = vmatprep.subr.mxu0 0.0
        %5646 = vmatpush1.msra.mxu0 0.0
        %5647 = vmatprep.subr.mxu0 0.0
        %5648 = vmatpush1.msra.mxu0 0.0
        %5649 = vmatprep.subr.mxu0 0.0
        %5650 = vmatpush1.msra.mxu0 0.0
        %5651 = vmatprep.subr.mxu0 0.0
        %5652 = vmatpush1.msra.mxu0 0.0
        %5653 = vmatprep.subr.mxu0 0.0
        %5654 = vmatpush1.msra.mxu0 0.0
        %5655 = vmatprep.subr.mxu0 0.0
        %5656 = vmatpush1.msra.mxu0 0.0
        %5657 = vmatprep.subr.mxu0 0.0
        %5658 = vmatpush1.msra.mxu0 0.0
        %5659 = vmatprep.subr.mxu0 0.0
        %5660 = vmatpush1.msra.mxu0 0.0
        %5661 = vmatprep.subr.mxu0 0.0
        %5662 = vmatpush1.msra.mxu0 0.0
        %5663 = vmatprep.subr.mxu0 0.0
        %5664 = vmatpush1.msra.mxu0 0.0
        %5665 = vmatprep.subr.mxu0 0.0
        %5666 = vmatpush1.msra.mxu0 0.0
        %5667 = vmatprep.subr.mxu0 0.0
        %5668 = vmatpush1.msra.mxu0 0.0
        %5669 = vmatprep.subr.mxu0 0.0
        %5670 = vmatpush1.msra.mxu0 0.0
        %5671 = vmatprep.subr.mxu0 0.0
        %5672 = vmatpush1.msra.mxu0 0.0
        %5673 = vmatprep.subr.mxu0 0.0
        %5674 = vmatpush1.msra.mxu0 0.0
        %5675 = vmatprep.subr.mxu0 0.0
        %5676 = vmatpush1.msra.mxu0 0.0
        %5677 = vmatprep.subr.mxu0 0.0
        %5678 = vmatpush1.msra.mxu0 0.0
        %5679 = vmatprep.subr.mxu0 0.0
        %5680 = vmatpush1.msra.mxu0 0.0
        %5681 = vmatprep.subr.mxu0 0.0
        %5682 = vmatpush1.msra.mxu0 0.0
        %5683 = vmatprep.subr.mxu0 0.0
        %5684 = vmatpush1.msra.mxu0 0.0
        %5685 = vmatprep.subr.mxu0 0.0
        %5686 = vmatpush1.msra.mxu0 0.0
        %5687 = vmatprep.subr.mxu0 0.0
        %5688 = vmatpush1.msra.mxu0 0.0
        %5689 = vmatprep.subr.mxu0 0.0
        %5690 = vmatpush1.msra.mxu0 0.0
        %5691 = vmatprep.subr.mxu0 0.0
        %5692 = vmatpush1.msra.mxu0 0.0
        %5693 = vmatprep.subr.mxu0 0.0
        %5694 = vmatpush1.msra.mxu0 0.0
        %5695 = vmatprep.subr.mxu0 0.0
        %5696 = vmatpush1.msra.mxu0 0.0
        %5697 = vmatprep.mubr.f32.mxu0 0.0
        %5698 = vmatmul.mubr.f32.gmra.mrb[0].mxu0 %v5631
        %v5699 = vpop.f32.mrb[0].mxu0
        %v5700 = vadd.f32 0.0, %v5699
        %v5701 = vpop.f32.mrb[0].mxu0
        %5702 = vdwg.mxu0
        %v5703 = vadd.f32 %v5462, %v5700
        %5704 = vrot.lane.b32.xlu0 %v4849, 104
        %v5705 = vpop.permute.xlu0 %5704
        %5706 = vrot.lane.b32.xlu0 %v4917, 104
        %v5707 = vpop.permute.xlu0 %5706
        %v5708 = vsel %vm1106, %v5705, 0
        %v5710 = vsel %vm1106, %v5707, 0
        %5712 = vmatprep.subr.mxu0 0.0
        %5713 = vmatpush1.xpose.msra.mxu0 %v5710
        %5714 = vmatprep.subr.mxu0 0.0
        %5715 = vmatpush1.xpose.msra.mxu0 0.0
        %5716 = vmatprep.subr.mxu0 0.0
        %5717 = vmatpush1.xpose.msra.mxu0 0.0
        %5718 = vmatprep.subr.mxu0 0.0
        %5719 = vmatpush1.xpose.msra.mxu0 0.0
        %5720 = vmatprep.subr.mxu0 0.0
        %5721 = vmatpush1.xpose.msra.mxu0 0.0
        %5722 = vmatprep.subr.mxu0 0.0
        %5723 = vmatpush1.xpose.msra.mxu0 0.0
        %5724 = vmatprep.subr.mxu0 0.0
        %5725 = vmatpush1.xpose.msra.mxu0 0.0
        %5726 = vmatprep.subr.mxu0 0.0
        %5727 = vmatpush1.xpose.msra.mxu0 0.0
        %5728 = vmatprep.subr.mxu0 0.0
        %5729 = vmatpush1.xpose.msra.mxu0 0.0
        %5730 = vmatprep.subr.mxu0 0.0
        %5731 = vmatpush1.xpose.msra.mxu0 0.0
        %5732 = vmatprep.subr.mxu0 0.0
        %5733 = vmatpush1.xpose.msra.mxu0 0.0
        %5734 = vmatprep.subr.mxu0 0.0
        %5735 = vmatpush1.xpose.msra.mxu0 0.0
        %5736 = vmatprep.subr.mxu0 0.0
        %5737 = vmatpush1.xpose.msra.mxu0 0.0
        %5738 = vmatprep.subr.mxu0 0.0
        %5739 = vmatpush1.xpose.msra.mxu0 0.0
        %5740 = vmatprep.subr.mxu0 0.0
        %5741 = vmatpush1.xpose.msra.mxu0 0.0
        %5742 = vmatprep.subr.mxu0 0.0
        %5743 = vmatpush1.xpose.msra.mxu0 0.0
        %5744 = vmatprep.subr.mxu0 0.0
        %5745 = vmatpush1.xpose.msra.mxu0 0.0
        %5746 = vmatprep.subr.mxu0 0.0
        %5747 = vmatpush1.xpose.msra.mxu0 0.0
        %5748 = vmatprep.subr.mxu0 0.0
        %5749 = vmatpush1.xpose.msra.mxu0 0.0
        %5750 = vmatprep.subr.mxu0 0.0
        %5751 = vmatpush1.xpose.msra.mxu0 0.0
        %5752 = vmatprep.subr.mxu0 0.0
        %5753 = vmatpush1.xpose.msra.mxu0 0.0
        %5754 = vmatprep.subr.mxu0 0.0
        %5755 = vmatpush1.xpose.msra.mxu0 0.0
        %5756 = vmatprep.subr.mxu0 0.0
        %5757 = vmatpush1.xpose.msra.mxu0 0.0
        %5758 = vmatprep.subr.mxu0 0.0
        %5759 = vmatpush1.xpose.msra.mxu0 0.0
        %5760 = vmatprep.subr.mxu0 0.0
        %5761 = vmatpush1.xpose.msra.mxu0 0.0
        %5762 = vmatprep.subr.mxu0 0.0
        %5763 = vmatpush1.xpose.msra.mxu0 0.0
        %5764 = vmatprep.subr.mxu0 0.0
        %5765 = vmatpush1.xpose.msra.mxu0 0.0
        %5766 = vmatprep.subr.mxu0 0.0
        %5767 = vmatpush1.xpose.msra.mxu0 0.0
        %5768 = vmatprep.subr.mxu0 0.0
        %5769 = vmatpush1.xpose.msra.mxu0 0.0
        %5770 = vmatprep.subr.mxu0 0.0
        %5771 = vmatpush1.xpose.msra.mxu0 0.0
        %5772 = vmatprep.subr.mxu0 0.0
        %5773 = vmatpush1.xpose.msra.mxu0 0.0
        %5774 = vmatprep.subr.mxu0 0.0
        %5775 = vmatpush1.xpose.msra.mxu0 0.0
        %5776 = vmatprep.mubr.f32.mxu0 0.0
        %5777 = vmatmul.mubr.f32.gmra.mrb[0].mxu0 %v5708
        %v5778 = vpop.f32.mrb[0].mxu0
        %v5779 = vadd.f32 0.0, %v5778
        %v5780 = vpop.f32.mrb[0].mxu0
        %5781 = vdwg.mxu0
        %v5782 = vsel %vm1106, %v5779, -inf
        %5783 = vmax.xlane.f32.xlu0 %v5782
        %v5784 = vpop.xlane.xlu0 %5783
        %v5785 = vsub.f32 %v5779, %v5784
        %v5786 = vmul.f32 %v5785, 1.442695
        %v5787 = vpow.pop %v5786
        %v5788 = vsel %vm1106, %v5787, 0.0
        %5789 = vadd.xlane.f32.xlu0 %v5788
        %v5790 = vpop.xlane.xlu0 %5789
        %v5791 = vrcp.pop %v5790
        %v5792 = vmul.f32 %v5787, %v5791
        %5793 = vrot.lane.b32.xlu0 %v4990, 104
        %v5794 = vpop.permute.xlu0 %5793
        %v5797 = vsel %vm1106, %v5792, 0
        %5799 = vmatprep.subr.mxu0 0.0
        %5800 = vmatpush1.msra.mxu0 %v5794
        %5801 = vmatprep.subr.mxu0 0.0
        %5802 = vmatpush1.msra.mxu0 0.0
        %5803 = vmatprep.subr.mxu0 0.0
        %5804 = vmatpush1.msra.mxu0 0.0
        %5805 = vmatprep.subr.mxu0 0.0
        %5806 = vmatpush1.msra.mxu0 0.0
        %5807 = vmatprep.subr.mxu0 0.0
        %5808 = vmatpush1.msra.mxu0 0.0
        %5809 = vmatprep.subr.mxu0 0.0
        %5810 = vmatpush1.msra.mxu0 0.0
        %5811 = vmatprep.subr.mxu0 0.0
        %5812 = vmatpush1.msra.mxu0 0.0
        %5813 = vmatprep.subr.mxu0 0.0
        %5814 = vmatpush1.msra.mxu0 0.0
        %5815 = vmatprep.subr.mxu0 0.0
        %5816 = vmatpush1.msra.mxu0 0.0
        %5817 = vmatprep.subr.mxu0 0.0
        %5818 = vmatpush1.msra.mxu0 0.0
        %5819 = vmatprep.subr.mxu0 0.0
        %5820 = vmatpush1.msra.mxu0 0.0
        %5821 = vmatprep.subr.mxu0 0.0
        %5822 = vmatpush1.msra.mxu0 0.0
        %5823 = vmatprep.subr.mxu0 0.0
        %5824 = vmatpush1.msra.mxu0 0.0
        %5825 = vmatprep.subr.mxu0 0.0
        %5826 = vmatpush1.msra.mxu0 0.0
        %5827 = vmatprep.subr.mxu0 0.0
        %5828 = vmatpush1.msra.mxu0 0.0
        %5829 = vmatprep.subr.mxu0 0.0
        %5830 = vmatpush1.msra.mxu0 0.0
        %5831 = vmatprep.subr.mxu0 0.0
        %5832 = vmatpush1.msra.mxu0 0.0
        %5833 = vmatprep.subr.mxu0 0.0
        %5834 = vmatpush1.msra.mxu0 0.0
        %5835 = vmatprep.subr.mxu0 0.0
        %5836 = vmatpush1.msra.mxu0 0.0
        %5837 = vmatprep.subr.mxu0 0.0
        %5838 = vmatpush1.msra.mxu0 0.0
        %5839 = vmatprep.subr.mxu0 0.0
        %5840 = vmatpush1.msra.mxu0 0.0
        %5841 = vmatprep.subr.mxu0 0.0
        %5842 = vmatpush1.msra.mxu0 0.0
        %5843 = vmatprep.subr.mxu0 0.0
        %5844 = vmatpush1.msra.mxu0 0.0
        %5845 = vmatprep.subr.mxu0 0.0
        %5846 = vmatpush1.msra.mxu0 0.0
        %5847 = vmatprep.subr.mxu0 0.0
        %5848 = vmatpush1.msra.mxu0 0.0
        %5849 = vmatprep.subr.mxu0 0.0
        %5850 = vmatpush1.msra.mxu0 0.0
        %5851 = vmatprep.subr.mxu0 0.0
        %5852 = vmatpush1.msra.mxu0 0.0
        %5853 = vmatprep.subr.mxu0 0.0
        %5854 = vmatpush1.msra.mxu0 0.0
        %5855 = vmatprep.subr.mxu0 0.0
        %5856 = vmatpush1.msra.mxu0 0.0
        %5857 = vmatprep.subr.mxu0 0.0
        %5858 = vmatpush1.msra.mxu0 0.0
        %5859 = vmatprep.subr.mxu0 0.0
        %5860 = vmatpush1.msra.mxu0 0.0
        %5861 = vmatprep.subr.mxu0 0.0
        %5862 = vmatpush1.msra.mxu0 0.0
        %5863 = vmatprep.mubr.f32.mxu0 0.0
        %5864 = vmatmul.mubr.f32.gmra.mrb[0].mxu0 %v5797
        %v5865 = vpop.f32.mrb[0].mxu0
        %v5866 = vadd.f32 0.0, %v5865
        %v5867 = vpop.f32.mrb[0].mxu0
        %5868 = vdwg.mxu0
        %v5870 = vsel %vm1106, %v5866, 0
        %5872 = vmatprep.subr.mxu0 0.0
        %5873 = vmatpush1.msra.mxu0 %v4773
        %5874 = vmatprep.subr.mxu0 0.0
        %5875 = vmatpush1.msra.mxu0 0.0
        %5876 = vmatprep.subr.mxu0 0.0
        %5877 = vmatpush1.msra.mxu0 0.0
        %5878 = vmatprep.subr.mxu0 0.0
        %5879 = vmatpush1.msra.mxu0 0.0
        %5880 = vmatprep.subr.mxu0 0.0
        %5881 = vmatpush1.msra.mxu0 0.0
        %5882 = vmatprep.subr.mxu0 0.0
        %5883 = vmatpush1.msra.mxu0 0.0
        %5884 = vmatprep.subr.mxu0 0.0
        %5885 = vmatpush1.msra.mxu0 0.0
        %5886 = vmatprep.subr.mxu0 0.0
        %5887 = vmatpush1.msra.mxu0 0.0
        %5888 = vmatprep.subr.mxu0 0.0
        %5889 = vmatpush1.msra.mxu0 0.0
        %5890 = vmatprep.subr.mxu0 0.0
        %5891 = vmatpush1.msra.mxu0 0.0
        %5892 = vmatprep.subr.mxu0 0.0
        %5893 = vmatpush1.msra.mxu0 0.0
        %5894 = vmatprep.subr.mxu0 0.0
        %5895 = vmatpush1.msra.mxu0 0.0
        %5896 = vmatprep.subr.mxu0 0.0
        %5897 = vmatpush1.msra.mxu0 0.0
        %5898 = vmatprep.subr.mxu0 0.0
        %5899 = vmatpush1.msra.mxu0 0.0
        %5900 = vmatprep.subr.mxu0 0.0
        %5901 = vmatpush1.msra.mxu0 0.0
        %5902 = vmatprep.subr.mxu0 0.0
        %5903 = vmatpush1.msra.mxu0 0.0
        %5904 = vmatprep.subr.mxu0 0.0
        %5905 = vmatpush1.msra.mxu0 0.0
        %5906 = vmatprep.subr.mxu0 0.0
        %5907 = vmatpush1.msra.mxu0 0.0
        %5908 = vmatprep.subr.mxu0 0.0
        %5909 = vmatpush1.msra.mxu0 0.0
        %5910 = vmatprep.subr.mxu0 0.0
        %5911 = vmatpush1.msra.mxu0 0.0
        %5912 = vmatprep.subr.mxu0 0.0
        %5913 = vmatpush1.msra.mxu0 0.0
        %5914 = vmatprep.subr.mxu0 0.0
        %5915 = vmatpush1.msra.mxu0 0.0
        %5916 = vmatprep.subr.mxu0 0.0
        %5917 = vmatpush1.msra.mxu0 0.0
        %5918 = vmatprep.subr.mxu0 0.0
        %5919 = vmatpush1.msra.mxu0 0.0
        %5920 = vmatprep.subr.mxu0 0.0
        %5921 = vmatpush1.msra.mxu0 0.0
        %5922 = vmatprep.subr.mxu0 0.0
        %5923 = vmatpush1.msra.mxu0 0.0
        %5924 = vmatprep.subr.mxu0 0.0
        %5925 = vmatpush1.msra.mxu0 0.0
        %5926 = vmatprep.subr.mxu0 0.0
        %5927 = vmatpush1.msra.mxu0 0.0
        %5928 = vmatprep.subr.mxu0 0.0
        %5929 = vmatpush1.msra.mxu0 0.0
        %5930 = vmatprep.subr.mxu0 0.0
        %5931 = vmatpush1.msra.mxu0 0.0
        %5932 = vmatprep.subr.mxu0 0.0
        %5933 = vmatpush1.msra.mxu0 0.0
        %5934 = vmatprep.subr.mxu0 0.0
        %5935 = vmatpush1.msra.mxu0 0.0
        %5936 = vmatprep.mubr.f32.mxu0 0.0
        %5937 = vmatmul.mubr.f32.gmra.mrb[0].mxu0 %v5870
        %v5938 = vpop.f32.mrb[0].mxu0
        %v5939 = vadd.f32 0.0, %v5938
        %v5940 = vpop.f32.mrb[0].mxu0
        %5941 = vdwg.mxu0
        %v5942 = vadd.f32 %v5703, %v5939
        %v5944 = vlaneseq
        %v5945 = vshrl.u32 %v5944, 7
        %v5946 = vsub.s32 0, %v5945
        %v5947 = vrot.slane %v4775, %v5946
        %v5949 = vadd.f32 %v5942, %v5947
        %v5950 = vadd.f32 %v5949, %v4753
        %s5951 = scalar_lea.vmem %s16, 1
        %v5952 = vld [vmem:[%s5951] sm:$0x1]
        %s5953 = scalar_lea.vmem %s17, 1
        %v5954 = vld [vmem:[%s5953] sm:$0x1]
        %v5955 = vsel %vm891, %v5950, 0.0
        %5956 = vadd.xlane.f32.xlu0 %v5955
        %v5957 = vpop.xlane.xlu0 %5956
        %v5958 = vmul.f32 %v5957, %v2074
        %v5959 = vsub.f32 %v5950, %v5958
        %v5960 = vmul.f32 %v5959, %v5959
        %v5961 = vsel %vm891, %v5960, 0.0
        %5962 = vadd.xlane.f32.xlu0 %v5961
        %v5963 = vpop.xlane.xlu0 %5962
        %v5964 = vmul.f32 %v5963, %v2074
        %v5965 = vadd.f32 %v5964, 1e-05
        %v5966 = vrsqrt.pop %v5965
        %v5967 = vmul.f32 %v5959, %v5966
        %v5969 = vlaneseq
        %v5970 = vshrl.u32 %v5969, 7
        %v5971 = vsub.s32 0, %v5970
        %v5972 = vrot.slane %v5952, %v5971
        %v5974 = vmul.f32 %v5967, %v5972
        %v5976 = vlaneseq
        %v5977 = vshrl.u32 %v5976, 7
        %v5978 = vsub.s32 0, %v5977
        %v5979 = vrot.slane %v5954, %v5978
        %v5981 = vadd.f32 %v5974, %v5979
        %s5982 = scalar_lea.vmem %s20, 32
        %v5983 = vld [vmem:[%s5982] sm:$0xff]
        %v5984 = vld [vmem:[%s5982 + $0x8] sm:$0xff]
        %v5985 = vld [vmem:[%s5982 + $0x10] sm:$0xff]
        %v5986 = vld [vmem:[%s5982 + $0x18] sm:$0xff]
        %s5987 = scalar_lea.vmem %s21, 1
        %v5988 = vld [vmem:[%s5987] sm:$0x1]
        %v5990 = vlaneseq
        %v5991 = vshrl.u32 %v5990, 7
        %v5992 = vsub.s32 0, %v5991
        %v5993 = vrot.slane %v5988, %v5992
        %v5996 = vsel %vm891, %v5981, 0
        %5998 = vmatprep.subr.mxu0 0.0
        %5999 = vmatpush1.msra.mxu0 %v5983
        %6000 = vmatprep.subr.mxu0 0.0
        %6001 = vmatpush1.msra.mxu0 %v5984
        %6002 = vmatprep.subr.mxu0 0.0
        %6003 = vmatpush1.msra.mxu0 %v5985
        %6004 = vmatprep.subr.mxu0 0.0
        %6005 = vmatpush1.msra.mxu0 %v5986
        %6006 = vmatprep.subr.mxu0 0.0
        %6007 = vmatpush1.msra.mxu0 0.0
        %6008 = vmatprep.subr.mxu0 0.0
        %6009 = vmatpush1.msra.mxu0 0.0
        %6010 = vmatprep.subr.mxu0 0.0
        %6011 = vmatpush1.msra.mxu0 0.0
        %6012 = vmatprep.subr.mxu0 0.0
        %6013 = vmatpush1.msra.mxu0 0.0
        %6014 = vmatprep.subr.mxu0 0.0
        %6015 = vmatpush1.msra.mxu0 0.0
        %6016 = vmatprep.subr.mxu0 0.0
        %6017 = vmatpush1.msra.mxu0 0.0
        %6018 = vmatprep.subr.mxu0 0.0
        %6019 = vmatpush1.msra.mxu0 0.0
        %6020 = vmatprep.subr.mxu0 0.0
        %6021 = vmatpush1.msra.mxu0 0.0
        %6022 = vmatprep.subr.mxu0 0.0
        %6023 = vmatpush1.msra.mxu0 0.0
        %6024 = vmatprep.subr.mxu0 0.0
        %6025 = vmatpush1.msra.mxu0 0.0
        %6026 = vmatprep.subr.mxu0 0.0
        %6027 = vmatpush1.msra.mxu0 0.0
        %6028 = vmatprep.subr.mxu0 0.0
        %6029 = vmatpush1.msra.mxu0 0.0
        %6030 = vmatprep.subr.mxu0 0.0
        %6031 = vmatpush1.msra.mxu0 0.0
        %6032 = vmatprep.subr.mxu0 0.0
        %6033 = vmatpush1.msra.mxu0 0.0
        %6034 = vmatprep.subr.mxu0 0.0
        %6035 = vmatpush1.msra.mxu0 0.0
        %6036 = vmatprep.subr.mxu0 0.0
        %6037 = vmatpush1.msra.mxu0 0.0
        %6038 = vmatprep.subr.mxu0 0.0
        %6039 = vmatpush1.msra.mxu0 0.0
        %6040 = vmatprep.subr.mxu0 0.0
        %6041 = vmatpush1.msra.mxu0 0.0
        %6042 = vmatprep.subr.mxu0 0.0
        %6043 = vmatpush1.msra.mxu0 0.0
        %6044 = vmatprep.subr.mxu0 0.0
        %6045 = vmatpush1.msra.mxu0 0.0
        %6046 = vmatprep.subr.mxu0 0.0
        %6047 = vmatpush1.msra.mxu0 0.0
        %6048 = vmatprep.subr.mxu0 0.0
        %6049 = vmatpush1.msra.mxu0 0.0
        %6050 = vmatprep.subr.mxu0 0.0
        %6051 = vmatpush1.msra.mxu0 0.0
        %6052 = vmatprep.subr.mxu0 0.0
        %6053 = vmatpush1.msra.mxu0 0.0
        %6054 = vmatprep.subr.mxu0 0.0
        %6055 = vmatpush1.msra.mxu0 0.0
        %6056 = vmatprep.subr.mxu0 0.0
        %6057 = vmatpush1.msra.mxu0 0.0
        %6058 = vmatprep.subr.mxu0 0.0
        %6059 = vmatpush1.msra.mxu0 0.0
        %6060 = vmatprep.subr.mxu0 0.0
        %6061 = vmatpush1.msra.mxu0 0.0
        %6062 = vmatprep.mubr.f32.mxu0 0.0
        %6063 = vmatmul.mubr.f32.gmra.mrb[0].mxu0 %v5996
        %v6064 = vpop.f32.mrb[0].mxu0
        %v6065 = vadd.f32 %v5993, %v6064
        %v6066 = vpop.f32.mrb[0].mxu0
        %6067 = vdwg.mxu0
        %v6068 = vmax.f32 %v6065, 0.0
        %s6069 = scalar_lea.vmem [#allocation14], 128
        %v6070 = vld [vmem:[%s6069] sm:$0xff]
        %v6071 = vld [vmem:[%s6069 + $0x8] sm:$0xff]
        %v6072 = vld [vmem:[%s6069 + $0x10] sm:$0xff]
        %v6073 = vld [vmem:[%s6069 + $0x18] sm:$0xff]
        %v6074 = vld [vmem:[%s6069 + $0x20] sm:$0xff]
        %v6075 = vld [vmem:[%s6069 + $0x28] sm:$0xff]
        %v6076 = vld [vmem:[%s6069 + $0x30] sm:$0xff]
        %v6077 = vld [vmem:[%s6069 + $0x38] sm:$0xff]
        %v6078 = vld [vmem:[%s6069 + $0x40] sm:$0xff]
        %v6079 = vld [vmem:[%s6069 + $0x48] sm:$0xff]
        %v6080 = vld [vmem:[%s6069 + $0x50] sm:$0xff]
        %v6081 = vld [vmem:[%s6069 + $0x58] sm:$0xff]
        %v6082 = vld [vmem:[%s6069 + $0x60] sm:$0xff]
        %v6083 = vld [vmem:[%s6069 + $0x68] sm:$0xff]
        %v6084 = vld [vmem:[%s6069 + $0x70] sm:$0xff]
        %v6085 = vld [vmem:[%s6069 + $0x78] sm:$0xff]
        %s6086 = scalar_lea.vmem %s23, 1
        %v6087 = vld [vmem:[%s6086] sm:$0x1]
        %v6089 = vlaneseq
        %v6090 = vshrl.u32 %v6089, 7
        %v6091 = vsub.s32 0, %v6090
        %v6092 = vrot.slane %v6087, %v6091
        %6094 = vmatprep.subr.mxu0 0.0
        %6095 = vmatpush1.msra.mxu0 %v6070
        %6096 = vmatprep.subr.mxu0 0.0
        %6097 = vmatpush1.msra.mxu0 %v6071
        %6098 = vmatprep.subr.mxu0 0.0
        %6099 = vmatpush1.msra.mxu0 %v6072
        %6100 = vmatprep.subr.mxu0 0.0
        %6101 = vmatpush1.msra.mxu0 %v6073
        %6102 = vmatprep.subr.mxu0 0.0
        %6103 = vmatpush1.msra.mxu0 %v6074
        %6104 = vmatprep.subr.mxu0 0.0
        %6105 = vmatpush1.msra.mxu0 %v6075
        %6106 = vmatprep.subr.mxu0 0.0
        %6107 = vmatpush1.msra.mxu0 %v6076
        %6108 = vmatprep.subr.mxu0 0.0
        %6109 = vmatpush1.msra.mxu0 %v6077
        %6110 = vmatprep.subr.mxu0 0.0
        %6111 = vmatpush1.msra.mxu0 %v6078
        %6112 = vmatprep.subr.mxu0 0.0
        %6113 = vmatpush1.msra.mxu0 %v6079
        %6114 = vmatprep.subr.mxu0 0.0
        %6115 = vmatpush1.msra.mxu0 %v6080
        %6116 = vmatprep.subr.mxu0 0.0
        %6117 = vmatpush1.msra.mxu0 %v6081
        %6118 = vmatprep.subr.mxu0 0.0
        %6119 = vmatpush1.msra.mxu0 %v6082
        %6120 = vmatprep.subr.mxu0 0.0
        %6121 = vmatpush1.msra.mxu0 %v6083
        %6122 = vmatprep.subr.mxu0 0.0
        %6123 = vmatpush1.msra.mxu0 %v6084
        %6124 = vmatprep.subr.mxu0 0.0
        %6125 = vmatpush1.msra.mxu0 %v6085
        %6126 = vmatprep.subr.mxu0 0.0
        %6127 = vmatpush1.msra.mxu0 0.0
        %6128 = vmatprep.subr.mxu0 0.0
        %6129 = vmatpush1.msra.mxu0 0.0
        %6130 = vmatprep.subr.mxu0 0.0
        %6131 = vmatpush1.msra.mxu0 0.0
        %6132 = vmatprep.subr.mxu0 0.0
        %6133 = vmatpush1.msra.mxu0 0.0
        %6134 = vmatprep.subr.mxu0 0.0
        %6135 = vmatpush1.msra.mxu0 0.0
        %6136 = vmatprep.subr.mxu0 0.0
        %6137 = vmatpush1.msra.mxu0 0.0
        %6138 = vmatprep.subr.mxu0 0.0
        %6139 = vmatpush1.msra.mxu0 0.0
        %6140 = vmatprep.subr.mxu0 0.0
        %6141 = vmatpush1.msra.mxu0 0.0
        %6142 = vmatprep.subr.mxu0 0.0
        %6143 = vmatpush1.msra.mxu0 0.0
        %6144 = vmatprep.subr.mxu0 0.0
        %6145 = vmatpush1.msra.mxu0 0.0
        %6146 = vmatprep.subr.mxu0 0.0
        %6147 = vmatpush1.msra.mxu0 0.0
        %6148 = vmatprep.subr.mxu0 0.0
        %6149 = vmatpush1.msra.mxu0 0.0
        %6150 = vmatprep.subr.mxu0 0.0
        %6151 = vmatpush1.msra.mxu0 0.0
        %6152 = vmatprep.subr.mxu0 0.0
        %6153 = vmatpush1.msra.mxu0 0.0
        %6154 = vmatprep.subr.mxu0 0.0
        %6155 = vmatpush1.msra.mxu0 0.0
        %6156 = vmatprep.subr.mxu0 0.0
        %6157 = vmatpush1.msra.mxu0 0.0
        %6158 = vmatprep.mubr.f32.mxu0 0.0
        %6159 = vmatmul.mubr.f32.gmra.mrb[0].mxu0 %v6068
        %v6160 = vpop.f32.mrb[0].mxu0
        %v6161 = vadd.f32 %v6092, %v6160
        %v6162 = vpop.f32.mrb[0].mxu0
        %6163 = vdwg.mxu0
        %v6164 = vadd.f32 %v6161, %v5981
        %s6165 = scalar_lea.vmem %s18, 1
        %v6166 = vld [vmem:[%s6165] sm:$0x1]
        %s6167 = scalar_lea.vmem %s19, 1
        %v6168 = vld [vmem:[%s6167] sm:$0x1]
        %v6169 = vsel %vm891, %v6164, 0.0
        %6170 = vadd.xlane.f32.xlu0 %v6169
        %v6171 = vpop.xlane.xlu0 %6170
        %v6172 = vmul.f32 %v6171, %v2074
        %v6173 = vsub.f32 %v6164, %v6172
        %v6174 = vmul.f32 %v6173, %v6173
        %v6175 = vsel %vm891, %v6174, 0.0
        %6176 = vadd.xlane.f32.xlu0 %v6175
        %v6177 = vpop.xlane.xlu0 %6176
        %v6178 = vmul.f32 %v6177, %v2074
        %v6179 = vadd.f32 %v6178, 1e-05
        %v6180 = vrsqrt.pop %v6179
        %v6181 = vmul.f32 %v6173, %v6180
        %v6183 = vlaneseq
        %v6184 = vshrl.u32 %v6183, 7
        %v6185 = vsub.s32 0, %v6184
        %v6186 = vrot.slane %v6166, %v6185
        %v6188 = vmul.f32 %v6181, %v6186
        %v6190 = vlaneseq
        %v6191 = vshrl.u32 %v6190, 7
        %v6192 = vsub.s32 0, %v6191
        %v6193 = vrot.slane %v6168, %v6192
        %v6195 = vadd.f32 %v6188, %v6193
        %6196 = vst.msk [vmem:[%s858] sm:$0xff] %vm891, %v6195
        %s6197 = sand.u32 %s565, 1
        %s6198 = scalar_lea.sflag [#allocation4], %s6197
        %s6199 = sand.u32 %s565, 1
        %s6200 = smul.addr %s6199, 8
        %s6201 = scalar_lea.vmem [#allocation16], %s6200
        // Predicated region
        $region149: #{_lambda_.1} parent=115 // pred_check
          %p6202 = pneg %p575
        $region150: #{_lambda_.1} parent=115 // pred_check_branch
          %6204 = sbr.rel (%p6202) target = $region152
        $region151: #{_lambda_.1} parent=115 // pred_region
          %s6206 = ssub.s32 128, 128
          %6207 = vsyncadd %s6198, %s6206
          %s6208 = smul.addr %s43, 128
          %s6209 = scalar_lea.hbm %s24, %s6208
          %s6211 = sshll.u32 %s6201, 4
          %s6212 = int_to_ptr.vmem [resolvable:$true] %s6211
          %6214 = dma.vmem_to_hbm [thread:$0]  %s6212, 128, %s6209, %s6198
        $region152: #{_lambda_.1} parent=115 // pred_fallthru
          _
      $region116: #{_lambda_.1} parent=5 // pred_fallthru
        _
      %p6215 = scmp.le.s32.totalorder 2, %s38
      // Predicated region
      $region153: #{_lambda_.1} parent=5 // pred_check
        %p6216 = pneg %p6215
      $region154: #{_lambda_.1} parent=5 // pred_check_branch
        %6218 = sbr.rel (%p6216) target = $region156
      $region155: #{_lambda_.1} parent=5 // pred_region
        %s6219 = ssub.s32 %s38, 2
        // Predicated region
        $region157: #{_lambda_.1} parent=155 // pred_check
          %p6220 = pneg %p581
        $region158: #{_lambda_.1} parent=155 // pred_check_branch
          %6222 = sbr.rel (%p6220) target = $region160
        $region159: #{_lambda_.1} parent=155 // pred_region
          %s6223 = sand.u32 %s566, 1
          %s6224 = scalar_lea.sflag [#allocation4], %s6223
          %s6225 = sand.u32 %s566, 1
          %s6226 = smul.addr %s6225, 8
          %s6227 = scalar_lea.vmem [#allocation16], %s6226
          %6228 = dma.done %s6224, 128
        $region160: #{_lambda_.1} parent=155 // pred_fallthru
          _
      $region156: #{_lambda_.1} parent=5 // pred_fallthru
        _
    $region6: #{_lambda_.1} parent=1 // loop_footer
      %s42 = sadd.s32 1, %s38
    $region7: #{_lambda_.1} parent=1 // loop_footer_branch
      %37 = sbr.rel target = $region3
    $region8: #{_lambda_.1} parent=1 // loop_exit
      _
    %6229 = vsyncpa [#allocation3], 1
    %s6230 = scalar_lea.sflag [#allocation3], 1
    %6231 = vsyncpa %s6230, 1
    %6232 = vsyncpa [#allocation6], 1
    %6233 = vsyncpa [#allocation9], 1
    %6234 = vsyncpa [#allocation12], 1
    %6235 = vsyncpa [#allocation15], 1
    %6236 = vsyncpa [#allocation4], 1
    %s6237 = scalar_lea.sflag [#allocation4], 1
    %6238 = vsyncpa %s6237, 1

</llo_original>
